<compile_context>
chip_gen: v5e
topology: v5e:2x2
jax: 0.10.0
libtpu: 0.0.40
codegen_flags: <defaults>
</compile_context>

<pallas_src>
import jax
import jax.numpy as jnp
from jax import lax
from jax.experimental import pallas as pl
from jax.experimental.pallas import tpu as pltpu


def _round_up(a, m):
    return ((a + m - 1) // m) * m


def net_kernel(im2_ref, r1_ref, b1_ref, r2_ref, b2_ref,
               g1_ref, bf1_ref, wf2_ref, bf2_ref, o_ref):
    f32 = jnp.float32
    bf16 = jnp.bfloat16
    TB = im2_ref.shape[1]

    # ---- conv1 (1->20, 5x5) + relu + 2x2 maxpool == ONE (24*TB,140)x(140,512) matmul ----
    # lhs rows = (y, b); K = kh*28 + w_in; N = dx*256 + px*20 + ch (lanes 240..255 of each
    # 256-lane half are zero-padded, so they stay 0 through bias/relu/pool).
    lhs1 = im2_ref[...].reshape(24 * TB, 140)
    z1 = jnp.dot(lhs1, r1_ref[...], preferred_element_type=f32)           # (24*TB, 512)
    z1 = jnp.maximum(z1 + b1_ref[...], 0.0)
    z1 = z1.reshape(12, 2, TB, 512)                                       # rows -> (py, dy, b)
    z1 = jnp.maximum(z1[:, 0], z1[:, 1])                                  # pool over dy
    pool1 = jnp.maximum(z1[..., :256], z1[..., 256:]).astype(bf16)        # pool over dx -> (12,TB,256)

    # ---- conv2 (20->50, 5x5) + relu + 2x2 maxpool == ONE (8*TB,1280)x(1280,512) matmul ----
    # im2col: concat of 5 vreg-aligned 256-lane slabs; K = kh*256 + (px*20+ch);
    # N = dX*256 + PX*50 + c2 (padded K rows / N lanes are zero in r2).
    lhs2 = jnp.concatenate([pool1[kh:kh + 8] for kh in range(5)], axis=-1)  # (8, TB, 1280)
    lhs2 = lhs2.reshape(8 * TB, 1280)
    z2 = jnp.dot(lhs2, r2_ref[...], preferred_element_type=f32)           # (8*TB, 512)
    z2 = jnp.maximum(z2 + b2_ref[...], 0.0)
    z2 = z2.reshape(4, 2, TB, 512)                                        # rows -> (PY, dy, b)
    z2 = jnp.maximum(z2[:, 0], z2[:, 1])
    pool2 = jnp.maximum(z2[..., :256], z2[..., 256:]).astype(bf16)        # (4, TB, 256)

    # ---- fc1 (800 -> 500, padded to 512) + relu == ONE (TB,1024)x(1024,512) matmul ----
    lhs3 = jnp.concatenate([pool2[py] for py in range(4)], axis=-1)       # (TB, 1024), aligned concat
    h1 = jnp.dot(lhs3, g1_ref[...], preferred_element_type=f32)
    h1 = jnp.maximum(h1 + bf1_ref[...], 0.0).astype(bf16)                 # (TB, 512)

    # ---- fc2 (500 -> 10, padded to 128 lanes) + softmax(dim=1) ----
    # Pad lanes carry a -1e30 bias -> exp underflows to 0, so they don't change the softmax.
    logits = jnp.dot(h1, wf2_ref[...], preferred_element_type=f32) + bf2_ref[...]   # (TB, 128)
    m = jnp.max(logits, axis=-1, keepdims=True)
    e = jnp.exp(logits - m)
    s = jnp.sum(e, axis=-1, keepdims=True)
    o_ref[...] = e * pl.reciprocal(s, approx=True)


def net_forward(x, params, tb=128):
    conv1_w, conv1_b, conv2_w, conv2_b, fc1_w, fc1_b, fc2_w, fc2_b = params
    f32, bf16 = jnp.float32, jnp.bfloat16
    B = x.shape[0]
    assert x.shape[1:] == (1, 28, 28)

    # Batch tile: sublane-aligned, and sized so large batches give >= 2 grid steps
    # (lets the "parallel" batch axis shard over v7x's two TensorCores).
    B16 = _round_up(B, 16)
    TB = min(tb, max(16, _round_up(-(-B16 // 2), 16)))
    Bp = _round_up(B, TB)

    # --- glue: repack input & weights into kernel-friendly, lane-dense layouts (layout only) ---
    img = x[:, 0].astype(f32)                                             # (B, 28, 28)
    if Bp != B:
        img = jnp.pad(img, ((0, Bp - B), (0, 0), (0, 0)))
    # conv1 im2col as input layout: lane = kh*28 + w_in, value = img[b, y+kh, w_in]
    im2 = jnp.concatenate([img[:, kh:kh + 24, :] for kh in range(5)], axis=-1)   # (Bp, 24, 140)
    im2 = im2.transpose(1, 0, 2).astype(bf16)                             # (24, Bp, 140) = (y, b, K)

    kw5 = jnp.arange(5)
    dxs = jnp.arange(2)

    # conv1 Toeplitz: r1[kh*28 + w_in, dx*256 + px*20 + ch] = W1[ch, 0, kh, w_in - (2*px+dx)]
    oh1 = (jnp.arange(28)[None, :, None, None] ==
           (2 * jnp.arange(12)[None, None, :, None] +
            dxs[:, None, None, None] + kw5[None, None, None, :])).astype(f32)    # (2,28,12,5)
    r1 = jnp.einsum('dwpk,chk->dhwpc', oh1, conv1_w[:, 0].astype(f32))           # (2,5,28,12,20)
    r1 = r1.reshape(2, 5, 28, 240)
    r1 = jnp.pad(r1, ((0, 0), (0, 0), (0, 0), (0, 16)))                          # (2,5,28,256)
    r1 = r1.transpose(1, 2, 0, 3).reshape(140, 512).astype(bf16)
    b1k = jnp.tile(jnp.pad(jnp.tile(conv1_b.astype(f32), 12), (0, 16)), 2).reshape(1, 512)

    # conv2 Toeplitz: r2[kh*256 + w*20 + ci, dX*256 + PX*50 + c2] = W2[c2, ci, kh, w - (2*PX+dX)]
    oh2 = (jnp.arange(12)[None, :, None, None] ==
           (2 * jnp.arange(4)[None, None, :, None] +
            dxs[:, None, None, None] + kw5[None, None, None, :])).astype(f32)    # (2,12,4,5)
    r2 = jnp.einsum('dpPk,cehk->dhpePc', oh2, conv2_w.astype(f32))               # (2,5,12,20,4,50)
    r2 = r2.reshape(2, 5, 240, 200)
    r2 = jnp.pad(r2, ((0, 0), (0, 0), (0, 16), (0, 56)))                         # (2,5,256,256)
    r2 = r2.transpose(1, 2, 0, 3).reshape(1280, 512).astype(bf16)
    b2k = jnp.tile(jnp.pad(jnp.tile(conv2_b.astype(f32), 4), (0, 56)), 2).reshape(1, 512)

    # fc1: torch NCHW flat index = c2*16 + PY*4 + PX; kernel K = PY*256 + PX*50 + c2; N 500->512.
    g1 = fc1_w.reshape(500, 50, 4, 4).transpose(2, 3, 1, 0).reshape(4, 200, 500)
    g1 = jnp.pad(g1, ((0, 0), (0, 56), (0, 12))).reshape(1024, 512).astype(bf16)
    bf1k = jnp.pad(fc1_b, (0, 12)).reshape(1, 512).astype(f32)

    # fc2: K 500->512 (zero rows), N 10->128 (zero cols; pad lanes get -1e30 bias for softmax).
    wf2k = jnp.pad(fc2_w.T, ((0, 12), (0, 118))).astype(bf16)                    # (512, 128)
    bf2k = jnp.pad(fc2_b.astype(f32), (0, 118), constant_values=-1e30).reshape(1, 128)

    out = pl.pallas_call(
        net_kernel,
        out_shape=jax.ShapeDtypeStruct((Bp, 128), f32),
        grid_spec=pltpu.PrefetchScalarGridSpec(
            num_scalar_prefetch=0,
            grid=(Bp // TB,),
            in_specs=[
                pl.BlockSpec((24, TB, 140), lambda i: (0, i, 0)),   # im2col'd image batch tile
                pl.BlockSpec((140, 512), lambda i: (0, 0)),         # conv1 Toeplitz weights
                pl.BlockSpec((1, 512), lambda i: (0, 0)),
                pl.BlockSpec((1280, 512), lambda i: (0, 0)),        # conv2 Toeplitz weights
                pl.BlockSpec((1, 512), lambda i: (0, 0)),
                pl.BlockSpec((1024, 512), lambda i: (0, 0)),        # fc1 weights
                pl.BlockSpec((1, 512), lambda i: (0, 0)),
                pl.BlockSpec((512, 128), lambda i: (0, 0)),         # fc2 weights
                pl.BlockSpec((1, 128), lambda i: (0, 0)),
            ],
            out_specs=pl.BlockSpec((TB, 128), lambda i: (i, 0)),
        ),
        compiler_params=pltpu.CompilerParams(
            dimension_semantics=("parallel",),            # batch steps can shard over v7x's 2 TCs
            vmem_limit_bytes=32 * 1024 * 1024,            # down from 48 MiB; covers ~20 MiB peak
        ),
    )(im2, r1, b1k, r2, b2k, g1, bf1k, wf2k, bf2k)
    return out[:B, :10]


def net_reference(x, params):
    """Pure-JAX f32 reference mirroring the PyTorch forward (for a sanity check)."""
    conv1_w, conv1_b, conv2_w, conv2_b, fc1_w, fc1_b, fc2_w, fc2_b = params
    dn = ('NCHW', 'OIHW', 'NCHW')
    y = lax.conv_general_dilated(x, conv1_w, (1, 1), 'VALID', dimension_numbers=dn)
    y = jnp.maximum(y + conv1_b.reshape(1, -1, 1, 1), 0.0)
    y = lax.reduce_window(y, -jnp.inf, lax.max, (1, 1, 2, 2), (1, 1, 2, 2), 'VALID')
    y = lax.conv_general_dilated(y, conv2_w, (1, 1), 'VALID', dimension_numbers=dn)
    y = jnp.maximum(y + conv2_b.reshape(1, -1, 1, 1), 0.0)
    y = lax.reduce_window(y, -jnp.inf, lax.max, (1, 1, 2, 2), (1, 1, 2, 2), 'VALID')
    y = y.reshape(y.shape[0], -1)                       # NCHW flatten -> (B, 800)
    y = jnp.maximum(y @ fc1_w.T + fc1_b, 0.0)
    y = y @ fc2_w.T + fc2_b
    return jax.nn.softmax(y, axis=1)


def init_params(key):
    """Deterministic PyTorch-default-style init: U(-1/sqrt(fan_in), 1/sqrt(fan_in))."""
    ks = jax.random.split(key, 8)

    def u(k, shape, fan_in):
        bound = 1.0 / (fan_in ** 0.5)
        return jax.random.uniform(k, shape, jnp.float32, -bound, bound)

    conv1_w = u(ks[0], (20, 1, 5, 5), 25)
    conv1_b = u(ks[1], (20,), 25)
    conv2_w = u(ks[2], (50, 20, 5, 5), 500)
    conv2_b = u(ks[3], (50,), 500)
    fc1_w = u(ks[4], (500, 800), 800)
    fc1_b = u(ks[5], (500,), 800)
    fc2_w = u(ks[6], (10, 500), 500)
    fc2_b = u(ks[7], (10,), 500)
    return conv1_w, conv1_b, conv2_w, conv2_b, fc1_w, fc1_b, fc2_w, fc2_b


if __name__ == "__main__":
    key = jax.random.PRNGKey(0)
    kx, kp = jax.random.split(key)
    params = init_params(kp)
    # 28x28 input is implied by the architecture (flatten to 4*4*50 = 800); batch = 2.
    x = jax.random.normal(kx, (2, 1, 28, 28), jnp.float32)

    fwd = jax.jit(net_forward)
    out = jax.block_until_ready(fwd(x, params))
    assert out.shape == (2, 10)

    ref = jax.block_until_ready(net_reference(x, params))
    # bf16 matmul operands (f32 accumulation) + approx reciprocal: typical max error ~1e-3.
    max_err = float(jnp.max(jnp.abs(out - ref)))
    assert max_err < 2e-2, f"kernel vs reference mismatch: max|diff|={max_err}"

    print("KERNEL_OK")
</pallas_src>

<mosaic_0001>
module attributes {stable_mosaic.version = 11 : i64} {
  func.func @net_kernel(%arg0: i32, %arg1: memref<24x16x140xbf16, #tpu.memory_space<vmem>>, %arg2: memref<140x512xbf16, #tpu.memory_space<vmem>>, %arg3: memref<1x512xf32, #tpu.memory_space<vmem>>, %arg4: memref<1280x512xbf16, #tpu.memory_space<vmem>>, %arg5: memref<1x512xf32, #tpu.memory_space<vmem>>, %arg6: memref<1024x512xbf16, #tpu.memory_space<vmem>>, %arg7: memref<1x512xf32, #tpu.memory_space<vmem>>, %arg8: memref<512x128xbf16, #tpu.memory_space<vmem>>, %arg9: memref<1x128xf32, #tpu.memory_space<vmem>>, %arg10: memref<16x128xf32, #tpu.memory_space<vmem>>) attributes {dimension_semantics = [#tpu.dimension_semantics<parallel>], iteration_bounds = array<i64: 1>, scalar_prefetch = 0 : i64, scratch_operands = 0 : i64, tpu.core_type = #tpu.core_type<tc>, window_params = [{transform_indices = @transform_0, window_bounds = array<i64: 24, 16, 140>}, {pipeline_mode = #tpu.pipeline_mode<synchronous>, transform_indices = @transform_1, window_bounds = array<i64: 140, 512>}, {pipeline_mode = #tpu.pipeline_mode<synchronous>, transform_indices = @transform_2, window_bounds = array<i64: 1, 512>}, {pipeline_mode = #tpu.pipeline_mode<synchronous>, transform_indices = @transform_3, window_bounds = array<i64: 1280, 512>}, {pipeline_mode = #tpu.pipeline_mode<synchronous>, transform_indices = @transform_4, window_bounds = array<i64: 1, 512>}, {pipeline_mode = #tpu.pipeline_mode<synchronous>, transform_indices = @transform_5, window_bounds = array<i64: 1024, 512>}, {pipeline_mode = #tpu.pipeline_mode<synchronous>, transform_indices = @transform_6, window_bounds = array<i64: 1, 512>}, {pipeline_mode = #tpu.pipeline_mode<synchronous>, transform_indices = @transform_7, window_bounds = array<i64: 512, 128>}, {pipeline_mode = #tpu.pipeline_mode<synchronous>, transform_indices = @transform_8, window_bounds = array<i64: 1, 128>}, {transform_indices = @transform_9, window_bounds = array<i64: 16, 128>}]} {
    %c0 = arith.constant 0 : index
    %c0_0 = arith.constant 0 : index
    %c0_1 = arith.constant 0 : index
    %0 = vector.load %arg1[%c0, %c0_0, %c0_1] : memref<24x16x140xbf16, #tpu.memory_space<vmem>>, vector<24x16x140xbf16>
    %1 = vector.shape_cast %0 : vector<24x16x140xbf16> to vector<384x140xbf16>
    %c0_2 = arith.constant 0 : index
    %c0_3 = arith.constant 0 : index
    %2 = vector.load %arg2[%c0_2, %c0_3] : memref<140x512xbf16, #tpu.memory_space<vmem>>, vector<140x512xbf16>
    %cst = arith.constant dense<0.000000e+00> : vector<384x512xf32>
    %3 = tpu.matmul %1, %2, %cst {dimension_numbers = #tpu.dot_dimension_numbers<[1], [0], [0], [1], [0, 0, 1, 1], [], []>} : vector<384x140xbf16>, vector<140x512xbf16>, vector<384x512xf32> -> vector<384x512xf32>
    %c0_4 = arith.constant 0 : index
    %c0_5 = arith.constant 0 : index
    %4 = vector.load %arg3[%c0_4, %c0_5] : memref<1x512xf32, #tpu.memory_space<vmem>>, vector<1x512xf32>
    %5 = vector.broadcast %4 : vector<1x512xf32> to vector<384x512xf32>
    %6 = arith.addf %3, %5 : vector<384x512xf32>
    %cst_6 = arith.constant 0.000000e+00 : f32
    %7 = vector.broadcast %cst_6 : f32 to vector<384x512xf32>
    %8 = arith.maximumf %6, %7 : vector<384x512xf32>
    %9 = vector.shape_cast %8 : vector<384x512xf32> to vector<12x2x16x512xf32>
    %10 = vector.extract_strided_slice %9 {offsets = [0, 0, 0, 0], sizes = [12, 1, 16, 512], strides = [1, 1, 1, 1]} : vector<12x2x16x512xf32> to vector<12x1x16x512xf32>
    %11 = vector.shape_cast %10 : vector<12x1x16x512xf32> to vector<12x16x512xf32>
    %12 = vector.extract_strided_slice %9 {offsets = [0, 1, 0, 0], sizes = [12, 1, 16, 512], strides = [1, 1, 1, 1]} : vector<12x2x16x512xf32> to vector<12x1x16x512xf32>
    %13 = vector.shape_cast %12 : vector<12x1x16x512xf32> to vector<12x16x512xf32>
    %14 = arith.maximumf %11, %13 : vector<12x16x512xf32>
    %15 = vector.extract_strided_slice %14 {offsets = [0, 0, 0], sizes = [12, 16, 256], strides = [1, 1, 1]} : vector<12x16x512xf32> to vector<12x16x256xf32>
    %16 = vector.extract_strided_slice %14 {offsets = [0, 0, 256], sizes = [12, 16, 256], strides = [1, 1, 1]} : vector<12x16x512xf32> to vector<12x16x256xf32>
    %17 = arith.maximumf %15, %16 : vector<12x16x256xf32>
    %18 = arith.truncf %17 : vector<12x16x256xf32> to vector<12x16x256xbf16>
    %19 = vector.extract_strided_slice %18 {offsets = [0, 0, 0], sizes = [8, 16, 256], strides = [1, 1, 1]} : vector<12x16x256xbf16> to vector<8x16x256xbf16>
    %20 = vector.extract_strided_slice %18 {offsets = [1, 0, 0], sizes = [8, 16, 256], strides = [1, 1, 1]} : vector<12x16x256xbf16> to vector<8x16x256xbf16>
    %21 = vector.extract_strided_slice %18 {offsets = [2, 0, 0], sizes = [8, 16, 256], strides = [1, 1, 1]} : vector<12x16x256xbf16> to vector<8x16x256xbf16>
    %22 = vector.extract_strided_slice %18 {offsets = [3, 0, 0], sizes = [8, 16, 256], strides = [1, 1, 1]} : vector<12x16x256xbf16> to vector<8x16x256xbf16>
    %23 = vector.extract_strided_slice %18 {offsets = [4, 0, 0], sizes = [8, 16, 256], strides = [1, 1, 1]} : vector<12x16x256xbf16> to vector<8x16x256xbf16>
    %24 = tpu.concatenate %19, %20, %21, %22, %23 in 2 : vector<8x16x256xbf16>, vector<8x16x256xbf16>, vector<8x16x256xbf16>, vector<8x16x256xbf16>, vector<8x16x256xbf16> -> vector<8x16x1280xbf16>
    %25 = vector.shape_cast %24 : vector<8x16x1280xbf16> to vector<128x1280xbf16>
    %c0_7 = arith.constant 0 : index
    %c0_8 = arith.constant 0 : index
    %26 = vector.load %arg4[%c0_7, %c0_8] : memref<1280x512xbf16, #tpu.memory_space<vmem>>, vector<1280x512xbf16>
    %cst_9 = arith.constant dense<0.000000e+00> : vector<128x512xf32>
    %27 = tpu.matmul %25, %26, %cst_9 {dimension_numbers = #tpu.dot_dimension_numbers<[1], [0], [0], [1], [0, 0, 1, 1], [], []>} : vector<128x1280xbf16>, vector<1280x512xbf16>, vector<128x512xf32> -> vector<128x512xf32>
    %c0_10 = arith.constant 0 : index
    %c0_11 = arith.constant 0 : index
    %28 = vector.load %arg5[%c0_10, %c0_11] : memref<1x512xf32, #tpu.memory_space<vmem>>, vector<1x512xf32>
    %29 = vector.broadcast %28 : vector<1x512xf32> to vector<128x512xf32>
    %30 = arith.addf %27, %29 : vector<128x512xf32>
    %cst_12 = arith.constant 0.000000e+00 : f32
    %31 = vector.broadcast %cst_12 : f32 to vector<128x512xf32>
    %32 = arith.maximumf %30, %31 : vector<128x512xf32>
    %33 = vector.shape_cast %32 : vector<128x512xf32> to vector<4x2x16x512xf32>
    %34 = vector.extract_strided_slice %33 {offsets = [0, 0, 0, 0], sizes = [4, 1, 16, 512], strides = [1, 1, 1, 1]} : vector<4x2x16x512xf32> to vector<4x1x16x512xf32>
    %35 = vector.shape_cast %34 : vector<4x1x16x512xf32> to vector<4x16x512xf32>
    %36 = vector.extract_strided_slice %33 {offsets = [0, 1, 0, 0], sizes = [4, 1, 16, 512], strides = [1, 1, 1, 1]} : vector<4x2x16x512xf32> to vector<4x1x16x512xf32>
    %37 = vector.shape_cast %36 : vector<4x1x16x512xf32> to vector<4x16x512xf32>
    %38 = arith.maximumf %35, %37 : vector<4x16x512xf32>
    %39 = vector.extract_strided_slice %38 {offsets = [0, 0, 0], sizes = [4, 16, 256], strides = [1, 1, 1]} : vector<4x16x512xf32> to vector<4x16x256xf32>
    %40 = vector.extract_strided_slice %38 {offsets = [0, 0, 256], sizes = [4, 16, 256], strides = [1, 1, 1]} : vector<4x16x512xf32> to vector<4x16x256xf32>
    %41 = arith.maximumf %39, %40 : vector<4x16x256xf32>
    %42 = arith.truncf %41 : vector<4x16x256xf32> to vector<4x16x256xbf16>
    %43 = vector.extract_strided_slice %42 {offsets = [0, 0, 0], sizes = [1, 16, 256], strides = [1, 1, 1]} : vector<4x16x256xbf16> to vector<1x16x256xbf16>
    %44 = vector.shape_cast %43 : vector<1x16x256xbf16> to vector<16x256xbf16>
    %45 = vector.extract_strided_slice %42 {offsets = [1, 0, 0], sizes = [1, 16, 256], strides = [1, 1, 1]} : vector<4x16x256xbf16> to vector<1x16x256xbf16>
    %46 = vector.shape_cast %45 : vector<1x16x256xbf16> to vector<16x256xbf16>
    %47 = vector.extract_strided_slice %42 {offsets = [2, 0, 0], sizes = [1, 16, 256], strides = [1, 1, 1]} : vector<4x16x256xbf16> to vector<1x16x256xbf16>
    %48 = vector.shape_cast %47 : vector<1x16x256xbf16> to vector<16x256xbf16>
    %49 = vector.extract_strided_slice %42 {offsets = [3, 0, 0], sizes = [1, 16, 256], strides = [1, 1, 1]} : vector<4x16x256xbf16> to vector<1x16x256xbf16>
    %50 = vector.shape_cast %49 : vector<1x16x256xbf16> to vector<16x256xbf16>
    %51 = tpu.concatenate %44, %46, %48, %50 in 1 : vector<16x256xbf16>, vector<16x256xbf16>, vector<16x256xbf16>, vector<16x256xbf16> -> vector<16x1024xbf16>
    %c0_13 = arith.constant 0 : index
    %c0_14 = arith.constant 0 : index
    %52 = vector.load %arg6[%c0_13, %c0_14] : memref<1024x512xbf16, #tpu.memory_space<vmem>>, vector<1024x512xbf16>
    %cst_15 = arith.constant dense<0.000000e+00> : vector<16x512xf32>
    %53 = tpu.matmul %51, %52, %cst_15 {dimension_numbers = #tpu.dot_dimension_numbers<[1], [0], [0], [1], [0, 0, 1, 1], [], []>} : vector<16x1024xbf16>, vector<1024x512xbf16>, vector<16x512xf32> -> vector<16x512xf32>
    %c0_16 = arith.constant 0 : index
    %c0_17 = arith.constant 0 : index
    %54 = vector.load %arg7[%c0_16, %c0_17] : memref<1x512xf32, #tpu.memory_space<vmem>>, vector<1x512xf32>
    %55 = vector.broadcast %54 : vector<1x512xf32> to vector<16x512xf32>
    %56 = arith.addf %53, %55 : vector<16x512xf32>
    %cst_18 = arith.constant 0.000000e+00 : f32
    %57 = vector.broadcast %cst_18 : f32 to vector<16x512xf32>
    %58 = arith.maximumf %56, %57 : vector<16x512xf32>
    %59 = arith.truncf %58 : vector<16x512xf32> to vector<16x512xbf16>
    %c0_19 = arith.constant 0 : index
    %c0_20 = arith.constant 0 : index
    %60 = vector.load %arg8[%c0_19, %c0_20] : memref<512x128xbf16, #tpu.memory_space<vmem>>, vector<512x128xbf16>
    %cst_21 = arith.constant dense<0.000000e+00> : vector<16x128xf32>
    %61 = tpu.matmul %59, %60, %cst_21 {dimension_numbers = #tpu.dot_dimension_numbers<[1], [0], [0], [1], [0, 0, 1, 1], [], []>} : vector<16x512xbf16>, vector<512x128xbf16>, vector<16x128xf32> -> vector<16x128xf32>
    %c0_22 = arith.constant 0 : index
    %c0_23 = arith.constant 0 : index
    %62 = vector.load %arg9[%c0_22, %c0_23] : memref<1x128xf32, #tpu.memory_space<vmem>>, vector<1x128xf32>
    %63 = vector.broadcast %62 : vector<1x128xf32> to vector<16x128xf32>
    %64 = arith.addf %61, %63 : vector<16x128xf32>
    %cst_24 = arith.constant dense<0xFF800000> : vector<16xf32>
    %65 = vector.multi_reduction <maximumf>, %64, %cst_24 [1] : vector<16x128xf32> to vector<16xf32>
    %66 = vector.shape_cast %65 : vector<16xf32> to vector<16x1xf32>
    %67 = vector.broadcast %66 : vector<16x1xf32> to vector<16x128xf32>
    %68 = arith.subf %64, %67 : vector<16x128xf32>
    %69 = math.exp %68 : vector<16x128xf32>
    %cst_25 = arith.constant dense<0.000000e+00> : vector<16xf32>
    %70 = vector.multi_reduction <add>, %69, %cst_25 [1] : vector<16x128xf32> to vector<16xf32>
    %71 = vector.shape_cast %70 : vector<16xf32> to vector<16x1xf32>
    %72 = tpu.reciprocal %71 {approx = true} : vector<16x1xf32> -> vector<16x1xf32>
    %73 = vector.broadcast %72 : vector<16x1xf32> to vector<16x128xf32>
    %74 = arith.mulf %69, %73 : vector<16x128xf32>
    %c0_26 = arith.constant 0 : index
    %c0_27 = arith.constant 0 : index
    %75 = vector.load %arg10[%c0_26, %c0_27] : memref<16x128xf32, #tpu.memory_space<vmem>>, vector<16x128xf32>
    tpu.vector_store %arg10[%c0_26, %c0_27], %74 {strides = array<i32>} : memref<16x128xf32, #tpu.memory_space<vmem>>, vector<16x128xf32>,
    return
  }
  func.func @transform_0(%arg0: i32) -> (i32, i32, i32) {
    %c0_i32 = arith.constant 0 : i32
    %c0_i32_0 = arith.constant 0 : i32
    %c0_i32_1 = arith.constant 0 : i32
    return %c0_i32, %arg0, %c0_i32_0 : i32, i32, i32
  }
  func.func @transform_1(%arg0: i32) -> (i32, i32) {
    %c0_i32 = arith.constant 0 : i32
    %c0_i32_0 = arith.constant 0 : i32
    %c0_i32_1 = arith.constant 0 : i32
    return %c0_i32, %c0_i32_0 : i32, i32
  }
  func.func @transform_2(%arg0: i32) -> (i32, i32) {
    %c0_i32 = arith.constant 0 : i32
    %c0_i32_0 = arith.constant 0 : i32
    %c0_i32_1 = arith.constant 0 : i32
    return %c0_i32, %c0_i32_0 : i32, i32
  }
  func.func @transform_3(%arg0: i32) -> (i32, i32) {
    %c0_i32 = arith.constant 0 : i32
    %c0_i32_0 = arith.constant 0 : i32
    %c0_i32_1 = arith.constant 0 : i32
    return %c0_i32, %c0_i32_0 : i32, i32
  }
  func.func @transform_4(%arg0: i32) -> (i32, i32) {
    %c0_i32 = arith.constant 0 : i32
    %c0_i32_0 = arith.constant 0 : i32
    %c0_i32_1 = arith.constant 0 : i32
    return %c0_i32, %c0_i32_0 : i32, i32
  }
  func.func @transform_5(%arg0: i32) -> (i32, i32) {
    %c0_i32 = arith.constant 0 : i32
    %c0_i32_0 = arith.constant 0 : i32
    %c0_i32_1 = arith.constant 0 : i32
    return %c0_i32, %c0_i32_0 : i32, i32
  }
  func.func @transform_6(%arg0: i32) -> (i32, i32) {
    %c0_i32 = arith.constant 0 : i32
    %c0_i32_0 = arith.constant 0 : i32
    %c0_i32_1 = arith.constant 0 : i32
    return %c0_i32, %c0_i32_0 : i32, i32
  }
  func.func @transform_7(%arg0: i32) -> (i32, i32) {
    %c0_i32 = arith.constant 0 : i32
    %c0_i32_0 = arith.constant 0 : i32
    %c0_i32_1 = arith.constant 0 : i32
    return %c0_i32, %c0_i32_0 : i32, i32
  }
  func.func @transform_8(%arg0: i32) -> (i32, i32) {
    %c0_i32 = arith.constant 0 : i32
    %c0_i32_0 = arith.constant 0 : i32
    %c0_i32_1 = arith.constant 0 : i32
    return %c0_i32, %c0_i32_0 : i32, i32
  }
  func.func @transform_9(%arg0: i32) -> (i32, i32) {
    %c0_i32 = arith.constant 0 : i32
    %c0_i32_0 = arith.constant 0 : i32
    return %arg0, %c0_i32 : i32, i32
  }
}

</mosaic_0001>

<llo_original>
// kernel: tile.23
$region0: #{tile.23}
  #allocation0 [shape = 's32[1]{0}', space=sflag, size = 0x4, scoped, tag = 'scoped memory for tile.23']
  %s0 = inlined_call_operand.vmem [shape: f32[20], index: 0, kind: input, shape index: {}]
  %s1 = inlined_call_operand.vmem [shape: f32[12,20], index: 1, kind: output, shape index: {}]
  // Predicated region
  $region2: #{tile.23} parent=0 // pred_check
    _
  $region3: #{tile.23} parent=0 // pred_check_branch
    %3 = sbr.rel (0) target = $region5
  $region4: #{tile.23} parent=0 // pred_region
    _
  $region5: #{tile.23} parent=0 // pred_fallthru
    _
  %v4 = vld [vmem:[%s0] ss:$0 sm:$0xff]
  %5 = vst [vmem:[%s1] sm:$0xff] %v4
  %s6 = scalar_lea.vmem %s1, 8
  %7 = vst [vmem:[%s6] sm:$0xff] %v4

// kernel: tile.24
$region0: #{tile.24}
  %s0 = inlined_call_operand.vmem [shape: f32[12,20], index: 0, kind: input, shape index: {}]
  %s1 = inlined_call_operand.vmem [shape: f32[240], index: 1, kind: output, shape index: {}]
  $region1: #{tile.24} parent=0
    #allocation0 [shape = 'u8[4096]{0}', space=vmem, size = 0x1000, scoped, tag = 'scoped mem for output reshape']
    %v2 = vld [vmem:[%s0] sm:$0x1]
    %vm3 = vcmask 162816
    %4 = vst.msk [vmem:[#allocation0] sm:$0x1] %vm3, %v2
    %s5 = scalar_lea.vmem %s0, 6
    %v6 = vld [vmem:[%s5] sm:$0x1]
    %s7 = scalar_lea.vmem %s0, 6
    %v8 = vld [vmem:[%s7] sm:$0x1]
    %vm9 = vcmask 64512
    %v10 = vsel %vm9, %v8, %v6
    %11 = vrot.lane.b32.xlu0 %v10, 120
    %v12 = vpop.permute.xlu0 %11
    %vm13 = vcmask 97280
    %s14 = scalar_lea.vmem [#allocation0], 1
    %15 = vst.msk [vmem:[%s14] sm:$0x1] %vm13, %v12
    %vm16 = vcmask 1048512
    %17 = vst.msk [vmem:[#allocation0] sm:$0x1] %vm16, %v12
    %s18 = scalar_lea.vmem %s0, 5
    %v19 = vld [vmem:[%s18] sm:$0x1]
    %20 = vrot.lane.b32.xlu0 %v19, 100
    %v21 = vpop.permute.xlu0 %20
    %vm22 = vcmask 982816
    %23 = vst.msk [vmem:[#allocation0] sm:$0x1] %vm22, %v21
    %s24 = scalar_lea.vmem %s0, 11
    %v25 = vld [vmem:[%s24] sm:$0x1]
    %26 = vrot.lane.b32.xlu0 %v25, 92
    %v27 = vpop.permute.xlu0 %26
    %vm28 = vcmask 917216
    %s29 = scalar_lea.vmem [#allocation0], 1
    %30 = vst.msk [vmem:[%s29] sm:$0x1] %vm28, %v27
    %s31 = scalar_lea.vmem %s0, 4
    %v32 = vld [vmem:[%s31] sm:$0x1]
    %33 = vrot.lane.b32.xlu0 %v32, 80
    %v34 = vpop.permute.xlu0 %33
    %vm35 = vcmask 818816
    %36 = vst.msk [vmem:[#allocation0] sm:$0x1] %vm35, %v34
    %s37 = scalar_lea.vmem %s0, 10
    %v38 = vld [vmem:[%s37] sm:$0x1]
    %39 = vrot.lane.b32.xlu0 %v38, 72
    %v40 = vpop.permute.xlu0 %39
    %vm41 = vcmask 753216
    %s42 = scalar_lea.vmem [#allocation0], 1
    %43 = vst.msk [vmem:[%s42] sm:$0x1] %vm41, %v40
    %s44 = scalar_lea.vmem %s0, 3
    %v45 = vld [vmem:[%s44] sm:$0x1]
    %46 = vrot.lane.b32.xlu0 %v45, 60
    %v47 = vpop.permute.xlu0 %46
    %vm48 = vcmask 654816
    %49 = vst.msk [vmem:[#allocation0] sm:$0x1] %vm48, %v47
    %s50 = scalar_lea.vmem %s0, 9
    %v51 = vld [vmem:[%s50] sm:$0x1]
    %52 = vrot.lane.b32.xlu0 %v51, 52
    %v53 = vpop.permute.xlu0 %52
    %vm54 = vcmask 589216
    %s55 = scalar_lea.vmem [#allocation0], 1
    %56 = vst.msk [vmem:[%s55] sm:$0x1] %vm54, %v53
    %s57 = scalar_lea.vmem %s0, 2
    %v58 = vld [vmem:[%s57] sm:$0x1]
    %59 = vrot.lane.b32.xlu0 %v58, 40
    %v60 = vpop.permute.xlu0 %59
    %vm61 = vcmask 490816
    %62 = vst.msk [vmem:[#allocation0] sm:$0x1] %vm61, %v60
    %s63 = scalar_lea.vmem %s0, 8
    %v64 = vld [vmem:[%s63] sm:$0x1]
    %65 = vrot.lane.b32.xlu0 %v64, 32
    %v66 = vpop.permute.xlu0 %65
    %vm67 = vcmask 425216
    %s68 = scalar_lea.vmem [#allocation0], 1
    %69 = vst.msk [vmem:[%s68] sm:$0x1] %vm67, %v66
    %s70 = scalar_lea.vmem %s0, 1
    %v71 = vld [vmem:[%s70] sm:$0x1]
    %72 = vrot.lane.b32.xlu0 %v71, 20
    %v73 = vpop.permute.xlu0 %72
    %vm74 = vcmask 326816
    %75 = vst.msk [vmem:[#allocation0] sm:$0x1] %vm74, %v73
    %s76 = scalar_lea.vmem %s0, 7
    %v77 = vld [vmem:[%s76] sm:$0x1]
    %78 = vrot.lane.b32.xlu0 %v77, 12
    %v79 = vpop.permute.xlu0 %78
    %vm80 = vcmask 261216
    %s81 = scalar_lea.vmem [#allocation0], 1
    %82 = vst.msk [vmem:[%s81] sm:$0x1] %vm80, %v79
    %s84 = ssub.s32 4, 1
    %v85 = vld [vmem:[#allocation0] sm:%s84]
    %s87 = ssub.s32 4, 1
    %88 = vst [vmem:[%s1] sm:%s87] %v85

// kernel: tile.33
$region0: #{tile.33}
  #allocation0 [shape = 's32[1]{0}', space=sflag, size = 0x4, scoped, tag = 'scoped memory for tile.33']
  %s0 = inlined_call_operand.vmem [shape: f32[50], index: 0, kind: input, shape index: {}]
  %s1 = inlined_call_operand.vmem [shape: f32[4,50], index: 1, kind: output, shape index: {}]
  // Predicated region
  $region2: #{tile.33} parent=0 // pred_check
    _
  $region3: #{tile.33} parent=0 // pred_check_branch
    %3 = sbr.rel (0) target = $region5
  $region4: #{tile.33} parent=0 // pred_region
    _
  $region5: #{tile.33} parent=0 // pred_fallthru
    _
  %v4 = vld [vmem:[%s0] ss:$0 sm:$0xff]
  %5 = vst [vmem:[%s1] sm:$0xf] %v4

// kernel: tile.34
$region0: #{tile.34}
  %s0 = inlined_call_operand.vmem [shape: f32[4,50], index: 0, kind: input, shape index: {}]
  %s1 = inlined_call_operand.vmem [shape: f32[200], index: 1, kind: output, shape index: {}]
  $region1: #{tile.34} parent=0
    #allocation0 [shape = 'u8[4096]{0}', space=vmem, size = 0x1000, scoped, tag = 'scoped mem for output reshape']
    #allocation1 [shape = 'u8[4096]{0}', space=vmem, size = 0x1000, scoped, tag = 'scoped mem for input reshape']
    %s3 = ssub.s32 16, 1
    %v4 = vld [vmem:[%s0] sm:%s3]
    %5 = vst [vmem:[#allocation1] sm:%s3] %v4
    %v6 = vld [vmem:[#allocation1] sm:$0x1]
    %vm7 = vcmask 408576
    %8 = vst.msk [vmem:[#allocation0] sm:$0x1] %vm7, %v6
    %s9 = scalar_lea.vmem [#allocation1], 2
    %v10 = vld [vmem:[%s9] sm:$0x1]
    %s11 = scalar_lea.vmem [#allocation1], 2
    %v12 = vld [vmem:[%s11] sm:$0x1]
    %vm13 = vcmask 228352
    %v14 = vsel %vm13, %v12, %v10
    %15 = vrot.lane.b32.xlu0 %v14, 100
    %v16 = vpop.permute.xlu0 %15
    %vm17 = vcmask 179200
    %s18 = scalar_lea.vmem [#allocation0], 1
    %19 = vst.msk [vmem:[%s18] sm:$0x1] %vm17, %v16
    %vm20 = vcmask 1048352
    %21 = vst.msk [vmem:[#allocation0] sm:$0x1] %vm20, %v16
    %s22 = scalar_lea.vmem [#allocation1], 1
    %v23 = vld [vmem:[%s22] sm:$0x1]
    %24 = vrot.lane.b32.xlu0 %v23, 50
    %v25 = vpop.permute.xlu0 %24
    %vm26 = vcmask 818576
    %27 = vst.msk [vmem:[#allocation0] sm:$0x1] %vm26, %v25
    %s28 = scalar_lea.vmem [#allocation1], 3
    %v29 = vld [vmem:[%s28] sm:$0x1]
    %30 = vrot.lane.b32.xlu0 %v29, 22
    %v31 = vpop.permute.xlu0 %30
    %vm32 = vcmask 588976
    %s33 = scalar_lea.vmem [#allocation0], 1
    %34 = vst.msk [vmem:[%s33] sm:$0x1] %vm32, %v31
    %s36 = ssub.s32 4, 1
    %v37 = vld [vmem:[#allocation0] sm:%s36]
    %s39 = ssub.s32 4, 1
    %40 = vst [vmem:[%s1] sm:%s39] %v37

// kernel: net_forward.1
$region0: #{net_forward.1}
  #allocation0 [shape = 'u32[]', space=smem, size = 0x4, offset = 0x4, fixed_abs, tag = 'smem constant byte address 0x4 - core index']
  #allocation1 [shape = 'u32[72,128]{1,0:T(1,128)}', space=vmem, size = 0x9000, scoped, tag = 'internal scratch']
  %s0 = inlined_call_operand.vmem [shape: bf16[24,16,140], index: 0, kind: input, shape index: {}]
  %s1 = inlined_call_operand.vmem [shape: bf16[140,512], index: 1, kind: input, shape index: {}]
  %s2 = inlined_call_operand.vmem [shape: f32[1,512], index: 2, kind: input, shape index: {}]
  %s3 = inlined_call_operand.vmem [shape: bf16[1280,512], index: 3, kind: input, shape index: {}]
  %s4 = inlined_call_operand.vmem [shape: f32[1,512], index: 4, kind: input, shape index: {}]
  %s5 = inlined_call_operand.vmem [shape: bf16[1024,512], index: 5, kind: input, shape index: {}]
  %s6 = inlined_call_operand.vmem [shape: f32[1,512], index: 6, kind: input, shape index: {}]
  %s7 = inlined_call_operand.vmem [shape: bf16[512,128], index: 7, kind: input, shape index: {}]
  %s8 = inlined_call_operand.vmem [shape: f32[1,128], index: 8, kind: input, shape index: {}]
  %s9 = inlined_call_operand.vmem [shape: f32[16,128], index: 9, kind: output, shape index: {}]
  %s10 = sld [smem:[#allocation0]]
  $region46: #{net_forward.1} parent=0
    _
  %s12 = ssub.s32 1, %s10
  %s13 = scalar_select 0, %s12, %s10
  // Predicated region
  $region2: #{net_forward.1} parent=0 // pred_check
    _
  $region3: #{net_forward.1} parent=0 // pred_check_branch
    %15 = sbr.rel (0) target = $region5
  $region4: #{net_forward.1} parent=0 // pred_region
    _
  $region5: #{net_forward.1} parent=0 // pred_fallthru
    _
  // Predicated region
  $region6: #{net_forward.1} parent=0 // pred_check
    _
  $region7: #{net_forward.1} parent=0 // pred_check_branch
    %17 = sbr.rel (0) target = $region9
  $region8: #{net_forward.1} parent=0 // pred_region
    _
  $region9: #{net_forward.1} parent=0 // pred_fallthru
    _
  // Predicated region
  $region10: #{net_forward.1} parent=0 // pred_check
    _
  $region11: #{net_forward.1} parent=0 // pred_check_branch
    %19 = sbr.rel (0) target = $region13
  $region12: #{net_forward.1} parent=0 // pred_region
    _
  $region13: #{net_forward.1} parent=0 // pred_fallthru
    _
  // Predicated region
  $region14: #{net_forward.1} parent=0 // pred_check
    _
  $region15: #{net_forward.1} parent=0 // pred_check_branch
    %21 = sbr.rel (0) target = $region17
  $region16: #{net_forward.1} parent=0 // pred_region
    _
  $region17: #{net_forward.1} parent=0 // pred_fallthru
    _
  // Predicated region
  $region18: #{net_forward.1} parent=0 // pred_check
    _
  $region19: #{net_forward.1} parent=0 // pred_check_branch
    %23 = sbr.rel (0) target = $region21
  $region20: #{net_forward.1} parent=0 // pred_region
    _
  $region21: #{net_forward.1} parent=0 // pred_fallthru
    _
  // Predicated region
  $region22: #{net_forward.1} parent=0 // pred_check
    _
  $region23: #{net_forward.1} parent=0 // pred_check_branch
    %25 = sbr.rel (0) target = $region25
  $region24: #{net_forward.1} parent=0 // pred_region
    _
  $region25: #{net_forward.1} parent=0 // pred_fallthru
    _
  // Predicated region
  $region26: #{net_forward.1} parent=0 // pred_check
    _
  $region27: #{net_forward.1} parent=0 // pred_check_branch
    %27 = sbr.rel (0) target = $region29
  $region28: #{net_forward.1} parent=0 // pred_region
    _
  $region29: #{net_forward.1} parent=0 // pred_fallthru
    _
  // Predicated region
  $region30: #{net_forward.1} parent=0 // pred_check
    _
  $region31: #{net_forward.1} parent=0 // pred_check_branch
    %29 = sbr.rel (0) target = $region33
  $region32: #{net_forward.1} parent=0 // pred_region
    _
  $region33: #{net_forward.1} parent=0 // pred_fallthru
    _
  // Predicated region
  $region34: #{net_forward.1} parent=0 // pred_check
    _
  $region35: #{net_forward.1} parent=0 // pred_check_branch
    %31 = sbr.rel (0) target = $region37
  $region36: #{net_forward.1} parent=0 // pred_region
    _
  $region37: #{net_forward.1} parent=0 // pred_fallthru
    _
  %v33 = vld [vmem:[%s0] sm:$0xff]
  %v34 = vld [vmem:[%s0 + $0x8] sm:$0xff]
  %v35 = vld [vmem:[%s0 + $0x10] sm:$0xff]
  %v36 = vld [vmem:[%s0 + $0x18] sm:$0xff]
  %v37 = vld [vmem:[%s0 + $0x20] sm:$0xff]
  %v38 = vld [vmem:[%s0 + $0x28] sm:$0xff]
  %v39 = vld [vmem:[%s0 + $0x30] sm:$0xff]
  %v40 = vld [vmem:[%s0 + $0x38] sm:$0xff]
  %v41 = vld [vmem:[%s0 + $0x40] sm:$0xff]
  %v42 = vld [vmem:[%s0 + $0x48] sm:$0xff]
  %v43 = vld [vmem:[%s0 + $0x50] sm:$0xff]
  %v44 = vld [vmem:[%s0 + $0x58] sm:$0xff]
  %v45 = vld [vmem:[%s0 + $0x60] sm:$0xff]
  %v46 = vld [vmem:[%s0 + $0x68] sm:$0xff]
  %v47 = vld [vmem:[%s0 + $0x70] sm:$0xff]
  %v48 = vld [vmem:[%s0 + $0x78] sm:$0xff]
  %v49 = vld [vmem:[%s0 + $0x80] sm:$0xff]
  %v50 = vld [vmem:[%s0 + $0x88] sm:$0xff]
  %v51 = vld [vmem:[%s0 + $0x90] sm:$0xff]
  %v52 = vld [vmem:[%s0 + $0x98] sm:$0xff]
  %v53 = vld [vmem:[%s0 + $0xa0] sm:$0xff]
  %v54 = vld [vmem:[%s0 + $0xa8] sm:$0xff]
  %v55 = vld [vmem:[%s0 + $0xb0] sm:$0xff]
  %v56 = vld [vmem:[%s0 + $0xb8] sm:$0xff]
  %v57 = vld [vmem:[%s0 + $0xc0] sm:$0xff]
  %v58 = vld [vmem:[%s0 + $0xc8] sm:$0xff]
  %v59 = vld [vmem:[%s0 + $0xd0] sm:$0xff]
  %v60 = vld [vmem:[%s0 + $0xd8] sm:$0xff]
  %v61 = vld [vmem:[%s0 + $0xe0] sm:$0xff]
  %v62 = vld [vmem:[%s0 + $0xe8] sm:$0xff]
  %v63 = vld [vmem:[%s0 + $0xf0] sm:$0xff]
  %v64 = vld [vmem:[%s0 + $0xf8] sm:$0xff]
  %v65 = vld [vmem:[%s0 + $0x100] sm:$0xff]
  %v66 = vld [vmem:[%s0 + $0x108] sm:$0xff]
  %v67 = vld [vmem:[%s0 + $0x110] sm:$0xff]
  %v68 = vld [vmem:[%s0 + $0x118] sm:$0xff]
  %v69 = vld [vmem:[%s0 + $0x120] sm:$0xff]
  %v70 = vld [vmem:[%s0 + $0x128] sm:$0xff]
  %v71 = vld [vmem:[%s0 + $0x130] sm:$0xff]
  %v72 = vld [vmem:[%s0 + $0x138] sm:$0xff]
  %v73 = vld [vmem:[%s0 + $0x140] sm:$0xff]
  %v74 = vld [vmem:[%s0 + $0x148] sm:$0xff]
  %v75 = vld [vmem:[%s0 + $0x150] sm:$0xff]
  %v76 = vld [vmem:[%s0 + $0x158] sm:$0xff]
  %v77 = vld [vmem:[%s0 + $0x160] sm:$0xff]
  %v78 = vld [vmem:[%s0 + $0x168] sm:$0xff]
  %v79 = vld [vmem:[%s0 + $0x170] sm:$0xff]
  %v80 = vld [vmem:[%s0 + $0x178] sm:$0xff]
  %v81 = vld [vmem:[%s1] sm:$0xff]
  %v82 = vld [vmem:[%s1 + $0x8] sm:$0xff]
  %v83 = vld [vmem:[%s1 + $0x10] sm:$0xff]
  %v84 = vld [vmem:[%s1 + $0x18] sm:$0xff]
  %v85 = vld [vmem:[%s1 + $0x20] sm:$0xff]
  %v86 = vld [vmem:[%s1 + $0x28] sm:$0xff]
  %v87 = vld [vmem:[%s1 + $0x30] sm:$0xff]
  %v88 = vld [vmem:[%s1 + $0x38] sm:$0xff]
  %v89 = vld [vmem:[%s1 + $0x40] sm:$0xff]
  %v90 = vld [vmem:[%s1 + $0x48] sm:$0xff]
  %v91 = vld [vmem:[%s1 + $0x50] sm:$0xff]
  %v92 = vld [vmem:[%s1 + $0x58] sm:$0xff]
  %v93 = vld [vmem:[%s1 + $0x60] sm:$0xff]
  %v94 = vld [vmem:[%s1 + $0x68] sm:$0xff]
  %v95 = vld [vmem:[%s1 + $0x70] sm:$0xff]
  %v96 = vld [vmem:[%s1 + $0x78] sm:$0xff]
  %v97 = vld [vmem:[%s1 + $0x80] sm:$0xff]
  %v98 = vld [vmem:[%s1 + $0x88] sm:$0xff]
  %v99 = vld [vmem:[%s1 + $0x90] sm:$0xff]
  %v100 = vld [vmem:[%s1 + $0x98] sm:$0xff]
  %v101 = vld [vmem:[%s1 + $0xa0] sm:$0xff]
  %v102 = vld [vmem:[%s1 + $0xa8] sm:$0xff]
  %v103 = vld [vmem:[%s1 + $0xb0] sm:$0xff]
  %v104 = vld [vmem:[%s1 + $0xb8] sm:$0xff]
  %v105 = vld [vmem:[%s1 + $0xc0] sm:$0xff]
  %v106 = vld [vmem:[%s1 + $0xc8] sm:$0xff]
  %v107 = vld [vmem:[%s1 + $0xd0] sm:$0xff]
  %v108 = vld [vmem:[%s1 + $0xd8] sm:$0xff]
  %v109 = vld [vmem:[%s1 + $0xe0] sm:$0xff]
  %v110 = vld [vmem:[%s1 + $0xe8] sm:$0xff]
  %v111 = vld [vmem:[%s1 + $0xf0] sm:$0xff]
  %v112 = vld [vmem:[%s1 + $0xf8] sm:$0xff]
  %v113 = vld [vmem:[%s1 + $0x100] sm:$0xff]
  %v114 = vld [vmem:[%s1 + $0x108] sm:$0xff]
  %v115 = vld [vmem:[%s1 + $0x110] sm:$0x33]
  %v116 = vld [vmem:[%s1 + $0x118] sm:$0x33]
  %v117 = vld [vmem:[%s2] sm:$0xf]
  %v119 = vperm.slane %v117, 0
  %v120 = vperm.slane %v117, 1
  %v121 = vperm.slane %v117, 2
  %v122 = vperm.slane %v117, 3
  %v175 = vunpack.c.l.b16 %v33
  %v176 = vunpack.c.h.b16 %v33
  %v177 = vunpack.c.l.b16 %v34
  %v178 = vunpack.c.h.b16 %v34
  %v179 = vunpack.c.l.b16 %v35
  %v180 = vunpack.c.h.b16 %v35
  %v181 = vunpack.c.l.b16 %v36
  %v182 = vunpack.c.h.b16 %v36
  %v183 = vunpack.c.l.b16 %v37
  %v184 = vunpack.c.h.b16 %v37
  %v185 = vunpack.c.l.b16 %v38
  %v186 = vunpack.c.h.b16 %v38
  %v187 = vunpack.c.l.b16 %v39
  %v188 = vunpack.c.h.b16 %v39
  %v189 = vunpack.c.l.b16 %v40
  %v190 = vunpack.c.h.b16 %v40
  %v191 = vunpack.c.l.b16 %v41
  %v192 = vunpack.c.h.b16 %v41
  %v193 = vunpack.c.l.b16 %v42
  %v194 = vunpack.c.h.b16 %v42
  %v195 = vunpack.c.l.b16 %v43
  %v196 = vunpack.c.h.b16 %v43
  %v197 = vunpack.c.l.b16 %v44
  %v198 = vunpack.c.h.b16 %v44
  %v199 = vunpack.c.l.b16 %v45
  %v200 = vunpack.c.h.b16 %v45
  %v201 = vunpack.c.l.b16 %v46
  %v202 = vunpack.c.h.b16 %v46
  %v203 = vunpack.c.l.b16 %v47
  %v204 = vunpack.c.h.b16 %v47
  %v205 = vunpack.c.l.b16 %v48
  %v206 = vunpack.c.h.b16 %v48
  %v207 = vunpack.c.l.b16 %v49
  %v208 = vunpack.c.h.b16 %v49
  %v209 = vunpack.c.l.b16 %v50
  %v210 = vunpack.c.h.b16 %v50
  %v211 = vunpack.c.l.b16 %v51
  %v212 = vunpack.c.h.b16 %v51
  %v213 = vunpack.c.l.b16 %v52
  %v214 = vunpack.c.h.b16 %v52
  %v215 = vunpack.c.l.b16 %v53
  %v216 = vunpack.c.h.b16 %v53
  %v217 = vunpack.c.l.b16 %v54
  %v218 = vunpack.c.h.b16 %v54
  %v219 = vunpack.c.l.b16 %v55
  %v220 = vunpack.c.h.b16 %v55
  %v221 = vunpack.c.l.b16 %v56
  %v222 = vunpack.c.h.b16 %v56
  %v223 = vunpack.c.l.b16 %v57
  %v224 = vunpack.c.h.b16 %v57
  %v225 = vunpack.c.l.b16 %v58
  %v226 = vunpack.c.h.b16 %v58
  %v227 = vunpack.c.l.b16 %v59
  %v228 = vunpack.c.h.b16 %v59
  %v229 = vunpack.c.l.b16 %v60
  %v230 = vunpack.c.h.b16 %v60
  %v231 = vunpack.c.l.b16 %v61
  %v232 = vunpack.c.h.b16 %v61
  %v233 = vunpack.c.l.b16 %v62
  %v234 = vunpack.c.h.b16 %v62
  %v235 = vunpack.c.l.b16 %v63
  %v236 = vunpack.c.h.b16 %v63
  %v237 = vunpack.c.l.b16 %v64
  %v238 = vunpack.c.h.b16 %v64
  %v239 = vunpack.c.l.b16 %v65
  %v240 = vunpack.c.h.b16 %v65
  %v241 = vunpack.c.l.b16 %v66
  %v242 = vunpack.c.h.b16 %v66
  %v243 = vunpack.c.l.b16 %v67
  %v244 = vunpack.c.h.b16 %v67
  %v245 = vunpack.c.l.b16 %v68
  %v246 = vunpack.c.h.b16 %v68
  %v247 = vunpack.c.l.b16 %v69
  %v248 = vunpack.c.h.b16 %v69
  %v249 = vunpack.c.l.b16 %v70
  %v250 = vunpack.c.h.b16 %v70
  %v251 = vunpack.c.l.b16 %v71
  %v252 = vunpack.c.h.b16 %v71
  %v253 = vunpack.c.l.b16 %v72
  %v254 = vunpack.c.h.b16 %v72
  %v255 = vunpack.c.l.b16 %v73
  %v256 = vunpack.c.h.b16 %v73
  %v257 = vunpack.c.l.b16 %v74
  %v258 = vunpack.c.h.b16 %v74
  %v259 = vunpack.c.l.b16 %v75
  %v260 = vunpack.c.h.b16 %v75
  %v261 = vunpack.c.l.b16 %v76
  %v262 = vunpack.c.h.b16 %v76
  %v263 = vunpack.c.l.b16 %v77
  %v264 = vunpack.c.h.b16 %v77
  %v265 = vunpack.c.l.b16 %v78
  %v266 = vunpack.c.h.b16 %v78
  %v267 = vunpack.c.l.b16 %v79
  %v268 = vunpack.c.h.b16 %v79
  %v269 = vunpack.c.l.b16 %v80
  %v270 = vunpack.c.h.b16 %v80
  %v271 = vpack.c.b16 %v177, %v175
  %v272 = vpack.c.b16 %v178, %v176
  %v273 = vpack.c.b16 %v181, %v179
  %v274 = vpack.c.b16 %v182, %v180
  %v275 = vpack.c.b16 %v185, %v183
  %v276 = vpack.c.b16 %v186, %v184
  %v277 = vpack.c.b16 %v189, %v187
  %v278 = vpack.c.b16 %v190, %v188
  %v279 = vpack.c.b16 %v193, %v191
  %v280 = vpack.c.b16 %v194, %v192
  %v281 = vpack.c.b16 %v197, %v195
  %v282 = vpack.c.b16 %v198, %v196
  %v283 = vpack.c.b16 %v201, %v199
  %v284 = vpack.c.b16 %v202, %v200
  %v285 = vpack.c.b16 %v205, %v203
  %v286 = vpack.c.b16 %v206, %v204
  %v287 = vpack.c.b16 %v209, %v207
  %v288 = vpack.c.b16 %v210, %v208
  %v289 = vpack.c.b16 %v213, %v211
  %v290 = vpack.c.b16 %v214, %v212
  %v291 = vpack.c.b16 %v217, %v215
  %v292 = vpack.c.b16 %v218, %v216
  %v293 = vpack.c.b16 %v221, %v219
  %v294 = vpack.c.b16 %v222, %v220
  %v295 = vpack.c.b16 %v225, %v223
  %v296 = vpack.c.b16 %v226, %v224
  %v297 = vpack.c.b16 %v229, %v227
  %v298 = vpack.c.b16 %v230, %v228
  %v299 = vpack.c.b16 %v233, %v231
  %v300 = vpack.c.b16 %v234, %v232
  %v301 = vpack.c.b16 %v237, %v235
  %v302 = vpack.c.b16 %v238, %v236
  %v303 = vpack.c.b16 %v241, %v239
  %v304 = vpack.c.b16 %v242, %v240
  %v305 = vpack.c.b16 %v245, %v243
  %v306 = vpack.c.b16 %v246, %v244
  %v307 = vpack.c.b16 %v249, %v247
  %v308 = vpack.c.b16 %v250, %v248
  %v309 = vpack.c.b16 %v253, %v251
  %v310 = vpack.c.b16 %v254, %v252
  %v311 = vpack.c.b16 %v257, %v255
  %v312 = vpack.c.b16 %v258, %v256
  %v313 = vpack.c.b16 %v261, %v259
  %v314 = vpack.c.b16 %v262, %v260
  %v315 = vpack.c.b16 %v265, %v263
  %v316 = vpack.c.b16 %v266, %v264
  %v317 = vpack.c.b16 %v269, %v267
  %v318 = vpack.c.b16 %v270, %v268
  %v379 = vunpack.c.l.b16 %v81
  %v380 = vunpack.c.h.b16 %v81
  %v381 = vunpack.c.l.b16 %v82
  %v382 = vunpack.c.h.b16 %v82
  %v383 = vunpack.c.l.b16 %v83
  %v384 = vunpack.c.h.b16 %v83
  %v385 = vunpack.c.l.b16 %v84
  %v386 = vunpack.c.h.b16 %v84
  %v387 = vunpack.c.l.b16 %v85
  %v388 = vunpack.c.h.b16 %v85
  %v389 = vunpack.c.l.b16 %v86
  %v390 = vunpack.c.h.b16 %v86
  %v391 = vunpack.c.l.b16 %v87
  %v392 = vunpack.c.h.b16 %v87
  %v393 = vunpack.c.l.b16 %v88
  %v394 = vunpack.c.h.b16 %v88
  %v395 = vunpack.c.l.b16 %v89
  %v396 = vunpack.c.h.b16 %v89
  %v397 = vunpack.c.l.b16 %v90
  %v398 = vunpack.c.h.b16 %v90
  %v399 = vunpack.c.l.b16 %v91
  %v400 = vunpack.c.h.b16 %v91
  %v401 = vunpack.c.l.b16 %v92
  %v402 = vunpack.c.h.b16 %v92
  %v403 = vunpack.c.l.b16 %v93
  %v404 = vunpack.c.h.b16 %v93
  %v405 = vunpack.c.l.b16 %v94
  %v406 = vunpack.c.h.b16 %v94
  %v407 = vunpack.c.l.b16 %v95
  %v408 = vunpack.c.h.b16 %v95
  %v409 = vunpack.c.l.b16 %v96
  %v410 = vunpack.c.h.b16 %v96
  %v411 = vunpack.c.l.b16 %v97
  %v412 = vunpack.c.h.b16 %v97
  %v413 = vunpack.c.l.b16 %v98
  %v414 = vunpack.c.h.b16 %v98
  %v415 = vunpack.c.l.b16 %v99
  %v416 = vunpack.c.h.b16 %v99
  %v417 = vunpack.c.l.b16 %v100
  %v418 = vunpack.c.h.b16 %v100
  %v419 = vunpack.c.l.b16 %v101
  %v420 = vunpack.c.h.b16 %v101
  %v421 = vunpack.c.l.b16 %v102
  %v422 = vunpack.c.h.b16 %v102
  %v423 = vunpack.c.l.b16 %v103
  %v424 = vunpack.c.h.b16 %v103
  %v425 = vunpack.c.l.b16 %v104
  %v426 = vunpack.c.h.b16 %v104
  %v427 = vunpack.c.l.b16 %v105
  %v428 = vunpack.c.h.b16 %v105
  %v429 = vunpack.c.l.b16 %v106
  %v430 = vunpack.c.h.b16 %v106
  %v431 = vunpack.c.l.b16 %v107
  %v432 = vunpack.c.h.b16 %v107
  %v433 = vunpack.c.l.b16 %v108
  %v434 = vunpack.c.h.b16 %v108
  %v435 = vunpack.c.l.b16 %v109
  %v436 = vunpack.c.h.b16 %v109
  %v437 = vunpack.c.l.b16 %v110
  %v438 = vunpack.c.h.b16 %v110
  %v439 = vunpack.c.l.b16 %v111
  %v440 = vunpack.c.h.b16 %v111
  %v441 = vunpack.c.l.b16 %v112
  %v442 = vunpack.c.h.b16 %v112
  %v443 = vunpack.c.l.b16 %v113
  %v444 = vunpack.c.h.b16 %v113
  %v445 = vunpack.c.l.b16 %v114
  %v446 = vunpack.c.h.b16 %v114
  %v447 = vunpack.c.l.b16 %v115
  %v448 = vunpack.c.h.b16 %v115
  %v449 = vunpack.c.l.b16 %v116
  %v450 = vunpack.c.h.b16 %v116
  %v451 = vpack.c.b16 %v383, %v379
  %v452 = vpack.c.b16 %v384, %v380
  %v453 = vpack.c.b16 %v385, %v381
  %v454 = vpack.c.b16 %v386, %v382
  %v455 = vpack.c.b16 %v391, %v387
  %v456 = vpack.c.b16 %v392, %v388
  %v457 = vpack.c.b16 %v393, %v389
  %v458 = vpack.c.b16 %v394, %v390
  %v459 = vpack.c.b16 %v399, %v395
  %v460 = vpack.c.b16 %v400, %v396
  %v461 = vpack.c.b16 %v401, %v397
  %v462 = vpack.c.b16 %v402, %v398
  %v463 = vpack.c.b16 %v407, %v403
  %v464 = vpack.c.b16 %v408, %v404
  %v465 = vpack.c.b16 %v409, %v405
  %v466 = vpack.c.b16 %v410, %v406
  %v467 = vpack.c.b16 %v415, %v411
  %v468 = vpack.c.b16 %v416, %v412
  %v469 = vpack.c.b16 %v417, %v413
  %v470 = vpack.c.b16 %v418, %v414
  %v471 = vpack.c.b16 %v423, %v419
  %v472 = vpack.c.b16 %v424, %v420
  %v473 = vpack.c.b16 %v425, %v421
  %v474 = vpack.c.b16 %v426, %v422
  %v475 = vpack.c.b16 %v431, %v427
  %v476 = vpack.c.b16 %v432, %v428
  %v477 = vpack.c.b16 %v433, %v429
  %v478 = vpack.c.b16 %v434, %v430
  %v479 = vpack.c.b16 %v439, %v435
  %v480 = vpack.c.b16 %v440, %v436
  %v481 = vpack.c.b16 %v441, %v437
  %v482 = vpack.c.b16 %v442, %v438
  %v483 = vpack.c.b16 %v447, %v443
  %v484 = vpack.c.b16 %v448, %v444
  %v485 = vpack.c.b16 %v449, %v445
  %v486 = vpack.c.b16 %v450, %v446
  %vm519 = vcmask 97280
  %v521 = vsel %vm519, %v272, 0
  %v524 = vsel %vm519, %v274, 0
  %v527 = vsel %vm519, %v276, 0
  %v530 = vsel %vm519, %v278, 0
  %v533 = vsel %vm519, %v280, 0
  %v536 = vsel %vm519, %v282, 0
  %v539 = vsel %vm519, %v284, 0
  %v542 = vsel %vm519, %v286, 0
  %v545 = vsel %vm519, %v288, 0
  %v548 = vsel %vm519, %v290, 0
  %v551 = vsel %vm519, %v292, 0
  %v554 = vsel %vm519, %v294, 0
  %v557 = vsel %vm519, %v296, 0
  %v560 = vsel %vm519, %v298, 0
  %v563 = vsel %vm519, %v300, 0
  %v566 = vsel %vm519, %v302, 0
  %v569 = vsel %vm519, %v304, 0
  %v572 = vsel %vm519, %v306, 0
  %v575 = vsel %vm519, %v308, 0
  %v578 = vsel %vm519, %v310, 0
  %v581 = vsel %vm519, %v312, 0
  %v584 = vsel %vm519, %v314, 0
  %v587 = vsel %vm519, %v316, 0
  %v590 = vsel %vm519, %v318, 0
  %vm592 = vcmask 1045504
  %v594 = vsel %vm592, %v483, 0
  %v597 = vsel %vm592, %v484, 0
  %v600 = vsel %vm592, %v485, 0
  %v603 = vsel %vm592, %v486, 0
  %605 = vmatpush.bf16.msra.mxu0 %v479
  %606 = vmatpush.bf16.msra.mxu0 %v475
  %607 = vmatpush.bf16.msra.mxu0 %v471
  %608 = vmatpush.bf16.msra.mxu0 %v467
  %609 = vmatpush.bf16.msra.mxu0 %v463
  %610 = vmatpush.bf16.msra.mxu0 %v459
  %611 = vmatpush.bf16.msra.mxu0 %v455
  %612 = vmatpush.bf16.msra.mxu0 %v451
  %613 = vmatmul.bf16.gmra.mxu0 %v271
  %v614 = vpop.f32.mrf.mxu0
  %v615 = vadd.f32 %v119, %v614
  %v616 = vpop.f32.mrf.mxu0
  %v617 = vadd.f32 %v119, %v616
  %618 = vmatmul.bf16.gmra.mxu0 %v273
  %v619 = vpop.f32.mrf.mxu0
  %v620 = vadd.f32 %v119, %v619
  %v621 = vpop.f32.mrf.mxu0
  %v622 = vadd.f32 %v119, %v621
  %623 = vmatmul.bf16.gmra.mxu0 %v275
  %v624 = vpop.f32.mrf.mxu0
  %v625 = vadd.f32 %v119, %v624
  %v626 = vpop.f32.mrf.mxu0
  %v627 = vadd.f32 %v119, %v626
  %628 = vmatmul.bf16.gmra.mxu0 %v277
  %v629 = vpop.f32.mrf.mxu0
  %v630 = vadd.f32 %v119, %v629
  %v631 = vpop.f32.mrf.mxu0
  %v632 = vadd.f32 %v119, %v631
  %633 = vmatmul.bf16.gmra.mxu0 %v279
  %v634 = vpop.f32.mrf.mxu0
  %v635 = vadd.f32 %v119, %v634
  %v636 = vpop.f32.mrf.mxu0
  %v637 = vadd.f32 %v119, %v636
  %638 = vmatmul.bf16.gmra.mxu0 %v281
  %v639 = vpop.f32.mrf.mxu0
  %v640 = vadd.f32 %v119, %v639
  %v641 = vpop.f32.mrf.mxu0
  %v642 = vadd.f32 %v119, %v641
  %643 = vmatmul.bf16.gmra.mxu0 %v283
  %v644 = vpop.f32.mrf.mxu0
  %v645 = vadd.f32 %v119, %v644
  %v646 = vpop.f32.mrf.mxu0
  %v647 = vadd.f32 %v119, %v646
  %648 = vmatmul.bf16.gmra.mxu0 %v285
  %v649 = vpop.f32.mrf.mxu0
  %v650 = vadd.f32 %v119, %v649
  %v651 = vpop.f32.mrf.mxu0
  %v652 = vadd.f32 %v119, %v651
  %653 = vmatmul.bf16.gmra.mxu0 %v287
  %v654 = vpop.f32.mrf.mxu0
  %v655 = vadd.f32 %v119, %v654
  %v656 = vpop.f32.mrf.mxu0
  %v657 = vadd.f32 %v119, %v656
  %658 = vmatmul.bf16.gmra.mxu0 %v289
  %v659 = vpop.f32.mrf.mxu0
  %v660 = vadd.f32 %v119, %v659
  %v661 = vpop.f32.mrf.mxu0
  %v662 = vadd.f32 %v119, %v661
  %663 = vmatmul.bf16.gmra.mxu0 %v291
  %v664 = vpop.f32.mrf.mxu0
  %v665 = vadd.f32 %v119, %v664
  %v666 = vpop.f32.mrf.mxu0
  %v667 = vadd.f32 %v119, %v666
  %668 = vmatmul.bf16.gmra.mxu0 %v293
  %v669 = vpop.f32.mrf.mxu0
  %v670 = vadd.f32 %v119, %v669
  %v671 = vpop.f32.mrf.mxu0
  %v672 = vadd.f32 %v119, %v671
  %673 = vmatmul.bf16.gmra.mxu0 %v295
  %v674 = vpop.f32.mrf.mxu0
  %v675 = vadd.f32 %v119, %v674
  %v676 = vpop.f32.mrf.mxu0
  %v677 = vadd.f32 %v119, %v676
  %678 = vmatmul.bf16.gmra.mxu0 %v297
  %v679 = vpop.f32.mrf.mxu0
  %v680 = vadd.f32 %v119, %v679
  %v681 = vpop.f32.mrf.mxu0
  %v682 = vadd.f32 %v119, %v681
  %683 = vmatmul.bf16.gmra.mxu0 %v299
  %v684 = vpop.f32.mrf.mxu0
  %v685 = vadd.f32 %v119, %v684
  %v686 = vpop.f32.mrf.mxu0
  %v687 = vadd.f32 %v119, %v686
  %688 = vmatmul.bf16.gmra.mxu0 %v301
  %v689 = vpop.f32.mrf.mxu0
  %v690 = vadd.f32 %v119, %v689
  %v691 = vpop.f32.mrf.mxu0
  %v692 = vadd.f32 %v119, %v691
  %693 = vmatmul.bf16.gmra.mxu0 %v303
  %v694 = vpop.f32.mrf.mxu0
  %v695 = vadd.f32 %v119, %v694
  %v696 = vpop.f32.mrf.mxu0
  %v697 = vadd.f32 %v119, %v696
  %698 = vmatmul.bf16.gmra.mxu0 %v305
  %v699 = vpop.f32.mrf.mxu0
  %v700 = vadd.f32 %v119, %v699
  %v701 = vpop.f32.mrf.mxu0
  %v702 = vadd.f32 %v119, %v701
  %703 = vmatmul.bf16.gmra.mxu0 %v307
  %v704 = vpop.f32.mrf.mxu0
  %v705 = vadd.f32 %v119, %v704
  %v706 = vpop.f32.mrf.mxu0
  %v707 = vadd.f32 %v119, %v706
  %708 = vmatmul.bf16.gmra.mxu0 %v309
  %v709 = vpop.f32.mrf.mxu0
  %v710 = vadd.f32 %v119, %v709
  %v711 = vpop.f32.mrf.mxu0
  %v712 = vadd.f32 %v119, %v711
  %713 = vmatmul.bf16.gmra.mxu0 %v311
  %v714 = vpop.f32.mrf.mxu0
  %v715 = vadd.f32 %v119, %v714
  %v716 = vpop.f32.mrf.mxu0
  %v717 = vadd.f32 %v119, %v716
  %718 = vmatmul.bf16.gmra.mxu0 %v313
  %v719 = vpop.f32.mrf.mxu0
  %v720 = vadd.f32 %v119, %v719
  %v721 = vpop.f32.mrf.mxu0
  %v722 = vadd.f32 %v119, %v721
  %723 = vmatmul.bf16.gmra.mxu0 %v315
  %v724 = vpop.f32.mrf.mxu0
  %v725 = vadd.f32 %v119, %v724
  %v726 = vpop.f32.mrf.mxu0
  %v727 = vadd.f32 %v119, %v726
  %728 = vmatmul.bf16.gmra.mxu0 %v317
  %v729 = vpop.f32.mrf.mxu0
  %v730 = vadd.f32 %v119, %v729
  %v731 = vpop.f32.mrf.mxu0
  %v732 = vadd.f32 %v119, %v731
  %733 = vdwg.mxu0
  %734 = vmatpush.bf16.msra.mxu0 0
  %735 = vmatpush.bf16.msra.mxu0 0
  %736 = vmatpush.bf16.msra.mxu0 0
  %737 = vmatpush.bf16.msra.mxu0 0
  %738 = vmatpush.bf16.msra.mxu0 0
  %739 = vmatpush.bf16.msra.mxu0 0
  %740 = vmatpush.bf16.msra.mxu0 0
  %741 = vmatpush.bf16.msra.mxu0 %v594
  %742 = vmatmul.bf16.gmra.mxu0 %v521
  %v743 = vpop.f32.mrf.mxu0
  %v744 = vadd.f32 %v615, %v743
  %v745 = vpop.f32.mrf.mxu0
  %v746 = vadd.f32 %v617, %v745
  %747 = vmatmul.bf16.gmra.mxu0 %v524
  %v748 = vpop.f32.mrf.mxu0
  %v749 = vadd.f32 %v620, %v748
  %v750 = vpop.f32.mrf.mxu0
  %v751 = vadd.f32 %v622, %v750
  %752 = vmatmul.bf16.gmra.mxu0 %v527
  %v753 = vpop.f32.mrf.mxu0
  %v754 = vadd.f32 %v625, %v753
  %v755 = vpop.f32.mrf.mxu0
  %v756 = vadd.f32 %v627, %v755
  %757 = vmatmul.bf16.gmra.mxu0 %v530
  %v758 = vpop.f32.mrf.mxu0
  %v759 = vadd.f32 %v630, %v758
  %v760 = vpop.f32.mrf.mxu0
  %v761 = vadd.f32 %v632, %v760
  %762 = vmatmul.bf16.gmra.mxu0 %v533
  %v763 = vpop.f32.mrf.mxu0
  %v764 = vadd.f32 %v635, %v763
  %v765 = vpop.f32.mrf.mxu0
  %v766 = vadd.f32 %v637, %v765
  %767 = vmatmul.bf16.gmra.mxu0 %v536
  %v768 = vpop.f32.mrf.mxu0
  %v769 = vadd.f32 %v640, %v768
  %v770 = vpop.f32.mrf.mxu0
  %v771 = vadd.f32 %v642, %v770
  %772 = vmatmul.bf16.gmra.mxu0 %v539
  %v773 = vpop.f32.mrf.mxu0
  %v774 = vadd.f32 %v645, %v773
  %v775 = vpop.f32.mrf.mxu0
  %v776 = vadd.f32 %v647, %v775
  %777 = vmatmul.bf16.gmra.mxu0 %v542
  %v778 = vpop.f32.mrf.mxu0
  %v779 = vadd.f32 %v650, %v778
  %v780 = vpop.f32.mrf.mxu0
  %v781 = vadd.f32 %v652, %v780
  %782 = vmatmul.bf16.gmra.mxu0 %v545
  %v783 = vpop.f32.mrf.mxu0
  %v784 = vadd.f32 %v655, %v783
  %v785 = vpop.f32.mrf.mxu0
  %v786 = vadd.f32 %v657, %v785
  %787 = vmatmul.bf16.gmra.mxu0 %v548
  %v788 = vpop.f32.mrf.mxu0
  %v789 = vadd.f32 %v660, %v788
  %v790 = vpop.f32.mrf.mxu0
  %v791 = vadd.f32 %v662, %v790
  %792 = vmatmul.bf16.gmra.mxu0 %v551
  %v793 = vpop.f32.mrf.mxu0
  %v794 = vadd.f32 %v665, %v793
  %v795 = vpop.f32.mrf.mxu0
  %v796 = vadd.f32 %v667, %v795
  %797 = vmatmul.bf16.gmra.mxu0 %v554
  %v798 = vpop.f32.mrf.mxu0
  %v799 = vadd.f32 %v670, %v798
  %v800 = vpop.f32.mrf.mxu0
  %v801 = vadd.f32 %v672, %v800
  %802 = vmatmul.bf16.gmra.mxu0 %v557
  %v803 = vpop.f32.mrf.mxu0
  %v804 = vadd.f32 %v675, %v803
  %v805 = vpop.f32.mrf.mxu0
  %v806 = vadd.f32 %v677, %v805
  %807 = vmatmul.bf16.gmra.mxu0 %v560
  %v808 = vpop.f32.mrf.mxu0
  %v809 = vadd.f32 %v680, %v808
  %v810 = vpop.f32.mrf.mxu0
  %v811 = vadd.f32 %v682, %v810
  %812 = vmatmul.bf16.gmra.mxu0 %v563
  %v813 = vpop.f32.mrf.mxu0
  %v814 = vadd.f32 %v685, %v813
  %v815 = vpop.f32.mrf.mxu0
  %v816 = vadd.f32 %v687, %v815
  %817 = vmatmul.bf16.gmra.mxu0 %v566
  %v818 = vpop.f32.mrf.mxu0
  %v819 = vadd.f32 %v690, %v818
  %v820 = vpop.f32.mrf.mxu0
  %v821 = vadd.f32 %v692, %v820
  %822 = vmatmul.bf16.gmra.mxu0 %v569
  %v823 = vpop.f32.mrf.mxu0
  %v824 = vadd.f32 %v695, %v823
  %v825 = vpop.f32.mrf.mxu0
  %v826 = vadd.f32 %v697, %v825
  %827 = vmatmul.bf16.gmra.mxu0 %v572
  %v828 = vpop.f32.mrf.mxu0
  %v829 = vadd.f32 %v700, %v828
  %v830 = vpop.f32.mrf.mxu0
  %v831 = vadd.f32 %v702, %v830
  %832 = vmatmul.bf16.gmra.mxu0 %v575
  %v833 = vpop.f32.mrf.mxu0
  %v834 = vadd.f32 %v705, %v833
  %v835 = vpop.f32.mrf.mxu0
  %v836 = vadd.f32 %v707, %v835
  %837 = vmatmul.bf16.gmra.mxu0 %v578
  %v838 = vpop.f32.mrf.mxu0
  %v839 = vadd.f32 %v710, %v838
  %v840 = vpop.f32.mrf.mxu0
  %v841 = vadd.f32 %v712, %v840
  %842 = vmatmul.bf16.gmra.mxu0 %v581
  %v843 = vpop.f32.mrf.mxu0
  %v844 = vadd.f32 %v715, %v843
  %v845 = vpop.f32.mrf.mxu0
  %v846 = vadd.f32 %v717, %v845
  %847 = vmatmul.bf16.gmra.mxu0 %v584
  %v848 = vpop.f32.mrf.mxu0
  %v849 = vadd.f32 %v720, %v848
  %v850 = vpop.f32.mrf.mxu0
  %v851 = vadd.f32 %v722, %v850
  %852 = vmatmul.bf16.gmra.mxu0 %v587
  %v853 = vpop.f32.mrf.mxu0
  %v854 = vadd.f32 %v725, %v853
  %v855 = vpop.f32.mrf.mxu0
  %v856 = vadd.f32 %v727, %v855
  %857 = vmatmul.bf16.gmra.mxu0 %v590
  %v858 = vpop.f32.mrf.mxu0
  %v859 = vadd.f32 %v730, %v858
  %v860 = vpop.f32.mrf.mxu0
  %v861 = vadd.f32 %v732, %v860
  %862 = vdwg.mxu0
  %863 = vmatpush.bf16.msra.mxu0 %v480
  %864 = vmatpush.bf16.msra.mxu0 %v476
  %865 = vmatpush.bf16.msra.mxu0 %v472
  %866 = vmatpush.bf16.msra.mxu0 %v468
  %867 = vmatpush.bf16.msra.mxu0 %v464
  %868 = vmatpush.bf16.msra.mxu0 %v460
  %869 = vmatpush.bf16.msra.mxu0 %v456
  %870 = vmatpush.bf16.msra.mxu0 %v452
  %871 = vmatmul.bf16.gmra.mxu0 %v271
  %v872 = vpop.f32.mrf.mxu0
  %v873 = vadd.f32 %v120, %v872
  %v874 = vpop.f32.mrf.mxu0
  %v875 = vadd.f32 %v120, %v874
  %876 = vmatmul.bf16.gmra.mxu0 %v273
  %v877 = vpop.f32.mrf.mxu0
  %v878 = vadd.f32 %v120, %v877
  %v879 = vpop.f32.mrf.mxu0
  %v880 = vadd.f32 %v120, %v879
  %881 = vmatmul.bf16.gmra.mxu0 %v275
  %v882 = vpop.f32.mrf.mxu0
  %v883 = vadd.f32 %v120, %v882
  %v884 = vpop.f32.mrf.mxu0
  %v885 = vadd.f32 %v120, %v884
  %886 = vmatmul.bf16.gmra.mxu0 %v277
  %v887 = vpop.f32.mrf.mxu0
  %v888 = vadd.f32 %v120, %v887
  %v889 = vpop.f32.mrf.mxu0
  %v890 = vadd.f32 %v120, %v889
  %891 = vmatmul.bf16.gmra.mxu0 %v279
  %v892 = vpop.f32.mrf.mxu0
  %v893 = vadd.f32 %v120, %v892
  %v894 = vpop.f32.mrf.mxu0
  %v895 = vadd.f32 %v120, %v894
  %896 = vmatmul.bf16.gmra.mxu0 %v281
  %v897 = vpop.f32.mrf.mxu0
  %v898 = vadd.f32 %v120, %v897
  %v899 = vpop.f32.mrf.mxu0
  %v900 = vadd.f32 %v120, %v899
  %901 = vmatmul.bf16.gmra.mxu0 %v283
  %v902 = vpop.f32.mrf.mxu0
  %v903 = vadd.f32 %v120, %v902
  %v904 = vpop.f32.mrf.mxu0
  %v905 = vadd.f32 %v120, %v904
  %906 = vmatmul.bf16.gmra.mxu0 %v285
  %v907 = vpop.f32.mrf.mxu0
  %v908 = vadd.f32 %v120, %v907
  %v909 = vpop.f32.mrf.mxu0
  %v910 = vadd.f32 %v120, %v909
  %911 = vmatmul.bf16.gmra.mxu0 %v287
  %v912 = vpop.f32.mrf.mxu0
  %v913 = vadd.f32 %v120, %v912
  %v914 = vpop.f32.mrf.mxu0
  %v915 = vadd.f32 %v120, %v914
  %916 = vmatmul.bf16.gmra.mxu0 %v289
  %v917 = vpop.f32.mrf.mxu0
  %v918 = vadd.f32 %v120, %v917
  %v919 = vpop.f32.mrf.mxu0
  %v920 = vadd.f32 %v120, %v919
  %921 = vmatmul.bf16.gmra.mxu0 %v291
  %v922 = vpop.f32.mrf.mxu0
  %v923 = vadd.f32 %v120, %v922
  %v924 = vpop.f32.mrf.mxu0
  %v925 = vadd.f32 %v120, %v924
  %926 = vmatmul.bf16.gmra.mxu0 %v293
  %v927 = vpop.f32.mrf.mxu0
  %v928 = vadd.f32 %v120, %v927
  %v929 = vpop.f32.mrf.mxu0
  %v930 = vadd.f32 %v120, %v929
  %931 = vmatmul.bf16.gmra.mxu0 %v295
  %v932 = vpop.f32.mrf.mxu0
  %v933 = vadd.f32 %v120, %v932
  %v934 = vpop.f32.mrf.mxu0
  %v935 = vadd.f32 %v120, %v934
  %936 = vmatmul.bf16.gmra.mxu0 %v297
  %v937 = vpop.f32.mrf.mxu0
  %v938 = vadd.f32 %v120, %v937
  %v939 = vpop.f32.mrf.mxu0
  %v940 = vadd.f32 %v120, %v939
  %941 = vmatmul.bf16.gmra.mxu0 %v299
  %v942 = vpop.f32.mrf.mxu0
  %v943 = vadd.f32 %v120, %v942
  %v944 = vpop.f32.mrf.mxu0
  %v945 = vadd.f32 %v120, %v944
  %946 = vmatmul.bf16.gmra.mxu0 %v301
  %v947 = vpop.f32.mrf.mxu0
  %v948 = vadd.f32 %v120, %v947
  %v949 = vpop.f32.mrf.mxu0
  %v950 = vadd.f32 %v120, %v949
  %951 = vmatmul.bf16.gmra.mxu0 %v303
  %v952 = vpop.f32.mrf.mxu0
  %v953 = vadd.f32 %v120, %v952
  %v954 = vpop.f32.mrf.mxu0
  %v955 = vadd.f32 %v120, %v954
  %956 = vmatmul.bf16.gmra.mxu0 %v305
  %v957 = vpop.f32.mrf.mxu0
  %v958 = vadd.f32 %v120, %v957
  %v959 = vpop.f32.mrf.mxu0
  %v960 = vadd.f32 %v120, %v959
  %961 = vmatmul.bf16.gmra.mxu0 %v307
  %v962 = vpop.f32.mrf.mxu0
  %v963 = vadd.f32 %v120, %v962
  %v964 = vpop.f32.mrf.mxu0
  %v965 = vadd.f32 %v120, %v964
  %966 = vmatmul.bf16.gmra.mxu0 %v309
  %v967 = vpop.f32.mrf.mxu0
  %v968 = vadd.f32 %v120, %v967
  %v969 = vpop.f32.mrf.mxu0
  %v970 = vadd.f32 %v120, %v969
  %971 = vmatmul.bf16.gmra.mxu0 %v311
  %v972 = vpop.f32.mrf.mxu0
  %v973 = vadd.f32 %v120, %v972
  %v974 = vpop.f32.mrf.mxu0
  %v975 = vadd.f32 %v120, %v974
  %976 = vmatmul.bf16.gmra.mxu0 %v313
  %v977 = vpop.f32.mrf.mxu0
  %v978 = vadd.f32 %v120, %v977
  %v979 = vpop.f32.mrf.mxu0
  %v980 = vadd.f32 %v120, %v979
  %981 = vmatmul.bf16.gmra.mxu0 %v315
  %v982 = vpop.f32.mrf.mxu0
  %v983 = vadd.f32 %v120, %v982
  %v984 = vpop.f32.mrf.mxu0
  %v985 = vadd.f32 %v120, %v984
  %986 = vmatmul.bf16.gmra.mxu0 %v317
  %v987 = vpop.f32.mrf.mxu0
  %v988 = vadd.f32 %v120, %v987
  %v989 = vpop.f32.mrf.mxu0
  %v990 = vadd.f32 %v120, %v989
  %991 = vdwg.mxu0
  %992 = vmatpush.bf16.msra.mxu0 0
  %993 = vmatpush.bf16.msra.mxu0 0
  %994 = vmatpush.bf16.msra.mxu0 0
  %995 = vmatpush.bf16.msra.mxu0 0
  %996 = vmatpush.bf16.msra.mxu0 0
  %997 = vmatpush.bf16.msra.mxu0 0
  %998 = vmatpush.bf16.msra.mxu0 0
  %999 = vmatpush.bf16.msra.mxu0 %v597
  %1000 = vmatmul.bf16.gmra.mxu0 %v521
  %v1001 = vpop.f32.mrf.mxu0
  %v1002 = vadd.f32 %v873, %v1001
  %v1003 = vpop.f32.mrf.mxu0
  %v1004 = vadd.f32 %v875, %v1003
  %1005 = vmatmul.bf16.gmra.mxu0 %v524
  %v1006 = vpop.f32.mrf.mxu0
  %v1007 = vadd.f32 %v878, %v1006
  %v1008 = vpop.f32.mrf.mxu0
  %v1009 = vadd.f32 %v880, %v1008
  %1010 = vmatmul.bf16.gmra.mxu0 %v527
  %v1011 = vpop.f32.mrf.mxu0
  %v1012 = vadd.f32 %v883, %v1011
  %v1013 = vpop.f32.mrf.mxu0
  %v1014 = vadd.f32 %v885, %v1013
  %1015 = vmatmul.bf16.gmra.mxu0 %v530
  %v1016 = vpop.f32.mrf.mxu0
  %v1017 = vadd.f32 %v888, %v1016
  %v1018 = vpop.f32.mrf.mxu0
  %v1019 = vadd.f32 %v890, %v1018
  %1020 = vmatmul.bf16.gmra.mxu0 %v533
  %v1021 = vpop.f32.mrf.mxu0
  %v1022 = vadd.f32 %v893, %v1021
  %v1023 = vpop.f32.mrf.mxu0
  %v1024 = vadd.f32 %v895, %v1023
  %1025 = vmatmul.bf16.gmra.mxu0 %v536
  %v1026 = vpop.f32.mrf.mxu0
  %v1027 = vadd.f32 %v898, %v1026
  %v1028 = vpop.f32.mrf.mxu0
  %v1029 = vadd.f32 %v900, %v1028
  %1030 = vmatmul.bf16.gmra.mxu0 %v539
  %v1031 = vpop.f32.mrf.mxu0
  %v1032 = vadd.f32 %v903, %v1031
  %v1033 = vpop.f32.mrf.mxu0
  %v1034 = vadd.f32 %v905, %v1033
  %1035 = vmatmul.bf16.gmra.mxu0 %v542
  %v1036 = vpop.f32.mrf.mxu0
  %v1037 = vadd.f32 %v908, %v1036
  %v1038 = vpop.f32.mrf.mxu0
  %v1039 = vadd.f32 %v910, %v1038
  %1040 = vmatmul.bf16.gmra.mxu0 %v545
  %v1041 = vpop.f32.mrf.mxu0
  %v1042 = vadd.f32 %v913, %v1041
  %v1043 = vpop.f32.mrf.mxu0
  %v1044 = vadd.f32 %v915, %v1043
  %1045 = vmatmul.bf16.gmra.mxu0 %v548
  %v1046 = vpop.f32.mrf.mxu0
  %v1047 = vadd.f32 %v918, %v1046
  %v1048 = vpop.f32.mrf.mxu0
  %v1049 = vadd.f32 %v920, %v1048
  %1050 = vmatmul.bf16.gmra.mxu0 %v551
  %v1051 = vpop.f32.mrf.mxu0
  %v1052 = vadd.f32 %v923, %v1051
  %v1053 = vpop.f32.mrf.mxu0
  %v1054 = vadd.f32 %v925, %v1053
  %1055 = vmatmul.bf16.gmra.mxu0 %v554
  %v1056 = vpop.f32.mrf.mxu0
  %v1057 = vadd.f32 %v928, %v1056
  %v1058 = vpop.f32.mrf.mxu0
  %v1059 = vadd.f32 %v930, %v1058
  %1060 = vmatmul.bf16.gmra.mxu0 %v557
  %v1061 = vpop.f32.mrf.mxu0
  %v1062 = vadd.f32 %v933, %v1061
  %v1063 = vpop.f32.mrf.mxu0
  %v1064 = vadd.f32 %v935, %v1063
  %1065 = vmatmul.bf16.gmra.mxu0 %v560
  %v1066 = vpop.f32.mrf.mxu0
  %v1067 = vadd.f32 %v938, %v1066
  %v1068 = vpop.f32.mrf.mxu0
  %v1069 = vadd.f32 %v940, %v1068
  %1070 = vmatmul.bf16.gmra.mxu0 %v563
  %v1071 = vpop.f32.mrf.mxu0
  %v1072 = vadd.f32 %v943, %v1071
  %v1073 = vpop.f32.mrf.mxu0
  %v1074 = vadd.f32 %v945, %v1073
  %1075 = vmatmul.bf16.gmra.mxu0 %v566
  %v1076 = vpop.f32.mrf.mxu0
  %v1077 = vadd.f32 %v948, %v1076
  %v1078 = vpop.f32.mrf.mxu0
  %v1079 = vadd.f32 %v950, %v1078
  %1080 = vmatmul.bf16.gmra.mxu0 %v569
  %v1081 = vpop.f32.mrf.mxu0
  %v1082 = vadd.f32 %v953, %v1081
  %v1083 = vpop.f32.mrf.mxu0
  %v1084 = vadd.f32 %v955, %v1083
  %1085 = vmatmul.bf16.gmra.mxu0 %v572
  %v1086 = vpop.f32.mrf.mxu0
  %v1087 = vadd.f32 %v958, %v1086
  %v1088 = vpop.f32.mrf.mxu0
  %v1089 = vadd.f32 %v960, %v1088
  %1090 = vmatmul.bf16.gmra.mxu0 %v575
  %v1091 = vpop.f32.mrf.mxu0
  %v1092 = vadd.f32 %v963, %v1091
  %v1093 = vpop.f32.mrf.mxu0
  %v1094 = vadd.f32 %v965, %v1093
  %1095 = vmatmul.bf16.gmra.mxu0 %v578
  %v1096 = vpop.f32.mrf.mxu0
  %v1097 = vadd.f32 %v968, %v1096
  %v1098 = vpop.f32.mrf.mxu0
  %v1099 = vadd.f32 %v970, %v1098
  %1100 = vmatmul.bf16.gmra.mxu0 %v581
  %v1101 = vpop.f32.mrf.mxu0
  %v1102 = vadd.f32 %v973, %v1101
  %v1103 = vpop.f32.mrf.mxu0
  %v1104 = vadd.f32 %v975, %v1103
  %1105 = vmatmul.bf16.gmra.mxu0 %v584
  %v1106 = vpop.f32.mrf.mxu0
  %v1107 = vadd.f32 %v978, %v1106
  %v1108 = vpop.f32.mrf.mxu0
  %v1109 = vadd.f32 %v980, %v1108
  %1110 = vmatmul.bf16.gmra.mxu0 %v587
  %v1111 = vpop.f32.mrf.mxu0
  %v1112 = vadd.f32 %v983, %v1111
  %v1113 = vpop.f32.mrf.mxu0
  %v1114 = vadd.f32 %v985, %v1113
  %1115 = vmatmul.bf16.gmra.mxu0 %v590
  %v1116 = vpop.f32.mrf.mxu0
  %v1117 = vadd.f32 %v988, %v1116
  %v1118 = vpop.f32.mrf.mxu0
  %v1119 = vadd.f32 %v990, %v1118
  %1120 = vdwg.mxu0
  %1121 = vmatpush.bf16.msra.mxu0 %v481
  %1122 = vmatpush.bf16.msra.mxu0 %v477
  %1123 = vmatpush.bf16.msra.mxu0 %v473
  %1124 = vmatpush.bf16.msra.mxu0 %v469
  %1125 = vmatpush.bf16.msra.mxu0 %v465
  %1126 = vmatpush.bf16.msra.mxu0 %v461
  %1127 = vmatpush.bf16.msra.mxu0 %v457
  %1128 = vmatpush.bf16.msra.mxu0 %v453
  %1129 = vmatmul.bf16.gmra.mxu0 %v271
  %v1130 = vpop.f32.mrf.mxu0
  %v1131 = vadd.f32 %v121, %v1130
  %v1132 = vpop.f32.mrf.mxu0
  %v1133 = vadd.f32 %v121, %v1132
  %1134 = vmatmul.bf16.gmra.mxu0 %v273
  %v1135 = vpop.f32.mrf.mxu0
  %v1136 = vadd.f32 %v121, %v1135
  %v1137 = vpop.f32.mrf.mxu0
  %v1138 = vadd.f32 %v121, %v1137
  %1139 = vmatmul.bf16.gmra.mxu0 %v275
  %v1140 = vpop.f32.mrf.mxu0
  %v1141 = vadd.f32 %v121, %v1140
  %v1142 = vpop.f32.mrf.mxu0
  %v1143 = vadd.f32 %v121, %v1142
  %1144 = vmatmul.bf16.gmra.mxu0 %v277
  %v1145 = vpop.f32.mrf.mxu0
  %v1146 = vadd.f32 %v121, %v1145
  %v1147 = vpop.f32.mrf.mxu0
  %v1148 = vadd.f32 %v121, %v1147
  %1149 = vmatmul.bf16.gmra.mxu0 %v279
  %v1150 = vpop.f32.mrf.mxu0
  %v1151 = vadd.f32 %v121, %v1150
  %v1152 = vpop.f32.mrf.mxu0
  %v1153 = vadd.f32 %v121, %v1152
  %1154 = vmatmul.bf16.gmra.mxu0 %v281
  %v1155 = vpop.f32.mrf.mxu0
  %v1156 = vadd.f32 %v121, %v1155
  %v1157 = vpop.f32.mrf.mxu0
  %v1158 = vadd.f32 %v121, %v1157
  %1159 = vmatmul.bf16.gmra.mxu0 %v283
  %v1160 = vpop.f32.mrf.mxu0
  %v1161 = vadd.f32 %v121, %v1160
  %v1162 = vpop.f32.mrf.mxu0
  %v1163 = vadd.f32 %v121, %v1162
  %1164 = vmatmul.bf16.gmra.mxu0 %v285
  %v1165 = vpop.f32.mrf.mxu0
  %v1166 = vadd.f32 %v121, %v1165
  %v1167 = vpop.f32.mrf.mxu0
  %v1168 = vadd.f32 %v121, %v1167
  %1169 = vmatmul.bf16.gmra.mxu0 %v287
  %v1170 = vpop.f32.mrf.mxu0
  %v1171 = vadd.f32 %v121, %v1170
  %v1172 = vpop.f32.mrf.mxu0
  %v1173 = vadd.f32 %v121, %v1172
  %1174 = vmatmul.bf16.gmra.mxu0 %v289
  %v1175 = vpop.f32.mrf.mxu0
  %v1176 = vadd.f32 %v121, %v1175
  %v1177 = vpop.f32.mrf.mxu0
  %v1178 = vadd.f32 %v121, %v1177
  %1179 = vmatmul.bf16.gmra.mxu0 %v291
  %v1180 = vpop.f32.mrf.mxu0
  %v1181 = vadd.f32 %v121, %v1180
  %v1182 = vpop.f32.mrf.mxu0
  %v1183 = vadd.f32 %v121, %v1182
  %1184 = vmatmul.bf16.gmra.mxu0 %v293
  %v1185 = vpop.f32.mrf.mxu0
  %v1186 = vadd.f32 %v121, %v1185
  %v1187 = vpop.f32.mrf.mxu0
  %v1188 = vadd.f32 %v121, %v1187
  %1189 = vmatmul.bf16.gmra.mxu0 %v295
  %v1190 = vpop.f32.mrf.mxu0
  %v1191 = vadd.f32 %v121, %v1190
  %v1192 = vpop.f32.mrf.mxu0
  %v1193 = vadd.f32 %v121, %v1192
  %1194 = vmatmul.bf16.gmra.mxu0 %v297
  %v1195 = vpop.f32.mrf.mxu0
  %v1196 = vadd.f32 %v121, %v1195
  %v1197 = vpop.f32.mrf.mxu0
  %v1198 = vadd.f32 %v121, %v1197
  %1199 = vmatmul.bf16.gmra.mxu0 %v299
  %v1200 = vpop.f32.mrf.mxu0
  %v1201 = vadd.f32 %v121, %v1200
  %v1202 = vpop.f32.mrf.mxu0
  %v1203 = vadd.f32 %v121, %v1202
  %1204 = vmatmul.bf16.gmra.mxu0 %v301
  %v1205 = vpop.f32.mrf.mxu0
  %v1206 = vadd.f32 %v121, %v1205
  %v1207 = vpop.f32.mrf.mxu0
  %v1208 = vadd.f32 %v121, %v1207
  %1209 = vmatmul.bf16.gmra.mxu0 %v303
  %v1210 = vpop.f32.mrf.mxu0
  %v1211 = vadd.f32 %v121, %v1210
  %v1212 = vpop.f32.mrf.mxu0
  %v1213 = vadd.f32 %v121, %v1212
  %1214 = vmatmul.bf16.gmra.mxu0 %v305
  %v1215 = vpop.f32.mrf.mxu0
  %v1216 = vadd.f32 %v121, %v1215
  %v1217 = vpop.f32.mrf.mxu0
  %v1218 = vadd.f32 %v121, %v1217
  %1219 = vmatmul.bf16.gmra.mxu0 %v307
  %v1220 = vpop.f32.mrf.mxu0
  %v1221 = vadd.f32 %v121, %v1220
  %v1222 = vpop.f32.mrf.mxu0
  %v1223 = vadd.f32 %v121, %v1222
  %1224 = vmatmul.bf16.gmra.mxu0 %v309
  %v1225 = vpop.f32.mrf.mxu0
  %v1226 = vadd.f32 %v121, %v1225
  %v1227 = vpop.f32.mrf.mxu0
  %v1228 = vadd.f32 %v121, %v1227
  %1229 = vmatmul.bf16.gmra.mxu0 %v311
  %v1230 = vpop.f32.mrf.mxu0
  %v1231 = vadd.f32 %v121, %v1230
  %v1232 = vpop.f32.mrf.mxu0
  %v1233 = vadd.f32 %v121, %v1232
  %1234 = vmatmul.bf16.gmra.mxu0 %v313
  %v1235 = vpop.f32.mrf.mxu0
  %v1236 = vadd.f32 %v121, %v1235
  %v1237 = vpop.f32.mrf.mxu0
  %v1238 = vadd.f32 %v121, %v1237
  %1239 = vmatmul.bf16.gmra.mxu0 %v315
  %v1240 = vpop.f32.mrf.mxu0
  %v1241 = vadd.f32 %v121, %v1240
  %v1242 = vpop.f32.mrf.mxu0
  %v1243 = vadd.f32 %v121, %v1242
  %1244 = vmatmul.bf16.gmra.mxu0 %v317
  %v1245 = vpop.f32.mrf.mxu0
  %v1246 = vadd.f32 %v121, %v1245
  %v1247 = vpop.f32.mrf.mxu0
  %v1248 = vadd.f32 %v121, %v1247
  %1249 = vdwg.mxu0
  %1250 = vmatpush.bf16.msra.mxu0 0
  %1251 = vmatpush.bf16.msra.mxu0 0
  %1252 = vmatpush.bf16.msra.mxu0 0
  %1253 = vmatpush.bf16.msra.mxu0 0
  %1254 = vmatpush.bf16.msra.mxu0 0
  %1255 = vmatpush.bf16.msra.mxu0 0
  %1256 = vmatpush.bf16.msra.mxu0 0
  %1257 = vmatpush.bf16.msra.mxu0 %v600
  %1258 = vmatmul.bf16.gmra.mxu0 %v521
  %v1259 = vpop.f32.mrf.mxu0
  %v1260 = vadd.f32 %v1131, %v1259
  %v1261 = vpop.f32.mrf.mxu0
  %v1262 = vadd.f32 %v1133, %v1261
  %1263 = vmatmul.bf16.gmra.mxu0 %v524
  %v1264 = vpop.f32.mrf.mxu0
  %v1265 = vadd.f32 %v1136, %v1264
  %v1266 = vpop.f32.mrf.mxu0
  %v1267 = vadd.f32 %v1138, %v1266
  %1268 = vmatmul.bf16.gmra.mxu0 %v527
  %v1269 = vpop.f32.mrf.mxu0
  %v1270 = vadd.f32 %v1141, %v1269
  %v1271 = vpop.f32.mrf.mxu0
  %v1272 = vadd.f32 %v1143, %v1271
  %1273 = vmatmul.bf16.gmra.mxu0 %v530
  %v1274 = vpop.f32.mrf.mxu0
  %v1275 = vadd.f32 %v1146, %v1274
  %v1276 = vpop.f32.mrf.mxu0
  %v1277 = vadd.f32 %v1148, %v1276
  %1278 = vmatmul.bf16.gmra.mxu0 %v533
  %v1279 = vpop.f32.mrf.mxu0
  %v1280 = vadd.f32 %v1151, %v1279
  %v1281 = vpop.f32.mrf.mxu0
  %v1282 = vadd.f32 %v1153, %v1281
  %1283 = vmatmul.bf16.gmra.mxu0 %v536
  %v1284 = vpop.f32.mrf.mxu0
  %v1285 = vadd.f32 %v1156, %v1284
  %v1286 = vpop.f32.mrf.mxu0
  %v1287 = vadd.f32 %v1158, %v1286
  %1288 = vmatmul.bf16.gmra.mxu0 %v539
  %v1289 = vpop.f32.mrf.mxu0
  %v1290 = vadd.f32 %v1161, %v1289
  %v1291 = vpop.f32.mrf.mxu0
  %v1292 = vadd.f32 %v1163, %v1291
  %1293 = vmatmul.bf16.gmra.mxu0 %v542
  %v1294 = vpop.f32.mrf.mxu0
  %v1295 = vadd.f32 %v1166, %v1294
  %v1296 = vpop.f32.mrf.mxu0
  %v1297 = vadd.f32 %v1168, %v1296
  %1298 = vmatmul.bf16.gmra.mxu0 %v545
  %v1299 = vpop.f32.mrf.mxu0
  %v1300 = vadd.f32 %v1171, %v1299
  %v1301 = vpop.f32.mrf.mxu0
  %v1302 = vadd.f32 %v1173, %v1301
  %1303 = vmatmul.bf16.gmra.mxu0 %v548
  %v1304 = vpop.f32.mrf.mxu0
  %v1305 = vadd.f32 %v1176, %v1304
  %v1306 = vpop.f32.mrf.mxu0
  %v1307 = vadd.f32 %v1178, %v1306
  %1308 = vmatmul.bf16.gmra.mxu0 %v551
  %v1309 = vpop.f32.mrf.mxu0
  %v1310 = vadd.f32 %v1181, %v1309
  %v1311 = vpop.f32.mrf.mxu0
  %v1312 = vadd.f32 %v1183, %v1311
  %1313 = vmatmul.bf16.gmra.mxu0 %v554
  %v1314 = vpop.f32.mrf.mxu0
  %v1315 = vadd.f32 %v1186, %v1314
  %v1316 = vpop.f32.mrf.mxu0
  %v1317 = vadd.f32 %v1188, %v1316
  %1318 = vmatmul.bf16.gmra.mxu0 %v557
  %v1319 = vpop.f32.mrf.mxu0
  %v1320 = vadd.f32 %v1191, %v1319
  %v1321 = vpop.f32.mrf.mxu0
  %v1322 = vadd.f32 %v1193, %v1321
  %1323 = vmatmul.bf16.gmra.mxu0 %v560
  %v1324 = vpop.f32.mrf.mxu0
  %v1325 = vadd.f32 %v1196, %v1324
  %v1326 = vpop.f32.mrf.mxu0
  %v1327 = vadd.f32 %v1198, %v1326
  %1328 = vmatmul.bf16.gmra.mxu0 %v563
  %v1329 = vpop.f32.mrf.mxu0
  %v1330 = vadd.f32 %v1201, %v1329
  %v1331 = vpop.f32.mrf.mxu0
  %v1332 = vadd.f32 %v1203, %v1331
  %1333 = vmatmul.bf16.gmra.mxu0 %v566
  %v1334 = vpop.f32.mrf.mxu0
  %v1335 = vadd.f32 %v1206, %v1334
  %v1336 = vpop.f32.mrf.mxu0
  %v1337 = vadd.f32 %v1208, %v1336
  %1338 = vmatmul.bf16.gmra.mxu0 %v569
  %v1339 = vpop.f32.mrf.mxu0
  %v1340 = vadd.f32 %v1211, %v1339
  %v1341 = vpop.f32.mrf.mxu0
  %v1342 = vadd.f32 %v1213, %v1341
  %1343 = vmatmul.bf16.gmra.mxu0 %v572
  %v1344 = vpop.f32.mrf.mxu0
  %v1345 = vadd.f32 %v1216, %v1344
  %v1346 = vpop.f32.mrf.mxu0
  %v1347 = vadd.f32 %v1218, %v1346
  %1348 = vmatmul.bf16.gmra.mxu0 %v575
  %v1349 = vpop.f32.mrf.mxu0
  %v1350 = vadd.f32 %v1221, %v1349
  %v1351 = vpop.f32.mrf.mxu0
  %v1352 = vadd.f32 %v1223, %v1351
  %1353 = vmatmul.bf16.gmra.mxu0 %v578
  %v1354 = vpop.f32.mrf.mxu0
  %v1355 = vadd.f32 %v1226, %v1354
  %v1356 = vpop.f32.mrf.mxu0
  %v1357 = vadd.f32 %v1228, %v1356
  %1358 = vmatmul.bf16.gmra.mxu0 %v581
  %v1359 = vpop.f32.mrf.mxu0
  %v1360 = vadd.f32 %v1231, %v1359
  %v1361 = vpop.f32.mrf.mxu0
  %v1362 = vadd.f32 %v1233, %v1361
  %1363 = vmatmul.bf16.gmra.mxu0 %v584
  %v1364 = vpop.f32.mrf.mxu0
  %v1365 = vadd.f32 %v1236, %v1364
  %v1366 = vpop.f32.mrf.mxu0
  %v1367 = vadd.f32 %v1238, %v1366
  %1368 = vmatmul.bf16.gmra.mxu0 %v587
  %v1369 = vpop.f32.mrf.mxu0
  %v1370 = vadd.f32 %v1241, %v1369
  %v1371 = vpop.f32.mrf.mxu0
  %v1372 = vadd.f32 %v1243, %v1371
  %1373 = vmatmul.bf16.gmra.mxu0 %v590
  %v1374 = vpop.f32.mrf.mxu0
  %v1375 = vadd.f32 %v1246, %v1374
  %v1376 = vpop.f32.mrf.mxu0
  %v1377 = vadd.f32 %v1248, %v1376
  %1378 = vdwg.mxu0
  %1379 = vmatpush.bf16.msra.mxu0 %v482
  %1380 = vmatpush.bf16.msra.mxu0 %v478
  %1381 = vmatpush.bf16.msra.mxu0 %v474
  %1382 = vmatpush.bf16.msra.mxu0 %v470
  %1383 = vmatpush.bf16.msra.mxu0 %v466
  %1384 = vmatpush.bf16.msra.mxu0 %v462
  %1385 = vmatpush.bf16.msra.mxu0 %v458
  %1386 = vmatpush.bf16.msra.mxu0 %v454
  %1387 = vmatmul.bf16.gmra.mxu0 %v271
  %v1388 = vpop.f32.mrf.mxu0
  %v1389 = vadd.f32 %v122, %v1388
  %v1390 = vpop.f32.mrf.mxu0
  %v1391 = vadd.f32 %v122, %v1390
  %1392 = vmatmul.bf16.gmra.mxu0 %v273
  %v1393 = vpop.f32.mrf.mxu0
  %v1394 = vadd.f32 %v122, %v1393
  %v1395 = vpop.f32.mrf.mxu0
  %v1396 = vadd.f32 %v122, %v1395
  %1397 = vmatmul.bf16.gmra.mxu0 %v275
  %v1398 = vpop.f32.mrf.mxu0
  %v1399 = vadd.f32 %v122, %v1398
  %v1400 = vpop.f32.mrf.mxu0
  %v1401 = vadd.f32 %v122, %v1400
  %1402 = vmatmul.bf16.gmra.mxu0 %v277
  %v1403 = vpop.f32.mrf.mxu0
  %v1404 = vadd.f32 %v122, %v1403
  %v1405 = vpop.f32.mrf.mxu0
  %v1406 = vadd.f32 %v122, %v1405
  %1407 = vmatmul.bf16.gmra.mxu0 %v279
  %v1408 = vpop.f32.mrf.mxu0
  %v1409 = vadd.f32 %v122, %v1408
  %v1410 = vpop.f32.mrf.mxu0
  %v1411 = vadd.f32 %v122, %v1410
  %1412 = vmatmul.bf16.gmra.mxu0 %v281
  %v1413 = vpop.f32.mrf.mxu0
  %v1414 = vadd.f32 %v122, %v1413
  %v1415 = vpop.f32.mrf.mxu0
  %v1416 = vadd.f32 %v122, %v1415
  %1417 = vmatmul.bf16.gmra.mxu0 %v283
  %v1418 = vpop.f32.mrf.mxu0
  %v1419 = vadd.f32 %v122, %v1418
  %v1420 = vpop.f32.mrf.mxu0
  %v1421 = vadd.f32 %v122, %v1420
  %1422 = vmatmul.bf16.gmra.mxu0 %v285
  %v1423 = vpop.f32.mrf.mxu0
  %v1424 = vadd.f32 %v122, %v1423
  %v1425 = vpop.f32.mrf.mxu0
  %v1426 = vadd.f32 %v122, %v1425
  %1427 = vmatmul.bf16.gmra.mxu0 %v287
  %v1428 = vpop.f32.mrf.mxu0
  %v1429 = vadd.f32 %v122, %v1428
  %v1430 = vpop.f32.mrf.mxu0
  %v1431 = vadd.f32 %v122, %v1430
  %1432 = vmatmul.bf16.gmra.mxu0 %v289
  %v1433 = vpop.f32.mrf.mxu0
  %v1434 = vadd.f32 %v122, %v1433
  %v1435 = vpop.f32.mrf.mxu0
  %v1436 = vadd.f32 %v122, %v1435
  %1437 = vmatmul.bf16.gmra.mxu0 %v291
  %v1438 = vpop.f32.mrf.mxu0
  %v1439 = vadd.f32 %v122, %v1438
  %v1440 = vpop.f32.mrf.mxu0
  %v1441 = vadd.f32 %v122, %v1440
  %1442 = vmatmul.bf16.gmra.mxu0 %v293
  %v1443 = vpop.f32.mrf.mxu0
  %v1444 = vadd.f32 %v122, %v1443
  %v1445 = vpop.f32.mrf.mxu0
  %v1446 = vadd.f32 %v122, %v1445
  %1447 = vmatmul.bf16.gmra.mxu0 %v295
  %v1448 = vpop.f32.mrf.mxu0
  %v1449 = vadd.f32 %v122, %v1448
  %v1450 = vpop.f32.mrf.mxu0
  %v1451 = vadd.f32 %v122, %v1450
  %1452 = vmatmul.bf16.gmra.mxu0 %v297
  %v1453 = vpop.f32.mrf.mxu0
  %v1454 = vadd.f32 %v122, %v1453
  %v1455 = vpop.f32.mrf.mxu0
  %v1456 = vadd.f32 %v122, %v1455
  %1457 = vmatmul.bf16.gmra.mxu0 %v299
  %v1458 = vpop.f32.mrf.mxu0
  %v1459 = vadd.f32 %v122, %v1458
  %v1460 = vpop.f32.mrf.mxu0
  %v1461 = vadd.f32 %v122, %v1460
  %1462 = vmatmul.bf16.gmra.mxu0 %v301
  %v1463 = vpop.f32.mrf.mxu0
  %v1464 = vadd.f32 %v122, %v1463
  %v1465 = vpop.f32.mrf.mxu0
  %v1466 = vadd.f32 %v122, %v1465
  %1467 = vmatmul.bf16.gmra.mxu0 %v303
  %v1468 = vpop.f32.mrf.mxu0
  %v1469 = vadd.f32 %v122, %v1468
  %v1470 = vpop.f32.mrf.mxu0
  %v1471 = vadd.f32 %v122, %v1470
  %1472 = vmatmul.bf16.gmra.mxu0 %v305
  %v1473 = vpop.f32.mrf.mxu0
  %v1474 = vadd.f32 %v122, %v1473
  %v1475 = vpop.f32.mrf.mxu0
  %v1476 = vadd.f32 %v122, %v1475
  %1477 = vmatmul.bf16.gmra.mxu0 %v307
  %v1478 = vpop.f32.mrf.mxu0
  %v1479 = vadd.f32 %v122, %v1478
  %v1480 = vpop.f32.mrf.mxu0
  %v1481 = vadd.f32 %v122, %v1480
  %1482 = vmatmul.bf16.gmra.mxu0 %v309
  %v1483 = vpop.f32.mrf.mxu0
  %v1484 = vadd.f32 %v122, %v1483
  %v1485 = vpop.f32.mrf.mxu0
  %v1486 = vadd.f32 %v122, %v1485
  %1487 = vmatmul.bf16.gmra.mxu0 %v311
  %v1488 = vpop.f32.mrf.mxu0
  %v1489 = vadd.f32 %v122, %v1488
  %v1490 = vpop.f32.mrf.mxu0
  %v1491 = vadd.f32 %v122, %v1490
  %1492 = vmatmul.bf16.gmra.mxu0 %v313
  %v1493 = vpop.f32.mrf.mxu0
  %v1494 = vadd.f32 %v122, %v1493
  %v1495 = vpop.f32.mrf.mxu0
  %v1496 = vadd.f32 %v122, %v1495
  %1497 = vmatmul.bf16.gmra.mxu0 %v315
  %v1498 = vpop.f32.mrf.mxu0
  %v1499 = vadd.f32 %v122, %v1498
  %v1500 = vpop.f32.mrf.mxu0
  %v1501 = vadd.f32 %v122, %v1500
  %1502 = vmatmul.bf16.gmra.mxu0 %v317
  %v1503 = vpop.f32.mrf.mxu0
  %v1504 = vadd.f32 %v122, %v1503
  %v1505 = vpop.f32.mrf.mxu0
  %v1506 = vadd.f32 %v122, %v1505
  %1507 = vdwg.mxu0
  %1508 = vmatpush.bf16.msra.mxu0 0
  %1509 = vmatpush.bf16.msra.mxu0 0
  %1510 = vmatpush.bf16.msra.mxu0 0
  %1511 = vmatpush.bf16.msra.mxu0 0
  %1512 = vmatpush.bf16.msra.mxu0 0
  %1513 = vmatpush.bf16.msra.mxu0 0
  %1514 = vmatpush.bf16.msra.mxu0 0
  %1515 = vmatpush.bf16.msra.mxu0 %v603
  %1516 = vmatmul.bf16.gmra.mxu0 %v521
  %v1517 = vpop.f32.mrf.mxu0
  %v1518 = vadd.f32 %v1389, %v1517
  %v1519 = vpop.f32.mrf.mxu0
  %v1520 = vadd.f32 %v1391, %v1519
  %1521 = vmatmul.bf16.gmra.mxu0 %v524
  %v1522 = vpop.f32.mrf.mxu0
  %v1523 = vadd.f32 %v1394, %v1522
  %v1524 = vpop.f32.mrf.mxu0
  %v1525 = vadd.f32 %v1396, %v1524
  %1526 = vmatmul.bf16.gmra.mxu0 %v527
  %v1527 = vpop.f32.mrf.mxu0
  %v1528 = vadd.f32 %v1399, %v1527
  %v1529 = vpop.f32.mrf.mxu0
  %v1530 = vadd.f32 %v1401, %v1529
  %1531 = vmatmul.bf16.gmra.mxu0 %v530
  %v1532 = vpop.f32.mrf.mxu0
  %v1533 = vadd.f32 %v1404, %v1532
  %v1534 = vpop.f32.mrf.mxu0
  %v1535 = vadd.f32 %v1406, %v1534
  %1536 = vmatmul.bf16.gmra.mxu0 %v533
  %v1537 = vpop.f32.mrf.mxu0
  %v1538 = vadd.f32 %v1409, %v1537
  %v1539 = vpop.f32.mrf.mxu0
  %v1540 = vadd.f32 %v1411, %v1539
  %1541 = vmatmul.bf16.gmra.mxu0 %v536
  %v1542 = vpop.f32.mrf.mxu0
  %v1543 = vadd.f32 %v1414, %v1542
  %v1544 = vpop.f32.mrf.mxu0
  %v1545 = vadd.f32 %v1416, %v1544
  %1546 = vmatmul.bf16.gmra.mxu0 %v539
  %v1547 = vpop.f32.mrf.mxu0
  %v1548 = vadd.f32 %v1419, %v1547
  %v1549 = vpop.f32.mrf.mxu0
  %v1550 = vadd.f32 %v1421, %v1549
  %1551 = vmatmul.bf16.gmra.mxu0 %v542
  %v1552 = vpop.f32.mrf.mxu0
  %v1553 = vadd.f32 %v1424, %v1552
  %v1554 = vpop.f32.mrf.mxu0
  %v1555 = vadd.f32 %v1426, %v1554
  %1556 = vmatmul.bf16.gmra.mxu0 %v545
  %v1557 = vpop.f32.mrf.mxu0
  %v1558 = vadd.f32 %v1429, %v1557
  %v1559 = vpop.f32.mrf.mxu0
  %v1560 = vadd.f32 %v1431, %v1559
  %1561 = vmatmul.bf16.gmra.mxu0 %v548
  %v1562 = vpop.f32.mrf.mxu0
  %v1563 = vadd.f32 %v1434, %v1562
  %v1564 = vpop.f32.mrf.mxu0
  %v1565 = vadd.f32 %v1436, %v1564
  %1566 = vmatmul.bf16.gmra.mxu0 %v551
  %v1567 = vpop.f32.mrf.mxu0
  %v1568 = vadd.f32 %v1439, %v1567
  %v1569 = vpop.f32.mrf.mxu0
  %v1570 = vadd.f32 %v1441, %v1569
  %1571 = vmatmul.bf16.gmra.mxu0 %v554
  %v1572 = vpop.f32.mrf.mxu0
  %v1573 = vadd.f32 %v1444, %v1572
  %v1574 = vpop.f32.mrf.mxu0
  %v1575 = vadd.f32 %v1446, %v1574
  %1576 = vmatmul.bf16.gmra.mxu0 %v557
  %v1577 = vpop.f32.mrf.mxu0
  %v1578 = vadd.f32 %v1449, %v1577
  %v1579 = vpop.f32.mrf.mxu0
  %v1580 = vadd.f32 %v1451, %v1579
  %1581 = vmatmul.bf16.gmra.mxu0 %v560
  %v1582 = vpop.f32.mrf.mxu0
  %v1583 = vadd.f32 %v1454, %v1582
  %v1584 = vpop.f32.mrf.mxu0
  %v1585 = vadd.f32 %v1456, %v1584
  %1586 = vmatmul.bf16.gmra.mxu0 %v563
  %v1587 = vpop.f32.mrf.mxu0
  %v1588 = vadd.f32 %v1459, %v1587
  %v1589 = vpop.f32.mrf.mxu0
  %v1590 = vadd.f32 %v1461, %v1589
  %1591 = vmatmul.bf16.gmra.mxu0 %v566
  %v1592 = vpop.f32.mrf.mxu0
  %v1593 = vadd.f32 %v1464, %v1592
  %v1594 = vpop.f32.mrf.mxu0
  %v1595 = vadd.f32 %v1466, %v1594
  %1596 = vmatmul.bf16.gmra.mxu0 %v569
  %v1597 = vpop.f32.mrf.mxu0
  %v1598 = vadd.f32 %v1469, %v1597
  %v1599 = vpop.f32.mrf.mxu0
  %v1600 = vadd.f32 %v1471, %v1599
  %1601 = vmatmul.bf16.gmra.mxu0 %v572
  %v1602 = vpop.f32.mrf.mxu0
  %v1603 = vadd.f32 %v1474, %v1602
  %v1604 = vpop.f32.mrf.mxu0
  %v1605 = vadd.f32 %v1476, %v1604
  %1606 = vmatmul.bf16.gmra.mxu0 %v575
  %v1607 = vpop.f32.mrf.mxu0
  %v1608 = vadd.f32 %v1479, %v1607
  %v1609 = vpop.f32.mrf.mxu0
  %v1610 = vadd.f32 %v1481, %v1609
  %1611 = vmatmul.bf16.gmra.mxu0 %v578
  %v1612 = vpop.f32.mrf.mxu0
  %v1613 = vadd.f32 %v1484, %v1612
  %v1614 = vpop.f32.mrf.mxu0
  %v1615 = vadd.f32 %v1486, %v1614
  %1616 = vmatmul.bf16.gmra.mxu0 %v581
  %v1617 = vpop.f32.mrf.mxu0
  %v1618 = vadd.f32 %v1489, %v1617
  %v1619 = vpop.f32.mrf.mxu0
  %v1620 = vadd.f32 %v1491, %v1619
  %1621 = vmatmul.bf16.gmra.mxu0 %v584
  %v1622 = vpop.f32.mrf.mxu0
  %v1623 = vadd.f32 %v1494, %v1622
  %v1624 = vpop.f32.mrf.mxu0
  %v1625 = vadd.f32 %v1496, %v1624
  %1626 = vmatmul.bf16.gmra.mxu0 %v587
  %v1627 = vpop.f32.mrf.mxu0
  %v1628 = vadd.f32 %v1499, %v1627
  %v1629 = vpop.f32.mrf.mxu0
  %v1630 = vadd.f32 %v1501, %v1629
  %1631 = vmatmul.bf16.gmra.mxu0 %v590
  %v1632 = vpop.f32.mrf.mxu0
  %v1633 = vadd.f32 %v1504, %v1632
  %v1634 = vpop.f32.mrf.mxu0
  %v1635 = vadd.f32 %v1506, %v1634
  %1636 = vdwg.mxu0
  %v1637 = vmax.f32 %v744, 0.0
  %v1638 = vmax.f32 %v1002, 0.0
  %v1639 = vmax.f32 %v1260, 0.0
  %v1640 = vmax.f32 %v1518, 0.0
  %v1641 = vmax.f32 %v746, 0.0
  %v1642 = vmax.f32 %v1004, 0.0
  %v1643 = vmax.f32 %v1262, 0.0
  %v1644 = vmax.f32 %v1520, 0.0
  %v1645 = vmax.f32 %v749, 0.0
  %v1646 = vmax.f32 %v1007, 0.0
  %v1647 = vmax.f32 %v1265, 0.0
  %v1648 = vmax.f32 %v1523, 0.0
  %v1649 = vmax.f32 %v751, 0.0
  %v1650 = vmax.f32 %v1009, 0.0
  %v1651 = vmax.f32 %v1267, 0.0
  %v1652 = vmax.f32 %v1525, 0.0
  %v1653 = vmax.f32 %v754, 0.0
  %v1654 = vmax.f32 %v1012, 0.0
  %v1655 = vmax.f32 %v1270, 0.0
  %v1656 = vmax.f32 %v1528, 0.0
  %v1657 = vmax.f32 %v756, 0.0
  %v1658 = vmax.f32 %v1014, 0.0
  %v1659 = vmax.f32 %v1272, 0.0
  %v1660 = vmax.f32 %v1530, 0.0
  %v1661 = vmax.f32 %v759, 0.0
  %v1662 = vmax.f32 %v1017, 0.0
  %v1663 = vmax.f32 %v1275, 0.0
  %v1664 = vmax.f32 %v1533, 0.0
  %v1665 = vmax.f32 %v761, 0.0
  %v1666 = vmax.f32 %v1019, 0.0
  %v1667 = vmax.f32 %v1277, 0.0
  %v1668 = vmax.f32 %v1535, 0.0
  %v1669 = vmax.f32 %v764, 0.0
  %v1670 = vmax.f32 %v1022, 0.0
  %v1671 = vmax.f32 %v1280, 0.0
  %v1672 = vmax.f32 %v1538, 0.0
  %v1673 = vmax.f32 %v766, 0.0
  %v1674 = vmax.f32 %v1024, 0.0
  %v1675 = vmax.f32 %v1282, 0.0
  %v1676 = vmax.f32 %v1540, 0.0
  %v1677 = vmax.f32 %v769, 0.0
  %v1678 = vmax.f32 %v1027, 0.0
  %v1679 = vmax.f32 %v1285, 0.0
  %v1680 = vmax.f32 %v1543, 0.0
  %v1681 = vmax.f32 %v771, 0.0
  %v1682 = vmax.f32 %v1029, 0.0
  %v1683 = vmax.f32 %v1287, 0.0
  %v1684 = vmax.f32 %v1545, 0.0
  %v1685 = vmax.f32 %v774, 0.0
  %v1686 = vmax.f32 %v1032, 0.0
  %v1687 = vmax.f32 %v1290, 0.0
  %v1688 = vmax.f32 %v1548, 0.0
  %v1689 = vmax.f32 %v776, 0.0
  %v1690 = vmax.f32 %v1034, 0.0
  %v1691 = vmax.f32 %v1292, 0.0
  %v1692 = vmax.f32 %v1550, 0.0
  %v1693 = vmax.f32 %v779, 0.0
  %v1694 = vmax.f32 %v1037, 0.0
  %v1695 = vmax.f32 %v1295, 0.0
  %v1696 = vmax.f32 %v1553, 0.0
  %v1697 = vmax.f32 %v781, 0.0
  %v1698 = vmax.f32 %v1039, 0.0
  %v1699 = vmax.f32 %v1297, 0.0
  %v1700 = vmax.f32 %v1555, 0.0
  %v1701 = vmax.f32 %v784, 0.0
  %v1702 = vmax.f32 %v1042, 0.0
  %v1703 = vmax.f32 %v1300, 0.0
  %v1704 = vmax.f32 %v1558, 0.0
  %v1705 = vmax.f32 %v786, 0.0
  %v1706 = vmax.f32 %v1044, 0.0
  %v1707 = vmax.f32 %v1302, 0.0
  %v1708 = vmax.f32 %v1560, 0.0
  %v1709 = vmax.f32 %v789, 0.0
  %v1710 = vmax.f32 %v1047, 0.0
  %v1711 = vmax.f32 %v1305, 0.0
  %v1712 = vmax.f32 %v1563, 0.0
  %v1713 = vmax.f32 %v791, 0.0
  %v1714 = vmax.f32 %v1049, 0.0
  %v1715 = vmax.f32 %v1307, 0.0
  %v1716 = vmax.f32 %v1565, 0.0
  %v1717 = vmax.f32 %v794, 0.0
  %v1718 = vmax.f32 %v1052, 0.0
  %v1719 = vmax.f32 %v1310, 0.0
  %v1720 = vmax.f32 %v1568, 0.0
  %v1721 = vmax.f32 %v796, 0.0
  %v1722 = vmax.f32 %v1054, 0.0
  %v1723 = vmax.f32 %v1312, 0.0
  %v1724 = vmax.f32 %v1570, 0.0
  %v1725 = vmax.f32 %v799, 0.0
  %v1726 = vmax.f32 %v1057, 0.0
  %v1727 = vmax.f32 %v1315, 0.0
  %v1728 = vmax.f32 %v1573, 0.0
  %v1729 = vmax.f32 %v801, 0.0
  %v1730 = vmax.f32 %v1059, 0.0
  %v1731 = vmax.f32 %v1317, 0.0
  %v1732 = vmax.f32 %v1575, 0.0
  %v1733 = vmax.f32 %v804, 0.0
  %v1734 = vmax.f32 %v1062, 0.0
  %v1735 = vmax.f32 %v1320, 0.0
  %v1736 = vmax.f32 %v1578, 0.0
  %v1737 = vmax.f32 %v806, 0.0
  %v1738 = vmax.f32 %v1064, 0.0
  %v1739 = vmax.f32 %v1322, 0.0
  %v1740 = vmax.f32 %v1580, 0.0
  %v1741 = vmax.f32 %v809, 0.0
  %v1742 = vmax.f32 %v1067, 0.0
  %v1743 = vmax.f32 %v1325, 0.0
  %v1744 = vmax.f32 %v1583, 0.0
  %v1745 = vmax.f32 %v811, 0.0
  %v1746 = vmax.f32 %v1069, 0.0
  %v1747 = vmax.f32 %v1327, 0.0
  %v1748 = vmax.f32 %v1585, 0.0
  %v1749 = vmax.f32 %v814, 0.0
  %v1750 = vmax.f32 %v1072, 0.0
  %v1751 = vmax.f32 %v1330, 0.0
  %v1752 = vmax.f32 %v1588, 0.0
  %v1753 = vmax.f32 %v816, 0.0
  %v1754 = vmax.f32 %v1074, 0.0
  %v1755 = vmax.f32 %v1332, 0.0
  %v1756 = vmax.f32 %v1590, 0.0
  %v1757 = vmax.f32 %v819, 0.0
  %v1758 = vmax.f32 %v1077, 0.0
  %v1759 = vmax.f32 %v1335, 0.0
  %v1760 = vmax.f32 %v1593, 0.0
  %v1761 = vmax.f32 %v821, 0.0
  %v1762 = vmax.f32 %v1079, 0.0
  %v1763 = vmax.f32 %v1337, 0.0
  %v1764 = vmax.f32 %v1595, 0.0
  %v1765 = vmax.f32 %v824, 0.0
  %v1766 = vmax.f32 %v1082, 0.0
  %v1767 = vmax.f32 %v1340, 0.0
  %v1768 = vmax.f32 %v1598, 0.0
  %v1769 = vmax.f32 %v826, 0.0
  %v1770 = vmax.f32 %v1084, 0.0
  %v1771 = vmax.f32 %v1342, 0.0
  %v1772 = vmax.f32 %v1600, 0.0
  %v1773 = vmax.f32 %v829, 0.0
  %v1774 = vmax.f32 %v1087, 0.0
  %v1775 = vmax.f32 %v1345, 0.0
  %v1776 = vmax.f32 %v1603, 0.0
  %v1777 = vmax.f32 %v831, 0.0
  %v1778 = vmax.f32 %v1089, 0.0
  %v1779 = vmax.f32 %v1347, 0.0
  %v1780 = vmax.f32 %v1605, 0.0
  %v1781 = vmax.f32 %v834, 0.0
  %v1782 = vmax.f32 %v1092, 0.0
  %v1783 = vmax.f32 %v1350, 0.0
  %v1784 = vmax.f32 %v1608, 0.0
  %v1785 = vmax.f32 %v836, 0.0
  %v1786 = vmax.f32 %v1094, 0.0
  %v1787 = vmax.f32 %v1352, 0.0
  %v1788 = vmax.f32 %v1610, 0.0
  %v1789 = vmax.f32 %v839, 0.0
  %v1790 = vmax.f32 %v1097, 0.0
  %v1791 = vmax.f32 %v1355, 0.0
  %v1792 = vmax.f32 %v1613, 0.0
  %v1793 = vmax.f32 %v841, 0.0
  %v1794 = vmax.f32 %v1099, 0.0
  %v1795 = vmax.f32 %v1357, 0.0
  %v1796 = vmax.f32 %v1615, 0.0
  %v1797 = vmax.f32 %v844, 0.0
  %v1798 = vmax.f32 %v1102, 0.0
  %v1799 = vmax.f32 %v1360, 0.0
  %v1800 = vmax.f32 %v1618, 0.0
  %v1801 = vmax.f32 %v846, 0.0
  %v1802 = vmax.f32 %v1104, 0.0
  %v1803 = vmax.f32 %v1362, 0.0
  %v1804 = vmax.f32 %v1620, 0.0
  %v1805 = vmax.f32 %v849, 0.0
  %v1806 = vmax.f32 %v1107, 0.0
  %v1807 = vmax.f32 %v1365, 0.0
  %v1808 = vmax.f32 %v1623, 0.0
  %v1809 = vmax.f32 %v851, 0.0
  %v1810 = vmax.f32 %v1109, 0.0
  %v1811 = vmax.f32 %v1367, 0.0
  %v1812 = vmax.f32 %v1625, 0.0
  %v1813 = vmax.f32 %v854, 0.0
  %v1814 = vmax.f32 %v1112, 0.0
  %v1815 = vmax.f32 %v1370, 0.0
  %v1816 = vmax.f32 %v1628, 0.0
  %v1817 = vmax.f32 %v856, 0.0
  %v1818 = vmax.f32 %v1114, 0.0
  %v1819 = vmax.f32 %v1372, 0.0
  %v1820 = vmax.f32 %v1630, 0.0
  %v1821 = vmax.f32 %v859, 0.0
  %v1822 = vmax.f32 %v1117, 0.0
  %v1823 = vmax.f32 %v1375, 0.0
  %v1824 = vmax.f32 %v1633, 0.0
  %v1825 = vmax.f32 %v861, 0.0
  %v1826 = vmax.f32 %v1119, 0.0
  %v1827 = vmax.f32 %v1377, 0.0
  %v1828 = vmax.f32 %v1635, 0.0
  %v1829 = vmax.f32 %v1637, %v1645
  %v1830 = vmax.f32 %v1638, %v1646
  %v1831 = vmax.f32 %v1639, %v1647
  %v1832 = vmax.f32 %v1640, %v1648
  %v1833 = vmax.f32 %v1641, %v1649
  %v1834 = vmax.f32 %v1642, %v1650
  %v1835 = vmax.f32 %v1643, %v1651
  %v1836 = vmax.f32 %v1644, %v1652
  %v1837 = vmax.f32 %v1653, %v1661
  %v1838 = vmax.f32 %v1654, %v1662
  %v1839 = vmax.f32 %v1655, %v1663
  %v1840 = vmax.f32 %v1656, %v1664
  %v1841 = vmax.f32 %v1657, %v1665
  %v1842 = vmax.f32 %v1658, %v1666
  %v1843 = vmax.f32 %v1659, %v1667
  %v1844 = vmax.f32 %v1660, %v1668
  %v1845 = vmax.f32 %v1669, %v1677
  %v1846 = vmax.f32 %v1670, %v1678
  %v1847 = vmax.f32 %v1671, %v1679
  %v1848 = vmax.f32 %v1672, %v1680
  %v1849 = vmax.f32 %v1673, %v1681
  %v1850 = vmax.f32 %v1674, %v1682
  %v1851 = vmax.f32 %v1675, %v1683
  %v1852 = vmax.f32 %v1676, %v1684
  %v1853 = vmax.f32 %v1685, %v1693
  %v1854 = vmax.f32 %v1686, %v1694
  %v1855 = vmax.f32 %v1687, %v1695
  %v1856 = vmax.f32 %v1688, %v1696
  %v1857 = vmax.f32 %v1689, %v1697
  %v1858 = vmax.f32 %v1690, %v1698
  %v1859 = vmax.f32 %v1691, %v1699
  %v1860 = vmax.f32 %v1692, %v1700
  %v1861 = vmax.f32 %v1701, %v1709
  %v1862 = vmax.f32 %v1702, %v1710
  %v1863 = vmax.f32 %v1703, %v1711
  %v1864 = vmax.f32 %v1704, %v1712
  %v1865 = vmax.f32 %v1705, %v1713
  %v1866 = vmax.f32 %v1706, %v1714
  %v1867 = vmax.f32 %v1707, %v1715
  %v1868 = vmax.f32 %v1708, %v1716
  %v1869 = vmax.f32 %v1717, %v1725
  %v1870 = vmax.f32 %v1718, %v1726
  %v1871 = vmax.f32 %v1719, %v1727
  %v1872 = vmax.f32 %v1720, %v1728
  %v1873 = vmax.f32 %v1721, %v1729
  %v1874 = vmax.f32 %v1722, %v1730
  %v1875 = vmax.f32 %v1723, %v1731
  %v1876 = vmax.f32 %v1724, %v1732
  %v1877 = vmax.f32 %v1733, %v1741
  %v1878 = vmax.f32 %v1734, %v1742
  %v1879 = vmax.f32 %v1735, %v1743
  %v1880 = vmax.f32 %v1736, %v1744
  %v1881 = vmax.f32 %v1737, %v1745
  %v1882 = vmax.f32 %v1738, %v1746
  %v1883 = vmax.f32 %v1739, %v1747
  %v1884 = vmax.f32 %v1740, %v1748
  %v1885 = vmax.f32 %v1749, %v1757
  %v1886 = vmax.f32 %v1750, %v1758
  %v1887 = vmax.f32 %v1751, %v1759
  %v1888 = vmax.f32 %v1752, %v1760
  %v1889 = vmax.f32 %v1753, %v1761
  %v1890 = vmax.f32 %v1754, %v1762
  %v1891 = vmax.f32 %v1755, %v1763
  %v1892 = vmax.f32 %v1756, %v1764
  %v1893 = vmax.f32 %v1765, %v1773
  %v1894 = vmax.f32 %v1766, %v1774
  %v1895 = vmax.f32 %v1767, %v1775
  %v1896 = vmax.f32 %v1768, %v1776
  %v1897 = vmax.f32 %v1769, %v1777
  %v1898 = vmax.f32 %v1770, %v1778
  %v1899 = vmax.f32 %v1771, %v1779
  %v1900 = vmax.f32 %v1772, %v1780
  %v1901 = vmax.f32 %v1781, %v1789
  %v1902 = vmax.f32 %v1782, %v1790
  %v1903 = vmax.f32 %v1783, %v1791
  %v1904 = vmax.f32 %v1784, %v1792
  %v1905 = vmax.f32 %v1785, %v1793
  %v1906 = vmax.f32 %v1786, %v1794
  %v1907 = vmax.f32 %v1787, %v1795
  %v1908 = vmax.f32 %v1788, %v1796
  %v1909 = vmax.f32 %v1797, %v1805
  %v1910 = vmax.f32 %v1798, %v1806
  %v1911 = vmax.f32 %v1799, %v1807
  %v1912 = vmax.f32 %v1800, %v1808
  %v1913 = vmax.f32 %v1801, %v1809
  %v1914 = vmax.f32 %v1802, %v1810
  %v1915 = vmax.f32 %v1803, %v1811
  %v1916 = vmax.f32 %v1804, %v1812
  %v1917 = vmax.f32 %v1813, %v1821
  %v1918 = vmax.f32 %v1814, %v1822
  %v1919 = vmax.f32 %v1815, %v1823
  %v1920 = vmax.f32 %v1816, %v1824
  %v1921 = vmax.f32 %v1817, %v1825
  %v1922 = vmax.f32 %v1818, %v1826
  %v1923 = vmax.f32 %v1819, %v1827
  %v1924 = vmax.f32 %v1820, %v1828
  %v1925 = vmax.f32 %v1829, %v1831
  %v1926 = vmax.f32 %v1830, %v1832
  %v1927 = vmax.f32 %v1833, %v1835
  %v1928 = vmax.f32 %v1834, %v1836
  %v1929 = vmax.f32 %v1837, %v1839
  %v1930 = vmax.f32 %v1838, %v1840
  %v1931 = vmax.f32 %v1841, %v1843
  %v1932 = vmax.f32 %v1842, %v1844
  %v1933 = vmax.f32 %v1845, %v1847
  %v1934 = vmax.f32 %v1846, %v1848
  %v1935 = vmax.f32 %v1849, %v1851
  %v1936 = vmax.f32 %v1850, %v1852
  %v1937 = vmax.f32 %v1853, %v1855
  %v1938 = vmax.f32 %v1854, %v1856
  %v1939 = vmax.f32 %v1857, %v1859
  %v1940 = vmax.f32 %v1858, %v1860
  %v1941 = vmax.f32 %v1861, %v1863
  %v1942 = vmax.f32 %v1862, %v1864
  %v1943 = vmax.f32 %v1865, %v1867
  %v1944 = vmax.f32 %v1866, %v1868
  %v1945 = vmax.f32 %v1869, %v1871
  %v1946 = vmax.f32 %v1870, %v1872
  %v1947 = vmax.f32 %v1873, %v1875
  %v1948 = vmax.f32 %v1874, %v1876
  %v1949 = vmax.f32 %v1877, %v1879
  %v1950 = vmax.f32 %v1878, %v1880
  %v1951 = vmax.f32 %v1881, %v1883
  %v1952 = vmax.f32 %v1882, %v1884
  %v1953 = vmax.f32 %v1885, %v1887
  %v1954 = vmax.f32 %v1886, %v1888
  %v1955 = vmax.f32 %v1889, %v1891
  %v1956 = vmax.f32 %v1890, %v1892
  %v1957 = vmax.f32 %v1893, %v1895
  %v1958 = vmax.f32 %v1894, %v1896
  %v1959 = vmax.f32 %v1897, %v1899
  %v1960 = vmax.f32 %v1898, %v1900
  %v1961 = vmax.f32 %v1901, %v1903
  %v1962 = vmax.f32 %v1902, %v1904
  %v1963 = vmax.f32 %v1905, %v1907
  %v1964 = vmax.f32 %v1906, %v1908
  %v1965 = vmax.f32 %v1909, %v1911
  %v1966 = vmax.f32 %v1910, %v1912
  %v1967 = vmax.f32 %v1913, %v1915
  %v1968 = vmax.f32 %v1914, %v1916
  %v1969 = vmax.f32 %v1917, %v1919
  %v1970 = vmax.f32 %v1918, %v1920
  %v1971 = vmax.f32 %v1921, %v1923
  %v1972 = vmax.f32 %v1922, %v1924
  %v1973 = vpack.c.bf16 %v1926, %v1925
  %v1974 = vpack.c.bf16 %v1928, %v1927
  %v1975 = vpack.c.bf16 %v1930, %v1929
  %v1976 = vpack.c.bf16 %v1932, %v1931
  %v1977 = vpack.c.bf16 %v1934, %v1933
  %v1978 = vpack.c.bf16 %v1936, %v1935
  %v1979 = vpack.c.bf16 %v1938, %v1937
  %v1980 = vpack.c.bf16 %v1940, %v1939
  %v1981 = vpack.c.bf16 %v1942, %v1941
  %v1982 = vpack.c.bf16 %v1944, %v1943
  %v1983 = vpack.c.bf16 %v1946, %v1945
  %v1984 = vpack.c.bf16 %v1948, %v1947
  %v1985 = vpack.c.bf16 %v1950, %v1949
  %v1986 = vpack.c.bf16 %v1952, %v1951
  %v1987 = vpack.c.bf16 %v1954, %v1953
  %v1988 = vpack.c.bf16 %v1956, %v1955
  %v1989 = vpack.c.bf16 %v1958, %v1957
  %v1990 = vpack.c.bf16 %v1960, %v1959
  %v1991 = vpack.c.bf16 %v1962, %v1961
  %v1992 = vpack.c.bf16 %v1964, %v1963
  %v1993 = vpack.c.bf16 %v1966, %v1965
  %v1994 = vpack.c.bf16 %v1968, %v1967
  %v1995 = vpack.c.bf16 %v1970, %v1969
  %v1996 = vpack.c.bf16 %v1972, %v1971
  %v2013 = vunpack.c.l.b16 %v1973
  %v2014 = vunpack.c.h.b16 %v1973
  %v2015 = vunpack.c.l.b16 %v1974
  %v2016 = vunpack.c.h.b16 %v1974
  %v2017 = vunpack.c.l.b16 %v1975
  %v2018 = vunpack.c.h.b16 %v1975
  %v2019 = vunpack.c.l.b16 %v1976
  %v2020 = vunpack.c.h.b16 %v1976
  %v2021 = vunpack.c.l.b16 %v1977
  %v2022 = vunpack.c.h.b16 %v1977
  %v2023 = vunpack.c.l.b16 %v1978
  %v2024 = vunpack.c.h.b16 %v1978
  %v2025 = vunpack.c.l.b16 %v1979
  %v2026 = vunpack.c.h.b16 %v1979
  %v2027 = vunpack.c.l.b16 %v1980
  %v2028 = vunpack.c.h.b16 %v1980
  %v2029 = vunpack.c.l.b16 %v1981
  %v2030 = vunpack.c.h.b16 %v1981
  %v2031 = vunpack.c.l.b16 %v1982
  %v2032 = vunpack.c.h.b16 %v1982
  %v2033 = vunpack.c.l.b16 %v1983
  %v2034 = vunpack.c.h.b16 %v1983
  %v2035 = vunpack.c.l.b16 %v1984
  %v2036 = vunpack.c.h.b16 %v1984
  %v2037 = vunpack.c.l.b16 %v1985
  %v2038 = vunpack.c.h.b16 %v1985
  %v2039 = vunpack.c.l.b16 %v1986
  %v2040 = vunpack.c.h.b16 %v1986
  %v2041 = vunpack.c.l.b16 %v1987
  %v2042 = vunpack.c.h.b16 %v1987
  %v2043 = vunpack.c.l.b16 %v1988
  %v2044 = vunpack.c.h.b16 %v1988
  %v2045 = vpack.c.b16 %v2015, %v2013
  %v2046 = vpack.c.b16 %v2016, %v2014
  %v2047 = vpack.c.b16 %v2019, %v2017
  %v2048 = vpack.c.b16 %v2020, %v2018
  %v2049 = vpack.c.b16 %v2023, %v2021
  %v2050 = vpack.c.b16 %v2024, %v2022
  %v2051 = vpack.c.b16 %v2027, %v2025
  %v2052 = vpack.c.b16 %v2028, %v2026
  %v2053 = vpack.c.b16 %v2031, %v2029
  %v2054 = vpack.c.b16 %v2032, %v2030
  %v2055 = vpack.c.b16 %v2035, %v2033
  %v2056 = vpack.c.b16 %v2036, %v2034
  %v2057 = vpack.c.b16 %v2039, %v2037
  %v2058 = vpack.c.b16 %v2040, %v2038
  %v2059 = vpack.c.b16 %v2043, %v2041
  %v2060 = vpack.c.b16 %v2044, %v2042
  %v2079 = vunpack.c.l.b16 %v1989
  %v2080 = vunpack.c.h.b16 %v1989
  %v2081 = vunpack.c.l.b16 %v1990
  %v2082 = vunpack.c.h.b16 %v1990
  %v2083 = vpack.c.b16 %v2081, %v2079
  %v2084 = vpack.c.b16 %v2082, %v2080
  %v2089 = vunpack.c.l.b16 %v1991
  %v2090 = vunpack.c.h.b16 %v1991
  %v2091 = vunpack.c.l.b16 %v1992
  %v2092 = vunpack.c.h.b16 %v1992
  %v2093 = vpack.c.b16 %v2091, %v2089
  %v2094 = vpack.c.b16 %v2092, %v2090
  %v2099 = vunpack.c.l.b16 %v1993
  %v2100 = vunpack.c.h.b16 %v1993
  %v2101 = vunpack.c.l.b16 %v1994
  %v2102 = vunpack.c.h.b16 %v1994
  %v2103 = vpack.c.b16 %v2101, %v2099
  %v2104 = vpack.c.b16 %v2102, %v2100
  %v2109 = vunpack.c.l.b16 %v1995
  %v2110 = vunpack.c.h.b16 %v1995
  %v2111 = vunpack.c.l.b16 %v1996
  %v2112 = vunpack.c.h.b16 %v1996
  %v2113 = vpack.c.b16 %v2111, %v2109
  %v2114 = vpack.c.b16 %v2112, %v2110
  %v2117 = vld [vmem:[%s3] sm:$0xff]
  %v2118 = vld [vmem:[%s3 + $0x8] sm:$0xff]
  %v2119 = vld [vmem:[%s3 + $0x10] sm:$0xff]
  %v2120 = vld [vmem:[%s3 + $0x18] sm:$0xff]
  %v2121 = vld [vmem:[%s3 + $0x20] sm:$0xff]
  %v2122 = vld [vmem:[%s3 + $0x28] sm:$0xff]
  %v2123 = vld [vmem:[%s3 + $0x30] sm:$0xff]
  %v2124 = vld [vmem:[%s3 + $0x38] sm:$0xff]
  %v2125 = vld [vmem:[%s3 + $0x40] sm:$0xff]
  %v2126 = vld [vmem:[%s3 + $0x48] sm:$0xff]
  %v2127 = vld [vmem:[%s3 + $0x50] sm:$0xff]
  %v2128 = vld [vmem:[%s3 + $0x58] sm:$0xff]
  %v2129 = vld [vmem:[%s3 + $0x60] sm:$0xff]
  %v2130 = vld [vmem:[%s3 + $0x68] sm:$0xff]
  %v2131 = vld [vmem:[%s3 + $0x70] sm:$0xff]
  %v2132 = vld [vmem:[%s3 + $0x78] sm:$0xff]
  %v2133 = vld [vmem:[%s3 + $0x80] sm:$0xff]
  %v2134 = vld [vmem:[%s3 + $0x88] sm:$0xff]
  %v2135 = vld [vmem:[%s3 + $0x90] sm:$0xff]
  %v2136 = vld [vmem:[%s3 + $0x98] sm:$0xff]
  %v2137 = vld [vmem:[%s3 + $0xa0] sm:$0xff]
  %v2138 = vld [vmem:[%s3 + $0xa8] sm:$0xff]
  %v2139 = vld [vmem:[%s3 + $0xb0] sm:$0xff]
  %v2140 = vld [vmem:[%s3 + $0xb8] sm:$0xff]
  %v2141 = vld [vmem:[%s3 + $0xc0] sm:$0xff]
  %v2142 = vld [vmem:[%s3 + $0xc8] sm:$0xff]
  %v2143 = vld [vmem:[%s3 + $0xd0] sm:$0xff]
  %v2144 = vld [vmem:[%s3 + $0xd8] sm:$0xff]
  %v2145 = vld [vmem:[%s3 + $0xe0] sm:$0xff]
  %v2146 = vld [vmem:[%s3 + $0xe8] sm:$0xff]
  %v2147 = vld [vmem:[%s3 + $0xf0] sm:$0xff]
  %v2148 = vld [vmem:[%s3 + $0xf8] sm:$0xff]
  %v2149 = vld [vmem:[%s3 + $0x100] sm:$0xff]
  %v2150 = vld [vmem:[%s3 + $0x108] sm:$0xff]
  %v2151 = vld [vmem:[%s3 + $0x110] sm:$0xff]
  %v2152 = vld [vmem:[%s3 + $0x118] sm:$0xff]
  %v2153 = vld [vmem:[%s3 + $0x120] sm:$0xff]
  %v2154 = vld [vmem:[%s3 + $0x128] sm:$0xff]
  %v2155 = vld [vmem:[%s3 + $0x130] sm:$0xff]
  %v2156 = vld [vmem:[%s3 + $0x138] sm:$0xff]
  %v2157 = vld [vmem:[%s3 + $0x140] sm:$0xff]
  %v2158 = vld [vmem:[%s3 + $0x148] sm:$0xff]
  %v2159 = vld [vmem:[%s3 + $0x150] sm:$0xff]
  %v2160 = vld [vmem:[%s3 + $0x158] sm:$0xff]
  %v2161 = vld [vmem:[%s3 + $0x160] sm:$0xff]
  %v2162 = vld [vmem:[%s3 + $0x168] sm:$0xff]
  %v2163 = vld [vmem:[%s3 + $0x170] sm:$0xff]
  %v2164 = vld [vmem:[%s3 + $0x178] sm:$0xff]
  %v2165 = vld [vmem:[%s3 + $0x180] sm:$0xff]
  %v2166 = vld [vmem:[%s3 + $0x188] sm:$0xff]
  %v2167 = vld [vmem:[%s3 + $0x190] sm:$0xff]
  %v2168 = vld [vmem:[%s3 + $0x198] sm:$0xff]
  %v2169 = vld [vmem:[%s3 + $0x1a0] sm:$0xff]
  %v2170 = vld [vmem:[%s3 + $0x1a8] sm:$0xff]
  %v2171 = vld [vmem:[%s3 + $0x1b0] sm:$0xff]
  %v2172 = vld [vmem:[%s3 + $0x1b8] sm:$0xff]
  %v2173 = vld [vmem:[%s3 + $0x1c0] sm:$0xff]
  %v2174 = vld [vmem:[%s3 + $0x1c8] sm:$0xff]
  %v2175 = vld [vmem:[%s3 + $0x1d0] sm:$0xff]
  %v2176 = vld [vmem:[%s3 + $0x1d8] sm:$0xff]
  %v2177 = vld [vmem:[%s3 + $0x1e0] sm:$0xff]
  %v2178 = vld [vmem:[%s3 + $0x1e8] sm:$0xff]
  %v2179 = vld [vmem:[%s3 + $0x1f0] sm:$0xff]
  %v2180 = vld [vmem:[%s3 + $0x1f8] sm:$0xff]
  %v2181 = vld [vmem:[%s3 + $0x200] sm:$0xff]
  %v2182 = vld [vmem:[%s3 + $0x208] sm:$0xff]
  %v2183 = vld [vmem:[%s3 + $0x210] sm:$0xff]
  %v2184 = vld [vmem:[%s3 + $0x218] sm:$0xff]
  %v2185 = vld [vmem:[%s3 + $0x220] sm:$0xff]
  %v2186 = vld [vmem:[%s3 + $0x228] sm:$0xff]
  %v2187 = vld [vmem:[%s3 + $0x230] sm:$0xff]
  %v2188 = vld [vmem:[%s3 + $0x238] sm:$0xff]
  %v2189 = vld [vmem:[%s3 + $0x240] sm:$0xff]
  %v2190 = vld [vmem:[%s3 + $0x248] sm:$0xff]
  %v2191 = vld [vmem:[%s3 + $0x250] sm:$0xff]
  %v2192 = vld [vmem:[%s3 + $0x258] sm:$0xff]
  %v2193 = vld [vmem:[%s3 + $0x260] sm:$0xff]
  %v2194 = vld [vmem:[%s3 + $0x268] sm:$0xff]
  %v2195 = vld [vmem:[%s3 + $0x270] sm:$0xff]
  %v2196 = vld [vmem:[%s3 + $0x278] sm:$0xff]
  %v2197 = vld [vmem:[%s3 + $0x280] sm:$0xff]
  %v2198 = vld [vmem:[%s3 + $0x288] sm:$0xff]
  %v2199 = vld [vmem:[%s3 + $0x290] sm:$0xff]
  %v2200 = vld [vmem:[%s3 + $0x298] sm:$0xff]
  %v2201 = vld [vmem:[%s3 + $0x2a0] sm:$0xff]
  %v2202 = vld [vmem:[%s3 + $0x2a8] sm:$0xff]
  %v2203 = vld [vmem:[%s3 + $0x2b0] sm:$0xff]
  %v2204 = vld [vmem:[%s3 + $0x2b8] sm:$0xff]
  %v2205 = vld [vmem:[%s3 + $0x2c0] sm:$0xff]
  %v2206 = vld [vmem:[%s3 + $0x2c8] sm:$0xff]
  %v2207 = vld [vmem:[%s3 + $0x2d0] sm:$0xff]
  %v2208 = vld [vmem:[%s3 + $0x2d8] sm:$0xff]
  %v2209 = vld [vmem:[%s3 + $0x2e0] sm:$0xff]
  %v2210 = vld [vmem:[%s3 + $0x2e8] sm:$0xff]
  %v2211 = vld [vmem:[%s3 + $0x2f0] sm:$0xff]
  %v2212 = vld [vmem:[%s3 + $0x2f8] sm:$0xff]
  %v2213 = vld [vmem:[%s3 + $0x300] sm:$0xff]
  %v2214 = vld [vmem:[%s3 + $0x308] sm:$0xff]
  %v2215 = vld [vmem:[%s3 + $0x310] sm:$0xff]
  %v2216 = vld [vmem:[%s3 + $0x318] sm:$0xff]
  %v2217 = vld [vmem:[%s3 + $0x320] sm:$0xff]
  %v2218 = vld [vmem:[%s3 + $0x328] sm:$0xff]
  %v2219 = vld [vmem:[%s3 + $0x330] sm:$0xff]
  %v2220 = vld [vmem:[%s3 + $0x338] sm:$0xff]
  %v2221 = vld [vmem:[%s3 + $0x340] sm:$0xff]
  %v2222 = vld [vmem:[%s3 + $0x348] sm:$0xff]
  %v2223 = vld [vmem:[%s3 + $0x350] sm:$0xff]
  %v2224 = vld [vmem:[%s3 + $0x358] sm:$0xff]
  %v2225 = vld [vmem:[%s3 + $0x360] sm:$0xff]
  %v2226 = vld [vmem:[%s3 + $0x368] sm:$0xff]
  %v2227 = vld [vmem:[%s3 + $0x370] sm:$0xff]
  %v2228 = vld [vmem:[%s3 + $0x378] sm:$0xff]
  %v2229 = vld [vmem:[%s3 + $0x380] sm:$0xff]
  %v2230 = vld [vmem:[%s3 + $0x388] sm:$0xff]
  %v2231 = vld [vmem:[%s3 + $0x390] sm:$0xff]
  %v2232 = vld [vmem:[%s3 + $0x398] sm:$0xff]
  %v2233 = vld [vmem:[%s3 + $0x3a0] sm:$0xff]
  %v2234 = vld [vmem:[%s3 + $0x3a8] sm:$0xff]
  %v2235 = vld [vmem:[%s3 + $0x3b0] sm:$0xff]
  %v2236 = vld [vmem:[%s3 + $0x3b8] sm:$0xff]
  %v2237 = vld [vmem:[%s3 + $0x3c0] sm:$0xff]
  %v2238 = vld [vmem:[%s3 + $0x3c8] sm:$0xff]
  %v2239 = vld [vmem:[%s3 + $0x3d0] sm:$0xff]
  %v2240 = vld [vmem:[%s3 + $0x3d8] sm:$0xff]
  %v2241 = vld [vmem:[%s3 + $0x3e0] sm:$0xff]
  %v2242 = vld [vmem:[%s3 + $0x3e8] sm:$0xff]
  %v2243 = vld [vmem:[%s3 + $0x3f0] sm:$0xff]
  %v2244 = vld [vmem:[%s3 + $0x3f8] sm:$0xff]
  %v2245 = vld [vmem:[%s3 + $0x400] sm:$0xff]
  %v2246 = vld [vmem:[%s3 + $0x408] sm:$0xff]
  %v2247 = vld [vmem:[%s3 + $0x410] sm:$0xff]
  %v2248 = vld [vmem:[%s3 + $0x418] sm:$0xff]
  %v2249 = vld [vmem:[%s3 + $0x420] sm:$0xff]
  %v2250 = vld [vmem:[%s3 + $0x428] sm:$0xff]
  %v2251 = vld [vmem:[%s3 + $0x430] sm:$0xff]
  %v2252 = vld [vmem:[%s3 + $0x438] sm:$0xff]
  %v2253 = vld [vmem:[%s3 + $0x440] sm:$0xff]
  %v2254 = vld [vmem:[%s3 + $0x448] sm:$0xff]
  %v2255 = vld [vmem:[%s3 + $0x450] sm:$0xff]
  %v2256 = vld [vmem:[%s3 + $0x458] sm:$0xff]
  %v2257 = vld [vmem:[%s3 + $0x460] sm:$0xff]
  %v2258 = vld [vmem:[%s3 + $0x468] sm:$0xff]
  %v2259 = vld [vmem:[%s3 + $0x470] sm:$0xff]
  %v2260 = vld [vmem:[%s3 + $0x478] sm:$0xff]
  %v2261 = vld [vmem:[%s3 + $0x480] sm:$0xff]
  %v2262 = vld [vmem:[%s3 + $0x488] sm:$0xff]
  %v2263 = vld [vmem:[%s3 + $0x490] sm:$0xff]
  %v2264 = vld [vmem:[%s3 + $0x498] sm:$0xff]
  %v2265 = vld [vmem:[%s3 + $0x4a0] sm:$0xff]
  %v2266 = vld [vmem:[%s3 + $0x4a8] sm:$0xff]
  %v2267 = vld [vmem:[%s3 + $0x4b0] sm:$0xff]
  %v2268 = vld [vmem:[%s3 + $0x4b8] sm:$0xff]
  %v2269 = vld [vmem:[%s3 + $0x4c0] sm:$0xff]
  %v2270 = vld [vmem:[%s3 + $0x4c8] sm:$0xff]
  %v2271 = vld [vmem:[%s3 + $0x4d0] sm:$0xff]
  %v2272 = vld [vmem:[%s3 + $0x4d8] sm:$0xff]
  %v2273 = vld [vmem:[%s3 + $0x4e0] sm:$0xff]
  %v2274 = vld [vmem:[%s3 + $0x4e8] sm:$0xff]
  %v2275 = vld [vmem:[%s3 + $0x4f0] sm:$0xff]
  %v2276 = vld [vmem:[%s3 + $0x4f8] sm:$0xff]
  %v2277 = vld [vmem:[%s3 + $0x500] sm:$0xff]
  %v2278 = vld [vmem:[%s3 + $0x508] sm:$0xff]
  %v2279 = vld [vmem:[%s3 + $0x510] sm:$0xff]
  %v2280 = vld [vmem:[%s3 + $0x518] sm:$0xff]
  %v2281 = vld [vmem:[%s3 + $0x520] sm:$0xff]
  %v2282 = vld [vmem:[%s3 + $0x528] sm:$0xff]
  %v2283 = vld [vmem:[%s3 + $0x530] sm:$0xff]
  %v2284 = vld [vmem:[%s3 + $0x538] sm:$0xff]
  %v2285 = vld [vmem:[%s3 + $0x540] sm:$0xff]
  %v2286 = vld [vmem:[%s3 + $0x548] sm:$0xff]
  %v2287 = vld [vmem:[%s3 + $0x550] sm:$0xff]
  %v2288 = vld [vmem:[%s3 + $0x558] sm:$0xff]
  %v2289 = vld [vmem:[%s3 + $0x560] sm:$0xff]
  %v2290 = vld [vmem:[%s3 + $0x568] sm:$0xff]
  %v2291 = vld [vmem:[%s3 + $0x570] sm:$0xff]
  %v2292 = vld [vmem:[%s3 + $0x578] sm:$0xff]
  %v2293 = vld [vmem:[%s3 + $0x580] sm:$0xff]
  %v2294 = vld [vmem:[%s3 + $0x588] sm:$0xff]
  %v2295 = vld [vmem:[%s3 + $0x590] sm:$0xff]
  %v2296 = vld [vmem:[%s3 + $0x598] sm:$0xff]
  %v2297 = vld [vmem:[%s3 + $0x5a0] sm:$0xff]
  %v2298 = vld [vmem:[%s3 + $0x5a8] sm:$0xff]
  %v2299 = vld [vmem:[%s3 + $0x5b0] sm:$0xff]
  %v2300 = vld [vmem:[%s3 + $0x5b8] sm:$0xff]
  %v2301 = vld [vmem:[%s3 + $0x5c0] sm:$0xff]
  %v2302 = vld [vmem:[%s3 + $0x5c8] sm:$0xff]
  %v2303 = vld [vmem:[%s3 + $0x5d0] sm:$0xff]
  %v2304 = vld [vmem:[%s3 + $0x5d8] sm:$0xff]
  %v2305 = vld [vmem:[%s3 + $0x5e0] sm:$0xff]
  %v2306 = vld [vmem:[%s3 + $0x5e8] sm:$0xff]
  %v2307 = vld [vmem:[%s3 + $0x5f0] sm:$0xff]
  %v2308 = vld [vmem:[%s3 + $0x5f8] sm:$0xff]
  %v2309 = vld [vmem:[%s3 + $0x600] sm:$0xff]
  %v2310 = vld [vmem:[%s3 + $0x608] sm:$0xff]
  %v2311 = vld [vmem:[%s3 + $0x610] sm:$0xff]
  %v2312 = vld [vmem:[%s3 + $0x618] sm:$0xff]
  %v2313 = vld [vmem:[%s3 + $0x620] sm:$0xff]
  %v2314 = vld [vmem:[%s3 + $0x628] sm:$0xff]
  %v2315 = vld [vmem:[%s3 + $0x630] sm:$0xff]
  %v2316 = vld [vmem:[%s3 + $0x638] sm:$0xff]
  %v2317 = vld [vmem:[%s3 + $0x640] sm:$0xff]
  %v2318 = vld [vmem:[%s3 + $0x648] sm:$0xff]
  %v2319 = vld [vmem:[%s3 + $0x650] sm:$0xff]
  %v2320 = vld [vmem:[%s3 + $0x658] sm:$0xff]
  %v2321 = vld [vmem:[%s3 + $0x660] sm:$0xff]
  %v2322 = vld [vmem:[%s3 + $0x668] sm:$0xff]
  %v2323 = vld [vmem:[%s3 + $0x670] sm:$0xff]
  %v2324 = vld [vmem:[%s3 + $0x678] sm:$0xff]
  %v2325 = vld [vmem:[%s3 + $0x680] sm:$0xff]
  %v2326 = vld [vmem:[%s3 + $0x688] sm:$0xff]
  %v2327 = vld [vmem:[%s3 + $0x690] sm:$0xff]
  %v2328 = vld [vmem:[%s3 + $0x698] sm:$0xff]
  %v2329 = vld [vmem:[%s3 + $0x6a0] sm:$0xff]
  %v2330 = vld [vmem:[%s3 + $0x6a8] sm:$0xff]
  %v2331 = vld [vmem:[%s3 + $0x6b0] sm:$0xff]
  %v2332 = vld [vmem:[%s3 + $0x6b8] sm:$0xff]
  %v2333 = vld [vmem:[%s3 + $0x6c0] sm:$0xff]
  %v2334 = vld [vmem:[%s3 + $0x6c8] sm:$0xff]
  %v2335 = vld [vmem:[%s3 + $0x6d0] sm:$0xff]
  %v2336 = vld [vmem:[%s3 + $0x6d8] sm:$0xff]
  %v2337 = vld [vmem:[%s3 + $0x6e0] sm:$0xff]
  %v2338 = vld [vmem:[%s3 + $0x6e8] sm:$0xff]
  %v2339 = vld [vmem:[%s3 + $0x6f0] sm:$0xff]
  %v2340 = vld [vmem:[%s3 + $0x6f8] sm:$0xff]
  %v2341 = vld [vmem:[%s3 + $0x700] sm:$0xff]
  %v2342 = vld [vmem:[%s3 + $0x708] sm:$0xff]
  %v2343 = vld [vmem:[%s3 + $0x710] sm:$0xff]
  %v2344 = vld [vmem:[%s3 + $0x718] sm:$0xff]
  %v2345 = vld [vmem:[%s3 + $0x720] sm:$0xff]
  %v2346 = vld [vmem:[%s3 + $0x728] sm:$0xff]
  %v2347 = vld [vmem:[%s3 + $0x730] sm:$0xff]
  %v2348 = vld [vmem:[%s3 + $0x738] sm:$0xff]
  %v2349 = vld [vmem:[%s3 + $0x740] sm:$0xff]
  %v2350 = vld [vmem:[%s3 + $0x748] sm:$0xff]
  %v2351 = vld [vmem:[%s3 + $0x750] sm:$0xff]
  %v2352 = vld [vmem:[%s3 + $0x758] sm:$0xff]
  %v2353 = vld [vmem:[%s3 + $0x760] sm:$0xff]
  %v2354 = vld [vmem:[%s3 + $0x768] sm:$0xff]
  %v2355 = vld [vmem:[%s3 + $0x770] sm:$0xff]
  %v2356 = vld [vmem:[%s3 + $0x778] sm:$0xff]
  %v2357 = vld [vmem:[%s3 + $0x780] sm:$0xff]
  %v2358 = vld [vmem:[%s3 + $0x788] sm:$0xff]
  %v2359 = vld [vmem:[%s3 + $0x790] sm:$0xff]
  %v2360 = vld [vmem:[%s3 + $0x798] sm:$0xff]
  %v2361 = vld [vmem:[%s3 + $0x7a0] sm:$0xff]
  %v2362 = vld [vmem:[%s3 + $0x7a8] sm:$0xff]
  %v2363 = vld [vmem:[%s3 + $0x7b0] sm:$0xff]
  %v2364 = vld [vmem:[%s3 + $0x7b8] sm:$0xff]
  %v2365 = vld [vmem:[%s3 + $0x7c0] sm:$0xff]
  %v2366 = vld [vmem:[%s3 + $0x7c8] sm:$0xff]
  %v2367 = vld [vmem:[%s3 + $0x7d0] sm:$0xff]
  %v2368 = vld [vmem:[%s3 + $0x7d8] sm:$0xff]
  %v2369 = vld [vmem:[%s3 + $0x7e0] sm:$0xff]
  %v2370 = vld [vmem:[%s3 + $0x7e8] sm:$0xff]
  %v2371 = vld [vmem:[%s3 + $0x7f0] sm:$0xff]
  %v2372 = vld [vmem:[%s3 + $0x7f8] sm:$0xff]
  %v2373 = vld [vmem:[%s3 + $0x800] sm:$0xff]
  %v2374 = vld [vmem:[%s3 + $0x808] sm:$0xff]
  %v2375 = vld [vmem:[%s3 + $0x810] sm:$0xff]
  %v2376 = vld [vmem:[%s3 + $0x818] sm:$0xff]
  %v2377 = vld [vmem:[%s3 + $0x820] sm:$0xff]
  %v2378 = vld [vmem:[%s3 + $0x828] sm:$0xff]
  %v2379 = vld [vmem:[%s3 + $0x830] sm:$0xff]
  %v2380 = vld [vmem:[%s3 + $0x838] sm:$0xff]
  %v2381 = vld [vmem:[%s3 + $0x840] sm:$0xff]
  %v2382 = vld [vmem:[%s3 + $0x848] sm:$0xff]
  %v2383 = vld [vmem:[%s3 + $0x850] sm:$0xff]
  %v2384 = vld [vmem:[%s3 + $0x858] sm:$0xff]
  %v2385 = vld [vmem:[%s3 + $0x860] sm:$0xff]
  %v2386 = vld [vmem:[%s3 + $0x868] sm:$0xff]
  %v2387 = vld [vmem:[%s3 + $0x870] sm:$0xff]
  %v2388 = vld [vmem:[%s3 + $0x878] sm:$0xff]
  %v2389 = vld [vmem:[%s3 + $0x880] sm:$0xff]
  %v2390 = vld [vmem:[%s3 + $0x888] sm:$0xff]
  %v2391 = vld [vmem:[%s3 + $0x890] sm:$0xff]
  %v2392 = vld [vmem:[%s3 + $0x898] sm:$0xff]
  %v2393 = vld [vmem:[%s3 + $0x8a0] sm:$0xff]
  %v2394 = vld [vmem:[%s3 + $0x8a8] sm:$0xff]
  %v2395 = vld [vmem:[%s3 + $0x8b0] sm:$0xff]
  %v2396 = vld [vmem:[%s3 + $0x8b8] sm:$0xff]
  %v2397 = vld [vmem:[%s3 + $0x8c0] sm:$0xff]
  %v2398 = vld [vmem:[%s3 + $0x8c8] sm:$0xff]
  %v2399 = vld [vmem:[%s3 + $0x8d0] sm:$0xff]
  %v2400 = vld [vmem:[%s3 + $0x8d8] sm:$0xff]
  %v2401 = vld [vmem:[%s3 + $0x8e0] sm:$0xff]
  %v2402 = vld [vmem:[%s3 + $0x8e8] sm:$0xff]
  %v2403 = vld [vmem:[%s3 + $0x8f0] sm:$0xff]
  %v2404 = vld [vmem:[%s3 + $0x8f8] sm:$0xff]
  %v2405 = vld [vmem:[%s3 + $0x900] sm:$0xff]
  %v2406 = vld [vmem:[%s3 + $0x908] sm:$0xff]
  %v2407 = vld [vmem:[%s3 + $0x910] sm:$0xff]
  %v2408 = vld [vmem:[%s3 + $0x918] sm:$0xff]
  %v2409 = vld [vmem:[%s3 + $0x920] sm:$0xff]
  %v2410 = vld [vmem:[%s3 + $0x928] sm:$0xff]
  %v2411 = vld [vmem:[%s3 + $0x930] sm:$0xff]
  %v2412 = vld [vmem:[%s3 + $0x938] sm:$0xff]
  %v2413 = vld [vmem:[%s3 + $0x940] sm:$0xff]
  %v2414 = vld [vmem:[%s3 + $0x948] sm:$0xff]
  %v2415 = vld [vmem:[%s3 + $0x950] sm:$0xff]
  %v2416 = vld [vmem:[%s3 + $0x958] sm:$0xff]
  %v2417 = vld [vmem:[%s3 + $0x960] sm:$0xff]
  %v2418 = vld [vmem:[%s3 + $0x968] sm:$0xff]
  %v2419 = vld [vmem:[%s3 + $0x970] sm:$0xff]
  %v2420 = vld [vmem:[%s3 + $0x978] sm:$0xff]
  %v2421 = vld [vmem:[%s3 + $0x980] sm:$0xff]
  %v2422 = vld [vmem:[%s3 + $0x988] sm:$0xff]
  %v2423 = vld [vmem:[%s3 + $0x990] sm:$0xff]
  %v2424 = vld [vmem:[%s3 + $0x998] sm:$0xff]
  %v2425 = vld [vmem:[%s3 + $0x9a0] sm:$0xff]
  %v2426 = vld [vmem:[%s3 + $0x9a8] sm:$0xff]
  %v2427 = vld [vmem:[%s3 + $0x9b0] sm:$0xff]
  %v2428 = vld [vmem:[%s3 + $0x9b8] sm:$0xff]
  %v2429 = vld [vmem:[%s3 + $0x9c0] sm:$0xff]
  %v2430 = vld [vmem:[%s3 + $0x9c8] sm:$0xff]
  %v2431 = vld [vmem:[%s3 + $0x9d0] sm:$0xff]
  %v2432 = vld [vmem:[%s3 + $0x9d8] sm:$0xff]
  %v2433 = vld [vmem:[%s3 + $0x9e0] sm:$0xff]
  %v2434 = vld [vmem:[%s3 + $0x9e8] sm:$0xff]
  %v2435 = vld [vmem:[%s3 + $0x9f0] sm:$0xff]
  %v2436 = vld [vmem:[%s3 + $0x9f8] sm:$0xff]
  %v2437 = vld [vmem:[%s4] sm:$0xf]
  %v2439 = vperm.slane %v2437, 0
  %v2440 = vperm.slane %v2437, 1
  %v2441 = vperm.slane %v2437, 2
  %v2442 = vperm.slane %v2437, 3
  %v2767 = vunpack.c.l.b16 %v2117
  %v2768 = vunpack.c.h.b16 %v2117
  %v2769 = vunpack.c.l.b16 %v2118
  %v2770 = vunpack.c.h.b16 %v2118
  %v2771 = vunpack.c.l.b16 %v2119
  %v2772 = vunpack.c.h.b16 %v2119
  %v2773 = vunpack.c.l.b16 %v2120
  %v2774 = vunpack.c.h.b16 %v2120
  %v2775 = vunpack.c.l.b16 %v2121
  %v2776 = vunpack.c.h.b16 %v2121
  %v2777 = vunpack.c.l.b16 %v2122
  %v2778 = vunpack.c.h.b16 %v2122
  %v2779 = vunpack.c.l.b16 %v2123
  %v2780 = vunpack.c.h.b16 %v2123
  %v2781 = vunpack.c.l.b16 %v2124
  %v2782 = vunpack.c.h.b16 %v2124
  %v2783 = vunpack.c.l.b16 %v2125
  %v2784 = vunpack.c.h.b16 %v2125
  %v2785 = vunpack.c.l.b16 %v2126
  %v2786 = vunpack.c.h.b16 %v2126
  %v2787 = vunpack.c.l.b16 %v2127
  %v2788 = vunpack.c.h.b16 %v2127
  %v2789 = vunpack.c.l.b16 %v2128
  %v2790 = vunpack.c.h.b16 %v2128
  %v2791 = vunpack.c.l.b16 %v2129
  %v2792 = vunpack.c.h.b16 %v2129
  %v2793 = vunpack.c.l.b16 %v2130
  %v2794 = vunpack.c.h.b16 %v2130
  %v2795 = vunpack.c.l.b16 %v2131
  %v2796 = vunpack.c.h.b16 %v2131
  %v2797 = vunpack.c.l.b16 %v2132
  %v2798 = vunpack.c.h.b16 %v2132
  %v2799 = vunpack.c.l.b16 %v2133
  %v2800 = vunpack.c.h.b16 %v2133
  %v2801 = vunpack.c.l.b16 %v2134
  %v2802 = vunpack.c.h.b16 %v2134
  %v2803 = vunpack.c.l.b16 %v2135
  %v2804 = vunpack.c.h.b16 %v2135
  %v2805 = vunpack.c.l.b16 %v2136
  %v2806 = vunpack.c.h.b16 %v2136
  %v2807 = vunpack.c.l.b16 %v2137
  %v2808 = vunpack.c.h.b16 %v2137
  %v2809 = vunpack.c.l.b16 %v2138
  %v2810 = vunpack.c.h.b16 %v2138
  %v2811 = vunpack.c.l.b16 %v2139
  %v2812 = vunpack.c.h.b16 %v2139
  %v2813 = vunpack.c.l.b16 %v2140
  %v2814 = vunpack.c.h.b16 %v2140
  %v2815 = vunpack.c.l.b16 %v2141
  %v2816 = vunpack.c.h.b16 %v2141
  %v2817 = vunpack.c.l.b16 %v2142
  %v2818 = vunpack.c.h.b16 %v2142
  %v2819 = vunpack.c.l.b16 %v2143
  %v2820 = vunpack.c.h.b16 %v2143
  %v2821 = vunpack.c.l.b16 %v2144
  %v2822 = vunpack.c.h.b16 %v2144
  %v2823 = vunpack.c.l.b16 %v2145
  %v2824 = vunpack.c.h.b16 %v2145
  %v2825 = vunpack.c.l.b16 %v2146
  %v2826 = vunpack.c.h.b16 %v2146
  %v2827 = vunpack.c.l.b16 %v2147
  %v2828 = vunpack.c.h.b16 %v2147
  %v2829 = vunpack.c.l.b16 %v2148
  %v2830 = vunpack.c.h.b16 %v2148
  %v2831 = vunpack.c.l.b16 %v2149
  %v2832 = vunpack.c.h.b16 %v2149
  %v2833 = vunpack.c.l.b16 %v2150
  %v2834 = vunpack.c.h.b16 %v2150
  %v2835 = vunpack.c.l.b16 %v2151
  %v2836 = vunpack.c.h.b16 %v2151
  %v2837 = vunpack.c.l.b16 %v2152
  %v2838 = vunpack.c.h.b16 %v2152
  %v2839 = vunpack.c.l.b16 %v2153
  %v2840 = vunpack.c.h.b16 %v2153
  %v2841 = vunpack.c.l.b16 %v2154
  %v2842 = vunpack.c.h.b16 %v2154
  %v2843 = vunpack.c.l.b16 %v2155
  %v2844 = vunpack.c.h.b16 %v2155
  %v2845 = vunpack.c.l.b16 %v2156
  %v2846 = vunpack.c.h.b16 %v2156
  %v2847 = vunpack.c.l.b16 %v2157
  %v2848 = vunpack.c.h.b16 %v2157
  %v2849 = vunpack.c.l.b16 %v2158
  %v2850 = vunpack.c.h.b16 %v2158
  %v2851 = vunpack.c.l.b16 %v2159
  %v2852 = vunpack.c.h.b16 %v2159
  %v2853 = vunpack.c.l.b16 %v2160
  %v2854 = vunpack.c.h.b16 %v2160
  %v2855 = vunpack.c.l.b16 %v2161
  %v2856 = vunpack.c.h.b16 %v2161
  %v2857 = vunpack.c.l.b16 %v2162
  %v2858 = vunpack.c.h.b16 %v2162
  %v2859 = vunpack.c.l.b16 %v2163
  %v2860 = vunpack.c.h.b16 %v2163
  %v2861 = vunpack.c.l.b16 %v2164
  %v2862 = vunpack.c.h.b16 %v2164
  %v2863 = vunpack.c.l.b16 %v2165
  %v2864 = vunpack.c.h.b16 %v2165
  %v2865 = vunpack.c.l.b16 %v2166
  %v2866 = vunpack.c.h.b16 %v2166
  %v2867 = vunpack.c.l.b16 %v2167
  %v2868 = vunpack.c.h.b16 %v2167
  %v2869 = vunpack.c.l.b16 %v2168
  %v2870 = vunpack.c.h.b16 %v2168
  %v2871 = vunpack.c.l.b16 %v2169
  %v2872 = vunpack.c.h.b16 %v2169
  %v2873 = vunpack.c.l.b16 %v2170
  %v2874 = vunpack.c.h.b16 %v2170
  %v2875 = vunpack.c.l.b16 %v2171
  %v2876 = vunpack.c.h.b16 %v2171
  %v2877 = vunpack.c.l.b16 %v2172
  %v2878 = vunpack.c.h.b16 %v2172
  %v2879 = vunpack.c.l.b16 %v2173
  %v2880 = vunpack.c.h.b16 %v2173
  %v2881 = vunpack.c.l.b16 %v2174
  %v2882 = vunpack.c.h.b16 %v2174
  %v2883 = vunpack.c.l.b16 %v2175
  %v2884 = vunpack.c.h.b16 %v2175
  %v2885 = vunpack.c.l.b16 %v2176
  %v2886 = vunpack.c.h.b16 %v2176
  %v2887 = vunpack.c.l.b16 %v2177
  %v2888 = vunpack.c.h.b16 %v2177
  %v2889 = vunpack.c.l.b16 %v2178
  %v2890 = vunpack.c.h.b16 %v2178
  %v2891 = vunpack.c.l.b16 %v2179
  %v2892 = vunpack.c.h.b16 %v2179
  %v2893 = vunpack.c.l.b16 %v2180
  %v2894 = vunpack.c.h.b16 %v2180
  %v2895 = vunpack.c.l.b16 %v2181
  %v2896 = vunpack.c.h.b16 %v2181
  %v2897 = vunpack.c.l.b16 %v2182
  %v2898 = vunpack.c.h.b16 %v2182
  %v2899 = vunpack.c.l.b16 %v2183
  %v2900 = vunpack.c.h.b16 %v2183
  %v2901 = vunpack.c.l.b16 %v2184
  %v2902 = vunpack.c.h.b16 %v2184
  %v2903 = vunpack.c.l.b16 %v2185
  %v2904 = vunpack.c.h.b16 %v2185
  %v2905 = vunpack.c.l.b16 %v2186
  %v2906 = vunpack.c.h.b16 %v2186
  %v2907 = vunpack.c.l.b16 %v2187
  %v2908 = vunpack.c.h.b16 %v2187
  %v2909 = vunpack.c.l.b16 %v2188
  %v2910 = vunpack.c.h.b16 %v2188
  %v2911 = vunpack.c.l.b16 %v2189
  %v2912 = vunpack.c.h.b16 %v2189
  %v2913 = vunpack.c.l.b16 %v2190
  %v2914 = vunpack.c.h.b16 %v2190
  %v2915 = vunpack.c.l.b16 %v2191
  %v2916 = vunpack.c.h.b16 %v2191
  %v2917 = vunpack.c.l.b16 %v2192
  %v2918 = vunpack.c.h.b16 %v2192
  %v2919 = vunpack.c.l.b16 %v2193
  %v2920 = vunpack.c.h.b16 %v2193
  %v2921 = vunpack.c.l.b16 %v2194
  %v2922 = vunpack.c.h.b16 %v2194
  %v2923 = vunpack.c.l.b16 %v2195
  %v2924 = vunpack.c.h.b16 %v2195
  %v2925 = vunpack.c.l.b16 %v2196
  %v2926 = vunpack.c.h.b16 %v2196
  %v2927 = vunpack.c.l.b16 %v2197
  %v2928 = vunpack.c.h.b16 %v2197
  %v2929 = vunpack.c.l.b16 %v2198
  %v2930 = vunpack.c.h.b16 %v2198
  %v2931 = vunpack.c.l.b16 %v2199
  %v2932 = vunpack.c.h.b16 %v2199
  %v2933 = vunpack.c.l.b16 %v2200
  %v2934 = vunpack.c.h.b16 %v2200
  %v2935 = vunpack.c.l.b16 %v2201
  %v2936 = vunpack.c.h.b16 %v2201
  %v2937 = vunpack.c.l.b16 %v2202
  %v2938 = vunpack.c.h.b16 %v2202
  %v2939 = vunpack.c.l.b16 %v2203
  %v2940 = vunpack.c.h.b16 %v2203
  %v2941 = vunpack.c.l.b16 %v2204
  %v2942 = vunpack.c.h.b16 %v2204
  %v2943 = vunpack.c.l.b16 %v2205
  %v2944 = vunpack.c.h.b16 %v2205
  %v2945 = vunpack.c.l.b16 %v2206
  %v2946 = vunpack.c.h.b16 %v2206
  %v2947 = vunpack.c.l.b16 %v2207
  %v2948 = vunpack.c.h.b16 %v2207
  %v2949 = vunpack.c.l.b16 %v2208
  %v2950 = vunpack.c.h.b16 %v2208
  %v2951 = vunpack.c.l.b16 %v2209
  %v2952 = vunpack.c.h.b16 %v2209
  %v2953 = vunpack.c.l.b16 %v2210
  %v2954 = vunpack.c.h.b16 %v2210
  %v2955 = vunpack.c.l.b16 %v2211
  %v2956 = vunpack.c.h.b16 %v2211
  %v2957 = vunpack.c.l.b16 %v2212
  %v2958 = vunpack.c.h.b16 %v2212
  %v2959 = vunpack.c.l.b16 %v2213
  %v2960 = vunpack.c.h.b16 %v2213
  %v2961 = vunpack.c.l.b16 %v2214
  %v2962 = vunpack.c.h.b16 %v2214
  %v2963 = vunpack.c.l.b16 %v2215
  %v2964 = vunpack.c.h.b16 %v2215
  %v2965 = vunpack.c.l.b16 %v2216
  %v2966 = vunpack.c.h.b16 %v2216
  %v2967 = vunpack.c.l.b16 %v2217
  %v2968 = vunpack.c.h.b16 %v2217
  %v2969 = vunpack.c.l.b16 %v2218
  %v2970 = vunpack.c.h.b16 %v2218
  %v2971 = vunpack.c.l.b16 %v2219
  %v2972 = vunpack.c.h.b16 %v2219
  %v2973 = vunpack.c.l.b16 %v2220
  %v2974 = vunpack.c.h.b16 %v2220
  %v2975 = vunpack.c.l.b16 %v2221
  %v2976 = vunpack.c.h.b16 %v2221
  %v2977 = vunpack.c.l.b16 %v2222
  %v2978 = vunpack.c.h.b16 %v2222
  %v2979 = vunpack.c.l.b16 %v2223
  %v2980 = vunpack.c.h.b16 %v2223
  %v2981 = vunpack.c.l.b16 %v2224
  %v2982 = vunpack.c.h.b16 %v2224
  %v2983 = vunpack.c.l.b16 %v2225
  %v2984 = vunpack.c.h.b16 %v2225
  %v2985 = vunpack.c.l.b16 %v2226
  %v2986 = vunpack.c.h.b16 %v2226
  %v2987 = vunpack.c.l.b16 %v2227
  %v2988 = vunpack.c.h.b16 %v2227
  %v2989 = vunpack.c.l.b16 %v2228
  %v2990 = vunpack.c.h.b16 %v2228
  %v2991 = vunpack.c.l.b16 %v2229
  %v2992 = vunpack.c.h.b16 %v2229
  %v2993 = vunpack.c.l.b16 %v2230
  %v2994 = vunpack.c.h.b16 %v2230
  %v2995 = vunpack.c.l.b16 %v2231
  %v2996 = vunpack.c.h.b16 %v2231
  %v2997 = vunpack.c.l.b16 %v2232
  %v2998 = vunpack.c.h.b16 %v2232
  %v2999 = vunpack.c.l.b16 %v2233
  %v3000 = vunpack.c.h.b16 %v2233
  %v3001 = vunpack.c.l.b16 %v2234
  %v3002 = vunpack.c.h.b16 %v2234
  %v3003 = vunpack.c.l.b16 %v2235
  %v3004 = vunpack.c.h.b16 %v2235
  %v3005 = vunpack.c.l.b16 %v2236
  %v3006 = vunpack.c.h.b16 %v2236
  %v3007 = vunpack.c.l.b16 %v2237
  %v3008 = vunpack.c.h.b16 %v2237
  %v3009 = vunpack.c.l.b16 %v2238
  %v3010 = vunpack.c.h.b16 %v2238
  %v3011 = vunpack.c.l.b16 %v2239
  %v3012 = vunpack.c.h.b16 %v2239
  %v3013 = vunpack.c.l.b16 %v2240
  %v3014 = vunpack.c.h.b16 %v2240
  %v3015 = vunpack.c.l.b16 %v2241
  %v3016 = vunpack.c.h.b16 %v2241
  %v3017 = vunpack.c.l.b16 %v2242
  %v3018 = vunpack.c.h.b16 %v2242
  %v3019 = vunpack.c.l.b16 %v2243
  %v3020 = vunpack.c.h.b16 %v2243
  %v3021 = vunpack.c.l.b16 %v2244
  %v3022 = vunpack.c.h.b16 %v2244
  %v3023 = vunpack.c.l.b16 %v2245
  %v3024 = vunpack.c.h.b16 %v2245
  %v3025 = vunpack.c.l.b16 %v2246
  %v3026 = vunpack.c.h.b16 %v2246
  %v3027 = vunpack.c.l.b16 %v2247
  %v3028 = vunpack.c.h.b16 %v2247
  %v3029 = vunpack.c.l.b16 %v2248
  %v3030 = vunpack.c.h.b16 %v2248
  %v3031 = vunpack.c.l.b16 %v2249
  %v3032 = vunpack.c.h.b16 %v2249
  %v3033 = vunpack.c.l.b16 %v2250
  %v3034 = vunpack.c.h.b16 %v2250
  %v3035 = vunpack.c.l.b16 %v2251
  %v3036 = vunpack.c.h.b16 %v2251
  %v3037 = vunpack.c.l.b16 %v2252
  %v3038 = vunpack.c.h.b16 %v2252
  %v3039 = vunpack.c.l.b16 %v2253
  %v3040 = vunpack.c.h.b16 %v2253
  %v3041 = vunpack.c.l.b16 %v2254
  %v3042 = vunpack.c.h.b16 %v2254
  %v3043 = vunpack.c.l.b16 %v2255
  %v3044 = vunpack.c.h.b16 %v2255
  %v3045 = vunpack.c.l.b16 %v2256
  %v3046 = vunpack.c.h.b16 %v2256
  %v3047 = vunpack.c.l.b16 %v2257
  %v3048 = vunpack.c.h.b16 %v2257
  %v3049 = vunpack.c.l.b16 %v2258
  %v3050 = vunpack.c.h.b16 %v2258
  %v3051 = vunpack.c.l.b16 %v2259
  %v3052 = vunpack.c.h.b16 %v2259
  %v3053 = vunpack.c.l.b16 %v2260
  %v3054 = vunpack.c.h.b16 %v2260
  %v3055 = vunpack.c.l.b16 %v2261
  %v3056 = vunpack.c.h.b16 %v2261
  %v3057 = vunpack.c.l.b16 %v2262
  %v3058 = vunpack.c.h.b16 %v2262
  %v3059 = vunpack.c.l.b16 %v2263
  %v3060 = vunpack.c.h.b16 %v2263
  %v3061 = vunpack.c.l.b16 %v2264
  %v3062 = vunpack.c.h.b16 %v2264
  %v3063 = vunpack.c.l.b16 %v2265
  %v3064 = vunpack.c.h.b16 %v2265
  %v3065 = vunpack.c.l.b16 %v2266
  %v3066 = vunpack.c.h.b16 %v2266
  %v3067 = vunpack.c.l.b16 %v2267
  %v3068 = vunpack.c.h.b16 %v2267
  %v3069 = vunpack.c.l.b16 %v2268
  %v3070 = vunpack.c.h.b16 %v2268
  %v3071 = vunpack.c.l.b16 %v2269
  %v3072 = vunpack.c.h.b16 %v2269
  %v3073 = vunpack.c.l.b16 %v2270
  %v3074 = vunpack.c.h.b16 %v2270
  %v3075 = vunpack.c.l.b16 %v2271
  %v3076 = vunpack.c.h.b16 %v2271
  %v3077 = vunpack.c.l.b16 %v2272
  %v3078 = vunpack.c.h.b16 %v2272
  %v3079 = vunpack.c.l.b16 %v2273
  %v3080 = vunpack.c.h.b16 %v2273
  %v3081 = vunpack.c.l.b16 %v2274
  %v3082 = vunpack.c.h.b16 %v2274
  %v3083 = vunpack.c.l.b16 %v2275
  %v3084 = vunpack.c.h.b16 %v2275
  %v3085 = vunpack.c.l.b16 %v2276
  %v3086 = vunpack.c.h.b16 %v2276
  %v3087 = vunpack.c.l.b16 %v2277
  %v3088 = vunpack.c.h.b16 %v2277
  %v3089 = vunpack.c.l.b16 %v2278
  %v3090 = vunpack.c.h.b16 %v2278
  %v3091 = vunpack.c.l.b16 %v2279
  %v3092 = vunpack.c.h.b16 %v2279
  %v3093 = vunpack.c.l.b16 %v2280
  %v3094 = vunpack.c.h.b16 %v2280
  %v3095 = vunpack.c.l.b16 %v2281
  %v3096 = vunpack.c.h.b16 %v2281
  %v3097 = vunpack.c.l.b16 %v2282
  %v3098 = vunpack.c.h.b16 %v2282
  %v3099 = vunpack.c.l.b16 %v2283
  %v3100 = vunpack.c.h.b16 %v2283
  %v3101 = vunpack.c.l.b16 %v2284
  %v3102 = vunpack.c.h.b16 %v2284
  %v3103 = vunpack.c.l.b16 %v2285
  %v3104 = vunpack.c.h.b16 %v2285
  %v3105 = vunpack.c.l.b16 %v2286
  %v3106 = vunpack.c.h.b16 %v2286
  %v3107 = vunpack.c.l.b16 %v2287
  %v3108 = vunpack.c.h.b16 %v2287
  %v3109 = vunpack.c.l.b16 %v2288
  %v3110 = vunpack.c.h.b16 %v2288
  %v3111 = vunpack.c.l.b16 %v2289
  %v3112 = vunpack.c.h.b16 %v2289
  %v3113 = vunpack.c.l.b16 %v2290
  %v3114 = vunpack.c.h.b16 %v2290
  %v3115 = vunpack.c.l.b16 %v2291
  %v3116 = vunpack.c.h.b16 %v2291
  %v3117 = vunpack.c.l.b16 %v2292
  %v3118 = vunpack.c.h.b16 %v2292
  %v3119 = vunpack.c.l.b16 %v2293
  %v3120 = vunpack.c.h.b16 %v2293
  %v3121 = vunpack.c.l.b16 %v2294
  %v3122 = vunpack.c.h.b16 %v2294
  %v3123 = vunpack.c.l.b16 %v2295
  %v3124 = vunpack.c.h.b16 %v2295
  %v3125 = vunpack.c.l.b16 %v2296
  %v3126 = vunpack.c.h.b16 %v2296
  %v3127 = vunpack.c.l.b16 %v2297
  %v3128 = vunpack.c.h.b16 %v2297
  %v3129 = vunpack.c.l.b16 %v2298
  %v3130 = vunpack.c.h.b16 %v2298
  %v3131 = vunpack.c.l.b16 %v2299
  %v3132 = vunpack.c.h.b16 %v2299
  %v3133 = vunpack.c.l.b16 %v2300
  %v3134 = vunpack.c.h.b16 %v2300
  %v3135 = vunpack.c.l.b16 %v2301
  %v3136 = vunpack.c.h.b16 %v2301
  %v3137 = vunpack.c.l.b16 %v2302
  %v3138 = vunpack.c.h.b16 %v2302
  %v3139 = vunpack.c.l.b16 %v2303
  %v3140 = vunpack.c.h.b16 %v2303
  %v3141 = vunpack.c.l.b16 %v2304
  %v3142 = vunpack.c.h.b16 %v2304
  %v3143 = vunpack.c.l.b16 %v2305
  %v3144 = vunpack.c.h.b16 %v2305
  %v3145 = vunpack.c.l.b16 %v2306
  %v3146 = vunpack.c.h.b16 %v2306
  %v3147 = vunpack.c.l.b16 %v2307
  %v3148 = vunpack.c.h.b16 %v2307
  %v3149 = vunpack.c.l.b16 %v2308
  %v3150 = vunpack.c.h.b16 %v2308
  %v3151 = vunpack.c.l.b16 %v2309
  %v3152 = vunpack.c.h.b16 %v2309
  %v3153 = vunpack.c.l.b16 %v2310
  %v3154 = vunpack.c.h.b16 %v2310
  %v3155 = vunpack.c.l.b16 %v2311
  %v3156 = vunpack.c.h.b16 %v2311
  %v3157 = vunpack.c.l.b16 %v2312
  %v3158 = vunpack.c.h.b16 %v2312
  %v3159 = vunpack.c.l.b16 %v2313
  %v3160 = vunpack.c.h.b16 %v2313
  %v3161 = vunpack.c.l.b16 %v2314
  %v3162 = vunpack.c.h.b16 %v2314
  %v3163 = vunpack.c.l.b16 %v2315
  %v3164 = vunpack.c.h.b16 %v2315
  %v3165 = vunpack.c.l.b16 %v2316
  %v3166 = vunpack.c.h.b16 %v2316
  %v3167 = vunpack.c.l.b16 %v2317
  %v3168 = vunpack.c.h.b16 %v2317
  %v3169 = vunpack.c.l.b16 %v2318
  %v3170 = vunpack.c.h.b16 %v2318
  %v3171 = vunpack.c.l.b16 %v2319
  %v3172 = vunpack.c.h.b16 %v2319
  %v3173 = vunpack.c.l.b16 %v2320
  %v3174 = vunpack.c.h.b16 %v2320
  %v3175 = vunpack.c.l.b16 %v2321
  %v3176 = vunpack.c.h.b16 %v2321
  %v3177 = vunpack.c.l.b16 %v2322
  %v3178 = vunpack.c.h.b16 %v2322
  %v3179 = vunpack.c.l.b16 %v2323
  %v3180 = vunpack.c.h.b16 %v2323
  %v3181 = vunpack.c.l.b16 %v2324
  %v3182 = vunpack.c.h.b16 %v2324
  %v3183 = vunpack.c.l.b16 %v2325
  %v3184 = vunpack.c.h.b16 %v2325
  %v3185 = vunpack.c.l.b16 %v2326
  %v3186 = vunpack.c.h.b16 %v2326
  %v3187 = vunpack.c.l.b16 %v2327
  %v3188 = vunpack.c.h.b16 %v2327
  %v3189 = vunpack.c.l.b16 %v2328
  %v3190 = vunpack.c.h.b16 %v2328
  %v3191 = vunpack.c.l.b16 %v2329
  %v3192 = vunpack.c.h.b16 %v2329
  %v3193 = vunpack.c.l.b16 %v2330
  %v3194 = vunpack.c.h.b16 %v2330
  %v3195 = vunpack.c.l.b16 %v2331
  %v3196 = vunpack.c.h.b16 %v2331
  %v3197 = vunpack.c.l.b16 %v2332
  %v3198 = vunpack.c.h.b16 %v2332
  %v3199 = vunpack.c.l.b16 %v2333
  %v3200 = vunpack.c.h.b16 %v2333
  %v3201 = vunpack.c.l.b16 %v2334
  %v3202 = vunpack.c.h.b16 %v2334
  %v3203 = vunpack.c.l.b16 %v2335
  %v3204 = vunpack.c.h.b16 %v2335
  %v3205 = vunpack.c.l.b16 %v2336
  %v3206 = vunpack.c.h.b16 %v2336
  %v3207 = vunpack.c.l.b16 %v2337
  %v3208 = vunpack.c.h.b16 %v2337
  %v3209 = vunpack.c.l.b16 %v2338
  %v3210 = vunpack.c.h.b16 %v2338
  %v3211 = vunpack.c.l.b16 %v2339
  %v3212 = vunpack.c.h.b16 %v2339
  %v3213 = vunpack.c.l.b16 %v2340
  %v3214 = vunpack.c.h.b16 %v2340
  %v3215 = vunpack.c.l.b16 %v2341
  %v3216 = vunpack.c.h.b16 %v2341
  %v3217 = vunpack.c.l.b16 %v2342
  %v3218 = vunpack.c.h.b16 %v2342
  %v3219 = vunpack.c.l.b16 %v2343
  %v3220 = vunpack.c.h.b16 %v2343
  %v3221 = vunpack.c.l.b16 %v2344
  %v3222 = vunpack.c.h.b16 %v2344
  %v3223 = vunpack.c.l.b16 %v2345
  %v3224 = vunpack.c.h.b16 %v2345
  %v3225 = vunpack.c.l.b16 %v2346
  %v3226 = vunpack.c.h.b16 %v2346
  %v3227 = vunpack.c.l.b16 %v2347
  %v3228 = vunpack.c.h.b16 %v2347
  %v3229 = vunpack.c.l.b16 %v2348
  %v3230 = vunpack.c.h.b16 %v2348
  %v3231 = vunpack.c.l.b16 %v2349
  %v3232 = vunpack.c.h.b16 %v2349
  %v3233 = vunpack.c.l.b16 %v2350
  %v3234 = vunpack.c.h.b16 %v2350
  %v3235 = vunpack.c.l.b16 %v2351
  %v3236 = vunpack.c.h.b16 %v2351
  %v3237 = vunpack.c.l.b16 %v2352
  %v3238 = vunpack.c.h.b16 %v2352
  %v3239 = vunpack.c.l.b16 %v2353
  %v3240 = vunpack.c.h.b16 %v2353
  %v3241 = vunpack.c.l.b16 %v2354
  %v3242 = vunpack.c.h.b16 %v2354
  %v3243 = vunpack.c.l.b16 %v2355
  %v3244 = vunpack.c.h.b16 %v2355
  %v3245 = vunpack.c.l.b16 %v2356
  %v3246 = vunpack.c.h.b16 %v2356
  %v3247 = vunpack.c.l.b16 %v2357
  %v3248 = vunpack.c.h.b16 %v2357
  %v3249 = vunpack.c.l.b16 %v2358
  %v3250 = vunpack.c.h.b16 %v2358
  %v3251 = vunpack.c.l.b16 %v2359
  %v3252 = vunpack.c.h.b16 %v2359
  %v3253 = vunpack.c.l.b16 %v2360
  %v3254 = vunpack.c.h.b16 %v2360
  %v3255 = vunpack.c.l.b16 %v2361
  %v3256 = vunpack.c.h.b16 %v2361
  %v3257 = vunpack.c.l.b16 %v2362
  %v3258 = vunpack.c.h.b16 %v2362
  %v3259 = vunpack.c.l.b16 %v2363
  %v3260 = vunpack.c.h.b16 %v2363
  %v3261 = vunpack.c.l.b16 %v2364
  %v3262 = vunpack.c.h.b16 %v2364
  %v3263 = vunpack.c.l.b16 %v2365
  %v3264 = vunpack.c.h.b16 %v2365
  %v3265 = vunpack.c.l.b16 %v2366
  %v3266 = vunpack.c.h.b16 %v2366
  %v3267 = vunpack.c.l.b16 %v2367
  %v3268 = vunpack.c.h.b16 %v2367
  %v3269 = vunpack.c.l.b16 %v2368
  %v3270 = vunpack.c.h.b16 %v2368
  %v3271 = vunpack.c.l.b16 %v2369
  %v3272 = vunpack.c.h.b16 %v2369
  %v3273 = vunpack.c.l.b16 %v2370
  %v3274 = vunpack.c.h.b16 %v2370
  %v3275 = vunpack.c.l.b16 %v2371
  %v3276 = vunpack.c.h.b16 %v2371
  %v3277 = vunpack.c.l.b16 %v2372
  %v3278 = vunpack.c.h.b16 %v2372
  %v3279 = vunpack.c.l.b16 %v2373
  %v3280 = vunpack.c.h.b16 %v2373
  %v3281 = vunpack.c.l.b16 %v2374
  %v3282 = vunpack.c.h.b16 %v2374
  %v3283 = vunpack.c.l.b16 %v2375
  %v3284 = vunpack.c.h.b16 %v2375
  %v3285 = vunpack.c.l.b16 %v2376
  %v3286 = vunpack.c.h.b16 %v2376
  %v3287 = vunpack.c.l.b16 %v2377
  %v3288 = vunpack.c.h.b16 %v2377
  %v3289 = vunpack.c.l.b16 %v2378
  %v3290 = vunpack.c.h.b16 %v2378
  %v3291 = vunpack.c.l.b16 %v2379
  %v3292 = vunpack.c.h.b16 %v2379
  %v3293 = vunpack.c.l.b16 %v2380
  %v3294 = vunpack.c.h.b16 %v2380
  %v3295 = vunpack.c.l.b16 %v2381
  %v3296 = vunpack.c.h.b16 %v2381
  %v3297 = vunpack.c.l.b16 %v2382
  %v3298 = vunpack.c.h.b16 %v2382
  %v3299 = vunpack.c.l.b16 %v2383
  %v3300 = vunpack.c.h.b16 %v2383
  %v3301 = vunpack.c.l.b16 %v2384
  %v3302 = vunpack.c.h.b16 %v2384
  %v3303 = vunpack.c.l.b16 %v2385
  %v3304 = vunpack.c.h.b16 %v2385
  %v3305 = vunpack.c.l.b16 %v2386
  %v3306 = vunpack.c.h.b16 %v2386
  %v3307 = vunpack.c.l.b16 %v2387
  %v3308 = vunpack.c.h.b16 %v2387
  %v3309 = vunpack.c.l.b16 %v2388
  %v3310 = vunpack.c.h.b16 %v2388
  %v3311 = vunpack.c.l.b16 %v2389
  %v3312 = vunpack.c.h.b16 %v2389
  %v3313 = vunpack.c.l.b16 %v2390
  %v3314 = vunpack.c.h.b16 %v2390
  %v3315 = vunpack.c.l.b16 %v2391
  %v3316 = vunpack.c.h.b16 %v2391
  %v3317 = vunpack.c.l.b16 %v2392
  %v3318 = vunpack.c.h.b16 %v2392
  %v3319 = vunpack.c.l.b16 %v2393
  %v3320 = vunpack.c.h.b16 %v2393
  %v3321 = vunpack.c.l.b16 %v2394
  %v3322 = vunpack.c.h.b16 %v2394
  %v3323 = vunpack.c.l.b16 %v2395
  %v3324 = vunpack.c.h.b16 %v2395
  %v3325 = vunpack.c.l.b16 %v2396
  %v3326 = vunpack.c.h.b16 %v2396
  %v3327 = vunpack.c.l.b16 %v2397
  %v3328 = vunpack.c.h.b16 %v2397
  %v3329 = vunpack.c.l.b16 %v2398
  %v3330 = vunpack.c.h.b16 %v2398
  %v3331 = vunpack.c.l.b16 %v2399
  %v3332 = vunpack.c.h.b16 %v2399
  %v3333 = vunpack.c.l.b16 %v2400
  %v3334 = vunpack.c.h.b16 %v2400
  %v3335 = vunpack.c.l.b16 %v2401
  %v3336 = vunpack.c.h.b16 %v2401
  %v3337 = vunpack.c.l.b16 %v2402
  %v3338 = vunpack.c.h.b16 %v2402
  %v3339 = vunpack.c.l.b16 %v2403
  %v3340 = vunpack.c.h.b16 %v2403
  %v3341 = vunpack.c.l.b16 %v2404
  %v3342 = vunpack.c.h.b16 %v2404
  %v3343 = vunpack.c.l.b16 %v2405
  %v3344 = vunpack.c.h.b16 %v2405
  %v3345 = vunpack.c.l.b16 %v2406
  %v3346 = vunpack.c.h.b16 %v2406
  %v3347 = vunpack.c.l.b16 %v2407
  %v3348 = vunpack.c.h.b16 %v2407
  %v3349 = vunpack.c.l.b16 %v2408
  %v3350 = vunpack.c.h.b16 %v2408
  %v3351 = vunpack.c.l.b16 %v2409
  %v3352 = vunpack.c.h.b16 %v2409
  %v3353 = vunpack.c.l.b16 %v2410
  %v3354 = vunpack.c.h.b16 %v2410
  %v3355 = vunpack.c.l.b16 %v2411
  %v3356 = vunpack.c.h.b16 %v2411
  %v3357 = vunpack.c.l.b16 %v2412
  %v3358 = vunpack.c.h.b16 %v2412
  %v3359 = vunpack.c.l.b16 %v2413
  %v3360 = vunpack.c.h.b16 %v2413
  %v3361 = vunpack.c.l.b16 %v2414
  %v3362 = vunpack.c.h.b16 %v2414
  %v3363 = vunpack.c.l.b16 %v2415
  %v3364 = vunpack.c.h.b16 %v2415
  %v3365 = vunpack.c.l.b16 %v2416
  %v3366 = vunpack.c.h.b16 %v2416
  %v3367 = vunpack.c.l.b16 %v2417
  %v3368 = vunpack.c.h.b16 %v2417
  %v3369 = vunpack.c.l.b16 %v2418
  %v3370 = vunpack.c.h.b16 %v2418
  %v3371 = vunpack.c.l.b16 %v2419
  %v3372 = vunpack.c.h.b16 %v2419
  %v3373 = vunpack.c.l.b16 %v2420
  %v3374 = vunpack.c.h.b16 %v2420
  %v3375 = vunpack.c.l.b16 %v2421
  %v3376 = vunpack.c.h.b16 %v2421
  %v3377 = vunpack.c.l.b16 %v2422
  %v3378 = vunpack.c.h.b16 %v2422
  %v3379 = vunpack.c.l.b16 %v2423
  %v3380 = vunpack.c.h.b16 %v2423
  %v3381 = vunpack.c.l.b16 %v2424
  %v3382 = vunpack.c.h.b16 %v2424
  %v3383 = vunpack.c.l.b16 %v2425
  %v3384 = vunpack.c.h.b16 %v2425
  %v3385 = vunpack.c.l.b16 %v2426
  %v3386 = vunpack.c.h.b16 %v2426
  %v3387 = vunpack.c.l.b16 %v2427
  %v3388 = vunpack.c.h.b16 %v2427
  %v3389 = vunpack.c.l.b16 %v2428
  %v3390 = vunpack.c.h.b16 %v2428
  %v3391 = vunpack.c.l.b16 %v2429
  %v3392 = vunpack.c.h.b16 %v2429
  %v3393 = vunpack.c.l.b16 %v2430
  %v3394 = vunpack.c.h.b16 %v2430
  %v3395 = vunpack.c.l.b16 %v2431
  %v3396 = vunpack.c.h.b16 %v2431
  %v3397 = vunpack.c.l.b16 %v2432
  %v3398 = vunpack.c.h.b16 %v2432
  %v3399 = vunpack.c.l.b16 %v2433
  %v3400 = vunpack.c.h.b16 %v2433
  %v3401 = vunpack.c.l.b16 %v2434
  %v3402 = vunpack.c.h.b16 %v2434
  %v3403 = vunpack.c.l.b16 %v2435
  %v3404 = vunpack.c.h.b16 %v2435
  %v3405 = vunpack.c.l.b16 %v2436
  %v3406 = vunpack.c.h.b16 %v2436
  %v3407 = vpack.c.b16 %v2771, %v2767
  %v3408 = vpack.c.b16 %v2772, %v2768
  %v3409 = vpack.c.b16 %v2773, %v2769
  %v3410 = vpack.c.b16 %v2774, %v2770
  %v3411 = vpack.c.b16 %v2779, %v2775
  %v3412 = vpack.c.b16 %v2780, %v2776
  %v3413 = vpack.c.b16 %v2781, %v2777
  %v3414 = vpack.c.b16 %v2782, %v2778
  %v3415 = vpack.c.b16 %v2787, %v2783
  %v3416 = vpack.c.b16 %v2788, %v2784
  %v3417 = vpack.c.b16 %v2789, %v2785
  %v3418 = vpack.c.b16 %v2790, %v2786
  %v3419 = vpack.c.b16 %v2795, %v2791
  %v3420 = vpack.c.b16 %v2796, %v2792
  %v3421 = vpack.c.b16 %v2797, %v2793
  %v3422 = vpack.c.b16 %v2798, %v2794
  %v3423 = vpack.c.b16 %v2803, %v2799
  %v3424 = vpack.c.b16 %v2804, %v2800
  %v3425 = vpack.c.b16 %v2805, %v2801
  %v3426 = vpack.c.b16 %v2806, %v2802
  %v3427 = vpack.c.b16 %v2811, %v2807
  %v3428 = vpack.c.b16 %v2812, %v2808
  %v3429 = vpack.c.b16 %v2813, %v2809
  %v3430 = vpack.c.b16 %v2814, %v2810
  %v3431 = vpack.c.b16 %v2819, %v2815
  %v3432 = vpack.c.b16 %v2820, %v2816
  %v3433 = vpack.c.b16 %v2821, %v2817
  %v3434 = vpack.c.b16 %v2822, %v2818
  %v3435 = vpack.c.b16 %v2827, %v2823
  %v3436 = vpack.c.b16 %v2828, %v2824
  %v3437 = vpack.c.b16 %v2829, %v2825
  %v3438 = vpack.c.b16 %v2830, %v2826
  %v3439 = vpack.c.b16 %v2835, %v2831
  %v3440 = vpack.c.b16 %v2836, %v2832
  %v3441 = vpack.c.b16 %v2837, %v2833
  %v3442 = vpack.c.b16 %v2838, %v2834
  %v3443 = vpack.c.b16 %v2843, %v2839
  %v3444 = vpack.c.b16 %v2844, %v2840
  %v3445 = vpack.c.b16 %v2845, %v2841
  %v3446 = vpack.c.b16 %v2846, %v2842
  %v3447 = vpack.c.b16 %v2851, %v2847
  %v3448 = vpack.c.b16 %v2852, %v2848
  %v3449 = vpack.c.b16 %v2853, %v2849
  %v3450 = vpack.c.b16 %v2854, %v2850
  %v3451 = vpack.c.b16 %v2859, %v2855
  %v3452 = vpack.c.b16 %v2860, %v2856
  %v3453 = vpack.c.b16 %v2861, %v2857
  %v3454 = vpack.c.b16 %v2862, %v2858
  %v3455 = vpack.c.b16 %v2867, %v2863
  %v3456 = vpack.c.b16 %v2868, %v2864
  %v3457 = vpack.c.b16 %v2869, %v2865
  %v3458 = vpack.c.b16 %v2870, %v2866
  %v3459 = vpack.c.b16 %v2875, %v2871
  %v3460 = vpack.c.b16 %v2876, %v2872
  %v3461 = vpack.c.b16 %v2877, %v2873
  %v3462 = vpack.c.b16 %v2878, %v2874
  %v3463 = vpack.c.b16 %v2883, %v2879
  %v3464 = vpack.c.b16 %v2884, %v2880
  %v3465 = vpack.c.b16 %v2885, %v2881
  %v3466 = vpack.c.b16 %v2886, %v2882
  %v3467 = vpack.c.b16 %v2891, %v2887
  %v3468 = vpack.c.b16 %v2892, %v2888
  %v3469 = vpack.c.b16 %v2893, %v2889
  %v3470 = vpack.c.b16 %v2894, %v2890
  %v3471 = vpack.c.b16 %v2899, %v2895
  %v3472 = vpack.c.b16 %v2900, %v2896
  %v3473 = vpack.c.b16 %v2901, %v2897
  %v3474 = vpack.c.b16 %v2902, %v2898
  %v3475 = vpack.c.b16 %v2907, %v2903
  %v3476 = vpack.c.b16 %v2908, %v2904
  %v3477 = vpack.c.b16 %v2909, %v2905
  %v3478 = vpack.c.b16 %v2910, %v2906
  %v3479 = vpack.c.b16 %v2915, %v2911
  %v3480 = vpack.c.b16 %v2916, %v2912
  %v3481 = vpack.c.b16 %v2917, %v2913
  %v3482 = vpack.c.b16 %v2918, %v2914
  %v3483 = vpack.c.b16 %v2923, %v2919
  %v3484 = vpack.c.b16 %v2924, %v2920
  %v3485 = vpack.c.b16 %v2925, %v2921
  %v3486 = vpack.c.b16 %v2926, %v2922
  %v3487 = vpack.c.b16 %v2931, %v2927
  %v3488 = vpack.c.b16 %v2932, %v2928
  %v3489 = vpack.c.b16 %v2933, %v2929
  %v3490 = vpack.c.b16 %v2934, %v2930
  %v3491 = vpack.c.b16 %v2939, %v2935
  %v3492 = vpack.c.b16 %v2940, %v2936
  %v3493 = vpack.c.b16 %v2941, %v2937
  %v3494 = vpack.c.b16 %v2942, %v2938
  %v3495 = vpack.c.b16 %v2947, %v2943
  %v3496 = vpack.c.b16 %v2948, %v2944
  %v3497 = vpack.c.b16 %v2949, %v2945
  %v3498 = vpack.c.b16 %v2950, %v2946
  %v3499 = vpack.c.b16 %v2955, %v2951
  %v3500 = vpack.c.b16 %v2956, %v2952
  %v3501 = vpack.c.b16 %v2957, %v2953
  %v3502 = vpack.c.b16 %v2958, %v2954
  %v3503 = vpack.c.b16 %v2963, %v2959
  %v3504 = vpack.c.b16 %v2964, %v2960
  %v3505 = vpack.c.b16 %v2965, %v2961
  %v3506 = vpack.c.b16 %v2966, %v2962
  %v3507 = vpack.c.b16 %v2971, %v2967
  %v3508 = vpack.c.b16 %v2972, %v2968
  %v3509 = vpack.c.b16 %v2973, %v2969
  %v3510 = vpack.c.b16 %v2974, %v2970
  %v3511 = vpack.c.b16 %v2979, %v2975
  %v3512 = vpack.c.b16 %v2980, %v2976
  %v3513 = vpack.c.b16 %v2981, %v2977
  %v3514 = vpack.c.b16 %v2982, %v2978
  %v3515 = vpack.c.b16 %v2987, %v2983
  %v3516 = vpack.c.b16 %v2988, %v2984
  %v3517 = vpack.c.b16 %v2989, %v2985
  %v3518 = vpack.c.b16 %v2990, %v2986
  %v3519 = vpack.c.b16 %v2995, %v2991
  %v3520 = vpack.c.b16 %v2996, %v2992
  %v3521 = vpack.c.b16 %v2997, %v2993
  %v3522 = vpack.c.b16 %v2998, %v2994
  %v3523 = vpack.c.b16 %v3003, %v2999
  %v3524 = vpack.c.b16 %v3004, %v3000
  %v3525 = vpack.c.b16 %v3005, %v3001
  %v3526 = vpack.c.b16 %v3006, %v3002
  %v3527 = vpack.c.b16 %v3011, %v3007
  %v3528 = vpack.c.b16 %v3012, %v3008
  %v3529 = vpack.c.b16 %v3013, %v3009
  %v3530 = vpack.c.b16 %v3014, %v3010
  %v3531 = vpack.c.b16 %v3019, %v3015
  %v3532 = vpack.c.b16 %v3020, %v3016
  %v3533 = vpack.c.b16 %v3021, %v3017
  %v3534 = vpack.c.b16 %v3022, %v3018
  %v3535 = vpack.c.b16 %v3027, %v3023
  %v3536 = vpack.c.b16 %v3028, %v3024
  %v3537 = vpack.c.b16 %v3029, %v3025
  %v3538 = vpack.c.b16 %v3030, %v3026
  %v3539 = vpack.c.b16 %v3035, %v3031
  %v3540 = vpack.c.b16 %v3036, %v3032
  %v3541 = vpack.c.b16 %v3037, %v3033
  %v3542 = vpack.c.b16 %v3038, %v3034
  %v3543 = vpack.c.b16 %v3043, %v3039
  %v3544 = vpack.c.b16 %v3044, %v3040
  %v3545 = vpack.c.b16 %v3045, %v3041
  %v3546 = vpack.c.b16 %v3046, %v3042
  %v3547 = vpack.c.b16 %v3051, %v3047
  %v3548 = vpack.c.b16 %v3052, %v3048
  %v3549 = vpack.c.b16 %v3053, %v3049
  %v3550 = vpack.c.b16 %v3054, %v3050
  %v3551 = vpack.c.b16 %v3059, %v3055
  %v3552 = vpack.c.b16 %v3060, %v3056
  %v3553 = vpack.c.b16 %v3061, %v3057
  %v3554 = vpack.c.b16 %v3062, %v3058
  %v3555 = vpack.c.b16 %v3067, %v3063
  %v3556 = vpack.c.b16 %v3068, %v3064
  %v3557 = vpack.c.b16 %v3069, %v3065
  %v3558 = vpack.c.b16 %v3070, %v3066
  %v3559 = vpack.c.b16 %v3075, %v3071
  %v3560 = vpack.c.b16 %v3076, %v3072
  %v3561 = vpack.c.b16 %v3077, %v3073
  %v3562 = vpack.c.b16 %v3078, %v3074
  %v3563 = vpack.c.b16 %v3083, %v3079
  %v3564 = vpack.c.b16 %v3084, %v3080
  %v3565 = vpack.c.b16 %v3085, %v3081
  %v3566 = vpack.c.b16 %v3086, %v3082
  %v3567 = vpack.c.b16 %v3091, %v3087
  %v3568 = vpack.c.b16 %v3092, %v3088
  %v3569 = vpack.c.b16 %v3093, %v3089
  %v3570 = vpack.c.b16 %v3094, %v3090
  %v3571 = vpack.c.b16 %v3099, %v3095
  %v3572 = vpack.c.b16 %v3100, %v3096
  %v3573 = vpack.c.b16 %v3101, %v3097
  %v3574 = vpack.c.b16 %v3102, %v3098
  %v3575 = vpack.c.b16 %v3107, %v3103
  %v3576 = vpack.c.b16 %v3108, %v3104
  %v3577 = vpack.c.b16 %v3109, %v3105
  %v3578 = vpack.c.b16 %v3110, %v3106
  %v3579 = vpack.c.b16 %v3115, %v3111
  %v3580 = vpack.c.b16 %v3116, %v3112
  %v3581 = vpack.c.b16 %v3117, %v3113
  %v3582 = vpack.c.b16 %v3118, %v3114
  %v3583 = vpack.c.b16 %v3123, %v3119
  %v3584 = vpack.c.b16 %v3124, %v3120
  %v3585 = vpack.c.b16 %v3125, %v3121
  %v3586 = vpack.c.b16 %v3126, %v3122
  %v3587 = vpack.c.b16 %v3131, %v3127
  %v3588 = vpack.c.b16 %v3132, %v3128
  %v3589 = vpack.c.b16 %v3133, %v3129
  %v3590 = vpack.c.b16 %v3134, %v3130
  %v3591 = vpack.c.b16 %v3139, %v3135
  %v3592 = vpack.c.b16 %v3140, %v3136
  %v3593 = vpack.c.b16 %v3141, %v3137
  %v3594 = vpack.c.b16 %v3142, %v3138
  %v3595 = vpack.c.b16 %v3147, %v3143
  %v3596 = vpack.c.b16 %v3148, %v3144
  %v3597 = vpack.c.b16 %v3149, %v3145
  %v3598 = vpack.c.b16 %v3150, %v3146
  %v3599 = vpack.c.b16 %v3155, %v3151
  %v3600 = vpack.c.b16 %v3156, %v3152
  %v3601 = vpack.c.b16 %v3157, %v3153
  %v3602 = vpack.c.b16 %v3158, %v3154
  %v3603 = vpack.c.b16 %v3163, %v3159
  %v3604 = vpack.c.b16 %v3164, %v3160
  %v3605 = vpack.c.b16 %v3165, %v3161
  %v3606 = vpack.c.b16 %v3166, %v3162
  %v3607 = vpack.c.b16 %v3171, %v3167
  %v3608 = vpack.c.b16 %v3172, %v3168
  %v3609 = vpack.c.b16 %v3173, %v3169
  %v3610 = vpack.c.b16 %v3174, %v3170
  %v3611 = vpack.c.b16 %v3179, %v3175
  %v3612 = vpack.c.b16 %v3180, %v3176
  %v3613 = vpack.c.b16 %v3181, %v3177
  %v3614 = vpack.c.b16 %v3182, %v3178
  %v3615 = vpack.c.b16 %v3187, %v3183
  %v3616 = vpack.c.b16 %v3188, %v3184
  %v3617 = vpack.c.b16 %v3189, %v3185
  %v3618 = vpack.c.b16 %v3190, %v3186
  %v3619 = vpack.c.b16 %v3195, %v3191
  %v3620 = vpack.c.b16 %v3196, %v3192
  %v3621 = vpack.c.b16 %v3197, %v3193
  %v3622 = vpack.c.b16 %v3198, %v3194
  %v3623 = vpack.c.b16 %v3203, %v3199
  %v3624 = vpack.c.b16 %v3204, %v3200
  %v3625 = vpack.c.b16 %v3205, %v3201
  %v3626 = vpack.c.b16 %v3206, %v3202
  %v3627 = vpack.c.b16 %v3211, %v3207
  %v3628 = vpack.c.b16 %v3212, %v3208
  %v3629 = vpack.c.b16 %v3213, %v3209
  %v3630 = vpack.c.b16 %v3214, %v3210
  %v3631 = vpack.c.b16 %v3219, %v3215
  %v3632 = vpack.c.b16 %v3220, %v3216
  %v3633 = vpack.c.b16 %v3221, %v3217
  %v3634 = vpack.c.b16 %v3222, %v3218
  %v3635 = vpack.c.b16 %v3227, %v3223
  %v3636 = vpack.c.b16 %v3228, %v3224
  %v3637 = vpack.c.b16 %v3229, %v3225
  %v3638 = vpack.c.b16 %v3230, %v3226
  %v3639 = vpack.c.b16 %v3235, %v3231
  %v3640 = vpack.c.b16 %v3236, %v3232
  %v3641 = vpack.c.b16 %v3237, %v3233
  %v3642 = vpack.c.b16 %v3238, %v3234
  %v3643 = vpack.c.b16 %v3243, %v3239
  %v3644 = vpack.c.b16 %v3244, %v3240
  %v3645 = vpack.c.b16 %v3245, %v3241
  %v3646 = vpack.c.b16 %v3246, %v3242
  %v3647 = vpack.c.b16 %v3251, %v3247
  %v3648 = vpack.c.b16 %v3252, %v3248
  %v3649 = vpack.c.b16 %v3253, %v3249
  %v3650 = vpack.c.b16 %v3254, %v3250
  %v3651 = vpack.c.b16 %v3259, %v3255
  %v3652 = vpack.c.b16 %v3260, %v3256
  %v3653 = vpack.c.b16 %v3261, %v3257
  %v3654 = vpack.c.b16 %v3262, %v3258
  %v3655 = vpack.c.b16 %v3267, %v3263
  %v3656 = vpack.c.b16 %v3268, %v3264
  %v3657 = vpack.c.b16 %v3269, %v3265
  %v3658 = vpack.c.b16 %v3270, %v3266
  %v3659 = vpack.c.b16 %v3275, %v3271
  %v3660 = vpack.c.b16 %v3276, %v3272
  %v3661 = vpack.c.b16 %v3277, %v3273
  %v3662 = vpack.c.b16 %v3278, %v3274
  %v3663 = vpack.c.b16 %v3283, %v3279
  %v3664 = vpack.c.b16 %v3284, %v3280
  %v3665 = vpack.c.b16 %v3285, %v3281
  %v3666 = vpack.c.b16 %v3286, %v3282
  %v3667 = vpack.c.b16 %v3291, %v3287
  %v3668 = vpack.c.b16 %v3292, %v3288
  %v3669 = vpack.c.b16 %v3293, %v3289
  %v3670 = vpack.c.b16 %v3294, %v3290
  %v3671 = vpack.c.b16 %v3299, %v3295
  %v3672 = vpack.c.b16 %v3300, %v3296
  %v3673 = vpack.c.b16 %v3301, %v3297
  %v3674 = vpack.c.b16 %v3302, %v3298
  %v3675 = vpack.c.b16 %v3307, %v3303
  %v3676 = vpack.c.b16 %v3308, %v3304
  %v3677 = vpack.c.b16 %v3309, %v3305
  %v3678 = vpack.c.b16 %v3310, %v3306
  %v3679 = vpack.c.b16 %v3315, %v3311
  %v3680 = vpack.c.b16 %v3316, %v3312
  %v3681 = vpack.c.b16 %v3317, %v3313
  %v3682 = vpack.c.b16 %v3318, %v3314
  %v3683 = vpack.c.b16 %v3323, %v3319
  %v3684 = vpack.c.b16 %v3324, %v3320
  %v3685 = vpack.c.b16 %v3325, %v3321
  %v3686 = vpack.c.b16 %v3326, %v3322
  %v3687 = vpack.c.b16 %v3331, %v3327
  %v3688 = vpack.c.b16 %v3332, %v3328
  %v3689 = vpack.c.b16 %v3333, %v3329
  %v3690 = vpack.c.b16 %v3334, %v3330
  %v3691 = vpack.c.b16 %v3339, %v3335
  %v3692 = vpack.c.b16 %v3340, %v3336
  %v3693 = vpack.c.b16 %v3341, %v3337
  %v3694 = vpack.c.b16 %v3342, %v3338
  %v3695 = vpack.c.b16 %v3347, %v3343
  %v3696 = vpack.c.b16 %v3348, %v3344
  %v3697 = vpack.c.b16 %v3349, %v3345
  %v3698 = vpack.c.b16 %v3350, %v3346
  %v3699 = vpack.c.b16 %v3355, %v3351
  %v3700 = vpack.c.b16 %v3356, %v3352
  %v3701 = vpack.c.b16 %v3357, %v3353
  %v3702 = vpack.c.b16 %v3358, %v3354
  %v3703 = vpack.c.b16 %v3363, %v3359
  %v3704 = vpack.c.b16 %v3364, %v3360
  %v3705 = vpack.c.b16 %v3365, %v3361
  %v3706 = vpack.c.b16 %v3366, %v3362
  %v3707 = vpack.c.b16 %v3371, %v3367
  %v3708 = vpack.c.b16 %v3372, %v3368
  %v3709 = vpack.c.b16 %v3373, %v3369
  %v3710 = vpack.c.b16 %v3374, %v3370
  %v3711 = vpack.c.b16 %v3379, %v3375
  %v3712 = vpack.c.b16 %v3380, %v3376
  %v3713 = vpack.c.b16 %v3381, %v3377
  %v3714 = vpack.c.b16 %v3382, %v3378
  %v3715 = vpack.c.b16 %v3387, %v3383
  %v3716 = vpack.c.b16 %v3388, %v3384
  %v3717 = vpack.c.b16 %v3389, %v3385
  %v3718 = vpack.c.b16 %v3390, %v3386
  %v3719 = vpack.c.b16 %v3395, %v3391
  %v3720 = vpack.c.b16 %v3396, %v3392
  %v3721 = vpack.c.b16 %v3397, %v3393
  %v3722 = vpack.c.b16 %v3398, %v3394
  %v3723 = vpack.c.b16 %v3403, %v3399
  %v3724 = vpack.c.b16 %v3404, %v3400
  %v3725 = vpack.c.b16 %v3405, %v3401
  %v3726 = vpack.c.b16 %v3406, %v3402
  %4047 = vmatpush.bf16.msra.mxu0 %v3435
  %4048 = vmatpush.bf16.msra.mxu0 %v3431
  %4049 = vmatpush.bf16.msra.mxu0 %v3427
  %4050 = vmatpush.bf16.msra.mxu0 %v3423
  %4051 = vmatpush.bf16.msra.mxu0 %v3419
  %4052 = vmatpush.bf16.msra.mxu0 %v3415
  %4053 = vmatpush.bf16.msra.mxu0 %v3411
  %4054 = vmatpush.bf16.msra.mxu0 %v3407
  %4055 = vmatmul.bf16.gmra.mxu0 %v2045
  %v4056 = vpop.f32.mrf.mxu0
  %v4057 = vadd.f32 %v2439, %v4056
  %v4058 = vpop.f32.mrf.mxu0
  %v4059 = vadd.f32 %v2439, %v4058
  %4060 = vmatmul.bf16.gmra.mxu0 %v2047
  %v4061 = vpop.f32.mrf.mxu0
  %v4062 = vadd.f32 %v2439, %v4061
  %v4063 = vpop.f32.mrf.mxu0
  %v4064 = vadd.f32 %v2439, %v4063
  %4065 = vmatmul.bf16.gmra.mxu0 %v2049
  %v4066 = vpop.f32.mrf.mxu0
  %v4067 = vadd.f32 %v2439, %v4066
  %v4068 = vpop.f32.mrf.mxu0
  %v4069 = vadd.f32 %v2439, %v4068
  %4070 = vmatmul.bf16.gmra.mxu0 %v2051
  %v4071 = vpop.f32.mrf.mxu0
  %v4072 = vadd.f32 %v2439, %v4071
  %v4073 = vpop.f32.mrf.mxu0
  %v4074 = vadd.f32 %v2439, %v4073
  %4075 = vmatmul.bf16.gmra.mxu0 %v2053
  %v4076 = vpop.f32.mrf.mxu0
  %v4077 = vadd.f32 %v2439, %v4076
  %v4078 = vpop.f32.mrf.mxu0
  %v4079 = vadd.f32 %v2439, %v4078
  %4080 = vmatmul.bf16.gmra.mxu0 %v2055
  %v4081 = vpop.f32.mrf.mxu0
  %v4082 = vadd.f32 %v2439, %v4081
  %v4083 = vpop.f32.mrf.mxu0
  %v4084 = vadd.f32 %v2439, %v4083
  %4085 = vmatmul.bf16.gmra.mxu0 %v2057
  %v4086 = vpop.f32.mrf.mxu0
  %v4087 = vadd.f32 %v2439, %v4086
  %v4088 = vpop.f32.mrf.mxu0
  %v4089 = vadd.f32 %v2439, %v4088
  %4090 = vmatmul.bf16.gmra.mxu0 %v2059
  %v4091 = vpop.f32.mrf.mxu0
  %v4092 = vadd.f32 %v2439, %v4091
  %v4093 = vpop.f32.mrf.mxu0
  %v4094 = vadd.f32 %v2439, %v4093
  %4095 = vdwg.mxu0
  %4096 = vmatpush.bf16.msra.mxu0 %v3467
  %4097 = vmatpush.bf16.msra.mxu0 %v3463
  %4098 = vmatpush.bf16.msra.mxu0 %v3459
  %4099 = vmatpush.bf16.msra.mxu0 %v3455
  %4100 = vmatpush.bf16.msra.mxu0 %v3451
  %4101 = vmatpush.bf16.msra.mxu0 %v3447
  %4102 = vmatpush.bf16.msra.mxu0 %v3443
  %4103 = vmatpush.bf16.msra.mxu0 %v3439
  %4104 = vmatmul.bf16.gmra.mxu0 %v2046
  %v4105 = vpop.f32.mrf.mxu0
  %v4106 = vadd.f32 %v4057, %v4105
  %v4107 = vpop.f32.mrf.mxu0
  %v4108 = vadd.f32 %v4059, %v4107
  %4109 = vmatmul.bf16.gmra.mxu0 %v2048
  %v4110 = vpop.f32.mrf.mxu0
  %v4111 = vadd.f32 %v4062, %v4110
  %v4112 = vpop.f32.mrf.mxu0
  %v4113 = vadd.f32 %v4064, %v4112
  %4114 = vmatmul.bf16.gmra.mxu0 %v2050
  %v4115 = vpop.f32.mrf.mxu0
  %v4116 = vadd.f32 %v4067, %v4115
  %v4117 = vpop.f32.mrf.mxu0
  %v4118 = vadd.f32 %v4069, %v4117
  %4119 = vmatmul.bf16.gmra.mxu0 %v2052
  %v4120 = vpop.f32.mrf.mxu0
  %v4121 = vadd.f32 %v4072, %v4120
  %v4122 = vpop.f32.mrf.mxu0
  %v4123 = vadd.f32 %v4074, %v4122
  %4124 = vmatmul.bf16.gmra.mxu0 %v2054
  %v4125 = vpop.f32.mrf.mxu0
  %v4126 = vadd.f32 %v4077, %v4125
  %v4127 = vpop.f32.mrf.mxu0
  %v4128 = vadd.f32 %v4079, %v4127
  %4129 = vmatmul.bf16.gmra.mxu0 %v2056
  %v4130 = vpop.f32.mrf.mxu0
  %v4131 = vadd.f32 %v4082, %v4130
  %v4132 = vpop.f32.mrf.mxu0
  %v4133 = vadd.f32 %v4084, %v4132
  %4134 = vmatmul.bf16.gmra.mxu0 %v2058
  %v4135 = vpop.f32.mrf.mxu0
  %v4136 = vadd.f32 %v4087, %v4135
  %v4137 = vpop.f32.mrf.mxu0
  %v4138 = vadd.f32 %v4089, %v4137
  %4139 = vmatmul.bf16.gmra.mxu0 %v2060
  %v4140 = vpop.f32.mrf.mxu0
  %v4141 = vadd.f32 %v4092, %v4140
  %v4142 = vpop.f32.mrf.mxu0
  %v4143 = vadd.f32 %v4094, %v4142
  %4144 = vdwg.mxu0
  %4145 = vmatpush.bf16.msra.mxu0 %v3499
  %4146 = vmatpush.bf16.msra.mxu0 %v3495
  %4147 = vmatpush.bf16.msra.mxu0 %v3491
  %4148 = vmatpush.bf16.msra.mxu0 %v3487
  %4149 = vmatpush.bf16.msra.mxu0 %v3483
  %4150 = vmatpush.bf16.msra.mxu0 %v3479
  %4151 = vmatpush.bf16.msra.mxu0 %v3475
  %4152 = vmatpush.bf16.msra.mxu0 %v3471
  %4153 = vmatmul.bf16.gmra.mxu0 %v2047
  %v4154 = vpop.f32.mrf.mxu0
  %v4155 = vadd.f32 %v4106, %v4154
  %v4156 = vpop.f32.mrf.mxu0
  %v4157 = vadd.f32 %v4108, %v4156
  %4158 = vmatmul.bf16.gmra.mxu0 %v2049
  %v4159 = vpop.f32.mrf.mxu0
  %v4160 = vadd.f32 %v4111, %v4159
  %v4161 = vpop.f32.mrf.mxu0
  %v4162 = vadd.f32 %v4113, %v4161
  %4163 = vmatmul.bf16.gmra.mxu0 %v2051
  %v4164 = vpop.f32.mrf.mxu0
  %v4165 = vadd.f32 %v4116, %v4164
  %v4166 = vpop.f32.mrf.mxu0
  %v4167 = vadd.f32 %v4118, %v4166
  %4168 = vmatmul.bf16.gmra.mxu0 %v2053
  %v4169 = vpop.f32.mrf.mxu0
  %v4170 = vadd.f32 %v4121, %v4169
  %v4171 = vpop.f32.mrf.mxu0
  %v4172 = vadd.f32 %v4123, %v4171
  %4173 = vmatmul.bf16.gmra.mxu0 %v2055
  %v4174 = vpop.f32.mrf.mxu0
  %v4175 = vadd.f32 %v4126, %v4174
  %v4176 = vpop.f32.mrf.mxu0
  %v4177 = vadd.f32 %v4128, %v4176
  %4178 = vmatmul.bf16.gmra.mxu0 %v2057
  %v4179 = vpop.f32.mrf.mxu0
  %v4180 = vadd.f32 %v4131, %v4179
  %v4181 = vpop.f32.mrf.mxu0
  %v4182 = vadd.f32 %v4133, %v4181
  %4183 = vmatmul.bf16.gmra.mxu0 %v2059
  %v4184 = vpop.f32.mrf.mxu0
  %v4185 = vadd.f32 %v4136, %v4184
  %v4186 = vpop.f32.mrf.mxu0
  %v4187 = vadd.f32 %v4138, %v4186
  %4188 = vmatmul.bf16.gmra.mxu0 %v2083
  %v4189 = vpop.f32.mrf.mxu0
  %v4190 = vadd.f32 %v4141, %v4189
  %v4191 = vpop.f32.mrf.mxu0
  %v4192 = vadd.f32 %v4143, %v4191
  %4193 = vdwg.mxu0
  %4194 = vmatpush.bf16.msra.mxu0 %v3531
  %4195 = vmatpush.bf16.msra.mxu0 %v3527
  %4196 = vmatpush.bf16.msra.mxu0 %v3523
  %4197 = vmatpush.bf16.msra.mxu0 %v3519
  %4198 = vmatpush.bf16.msra.mxu0 %v3515
  %4199 = vmatpush.bf16.msra.mxu0 %v3511
  %4200 = vmatpush.bf16.msra.mxu0 %v3507
  %4201 = vmatpush.bf16.msra.mxu0 %v3503
  %4202 = vmatmul.bf16.gmra.mxu0 %v2048
  %v4203 = vpop.f32.mrf.mxu0
  %v4204 = vadd.f32 %v4155, %v4203
  %v4205 = vpop.f32.mrf.mxu0
  %v4206 = vadd.f32 %v4157, %v4205
  %4207 = vmatmul.bf16.gmra.mxu0 %v2050
  %v4208 = vpop.f32.mrf.mxu0
  %v4209 = vadd.f32 %v4160, %v4208
  %v4210 = vpop.f32.mrf.mxu0
  %v4211 = vadd.f32 %v4162, %v4210
  %4212 = vmatmul.bf16.gmra.mxu0 %v2052
  %v4213 = vpop.f32.mrf.mxu0
  %v4214 = vadd.f32 %v4165, %v4213
  %v4215 = vpop.f32.mrf.mxu0
  %v4216 = vadd.f32 %v4167, %v4215
  %4217 = vmatmul.bf16.gmra.mxu0 %v2054
  %v4218 = vpop.f32.mrf.mxu0
  %v4219 = vadd.f32 %v4170, %v4218
  %v4220 = vpop.f32.mrf.mxu0
  %v4221 = vadd.f32 %v4172, %v4220
  %4222 = vmatmul.bf16.gmra.mxu0 %v2056
  %v4223 = vpop.f32.mrf.mxu0
  %v4224 = vadd.f32 %v4175, %v4223
  %v4225 = vpop.f32.mrf.mxu0
  %v4226 = vadd.f32 %v4177, %v4225
  %4227 = vmatmul.bf16.gmra.mxu0 %v2058
  %v4228 = vpop.f32.mrf.mxu0
  %v4229 = vadd.f32 %v4180, %v4228
  %v4230 = vpop.f32.mrf.mxu0
  %v4231 = vadd.f32 %v4182, %v4230
  %4232 = vmatmul.bf16.gmra.mxu0 %v2060
  %v4233 = vpop.f32.mrf.mxu0
  %v4234 = vadd.f32 %v4185, %v4233
  %v4235 = vpop.f32.mrf.mxu0
  %v4236 = vadd.f32 %v4187, %v4235
  %4237 = vmatmul.bf16.gmra.mxu0 %v2084
  %v4238 = vpop.f32.mrf.mxu0
  %v4239 = vadd.f32 %v4190, %v4238
  %v4240 = vpop.f32.mrf.mxu0
  %v4241 = vadd.f32 %v4192, %v4240
  %4242 = vdwg.mxu0
  %4243 = vmatpush.bf16.msra.mxu0 %v3563
  %4244 = vmatpush.bf16.msra.mxu0 %v3559
  %4245 = vmatpush.bf16.msra.mxu0 %v3555
  %4246 = vmatpush.bf16.msra.mxu0 %v3551
  %4247 = vmatpush.bf16.msra.mxu0 %v3547
  %4248 = vmatpush.bf16.msra.mxu0 %v3543
  %4249 = vmatpush.bf16.msra.mxu0 %v3539
  %4250 = vmatpush.bf16.msra.mxu0 %v3535
  %4251 = vmatmul.bf16.gmra.mxu0 %v2049
  %v4252 = vpop.f32.mrf.mxu0
  %v4253 = vadd.f32 %v4204, %v4252
  %v4254 = vpop.f32.mrf.mxu0
  %v4255 = vadd.f32 %v4206, %v4254
  %4256 = vmatmul.bf16.gmra.mxu0 %v2051
  %v4257 = vpop.f32.mrf.mxu0
  %v4258 = vadd.f32 %v4209, %v4257
  %v4259 = vpop.f32.mrf.mxu0
  %v4260 = vadd.f32 %v4211, %v4259
  %4261 = vmatmul.bf16.gmra.mxu0 %v2053
  %v4262 = vpop.f32.mrf.mxu0
  %v4263 = vadd.f32 %v4214, %v4262
  %v4264 = vpop.f32.mrf.mxu0
  %v4265 = vadd.f32 %v4216, %v4264
  %4266 = vmatmul.bf16.gmra.mxu0 %v2055
  %v4267 = vpop.f32.mrf.mxu0
  %v4268 = vadd.f32 %v4219, %v4267
  %v4269 = vpop.f32.mrf.mxu0
  %v4270 = vadd.f32 %v4221, %v4269
  %4271 = vmatmul.bf16.gmra.mxu0 %v2057
  %v4272 = vpop.f32.mrf.mxu0
  %v4273 = vadd.f32 %v4224, %v4272
  %v4274 = vpop.f32.mrf.mxu0
  %v4275 = vadd.f32 %v4226, %v4274
  %4276 = vmatmul.bf16.gmra.mxu0 %v2059
  %v4277 = vpop.f32.mrf.mxu0
  %v4278 = vadd.f32 %v4229, %v4277
  %v4279 = vpop.f32.mrf.mxu0
  %v4280 = vadd.f32 %v4231, %v4279
  %4281 = vmatmul.bf16.gmra.mxu0 %v2083
  %v4282 = vpop.f32.mrf.mxu0
  %v4283 = vadd.f32 %v4234, %v4282
  %v4284 = vpop.f32.mrf.mxu0
  %v4285 = vadd.f32 %v4236, %v4284
  %4286 = vmatmul.bf16.gmra.mxu0 %v2093
  %v4287 = vpop.f32.mrf.mxu0
  %v4288 = vadd.f32 %v4239, %v4287
  %v4289 = vpop.f32.mrf.mxu0
  %v4290 = vadd.f32 %v4241, %v4289
  %4291 = vdwg.mxu0
  %4292 = vmatpush.bf16.msra.mxu0 %v3595
  %4293 = vmatpush.bf16.msra.mxu0 %v3591
  %4294 = vmatpush.bf16.msra.mxu0 %v3587
  %4295 = vmatpush.bf16.msra.mxu0 %v3583
  %4296 = vmatpush.bf16.msra.mxu0 %v3579
  %4297 = vmatpush.bf16.msra.mxu0 %v3575
  %4298 = vmatpush.bf16.msra.mxu0 %v3571
  %4299 = vmatpush.bf16.msra.mxu0 %v3567
  %4300 = vmatmul.bf16.gmra.mxu0 %v2050
  %v4301 = vpop.f32.mrf.mxu0
  %v4302 = vadd.f32 %v4253, %v4301
  %v4303 = vpop.f32.mrf.mxu0
  %v4304 = vadd.f32 %v4255, %v4303
  %4305 = vmatmul.bf16.gmra.mxu0 %v2052
  %v4306 = vpop.f32.mrf.mxu0
  %v4307 = vadd.f32 %v4258, %v4306
  %v4308 = vpop.f32.mrf.mxu0
  %v4309 = vadd.f32 %v4260, %v4308
  %4310 = vmatmul.bf16.gmra.mxu0 %v2054
  %v4311 = vpop.f32.mrf.mxu0
  %v4312 = vadd.f32 %v4263, %v4311
  %v4313 = vpop.f32.mrf.mxu0
  %v4314 = vadd.f32 %v4265, %v4313
  %4315 = vmatmul.bf16.gmra.mxu0 %v2056
  %v4316 = vpop.f32.mrf.mxu0
  %v4317 = vadd.f32 %v4268, %v4316
  %v4318 = vpop.f32.mrf.mxu0
  %v4319 = vadd.f32 %v4270, %v4318
  %4320 = vmatmul.bf16.gmra.mxu0 %v2058
  %v4321 = vpop.f32.mrf.mxu0
  %v4322 = vadd.f32 %v4273, %v4321
  %v4323 = vpop.f32.mrf.mxu0
  %v4324 = vadd.f32 %v4275, %v4323
  %4325 = vmatmul.bf16.gmra.mxu0 %v2060
  %v4326 = vpop.f32.mrf.mxu0
  %v4327 = vadd.f32 %v4278, %v4326
  %v4328 = vpop.f32.mrf.mxu0
  %v4329 = vadd.f32 %v4280, %v4328
  %4330 = vmatmul.bf16.gmra.mxu0 %v2084
  %v4331 = vpop.f32.mrf.mxu0
  %v4332 = vadd.f32 %v4283, %v4331
  %v4333 = vpop.f32.mrf.mxu0
  %v4334 = vadd.f32 %v4285, %v4333
  %4335 = vmatmul.bf16.gmra.mxu0 %v2094
  %v4336 = vpop.f32.mrf.mxu0
  %v4337 = vadd.f32 %v4288, %v4336
  %v4338 = vpop.f32.mrf.mxu0
  %v4339 = vadd.f32 %v4290, %v4338
  %4340 = vdwg.mxu0
  %4341 = vmatpush.bf16.msra.mxu0 %v3627
  %4342 = vmatpush.bf16.msra.mxu0 %v3623
  %4343 = vmatpush.bf16.msra.mxu0 %v3619
  %4344 = vmatpush.bf16.msra.mxu0 %v3615
  %4345 = vmatpush.bf16.msra.mxu0 %v3611
  %4346 = vmatpush.bf16.msra.mxu0 %v3607
  %4347 = vmatpush.bf16.msra.mxu0 %v3603
  %4348 = vmatpush.bf16.msra.mxu0 %v3599
  %4349 = vmatmul.bf16.gmra.mxu0 %v2051
  %v4350 = vpop.f32.mrf.mxu0
  %v4351 = vadd.f32 %v4302, %v4350
  %v4352 = vpop.f32.mrf.mxu0
  %v4353 = vadd.f32 %v4304, %v4352
  %4354 = vmatmul.bf16.gmra.mxu0 %v2053
  %v4355 = vpop.f32.mrf.mxu0
  %v4356 = vadd.f32 %v4307, %v4355
  %v4357 = vpop.f32.mrf.mxu0
  %v4358 = vadd.f32 %v4309, %v4357
  %4359 = vmatmul.bf16.gmra.mxu0 %v2055
  %v4360 = vpop.f32.mrf.mxu0
  %v4361 = vadd.f32 %v4312, %v4360
  %v4362 = vpop.f32.mrf.mxu0
  %v4363 = vadd.f32 %v4314, %v4362
  %4364 = vmatmul.bf16.gmra.mxu0 %v2057
  %v4365 = vpop.f32.mrf.mxu0
  %v4366 = vadd.f32 %v4317, %v4365
  %v4367 = vpop.f32.mrf.mxu0
  %v4368 = vadd.f32 %v4319, %v4367
  %4369 = vmatmul.bf16.gmra.mxu0 %v2059
  %v4370 = vpop.f32.mrf.mxu0
  %v4371 = vadd.f32 %v4322, %v4370
  %v4372 = vpop.f32.mrf.mxu0
  %v4373 = vadd.f32 %v4324, %v4372
  %4374 = vmatmul.bf16.gmra.mxu0 %v2083
  %v4375 = vpop.f32.mrf.mxu0
  %v4376 = vadd.f32 %v4327, %v4375
  %v4377 = vpop.f32.mrf.mxu0
  %v4378 = vadd.f32 %v4329, %v4377
  %4379 = vmatmul.bf16.gmra.mxu0 %v2093
  %v4380 = vpop.f32.mrf.mxu0
  %v4381 = vadd.f32 %v4332, %v4380
  %v4382 = vpop.f32.mrf.mxu0
  %v4383 = vadd.f32 %v4334, %v4382
  %4384 = vmatmul.bf16.gmra.mxu0 %v2103
  %v4385 = vpop.f32.mrf.mxu0
  %v4386 = vadd.f32 %v4337, %v4385
  %v4387 = vpop.f32.mrf.mxu0
  %v4388 = vadd.f32 %v4339, %v4387
  %4389 = vdwg.mxu0
  %4390 = vmatpush.bf16.msra.mxu0 %v3659
  %4391 = vmatpush.bf16.msra.mxu0 %v3655
  %4392 = vmatpush.bf16.msra.mxu0 %v3651
  %4393 = vmatpush.bf16.msra.mxu0 %v3647
  %4394 = vmatpush.bf16.msra.mxu0 %v3643
  %4395 = vmatpush.bf16.msra.mxu0 %v3639
  %4396 = vmatpush.bf16.msra.mxu0 %v3635
  %4397 = vmatpush.bf16.msra.mxu0 %v3631
  %4398 = vmatmul.bf16.gmra.mxu0 %v2052
  %v4399 = vpop.f32.mrf.mxu0
  %v4400 = vadd.f32 %v4351, %v4399
  %v4401 = vpop.f32.mrf.mxu0
  %v4402 = vadd.f32 %v4353, %v4401
  %4403 = vmatmul.bf16.gmra.mxu0 %v2054
  %v4404 = vpop.f32.mrf.mxu0
  %v4405 = vadd.f32 %v4356, %v4404
  %v4406 = vpop.f32.mrf.mxu0
  %v4407 = vadd.f32 %v4358, %v4406
  %4408 = vmatmul.bf16.gmra.mxu0 %v2056
  %v4409 = vpop.f32.mrf.mxu0
  %v4410 = vadd.f32 %v4361, %v4409
  %v4411 = vpop.f32.mrf.mxu0
  %v4412 = vadd.f32 %v4363, %v4411
  %4413 = vmatmul.bf16.gmra.mxu0 %v2058
  %v4414 = vpop.f32.mrf.mxu0
  %v4415 = vadd.f32 %v4366, %v4414
  %v4416 = vpop.f32.mrf.mxu0
  %v4417 = vadd.f32 %v4368, %v4416
  %4418 = vmatmul.bf16.gmra.mxu0 %v2060
  %v4419 = vpop.f32.mrf.mxu0
  %v4420 = vadd.f32 %v4371, %v4419
  %v4421 = vpop.f32.mrf.mxu0
  %v4422 = vadd.f32 %v4373, %v4421
  %4423 = vmatmul.bf16.gmra.mxu0 %v2084
  %v4424 = vpop.f32.mrf.mxu0
  %v4425 = vadd.f32 %v4376, %v4424
  %v4426 = vpop.f32.mrf.mxu0
  %v4427 = vadd.f32 %v4378, %v4426
  %4428 = vmatmul.bf16.gmra.mxu0 %v2094
  %v4429 = vpop.f32.mrf.mxu0
  %v4430 = vadd.f32 %v4381, %v4429
  %v4431 = vpop.f32.mrf.mxu0
  %v4432 = vadd.f32 %v4383, %v4431
  %4433 = vmatmul.bf16.gmra.mxu0 %v2104
  %v4434 = vpop.f32.mrf.mxu0
  %v4435 = vadd.f32 %v4386, %v4434
  %v4436 = vpop.f32.mrf.mxu0
  %v4437 = vadd.f32 %v4388, %v4436
  %4438 = vdwg.mxu0
  %4439 = vmatpush.bf16.msra.mxu0 %v3691
  %4440 = vmatpush.bf16.msra.mxu0 %v3687
  %4441 = vmatpush.bf16.msra.mxu0 %v3683
  %4442 = vmatpush.bf16.msra.mxu0 %v3679
  %4443 = vmatpush.bf16.msra.mxu0 %v3675
  %4444 = vmatpush.bf16.msra.mxu0 %v3671
  %4445 = vmatpush.bf16.msra.mxu0 %v3667
  %4446 = vmatpush.bf16.msra.mxu0 %v3663
  %4447 = vmatmul.bf16.gmra.mxu0 %v2053
  %v4448 = vpop.f32.mrf.mxu0
  %v4449 = vadd.f32 %v4400, %v4448
  %v4450 = vpop.f32.mrf.mxu0
  %v4451 = vadd.f32 %v4402, %v4450
  %4452 = vmatmul.bf16.gmra.mxu0 %v2055
  %v4453 = vpop.f32.mrf.mxu0
  %v4454 = vadd.f32 %v4405, %v4453
  %v4455 = vpop.f32.mrf.mxu0
  %v4456 = vadd.f32 %v4407, %v4455
  %4457 = vmatmul.bf16.gmra.mxu0 %v2057
  %v4458 = vpop.f32.mrf.mxu0
  %v4459 = vadd.f32 %v4410, %v4458
  %v4460 = vpop.f32.mrf.mxu0
  %v4461 = vadd.f32 %v4412, %v4460
  %4462 = vmatmul.bf16.gmra.mxu0 %v2059
  %v4463 = vpop.f32.mrf.mxu0
  %v4464 = vadd.f32 %v4415, %v4463
  %v4465 = vpop.f32.mrf.mxu0
  %v4466 = vadd.f32 %v4417, %v4465
  %4467 = vmatmul.bf16.gmra.mxu0 %v2083
  %v4468 = vpop.f32.mrf.mxu0
  %v4469 = vadd.f32 %v4420, %v4468
  %v4470 = vpop.f32.mrf.mxu0
  %v4471 = vadd.f32 %v4422, %v4470
  %4472 = vmatmul.bf16.gmra.mxu0 %v2093
  %v4473 = vpop.f32.mrf.mxu0
  %v4474 = vadd.f32 %v4425, %v4473
  %v4475 = vpop.f32.mrf.mxu0
  %v4476 = vadd.f32 %v4427, %v4475
  %4477 = vmatmul.bf16.gmra.mxu0 %v2103
  %v4478 = vpop.f32.mrf.mxu0
  %v4479 = vadd.f32 %v4430, %v4478
  %v4480 = vpop.f32.mrf.mxu0
  %v4481 = vadd.f32 %v4432, %v4480
  %4482 = vmatmul.bf16.gmra.mxu0 %v2113
  %v4483 = vpop.f32.mrf.mxu0
  %v4484 = vadd.f32 %v4435, %v4483
  %v4485 = vpop.f32.mrf.mxu0
  %v4486 = vadd.f32 %v4437, %v4485
  %4487 = vdwg.mxu0
  %4488 = vmatpush.bf16.msra.mxu0 %v3723
  %4489 = vmatpush.bf16.msra.mxu0 %v3719
  %4490 = vmatpush.bf16.msra.mxu0 %v3715
  %4491 = vmatpush.bf16.msra.mxu0 %v3711
  %4492 = vmatpush.bf16.msra.mxu0 %v3707
  %4493 = vmatpush.bf16.msra.mxu0 %v3703
  %4494 = vmatpush.bf16.msra.mxu0 %v3699
  %4495 = vmatpush.bf16.msra.mxu0 %v3695
  %4496 = vmatmul.bf16.gmra.mxu0 %v2054
  %v4497 = vpop.f32.mrf.mxu0
  %v4498 = vadd.f32 %v4449, %v4497
  %v4499 = vpop.f32.mrf.mxu0
  %v4500 = vadd.f32 %v4451, %v4499
  %4501 = vmatmul.bf16.gmra.mxu0 %v2056
  %v4502 = vpop.f32.mrf.mxu0
  %v4503 = vadd.f32 %v4454, %v4502
  %v4504 = vpop.f32.mrf.mxu0
  %v4505 = vadd.f32 %v4456, %v4504
  %4506 = vmatmul.bf16.gmra.mxu0 %v2058
  %v4507 = vpop.f32.mrf.mxu0
  %v4508 = vadd.f32 %v4459, %v4507
  %v4509 = vpop.f32.mrf.mxu0
  %v4510 = vadd.f32 %v4461, %v4509
  %4511 = vmatmul.bf16.gmra.mxu0 %v2060
  %v4512 = vpop.f32.mrf.mxu0
  %v4513 = vadd.f32 %v4464, %v4512
  %v4514 = vpop.f32.mrf.mxu0
  %v4515 = vadd.f32 %v4466, %v4514
  %4516 = vmatmul.bf16.gmra.mxu0 %v2084
  %v4517 = vpop.f32.mrf.mxu0
  %v4518 = vadd.f32 %v4469, %v4517
  %v4519 = vpop.f32.mrf.mxu0
  %v4520 = vadd.f32 %v4471, %v4519
  %4521 = vmatmul.bf16.gmra.mxu0 %v2094
  %v4522 = vpop.f32.mrf.mxu0
  %v4523 = vadd.f32 %v4474, %v4522
  %v4524 = vpop.f32.mrf.mxu0
  %v4525 = vadd.f32 %v4476, %v4524
  %4526 = vmatmul.bf16.gmra.mxu0 %v2104
  %v4527 = vpop.f32.mrf.mxu0
  %v4528 = vadd.f32 %v4479, %v4527
  %v4529 = vpop.f32.mrf.mxu0
  %v4530 = vadd.f32 %v4481, %v4529
  %4531 = vmatmul.bf16.gmra.mxu0 %v2114
  %v4532 = vpop.f32.mrf.mxu0
  %v4533 = vadd.f32 %v4484, %v4532
  %v4534 = vpop.f32.mrf.mxu0
  %v4535 = vadd.f32 %v4486, %v4534
  %4536 = vdwg.mxu0
  %4537 = vmatpush.bf16.msra.mxu0 %v3436
  %4538 = vmatpush.bf16.msra.mxu0 %v3432
  %4539 = vmatpush.bf16.msra.mxu0 %v3428
  %4540 = vmatpush.bf16.msra.mxu0 %v3424
  %4541 = vmatpush.bf16.msra.mxu0 %v3420
  %4542 = vmatpush.bf16.msra.mxu0 %v3416
  %4543 = vmatpush.bf16.msra.mxu0 %v3412
  %4544 = vmatpush.bf16.msra.mxu0 %v3408
  %4545 = vmatmul.bf16.gmra.mxu0 %v2045
  %v4546 = vpop.f32.mrf.mxu0
  %v4547 = vadd.f32 %v2440, %v4546
  %v4548 = vpop.f32.mrf.mxu0
  %v4549 = vadd.f32 %v2440, %v4548
  %4550 = vmatmul.bf16.gmra.mxu0 %v2047
  %v4551 = vpop.f32.mrf.mxu0
  %v4552 = vadd.f32 %v2440, %v4551
  %v4553 = vpop.f32.mrf.mxu0
  %v4554 = vadd.f32 %v2440, %v4553
  %4555 = vmatmul.bf16.gmra.mxu0 %v2049
  %v4556 = vpop.f32.mrf.mxu0
  %v4557 = vadd.f32 %v2440, %v4556
  %v4558 = vpop.f32.mrf.mxu0
  %v4559 = vadd.f32 %v2440, %v4558
  %4560 = vmatmul.bf16.gmra.mxu0 %v2051
  %v4561 = vpop.f32.mrf.mxu0
  %v4562 = vadd.f32 %v2440, %v4561
  %v4563 = vpop.f32.mrf.mxu0
  %v4564 = vadd.f32 %v2440, %v4563
  %4565 = vmatmul.bf16.gmra.mxu0 %v2053
  %v4566 = vpop.f32.mrf.mxu0
  %v4567 = vadd.f32 %v2440, %v4566
  %v4568 = vpop.f32.mrf.mxu0
  %v4569 = vadd.f32 %v2440, %v4568
  %4570 = vmatmul.bf16.gmra.mxu0 %v2055
  %v4571 = vpop.f32.mrf.mxu0
  %v4572 = vadd.f32 %v2440, %v4571
  %v4573 = vpop.f32.mrf.mxu0
  %v4574 = vadd.f32 %v2440, %v4573
  %4575 = vmatmul.bf16.gmra.mxu0 %v2057
  %v4576 = vpop.f32.mrf.mxu0
  %v4577 = vadd.f32 %v2440, %v4576
  %v4578 = vpop.f32.mrf.mxu0
  %v4579 = vadd.f32 %v2440, %v4578
  %4580 = vmatmul.bf16.gmra.mxu0 %v2059
  %v4581 = vpop.f32.mrf.mxu0
  %v4582 = vadd.f32 %v2440, %v4581
  %v4583 = vpop.f32.mrf.mxu0
  %v4584 = vadd.f32 %v2440, %v4583
  %4585 = vdwg.mxu0
  %4586 = vmatpush.bf16.msra.mxu0 %v3468
  %4587 = vmatpush.bf16.msra.mxu0 %v3464
  %4588 = vmatpush.bf16.msra.mxu0 %v3460
  %4589 = vmatpush.bf16.msra.mxu0 %v3456
  %4590 = vmatpush.bf16.msra.mxu0 %v3452
  %4591 = vmatpush.bf16.msra.mxu0 %v3448
  %4592 = vmatpush.bf16.msra.mxu0 %v3444
  %4593 = vmatpush.bf16.msra.mxu0 %v3440
  %4594 = vmatmul.bf16.gmra.mxu0 %v2046
  %v4595 = vpop.f32.mrf.mxu0
  %v4596 = vadd.f32 %v4547, %v4595
  %v4597 = vpop.f32.mrf.mxu0
  %v4598 = vadd.f32 %v4549, %v4597
  %4599 = vmatmul.bf16.gmra.mxu0 %v2048
  %v4600 = vpop.f32.mrf.mxu0
  %v4601 = vadd.f32 %v4552, %v4600
  %v4602 = vpop.f32.mrf.mxu0
  %v4603 = vadd.f32 %v4554, %v4602
  %4604 = vmatmul.bf16.gmra.mxu0 %v2050
  %v4605 = vpop.f32.mrf.mxu0
  %v4606 = vadd.f32 %v4557, %v4605
  %v4607 = vpop.f32.mrf.mxu0
  %v4608 = vadd.f32 %v4559, %v4607
  %4609 = vmatmul.bf16.gmra.mxu0 %v2052
  %v4610 = vpop.f32.mrf.mxu0
  %v4611 = vadd.f32 %v4562, %v4610
  %v4612 = vpop.f32.mrf.mxu0
  %v4613 = vadd.f32 %v4564, %v4612
  %4614 = vmatmul.bf16.gmra.mxu0 %v2054
  %v4615 = vpop.f32.mrf.mxu0
  %v4616 = vadd.f32 %v4567, %v4615
  %v4617 = vpop.f32.mrf.mxu0
  %v4618 = vadd.f32 %v4569, %v4617
  %4619 = vmatmul.bf16.gmra.mxu0 %v2056
  %v4620 = vpop.f32.mrf.mxu0
  %v4621 = vadd.f32 %v4572, %v4620
  %v4622 = vpop.f32.mrf.mxu0
  %v4623 = vadd.f32 %v4574, %v4622
  %4624 = vmatmul.bf16.gmra.mxu0 %v2058
  %v4625 = vpop.f32.mrf.mxu0
  %v4626 = vadd.f32 %v4577, %v4625
  %v4627 = vpop.f32.mrf.mxu0
  %v4628 = vadd.f32 %v4579, %v4627
  %4629 = vmatmul.bf16.gmra.mxu0 %v2060
  %v4630 = vpop.f32.mrf.mxu0
  %v4631 = vadd.f32 %v4582, %v4630
  %v4632 = vpop.f32.mrf.mxu0
  %v4633 = vadd.f32 %v4584, %v4632
  %4634 = vdwg.mxu0
  %4635 = vmatpush.bf16.msra.mxu0 %v3500
  %4636 = vmatpush.bf16.msra.mxu0 %v3496
  %4637 = vmatpush.bf16.msra.mxu0 %v3492
  %4638 = vmatpush.bf16.msra.mxu0 %v3488
  %4639 = vmatpush.bf16.msra.mxu0 %v3484
  %4640 = vmatpush.bf16.msra.mxu0 %v3480
  %4641 = vmatpush.bf16.msra.mxu0 %v3476
  %4642 = vmatpush.bf16.msra.mxu0 %v3472
  %4643 = vmatmul.bf16.gmra.mxu0 %v2047
  %v4644 = vpop.f32.mrf.mxu0
  %v4645 = vadd.f32 %v4596, %v4644
  %v4646 = vpop.f32.mrf.mxu0
  %v4647 = vadd.f32 %v4598, %v4646
  %4648 = vmatmul.bf16.gmra.mxu0 %v2049
  %v4649 = vpop.f32.mrf.mxu0
  %v4650 = vadd.f32 %v4601, %v4649
  %v4651 = vpop.f32.mrf.mxu0
  %v4652 = vadd.f32 %v4603, %v4651
  %4653 = vmatmul.bf16.gmra.mxu0 %v2051
  %v4654 = vpop.f32.mrf.mxu0
  %v4655 = vadd.f32 %v4606, %v4654
  %v4656 = vpop.f32.mrf.mxu0
  %v4657 = vadd.f32 %v4608, %v4656
  %4658 = vmatmul.bf16.gmra.mxu0 %v2053
  %v4659 = vpop.f32.mrf.mxu0
  %v4660 = vadd.f32 %v4611, %v4659
  %v4661 = vpop.f32.mrf.mxu0
  %v4662 = vadd.f32 %v4613, %v4661
  %4663 = vmatmul.bf16.gmra.mxu0 %v2055
  %v4664 = vpop.f32.mrf.mxu0
  %v4665 = vadd.f32 %v4616, %v4664
  %v4666 = vpop.f32.mrf.mxu0
  %v4667 = vadd.f32 %v4618, %v4666
  %4668 = vmatmul.bf16.gmra.mxu0 %v2057
  %v4669 = vpop.f32.mrf.mxu0
  %v4670 = vadd.f32 %v4621, %v4669
  %v4671 = vpop.f32.mrf.mxu0
  %v4672 = vadd.f32 %v4623, %v4671
  %4673 = vmatmul.bf16.gmra.mxu0 %v2059
  %v4674 = vpop.f32.mrf.mxu0
  %v4675 = vadd.f32 %v4626, %v4674
  %v4676 = vpop.f32.mrf.mxu0
  %v4677 = vadd.f32 %v4628, %v4676
  %4678 = vmatmul.bf16.gmra.mxu0 %v2083
  %v4679 = vpop.f32.mrf.mxu0
  %v4680 = vadd.f32 %v4631, %v4679
  %v4681 = vpop.f32.mrf.mxu0
  %v4682 = vadd.f32 %v4633, %v4681
  %4683 = vdwg.mxu0
  %4684 = vmatpush.bf16.msra.mxu0 %v3532
  %4685 = vmatpush.bf16.msra.mxu0 %v3528
  %4686 = vmatpush.bf16.msra.mxu0 %v3524
  %4687 = vmatpush.bf16.msra.mxu0 %v3520
  %4688 = vmatpush.bf16.msra.mxu0 %v3516
  %4689 = vmatpush.bf16.msra.mxu0 %v3512
  %4690 = vmatpush.bf16.msra.mxu0 %v3508
  %4691 = vmatpush.bf16.msra.mxu0 %v3504
  %4692 = vmatmul.bf16.gmra.mxu0 %v2048
  %v4693 = vpop.f32.mrf.mxu0
  %v4694 = vadd.f32 %v4645, %v4693
  %v4695 = vpop.f32.mrf.mxu0
  %v4696 = vadd.f32 %v4647, %v4695
  %4697 = vmatmul.bf16.gmra.mxu0 %v2050
  %v4698 = vpop.f32.mrf.mxu0
  %v4699 = vadd.f32 %v4650, %v4698
  %v4700 = vpop.f32.mrf.mxu0
  %v4701 = vadd.f32 %v4652, %v4700
  %4702 = vmatmul.bf16.gmra.mxu0 %v2052
  %v4703 = vpop.f32.mrf.mxu0
  %v4704 = vadd.f32 %v4655, %v4703
  %v4705 = vpop.f32.mrf.mxu0
  %v4706 = vadd.f32 %v4657, %v4705
  %4707 = vmatmul.bf16.gmra.mxu0 %v2054
  %v4708 = vpop.f32.mrf.mxu0
  %v4709 = vadd.f32 %v4660, %v4708
  %v4710 = vpop.f32.mrf.mxu0
  %v4711 = vadd.f32 %v4662, %v4710
  %4712 = vmatmul.bf16.gmra.mxu0 %v2056
  %v4713 = vpop.f32.mrf.mxu0
  %v4714 = vadd.f32 %v4665, %v4713
  %v4715 = vpop.f32.mrf.mxu0
  %v4716 = vadd.f32 %v4667, %v4715
  %4717 = vmatmul.bf16.gmra.mxu0 %v2058
  %v4718 = vpop.f32.mrf.mxu0
  %v4719 = vadd.f32 %v4670, %v4718
  %v4720 = vpop.f32.mrf.mxu0
  %v4721 = vadd.f32 %v4672, %v4720
  %4722 = vmatmul.bf16.gmra.mxu0 %v2060
  %v4723 = vpop.f32.mrf.mxu0
  %v4724 = vadd.f32 %v4675, %v4723
  %v4725 = vpop.f32.mrf.mxu0
  %v4726 = vadd.f32 %v4677, %v4725
  %4727 = vmatmul.bf16.gmra.mxu0 %v2084
  %v4728 = vpop.f32.mrf.mxu0
  %v4729 = vadd.f32 %v4680, %v4728
  %v4730 = vpop.f32.mrf.mxu0
  %v4731 = vadd.f32 %v4682, %v4730
  %4732 = vdwg.mxu0
  %4733 = vmatpush.bf16.msra.mxu0 %v3564
  %4734 = vmatpush.bf16.msra.mxu0 %v3560
  %4735 = vmatpush.bf16.msra.mxu0 %v3556
  %4736 = vmatpush.bf16.msra.mxu0 %v3552
  %4737 = vmatpush.bf16.msra.mxu0 %v3548
  %4738 = vmatpush.bf16.msra.mxu0 %v3544
  %4739 = vmatpush.bf16.msra.mxu0 %v3540
  %4740 = vmatpush.bf16.msra.mxu0 %v3536
  %4741 = vmatmul.bf16.gmra.mxu0 %v2049
  %v4742 = vpop.f32.mrf.mxu0
  %v4743 = vadd.f32 %v4694, %v4742
  %v4744 = vpop.f32.mrf.mxu0
  %v4745 = vadd.f32 %v4696, %v4744
  %4746 = vmatmul.bf16.gmra.mxu0 %v2051
  %v4747 = vpop.f32.mrf.mxu0
  %v4748 = vadd.f32 %v4699, %v4747
  %v4749 = vpop.f32.mrf.mxu0
  %v4750 = vadd.f32 %v4701, %v4749
  %4751 = vmatmul.bf16.gmra.mxu0 %v2053
  %v4752 = vpop.f32.mrf.mxu0
  %v4753 = vadd.f32 %v4704, %v4752
  %v4754 = vpop.f32.mrf.mxu0
  %v4755 = vadd.f32 %v4706, %v4754
  %4756 = vmatmul.bf16.gmra.mxu0 %v2055
  %v4757 = vpop.f32.mrf.mxu0
  %v4758 = vadd.f32 %v4709, %v4757
  %v4759 = vpop.f32.mrf.mxu0
  %v4760 = vadd.f32 %v4711, %v4759
  %4761 = vmatmul.bf16.gmra.mxu0 %v2057
  %v4762 = vpop.f32.mrf.mxu0
  %v4763 = vadd.f32 %v4714, %v4762
  %v4764 = vpop.f32.mrf.mxu0
  %v4765 = vadd.f32 %v4716, %v4764
  %4766 = vmatmul.bf16.gmra.mxu0 %v2059
  %v4767 = vpop.f32.mrf.mxu0
  %v4768 = vadd.f32 %v4719, %v4767
  %v4769 = vpop.f32.mrf.mxu0
  %v4770 = vadd.f32 %v4721, %v4769
  %4771 = vmatmul.bf16.gmra.mxu0 %v2083
  %v4772 = vpop.f32.mrf.mxu0
  %v4773 = vadd.f32 %v4724, %v4772
  %v4774 = vpop.f32.mrf.mxu0
  %v4775 = vadd.f32 %v4726, %v4774
  %4776 = vmatmul.bf16.gmra.mxu0 %v2093
  %v4777 = vpop.f32.mrf.mxu0
  %v4778 = vadd.f32 %v4729, %v4777
  %v4779 = vpop.f32.mrf.mxu0
  %v4780 = vadd.f32 %v4731, %v4779
  %4781 = vdwg.mxu0
  %4782 = vmatpush.bf16.msra.mxu0 %v3596
  %4783 = vmatpush.bf16.msra.mxu0 %v3592
  %4784 = vmatpush.bf16.msra.mxu0 %v3588
  %4785 = vmatpush.bf16.msra.mxu0 %v3584
  %4786 = vmatpush.bf16.msra.mxu0 %v3580
  %4787 = vmatpush.bf16.msra.mxu0 %v3576
  %4788 = vmatpush.bf16.msra.mxu0 %v3572
  %4789 = vmatpush.bf16.msra.mxu0 %v3568
  %4790 = vmatmul.bf16.gmra.mxu0 %v2050
  %v4791 = vpop.f32.mrf.mxu0
  %v4792 = vadd.f32 %v4743, %v4791
  %v4793 = vpop.f32.mrf.mxu0
  %v4794 = vadd.f32 %v4745, %v4793
  %4795 = vmatmul.bf16.gmra.mxu0 %v2052
  %v4796 = vpop.f32.mrf.mxu0
  %v4797 = vadd.f32 %v4748, %v4796
  %v4798 = vpop.f32.mrf.mxu0
  %v4799 = vadd.f32 %v4750, %v4798
  %4800 = vmatmul.bf16.gmra.mxu0 %v2054
  %v4801 = vpop.f32.mrf.mxu0
  %v4802 = vadd.f32 %v4753, %v4801
  %v4803 = vpop.f32.mrf.mxu0
  %v4804 = vadd.f32 %v4755, %v4803
  %4805 = vmatmul.bf16.gmra.mxu0 %v2056
  %v4806 = vpop.f32.mrf.mxu0
  %v4807 = vadd.f32 %v4758, %v4806
  %v4808 = vpop.f32.mrf.mxu0
  %v4809 = vadd.f32 %v4760, %v4808
  %4810 = vmatmul.bf16.gmra.mxu0 %v2058
  %v4811 = vpop.f32.mrf.mxu0
  %v4812 = vadd.f32 %v4763, %v4811
  %v4813 = vpop.f32.mrf.mxu0
  %v4814 = vadd.f32 %v4765, %v4813
  %4815 = vmatmul.bf16.gmra.mxu0 %v2060
  %v4816 = vpop.f32.mrf.mxu0
  %v4817 = vadd.f32 %v4768, %v4816
  %v4818 = vpop.f32.mrf.mxu0
  %v4819 = vadd.f32 %v4770, %v4818
  %4820 = vmatmul.bf16.gmra.mxu0 %v2084
  %v4821 = vpop.f32.mrf.mxu0
  %v4822 = vadd.f32 %v4773, %v4821
  %v4823 = vpop.f32.mrf.mxu0
  %v4824 = vadd.f32 %v4775, %v4823
  %4825 = vmatmul.bf16.gmra.mxu0 %v2094
  %v4826 = vpop.f32.mrf.mxu0
  %v4827 = vadd.f32 %v4778, %v4826
  %v4828 = vpop.f32.mrf.mxu0
  %v4829 = vadd.f32 %v4780, %v4828
  %4830 = vdwg.mxu0
  %4831 = vmatpush.bf16.msra.mxu0 %v3628
  %4832 = vmatpush.bf16.msra.mxu0 %v3624
  %4833 = vmatpush.bf16.msra.mxu0 %v3620
  %4834 = vmatpush.bf16.msra.mxu0 %v3616
  %4835 = vmatpush.bf16.msra.mxu0 %v3612
  %4836 = vmatpush.bf16.msra.mxu0 %v3608
  %4837 = vmatpush.bf16.msra.mxu0 %v3604
  %4838 = vmatpush.bf16.msra.mxu0 %v3600
  %4839 = vmatmul.bf16.gmra.mxu0 %v2051
  %v4840 = vpop.f32.mrf.mxu0
  %v4841 = vadd.f32 %v4792, %v4840
  %v4842 = vpop.f32.mrf.mxu0
  %v4843 = vadd.f32 %v4794, %v4842
  %4844 = vmatmul.bf16.gmra.mxu0 %v2053
  %v4845 = vpop.f32.mrf.mxu0
  %v4846 = vadd.f32 %v4797, %v4845
  %v4847 = vpop.f32.mrf.mxu0
  %v4848 = vadd.f32 %v4799, %v4847
  %4849 = vmatmul.bf16.gmra.mxu0 %v2055
  %v4850 = vpop.f32.mrf.mxu0
  %v4851 = vadd.f32 %v4802, %v4850
  %v4852 = vpop.f32.mrf.mxu0
  %v4853 = vadd.f32 %v4804, %v4852
  %4854 = vmatmul.bf16.gmra.mxu0 %v2057
  %v4855 = vpop.f32.mrf.mxu0
  %v4856 = vadd.f32 %v4807, %v4855
  %v4857 = vpop.f32.mrf.mxu0
  %v4858 = vadd.f32 %v4809, %v4857
  %4859 = vmatmul.bf16.gmra.mxu0 %v2059
  %v4860 = vpop.f32.mrf.mxu0
  %v4861 = vadd.f32 %v4812, %v4860
  %v4862 = vpop.f32.mrf.mxu0
  %v4863 = vadd.f32 %v4814, %v4862
  %4864 = vmatmul.bf16.gmra.mxu0 %v2083
  %v4865 = vpop.f32.mrf.mxu0
  %v4866 = vadd.f32 %v4817, %v4865
  %v4867 = vpop.f32.mrf.mxu0
  %v4868 = vadd.f32 %v4819, %v4867
  %4869 = vmatmul.bf16.gmra.mxu0 %v2093
  %v4870 = vpop.f32.mrf.mxu0
  %v4871 = vadd.f32 %v4822, %v4870
  %v4872 = vpop.f32.mrf.mxu0
  %v4873 = vadd.f32 %v4824, %v4872
  %4874 = vmatmul.bf16.gmra.mxu0 %v2103
  %v4875 = vpop.f32.mrf.mxu0
  %v4876 = vadd.f32 %v4827, %v4875
  %v4877 = vpop.f32.mrf.mxu0
  %v4878 = vadd.f32 %v4829, %v4877
  %4879 = vdwg.mxu0
  %4880 = vmatpush.bf16.msra.mxu0 %v3660
  %4881 = vmatpush.bf16.msra.mxu0 %v3656
  %4882 = vmatpush.bf16.msra.mxu0 %v3652
  %4883 = vmatpush.bf16.msra.mxu0 %v3648
  %4884 = vmatpush.bf16.msra.mxu0 %v3644
  %4885 = vmatpush.bf16.msra.mxu0 %v3640
  %4886 = vmatpush.bf16.msra.mxu0 %v3636
  %4887 = vmatpush.bf16.msra.mxu0 %v3632
  %4888 = vmatmul.bf16.gmra.mxu0 %v2052
  %v4889 = vpop.f32.mrf.mxu0
  %v4890 = vadd.f32 %v4841, %v4889
  %v4891 = vpop.f32.mrf.mxu0
  %v4892 = vadd.f32 %v4843, %v4891
  %4893 = vmatmul.bf16.gmra.mxu0 %v2054
  %v4894 = vpop.f32.mrf.mxu0
  %v4895 = vadd.f32 %v4846, %v4894
  %v4896 = vpop.f32.mrf.mxu0
  %v4897 = vadd.f32 %v4848, %v4896
  %4898 = vmatmul.bf16.gmra.mxu0 %v2056
  %v4899 = vpop.f32.mrf.mxu0
  %v4900 = vadd.f32 %v4851, %v4899
  %v4901 = vpop.f32.mrf.mxu0
  %v4902 = vadd.f32 %v4853, %v4901
  %4903 = vmatmul.bf16.gmra.mxu0 %v2058
  %v4904 = vpop.f32.mrf.mxu0
  %v4905 = vadd.f32 %v4856, %v4904
  %v4906 = vpop.f32.mrf.mxu0
  %v4907 = vadd.f32 %v4858, %v4906
  %4908 = vmatmul.bf16.gmra.mxu0 %v2060
  %v4909 = vpop.f32.mrf.mxu0
  %v4910 = vadd.f32 %v4861, %v4909
  %v4911 = vpop.f32.mrf.mxu0
  %v4912 = vadd.f32 %v4863, %v4911
  %4913 = vmatmul.bf16.gmra.mxu0 %v2084
  %v4914 = vpop.f32.mrf.mxu0
  %v4915 = vadd.f32 %v4866, %v4914
  %v4916 = vpop.f32.mrf.mxu0
  %v4917 = vadd.f32 %v4868, %v4916
  %4918 = vmatmul.bf16.gmra.mxu0 %v2094
  %v4919 = vpop.f32.mrf.mxu0
  %v4920 = vadd.f32 %v4871, %v4919
  %v4921 = vpop.f32.mrf.mxu0
  %v4922 = vadd.f32 %v4873, %v4921
  %4923 = vmatmul.bf16.gmra.mxu0 %v2104
  %v4924 = vpop.f32.mrf.mxu0
  %v4925 = vadd.f32 %v4876, %v4924
  %v4926 = vpop.f32.mrf.mxu0
  %v4927 = vadd.f32 %v4878, %v4926
  %4928 = vdwg.mxu0
  %4929 = vmatpush.bf16.msra.mxu0 %v3692
  %4930 = vmatpush.bf16.msra.mxu0 %v3688
  %4931 = vmatpush.bf16.msra.mxu0 %v3684
  %4932 = vmatpush.bf16.msra.mxu0 %v3680
  %4933 = vmatpush.bf16.msra.mxu0 %v3676
  %4934 = vmatpush.bf16.msra.mxu0 %v3672
  %4935 = vmatpush.bf16.msra.mxu0 %v3668
  %4936 = vmatpush.bf16.msra.mxu0 %v3664
  %4937 = vmatmul.bf16.gmra.mxu0 %v2053
  %v4938 = vpop.f32.mrf.mxu0
  %v4939 = vadd.f32 %v4890, %v4938
  %v4940 = vpop.f32.mrf.mxu0
  %v4941 = vadd.f32 %v4892, %v4940
  %4942 = vmatmul.bf16.gmra.mxu0 %v2055
  %v4943 = vpop.f32.mrf.mxu0
  %v4944 = vadd.f32 %v4895, %v4943
  %v4945 = vpop.f32.mrf.mxu0
  %v4946 = vadd.f32 %v4897, %v4945
  %4947 = vmatmul.bf16.gmra.mxu0 %v2057
  %v4948 = vpop.f32.mrf.mxu0
  %v4949 = vadd.f32 %v4900, %v4948
  %v4950 = vpop.f32.mrf.mxu0
  %v4951 = vadd.f32 %v4902, %v4950
  %4952 = vmatmul.bf16.gmra.mxu0 %v2059
  %v4953 = vpop.f32.mrf.mxu0
  %v4954 = vadd.f32 %v4905, %v4953
  %v4955 = vpop.f32.mrf.mxu0
  %v4956 = vadd.f32 %v4907, %v4955
  %4957 = vmatmul.bf16.gmra.mxu0 %v2083
  %v4958 = vpop.f32.mrf.mxu0
  %v4959 = vadd.f32 %v4910, %v4958
  %v4960 = vpop.f32.mrf.mxu0
  %v4961 = vadd.f32 %v4912, %v4960
  %4962 = vmatmul.bf16.gmra.mxu0 %v2093
  %v4963 = vpop.f32.mrf.mxu0
  %v4964 = vadd.f32 %v4915, %v4963
  %v4965 = vpop.f32.mrf.mxu0
  %v4966 = vadd.f32 %v4917, %v4965
  %4967 = vmatmul.bf16.gmra.mxu0 %v2103
  %v4968 = vpop.f32.mrf.mxu0
  %v4969 = vadd.f32 %v4920, %v4968
  %v4970 = vpop.f32.mrf.mxu0
  %v4971 = vadd.f32 %v4922, %v4970
  %4972 = vmatmul.bf16.gmra.mxu0 %v2113
  %v4973 = vpop.f32.mrf.mxu0
  %v4974 = vadd.f32 %v4925, %v4973
  %v4975 = vpop.f32.mrf.mxu0
  %v4976 = vadd.f32 %v4927, %v4975
  %4977 = vdwg.mxu0
  %4978 = vmatpush.bf16.msra.mxu0 %v3724
  %4979 = vmatpush.bf16.msra.mxu0 %v3720
  %4980 = vmatpush.bf16.msra.mxu0 %v3716
  %4981 = vmatpush.bf16.msra.mxu0 %v3712
  %4982 = vmatpush.bf16.msra.mxu0 %v3708
  %4983 = vmatpush.bf16.msra.mxu0 %v3704
  %4984 = vmatpush.bf16.msra.mxu0 %v3700
  %4985 = vmatpush.bf16.msra.mxu0 %v3696
  %4986 = vmatmul.bf16.gmra.mxu0 %v2054
  %v4987 = vpop.f32.mrf.mxu0
  %v4988 = vadd.f32 %v4939, %v4987
  %v4989 = vpop.f32.mrf.mxu0
  %v4990 = vadd.f32 %v4941, %v4989
  %4991 = vmatmul.bf16.gmra.mxu0 %v2056
  %v4992 = vpop.f32.mrf.mxu0
  %v4993 = vadd.f32 %v4944, %v4992
  %v4994 = vpop.f32.mrf.mxu0
  %v4995 = vadd.f32 %v4946, %v4994
  %4996 = vmatmul.bf16.gmra.mxu0 %v2058
  %v4997 = vpop.f32.mrf.mxu0
  %v4998 = vadd.f32 %v4949, %v4997
  %v4999 = vpop.f32.mrf.mxu0
  %v5000 = vadd.f32 %v4951, %v4999
  %5001 = vmatmul.bf16.gmra.mxu0 %v2060
  %v5002 = vpop.f32.mrf.mxu0
  %v5003 = vadd.f32 %v4954, %v5002
  %v5004 = vpop.f32.mrf.mxu0
  %v5005 = vadd.f32 %v4956, %v5004
  %5006 = vmatmul.bf16.gmra.mxu0 %v2084
  %v5007 = vpop.f32.mrf.mxu0
  %v5008 = vadd.f32 %v4959, %v5007
  %v5009 = vpop.f32.mrf.mxu0
  %v5010 = vadd.f32 %v4961, %v5009
  %5011 = vmatmul.bf16.gmra.mxu0 %v2094
  %v5012 = vpop.f32.mrf.mxu0
  %v5013 = vadd.f32 %v4964, %v5012
  %v5014 = vpop.f32.mrf.mxu0
  %v5015 = vadd.f32 %v4966, %v5014
  %5016 = vmatmul.bf16.gmra.mxu0 %v2104
  %v5017 = vpop.f32.mrf.mxu0
  %v5018 = vadd.f32 %v4969, %v5017
  %v5019 = vpop.f32.mrf.mxu0
  %v5020 = vadd.f32 %v4971, %v5019
  %5021 = vmatmul.bf16.gmra.mxu0 %v2114
  %v5022 = vpop.f32.mrf.mxu0
  %v5023 = vadd.f32 %v4974, %v5022
  %v5024 = vpop.f32.mrf.mxu0
  %v5025 = vadd.f32 %v4976, %v5024
  %5026 = vdwg.mxu0
  %5027 = vmatpush.bf16.msra.mxu0 %v3437
  %5028 = vmatpush.bf16.msra.mxu0 %v3433
  %5029 = vmatpush.bf16.msra.mxu0 %v3429
  %5030 = vmatpush.bf16.msra.mxu0 %v3425
  %5031 = vmatpush.bf16.msra.mxu0 %v3421
  %5032 = vmatpush.bf16.msra.mxu0 %v3417
  %5033 = vmatpush.bf16.msra.mxu0 %v3413
  %5034 = vmatpush.bf16.msra.mxu0 %v3409
  %5035 = vmatmul.bf16.gmra.mxu0 %v2045
  %v5036 = vpop.f32.mrf.mxu0
  %v5037 = vadd.f32 %v2441, %v5036
  %v5038 = vpop.f32.mrf.mxu0
  %v5039 = vadd.f32 %v2441, %v5038
  %5040 = vmatmul.bf16.gmra.mxu0 %v2047
  %v5041 = vpop.f32.mrf.mxu0
  %v5042 = vadd.f32 %v2441, %v5041
  %v5043 = vpop.f32.mrf.mxu0
  %v5044 = vadd.f32 %v2441, %v5043
  %5045 = vmatmul.bf16.gmra.mxu0 %v2049
  %v5046 = vpop.f32.mrf.mxu0
  %v5047 = vadd.f32 %v2441, %v5046
  %v5048 = vpop.f32.mrf.mxu0
  %v5049 = vadd.f32 %v2441, %v5048
  %5050 = vmatmul.bf16.gmra.mxu0 %v2051
  %v5051 = vpop.f32.mrf.mxu0
  %v5052 = vadd.f32 %v2441, %v5051
  %v5053 = vpop.f32.mrf.mxu0
  %v5054 = vadd.f32 %v2441, %v5053
  %5055 = vmatmul.bf16.gmra.mxu0 %v2053
  %v5056 = vpop.f32.mrf.mxu0
  %v5057 = vadd.f32 %v2441, %v5056
  %v5058 = vpop.f32.mrf.mxu0
  %v5059 = vadd.f32 %v2441, %v5058
  %5060 = vmatmul.bf16.gmra.mxu0 %v2055
  %v5061 = vpop.f32.mrf.mxu0
  %v5062 = vadd.f32 %v2441, %v5061
  %v5063 = vpop.f32.mrf.mxu0
  %v5064 = vadd.f32 %v2441, %v5063
  %5065 = vmatmul.bf16.gmra.mxu0 %v2057
  %v5066 = vpop.f32.mrf.mxu0
  %v5067 = vadd.f32 %v2441, %v5066
  %v5068 = vpop.f32.mrf.mxu0
  %v5069 = vadd.f32 %v2441, %v5068
  %5070 = vmatmul.bf16.gmra.mxu0 %v2059
  %v5071 = vpop.f32.mrf.mxu0
  %v5072 = vadd.f32 %v2441, %v5071
  %v5073 = vpop.f32.mrf.mxu0
  %v5074 = vadd.f32 %v2441, %v5073
  %5075 = vdwg.mxu0
  %5076 = vmatpush.bf16.msra.mxu0 %v3469
  %5077 = vmatpush.bf16.msra.mxu0 %v3465
  %5078 = vmatpush.bf16.msra.mxu0 %v3461
  %5079 = vmatpush.bf16.msra.mxu0 %v3457
  %5080 = vmatpush.bf16.msra.mxu0 %v3453
  %5081 = vmatpush.bf16.msra.mxu0 %v3449
  %5082 = vmatpush.bf16.msra.mxu0 %v3445
  %5083 = vmatpush.bf16.msra.mxu0 %v3441
  %5084 = vmatmul.bf16.gmra.mxu0 %v2046
  %v5085 = vpop.f32.mrf.mxu0
  %v5086 = vadd.f32 %v5037, %v5085
  %v5087 = vpop.f32.mrf.mxu0
  %v5088 = vadd.f32 %v5039, %v5087
  %5089 = vmatmul.bf16.gmra.mxu0 %v2048
  %v5090 = vpop.f32.mrf.mxu0
  %v5091 = vadd.f32 %v5042, %v5090
  %v5092 = vpop.f32.mrf.mxu0
  %v5093 = vadd.f32 %v5044, %v5092
  %5094 = vmatmul.bf16.gmra.mxu0 %v2050
  %v5095 = vpop.f32.mrf.mxu0
  %v5096 = vadd.f32 %v5047, %v5095
  %v5097 = vpop.f32.mrf.mxu0
  %v5098 = vadd.f32 %v5049, %v5097
  %5099 = vmatmul.bf16.gmra.mxu0 %v2052
  %v5100 = vpop.f32.mrf.mxu0
  %v5101 = vadd.f32 %v5052, %v5100
  %v5102 = vpop.f32.mrf.mxu0
  %v5103 = vadd.f32 %v5054, %v5102
  %5104 = vmatmul.bf16.gmra.mxu0 %v2054
  %v5105 = vpop.f32.mrf.mxu0
  %v5106 = vadd.f32 %v5057, %v5105
  %v5107 = vpop.f32.mrf.mxu0
  %v5108 = vadd.f32 %v5059, %v5107
  %5109 = vmatmul.bf16.gmra.mxu0 %v2056
  %v5110 = vpop.f32.mrf.mxu0
  %v5111 = vadd.f32 %v5062, %v5110
  %v5112 = vpop.f32.mrf.mxu0
  %v5113 = vadd.f32 %v5064, %v5112
  %5114 = vmatmul.bf16.gmra.mxu0 %v2058
  %v5115 = vpop.f32.mrf.mxu0
  %v5116 = vadd.f32 %v5067, %v5115
  %v5117 = vpop.f32.mrf.mxu0
  %v5118 = vadd.f32 %v5069, %v5117
  %5119 = vmatmul.bf16.gmra.mxu0 %v2060
  %v5120 = vpop.f32.mrf.mxu0
  %v5121 = vadd.f32 %v5072, %v5120
  %v5122 = vpop.f32.mrf.mxu0
  %v5123 = vadd.f32 %v5074, %v5122
  %5124 = vdwg.mxu0
  %5125 = vmatpush.bf16.msra.mxu0 %v3501
  %5126 = vmatpush.bf16.msra.mxu0 %v3497
  %5127 = vmatpush.bf16.msra.mxu0 %v3493
  %5128 = vmatpush.bf16.msra.mxu0 %v3489
  %5129 = vmatpush.bf16.msra.mxu0 %v3485
  %5130 = vmatpush.bf16.msra.mxu0 %v3481
  %5131 = vmatpush.bf16.msra.mxu0 %v3477
  %5132 = vmatpush.bf16.msra.mxu0 %v3473
  %5133 = vmatmul.bf16.gmra.mxu0 %v2047
  %v5134 = vpop.f32.mrf.mxu0
  %v5135 = vadd.f32 %v5086, %v5134
  %v5136 = vpop.f32.mrf.mxu0
  %v5137 = vadd.f32 %v5088, %v5136
  %5138 = vmatmul.bf16.gmra.mxu0 %v2049
  %v5139 = vpop.f32.mrf.mxu0
  %v5140 = vadd.f32 %v5091, %v5139
  %v5141 = vpop.f32.mrf.mxu0
  %v5142 = vadd.f32 %v5093, %v5141
  %5143 = vmatmul.bf16.gmra.mxu0 %v2051
  %v5144 = vpop.f32.mrf.mxu0
  %v5145 = vadd.f32 %v5096, %v5144
  %v5146 = vpop.f32.mrf.mxu0
  %v5147 = vadd.f32 %v5098, %v5146
  %5148 = vmatmul.bf16.gmra.mxu0 %v2053
  %v5149 = vpop.f32.mrf.mxu0
  %v5150 = vadd.f32 %v5101, %v5149
  %v5151 = vpop.f32.mrf.mxu0
  %v5152 = vadd.f32 %v5103, %v5151
  %5153 = vmatmul.bf16.gmra.mxu0 %v2055
  %v5154 = vpop.f32.mrf.mxu0
  %v5155 = vadd.f32 %v5106, %v5154
  %v5156 = vpop.f32.mrf.mxu0
  %v5157 = vadd.f32 %v5108, %v5156
  %5158 = vmatmul.bf16.gmra.mxu0 %v2057
  %v5159 = vpop.f32.mrf.mxu0
  %v5160 = vadd.f32 %v5111, %v5159
  %v5161 = vpop.f32.mrf.mxu0
  %v5162 = vadd.f32 %v5113, %v5161
  %5163 = vmatmul.bf16.gmra.mxu0 %v2059
  %v5164 = vpop.f32.mrf.mxu0
  %v5165 = vadd.f32 %v5116, %v5164
  %v5166 = vpop.f32.mrf.mxu0
  %v5167 = vadd.f32 %v5118, %v5166
  %5168 = vmatmul.bf16.gmra.mxu0 %v2083
  %v5169 = vpop.f32.mrf.mxu0
  %v5170 = vadd.f32 %v5121, %v5169
  %v5171 = vpop.f32.mrf.mxu0
  %v5172 = vadd.f32 %v5123, %v5171
  %5173 = vdwg.mxu0
  %5174 = vmatpush.bf16.msra.mxu0 %v3533
  %5175 = vmatpush.bf16.msra.mxu0 %v3529
  %5176 = vmatpush.bf16.msra.mxu0 %v3525
  %5177 = vmatpush.bf16.msra.mxu0 %v3521
  %5178 = vmatpush.bf16.msra.mxu0 %v3517
  %5179 = vmatpush.bf16.msra.mxu0 %v3513
  %5180 = vmatpush.bf16.msra.mxu0 %v3509
  %5181 = vmatpush.bf16.msra.mxu0 %v3505
  %5182 = vmatmul.bf16.gmra.mxu0 %v2048
  %v5183 = vpop.f32.mrf.mxu0
  %v5184 = vadd.f32 %v5135, %v5183
  %v5185 = vpop.f32.mrf.mxu0
  %v5186 = vadd.f32 %v5137, %v5185
  %5187 = vmatmul.bf16.gmra.mxu0 %v2050
  %v5188 = vpop.f32.mrf.mxu0
  %v5189 = vadd.f32 %v5140, %v5188
  %v5190 = vpop.f32.mrf.mxu0
  %v5191 = vadd.f32 %v5142, %v5190
  %5192 = vmatmul.bf16.gmra.mxu0 %v2052
  %v5193 = vpop.f32.mrf.mxu0
  %v5194 = vadd.f32 %v5145, %v5193
  %v5195 = vpop.f32.mrf.mxu0
  %v5196 = vadd.f32 %v5147, %v5195
  %5197 = vmatmul.bf16.gmra.mxu0 %v2054
  %v5198 = vpop.f32.mrf.mxu0
  %v5199 = vadd.f32 %v5150, %v5198
  %v5200 = vpop.f32.mrf.mxu0
  %v5201 = vadd.f32 %v5152, %v5200
  %5202 = vmatmul.bf16.gmra.mxu0 %v2056
  %v5203 = vpop.f32.mrf.mxu0
  %v5204 = vadd.f32 %v5155, %v5203
  %v5205 = vpop.f32.mrf.mxu0
  %v5206 = vadd.f32 %v5157, %v5205
  %5207 = vmatmul.bf16.gmra.mxu0 %v2058
  %v5208 = vpop.f32.mrf.mxu0
  %v5209 = vadd.f32 %v5160, %v5208
  %v5210 = vpop.f32.mrf.mxu0
  %v5211 = vadd.f32 %v5162, %v5210
  %5212 = vmatmul.bf16.gmra.mxu0 %v2060
  %v5213 = vpop.f32.mrf.mxu0
  %v5214 = vadd.f32 %v5165, %v5213
  %v5215 = vpop.f32.mrf.mxu0
  %v5216 = vadd.f32 %v5167, %v5215
  %5217 = vmatmul.bf16.gmra.mxu0 %v2084
  %v5218 = vpop.f32.mrf.mxu0
  %v5219 = vadd.f32 %v5170, %v5218
  %v5220 = vpop.f32.mrf.mxu0
  %v5221 = vadd.f32 %v5172, %v5220
  %5222 = vdwg.mxu0
  %5223 = vmatpush.bf16.msra.mxu0 %v3565
  %5224 = vmatpush.bf16.msra.mxu0 %v3561
  %5225 = vmatpush.bf16.msra.mxu0 %v3557
  %5226 = vmatpush.bf16.msra.mxu0 %v3553
  %5227 = vmatpush.bf16.msra.mxu0 %v3549
  %5228 = vmatpush.bf16.msra.mxu0 %v3545
  %5229 = vmatpush.bf16.msra.mxu0 %v3541
  %5230 = vmatpush.bf16.msra.mxu0 %v3537
  %5231 = vmatmul.bf16.gmra.mxu0 %v2049
  %v5232 = vpop.f32.mrf.mxu0
  %v5233 = vadd.f32 %v5184, %v5232
  %v5234 = vpop.f32.mrf.mxu0
  %v5235 = vadd.f32 %v5186, %v5234
  %5236 = vmatmul.bf16.gmra.mxu0 %v2051
  %v5237 = vpop.f32.mrf.mxu0
  %v5238 = vadd.f32 %v5189, %v5237
  %v5239 = vpop.f32.mrf.mxu0
  %v5240 = vadd.f32 %v5191, %v5239
  %5241 = vmatmul.bf16.gmra.mxu0 %v2053
  %v5242 = vpop.f32.mrf.mxu0
  %v5243 = vadd.f32 %v5194, %v5242
  %v5244 = vpop.f32.mrf.mxu0
  %v5245 = vadd.f32 %v5196, %v5244
  %5246 = vmatmul.bf16.gmra.mxu0 %v2055
  %v5247 = vpop.f32.mrf.mxu0
  %v5248 = vadd.f32 %v5199, %v5247
  %v5249 = vpop.f32.mrf.mxu0
  %v5250 = vadd.f32 %v5201, %v5249
  %5251 = vmatmul.bf16.gmra.mxu0 %v2057
  %v5252 = vpop.f32.mrf.mxu0
  %v5253 = vadd.f32 %v5204, %v5252
  %v5254 = vpop.f32.mrf.mxu0
  %v5255 = vadd.f32 %v5206, %v5254
  %5256 = vmatmul.bf16.gmra.mxu0 %v2059
  %v5257 = vpop.f32.mrf.mxu0
  %v5258 = vadd.f32 %v5209, %v5257
  %v5259 = vpop.f32.mrf.mxu0
  %v5260 = vadd.f32 %v5211, %v5259
  %5261 = vmatmul.bf16.gmra.mxu0 %v2083
  %v5262 = vpop.f32.mrf.mxu0
  %v5263 = vadd.f32 %v5214, %v5262
  %v5264 = vpop.f32.mrf.mxu0
  %v5265 = vadd.f32 %v5216, %v5264
  %5266 = vmatmul.bf16.gmra.mxu0 %v2093
  %v5267 = vpop.f32.mrf.mxu0
  %v5268 = vadd.f32 %v5219, %v5267
  %v5269 = vpop.f32.mrf.mxu0
  %v5270 = vadd.f32 %v5221, %v5269
  %5271 = vdwg.mxu0
  %5272 = vmatpush.bf16.msra.mxu0 %v3597
  %5273 = vmatpush.bf16.msra.mxu0 %v3593
  %5274 = vmatpush.bf16.msra.mxu0 %v3589
  %5275 = vmatpush.bf16.msra.mxu0 %v3585
  %5276 = vmatpush.bf16.msra.mxu0 %v3581
  %5277 = vmatpush.bf16.msra.mxu0 %v3577
  %5278 = vmatpush.bf16.msra.mxu0 %v3573
  %5279 = vmatpush.bf16.msra.mxu0 %v3569
  %5280 = vmatmul.bf16.gmra.mxu0 %v2050
  %v5281 = vpop.f32.mrf.mxu0
  %v5282 = vadd.f32 %v5233, %v5281
  %v5283 = vpop.f32.mrf.mxu0
  %v5284 = vadd.f32 %v5235, %v5283
  %5285 = vmatmul.bf16.gmra.mxu0 %v2052
  %v5286 = vpop.f32.mrf.mxu0
  %v5287 = vadd.f32 %v5238, %v5286
  %v5288 = vpop.f32.mrf.mxu0
  %v5289 = vadd.f32 %v5240, %v5288
  %5290 = vmatmul.bf16.gmra.mxu0 %v2054
  %v5291 = vpop.f32.mrf.mxu0
  %v5292 = vadd.f32 %v5243, %v5291
  %v5293 = vpop.f32.mrf.mxu0
  %v5294 = vadd.f32 %v5245, %v5293
  %5295 = vmatmul.bf16.gmra.mxu0 %v2056
  %v5296 = vpop.f32.mrf.mxu0
  %v5297 = vadd.f32 %v5248, %v5296
  %v5298 = vpop.f32.mrf.mxu0
  %v5299 = vadd.f32 %v5250, %v5298
  %5300 = vmatmul.bf16.gmra.mxu0 %v2058
  %v5301 = vpop.f32.mrf.mxu0
  %v5302 = vadd.f32 %v5253, %v5301
  %v5303 = vpop.f32.mrf.mxu0
  %v5304 = vadd.f32 %v5255, %v5303
  %5305 = vmatmul.bf16.gmra.mxu0 %v2060
  %v5306 = vpop.f32.mrf.mxu0
  %v5307 = vadd.f32 %v5258, %v5306
  %v5308 = vpop.f32.mrf.mxu0
  %v5309 = vadd.f32 %v5260, %v5308
  %5310 = vmatmul.bf16.gmra.mxu0 %v2084
  %v5311 = vpop.f32.mrf.mxu0
  %v5312 = vadd.f32 %v5263, %v5311
  %v5313 = vpop.f32.mrf.mxu0
  %v5314 = vadd.f32 %v5265, %v5313
  %5315 = vmatmul.bf16.gmra.mxu0 %v2094
  %v5316 = vpop.f32.mrf.mxu0
  %v5317 = vadd.f32 %v5268, %v5316
  %v5318 = vpop.f32.mrf.mxu0
  %v5319 = vadd.f32 %v5270, %v5318
  %5320 = vdwg.mxu0
  %5321 = vmatpush.bf16.msra.mxu0 %v3629
  %5322 = vmatpush.bf16.msra.mxu0 %v3625
  %5323 = vmatpush.bf16.msra.mxu0 %v3621
  %5324 = vmatpush.bf16.msra.mxu0 %v3617
  %5325 = vmatpush.bf16.msra.mxu0 %v3613
  %5326 = vmatpush.bf16.msra.mxu0 %v3609
  %5327 = vmatpush.bf16.msra.mxu0 %v3605
  %5328 = vmatpush.bf16.msra.mxu0 %v3601
  %5329 = vmatmul.bf16.gmra.mxu0 %v2051
  %v5330 = vpop.f32.mrf.mxu0
  %v5331 = vadd.f32 %v5282, %v5330
  %v5332 = vpop.f32.mrf.mxu0
  %v5333 = vadd.f32 %v5284, %v5332
  %5334 = vmatmul.bf16.gmra.mxu0 %v2053
  %v5335 = vpop.f32.mrf.mxu0
  %v5336 = vadd.f32 %v5287, %v5335
  %v5337 = vpop.f32.mrf.mxu0
  %v5338 = vadd.f32 %v5289, %v5337
  %5339 = vmatmul.bf16.gmra.mxu0 %v2055
  %v5340 = vpop.f32.mrf.mxu0
  %v5341 = vadd.f32 %v5292, %v5340
  %v5342 = vpop.f32.mrf.mxu0
  %v5343 = vadd.f32 %v5294, %v5342
  %5344 = vmatmul.bf16.gmra.mxu0 %v2057
  %v5345 = vpop.f32.mrf.mxu0
  %v5346 = vadd.f32 %v5297, %v5345
  %v5347 = vpop.f32.mrf.mxu0
  %v5348 = vadd.f32 %v5299, %v5347
  %5349 = vmatmul.bf16.gmra.mxu0 %v2059
  %v5350 = vpop.f32.mrf.mxu0
  %v5351 = vadd.f32 %v5302, %v5350
  %v5352 = vpop.f32.mrf.mxu0
  %v5353 = vadd.f32 %v5304, %v5352
  %5354 = vmatmul.bf16.gmra.mxu0 %v2083
  %v5355 = vpop.f32.mrf.mxu0
  %v5356 = vadd.f32 %v5307, %v5355
  %v5357 = vpop.f32.mrf.mxu0
  %v5358 = vadd.f32 %v5309, %v5357
  %5359 = vmatmul.bf16.gmra.mxu0 %v2093
  %v5360 = vpop.f32.mrf.mxu0
  %v5361 = vadd.f32 %v5312, %v5360
  %v5362 = vpop.f32.mrf.mxu0
  %v5363 = vadd.f32 %v5314, %v5362
  %5364 = vmatmul.bf16.gmra.mxu0 %v2103
  %v5365 = vpop.f32.mrf.mxu0
  %v5366 = vadd.f32 %v5317, %v5365
  %v5367 = vpop.f32.mrf.mxu0
  %v5368 = vadd.f32 %v5319, %v5367
  %5369 = vdwg.mxu0
  %5370 = vmatpush.bf16.msra.mxu0 %v3661
  %5371 = vmatpush.bf16.msra.mxu0 %v3657
  %5372 = vmatpush.bf16.msra.mxu0 %v3653
  %5373 = vmatpush.bf16.msra.mxu0 %v3649
  %5374 = vmatpush.bf16.msra.mxu0 %v3645
  %5375 = vmatpush.bf16.msra.mxu0 %v3641
  %5376 = vmatpush.bf16.msra.mxu0 %v3637
  %5377 = vmatpush.bf16.msra.mxu0 %v3633
  %5378 = vmatmul.bf16.gmra.mxu0 %v2052
  %v5379 = vpop.f32.mrf.mxu0
  %v5380 = vadd.f32 %v5331, %v5379
  %v5381 = vpop.f32.mrf.mxu0
  %v5382 = vadd.f32 %v5333, %v5381
  %5383 = vmatmul.bf16.gmra.mxu0 %v2054
  %v5384 = vpop.f32.mrf.mxu0
  %v5385 = vadd.f32 %v5336, %v5384
  %v5386 = vpop.f32.mrf.mxu0
  %v5387 = vadd.f32 %v5338, %v5386
  %5388 = vmatmul.bf16.gmra.mxu0 %v2056
  %v5389 = vpop.f32.mrf.mxu0
  %v5390 = vadd.f32 %v5341, %v5389
  %v5391 = vpop.f32.mrf.mxu0
  %v5392 = vadd.f32 %v5343, %v5391
  %5393 = vmatmul.bf16.gmra.mxu0 %v2058
  %v5394 = vpop.f32.mrf.mxu0
  %v5395 = vadd.f32 %v5346, %v5394
  %v5396 = vpop.f32.mrf.mxu0
  %v5397 = vadd.f32 %v5348, %v5396
  %5398 = vmatmul.bf16.gmra.mxu0 %v2060
  %v5399 = vpop.f32.mrf.mxu0
  %v5400 = vadd.f32 %v5351, %v5399
  %v5401 = vpop.f32.mrf.mxu0
  %v5402 = vadd.f32 %v5353, %v5401
  %5403 = vmatmul.bf16.gmra.mxu0 %v2084
  %v5404 = vpop.f32.mrf.mxu0
  %v5405 = vadd.f32 %v5356, %v5404
  %v5406 = vpop.f32.mrf.mxu0
  %v5407 = vadd.f32 %v5358, %v5406
  %5408 = vmatmul.bf16.gmra.mxu0 %v2094
  %v5409 = vpop.f32.mrf.mxu0
  %v5410 = vadd.f32 %v5361, %v5409
  %v5411 = vpop.f32.mrf.mxu0
  %v5412 = vadd.f32 %v5363, %v5411
  %5413 = vmatmul.bf16.gmra.mxu0 %v2104
  %v5414 = vpop.f32.mrf.mxu0
  %v5415 = vadd.f32 %v5366, %v5414
  %v5416 = vpop.f32.mrf.mxu0
  %v5417 = vadd.f32 %v5368, %v5416
  %5418 = vdwg.mxu0
  %5419 = vmatpush.bf16.msra.mxu0 %v3693
  %5420 = vmatpush.bf16.msra.mxu0 %v3689
  %5421 = vmatpush.bf16.msra.mxu0 %v3685
  %5422 = vmatpush.bf16.msra.mxu0 %v3681
  %5423 = vmatpush.bf16.msra.mxu0 %v3677
  %5424 = vmatpush.bf16.msra.mxu0 %v3673
  %5425 = vmatpush.bf16.msra.mxu0 %v3669
  %5426 = vmatpush.bf16.msra.mxu0 %v3665
  %5427 = vmatmul.bf16.gmra.mxu0 %v2053
  %v5428 = vpop.f32.mrf.mxu0
  %v5429 = vadd.f32 %v5380, %v5428
  %v5430 = vpop.f32.mrf.mxu0
  %v5431 = vadd.f32 %v5382, %v5430
  %5432 = vmatmul.bf16.gmra.mxu0 %v2055
  %v5433 = vpop.f32.mrf.mxu0
  %v5434 = vadd.f32 %v5385, %v5433
  %v5435 = vpop.f32.mrf.mxu0
  %v5436 = vadd.f32 %v5387, %v5435
  %5437 = vmatmul.bf16.gmra.mxu0 %v2057
  %v5438 = vpop.f32.mrf.mxu0
  %v5439 = vadd.f32 %v5390, %v5438
  %v5440 = vpop.f32.mrf.mxu0
  %v5441 = vadd.f32 %v5392, %v5440
  %5442 = vmatmul.bf16.gmra.mxu0 %v2059
  %v5443 = vpop.f32.mrf.mxu0
  %v5444 = vadd.f32 %v5395, %v5443
  %v5445 = vpop.f32.mrf.mxu0
  %v5446 = vadd.f32 %v5397, %v5445
  %5447 = vmatmul.bf16.gmra.mxu0 %v2083
  %v5448 = vpop.f32.mrf.mxu0
  %v5449 = vadd.f32 %v5400, %v5448
  %v5450 = vpop.f32.mrf.mxu0
  %v5451 = vadd.f32 %v5402, %v5450
  %5452 = vmatmul.bf16.gmra.mxu0 %v2093
  %v5453 = vpop.f32.mrf.mxu0
  %v5454 = vadd.f32 %v5405, %v5453
  %v5455 = vpop.f32.mrf.mxu0
  %v5456 = vadd.f32 %v5407, %v5455
  %5457 = vmatmul.bf16.gmra.mxu0 %v2103
  %v5458 = vpop.f32.mrf.mxu0
  %v5459 = vadd.f32 %v5410, %v5458
  %v5460 = vpop.f32.mrf.mxu0
  %v5461 = vadd.f32 %v5412, %v5460
  %5462 = vmatmul.bf16.gmra.mxu0 %v2113
  %v5463 = vpop.f32.mrf.mxu0
  %v5464 = vadd.f32 %v5415, %v5463
  %v5465 = vpop.f32.mrf.mxu0
  %v5466 = vadd.f32 %v5417, %v5465
  %5467 = vdwg.mxu0
  %5468 = vmatpush.bf16.msra.mxu0 %v3725
  %5469 = vmatpush.bf16.msra.mxu0 %v3721
  %5470 = vmatpush.bf16.msra.mxu0 %v3717
  %5471 = vmatpush.bf16.msra.mxu0 %v3713
  %5472 = vmatpush.bf16.msra.mxu0 %v3709
  %5473 = vmatpush.bf16.msra.mxu0 %v3705
  %5474 = vmatpush.bf16.msra.mxu0 %v3701
  %5475 = vmatpush.bf16.msra.mxu0 %v3697
  %5476 = vmatmul.bf16.gmra.mxu0 %v2054
  %v5477 = vpop.f32.mrf.mxu0
  %v5478 = vadd.f32 %v5429, %v5477
  %v5479 = vpop.f32.mrf.mxu0
  %v5480 = vadd.f32 %v5431, %v5479
  %5481 = vmatmul.bf16.gmra.mxu0 %v2056
  %v5482 = vpop.f32.mrf.mxu0
  %v5483 = vadd.f32 %v5434, %v5482
  %v5484 = vpop.f32.mrf.mxu0
  %v5485 = vadd.f32 %v5436, %v5484
  %5486 = vmatmul.bf16.gmra.mxu0 %v2058
  %v5487 = vpop.f32.mrf.mxu0
  %v5488 = vadd.f32 %v5439, %v5487
  %v5489 = vpop.f32.mrf.mxu0
  %v5490 = vadd.f32 %v5441, %v5489
  %5491 = vmatmul.bf16.gmra.mxu0 %v2060
  %v5492 = vpop.f32.mrf.mxu0
  %v5493 = vadd.f32 %v5444, %v5492
  %v5494 = vpop.f32.mrf.mxu0
  %v5495 = vadd.f32 %v5446, %v5494
  %5496 = vmatmul.bf16.gmra.mxu0 %v2084
  %v5497 = vpop.f32.mrf.mxu0
  %v5498 = vadd.f32 %v5449, %v5497
  %v5499 = vpop.f32.mrf.mxu0
  %v5500 = vadd.f32 %v5451, %v5499
  %5501 = vmatmul.bf16.gmra.mxu0 %v2094
  %v5502 = vpop.f32.mrf.mxu0
  %v5503 = vadd.f32 %v5454, %v5502
  %v5504 = vpop.f32.mrf.mxu0
  %v5505 = vadd.f32 %v5456, %v5504
  %5506 = vmatmul.bf16.gmra.mxu0 %v2104
  %v5507 = vpop.f32.mrf.mxu0
  %v5508 = vadd.f32 %v5459, %v5507
  %v5509 = vpop.f32.mrf.mxu0
  %v5510 = vadd.f32 %v5461, %v5509
  %5511 = vmatmul.bf16.gmra.mxu0 %v2114
  %v5512 = vpop.f32.mrf.mxu0
  %v5513 = vadd.f32 %v5464, %v5512
  %v5514 = vpop.f32.mrf.mxu0
  %v5515 = vadd.f32 %v5466, %v5514
  %5516 = vdwg.mxu0
  %5517 = vmatpush.bf16.msra.mxu0 %v3438
  %5518 = vmatpush.bf16.msra.mxu0 %v3434
  %5519 = vmatpush.bf16.msra.mxu0 %v3430
  %5520 = vmatpush.bf16.msra.mxu0 %v3426
  %5521 = vmatpush.bf16.msra.mxu0 %v3422
  %5522 = vmatpush.bf16.msra.mxu0 %v3418
  %5523 = vmatpush.bf16.msra.mxu0 %v3414
  %5524 = vmatpush.bf16.msra.mxu0 %v3410
  %5525 = vmatmul.bf16.gmra.mxu0 %v2045
  %v5526 = vpop.f32.mrf.mxu0
  %v5527 = vadd.f32 %v2442, %v5526
  %v5528 = vpop.f32.mrf.mxu0
  %v5529 = vadd.f32 %v2442, %v5528
  %5530 = vmatmul.bf16.gmra.mxu0 %v2047
  %v5531 = vpop.f32.mrf.mxu0
  %v5532 = vadd.f32 %v2442, %v5531
  %v5533 = vpop.f32.mrf.mxu0
  %v5534 = vadd.f32 %v2442, %v5533
  %5535 = vmatmul.bf16.gmra.mxu0 %v2049
  %v5536 = vpop.f32.mrf.mxu0
  %v5537 = vadd.f32 %v2442, %v5536
  %v5538 = vpop.f32.mrf.mxu0
  %v5539 = vadd.f32 %v2442, %v5538
  %5540 = vmatmul.bf16.gmra.mxu0 %v2051
  %v5541 = vpop.f32.mrf.mxu0
  %v5542 = vadd.f32 %v2442, %v5541
  %v5543 = vpop.f32.mrf.mxu0
  %v5544 = vadd.f32 %v2442, %v5543
  %5545 = vmatmul.bf16.gmra.mxu0 %v2053
  %v5546 = vpop.f32.mrf.mxu0
  %v5547 = vadd.f32 %v2442, %v5546
  %v5548 = vpop.f32.mrf.mxu0
  %v5549 = vadd.f32 %v2442, %v5548
  %5550 = vmatmul.bf16.gmra.mxu0 %v2055
  %v5551 = vpop.f32.mrf.mxu0
  %v5552 = vadd.f32 %v2442, %v5551
  %v5553 = vpop.f32.mrf.mxu0
  %v5554 = vadd.f32 %v2442, %v5553
  %5555 = vmatmul.bf16.gmra.mxu0 %v2057
  %v5556 = vpop.f32.mrf.mxu0
  %v5557 = vadd.f32 %v2442, %v5556
  %v5558 = vpop.f32.mrf.mxu0
  %v5559 = vadd.f32 %v2442, %v5558
  %5560 = vmatmul.bf16.gmra.mxu0 %v2059
  %v5561 = vpop.f32.mrf.mxu0
  %v5562 = vadd.f32 %v2442, %v5561
  %v5563 = vpop.f32.mrf.mxu0
  %v5564 = vadd.f32 %v2442, %v5563
  %5565 = vdwg.mxu0
  %5566 = vmatpush.bf16.msra.mxu0 %v3470
  %5567 = vmatpush.bf16.msra.mxu0 %v3466
  %5568 = vmatpush.bf16.msra.mxu0 %v3462
  %5569 = vmatpush.bf16.msra.mxu0 %v3458
  %5570 = vmatpush.bf16.msra.mxu0 %v3454
  %5571 = vmatpush.bf16.msra.mxu0 %v3450
  %5572 = vmatpush.bf16.msra.mxu0 %v3446
  %5573 = vmatpush.bf16.msra.mxu0 %v3442
  %5574 = vmatmul.bf16.gmra.mxu0 %v2046
  %v5575 = vpop.f32.mrf.mxu0
  %v5576 = vadd.f32 %v5527, %v5575
  %v5577 = vpop.f32.mrf.mxu0
  %v5578 = vadd.f32 %v5529, %v5577
  %5579 = vmatmul.bf16.gmra.mxu0 %v2048
  %v5580 = vpop.f32.mrf.mxu0
  %v5581 = vadd.f32 %v5532, %v5580
  %v5582 = vpop.f32.mrf.mxu0
  %v5583 = vadd.f32 %v5534, %v5582
  %5584 = vmatmul.bf16.gmra.mxu0 %v2050
  %v5585 = vpop.f32.mrf.mxu0
  %v5586 = vadd.f32 %v5537, %v5585
  %v5587 = vpop.f32.mrf.mxu0
  %v5588 = vadd.f32 %v5539, %v5587
  %5589 = vmatmul.bf16.gmra.mxu0 %v2052
  %v5590 = vpop.f32.mrf.mxu0
  %v5591 = vadd.f32 %v5542, %v5590
  %v5592 = vpop.f32.mrf.mxu0
  %v5593 = vadd.f32 %v5544, %v5592
  %5594 = vmatmul.bf16.gmra.mxu0 %v2054
  %v5595 = vpop.f32.mrf.mxu0
  %v5596 = vadd.f32 %v5547, %v5595
  %v5597 = vpop.f32.mrf.mxu0
  %v5598 = vadd.f32 %v5549, %v5597
  %5599 = vmatmul.bf16.gmra.mxu0 %v2056
  %v5600 = vpop.f32.mrf.mxu0
  %v5601 = vadd.f32 %v5552, %v5600
  %v5602 = vpop.f32.mrf.mxu0
  %v5603 = vadd.f32 %v5554, %v5602
  %5604 = vmatmul.bf16.gmra.mxu0 %v2058
  %v5605 = vpop.f32.mrf.mxu0
  %v5606 = vadd.f32 %v5557, %v5605
  %v5607 = vpop.f32.mrf.mxu0
  %v5608 = vadd.f32 %v5559, %v5607
  %5609 = vmatmul.bf16.gmra.mxu0 %v2060
  %v5610 = vpop.f32.mrf.mxu0
  %v5611 = vadd.f32 %v5562, %v5610
  %v5612 = vpop.f32.mrf.mxu0
  %v5613 = vadd.f32 %v5564, %v5612
  %5614 = vdwg.mxu0
  %5615 = vmatpush.bf16.msra.mxu0 %v3502
  %5616 = vmatpush.bf16.msra.mxu0 %v3498
  %5617 = vmatpush.bf16.msra.mxu0 %v3494
  %5618 = vmatpush.bf16.msra.mxu0 %v3490
  %5619 = vmatpush.bf16.msra.mxu0 %v3486
  %5620 = vmatpush.bf16.msra.mxu0 %v3482
  %5621 = vmatpush.bf16.msra.mxu0 %v3478
  %5622 = vmatpush.bf16.msra.mxu0 %v3474
  %5623 = vmatmul.bf16.gmra.mxu0 %v2047
  %v5624 = vpop.f32.mrf.mxu0
  %v5625 = vadd.f32 %v5576, %v5624
  %v5626 = vpop.f32.mrf.mxu0
  %v5627 = vadd.f32 %v5578, %v5626
  %5628 = vmatmul.bf16.gmra.mxu0 %v2049
  %v5629 = vpop.f32.mrf.mxu0
  %v5630 = vadd.f32 %v5581, %v5629
  %v5631 = vpop.f32.mrf.mxu0
  %v5632 = vadd.f32 %v5583, %v5631
  %5633 = vmatmul.bf16.gmra.mxu0 %v2051
  %v5634 = vpop.f32.mrf.mxu0
  %v5635 = vadd.f32 %v5586, %v5634
  %v5636 = vpop.f32.mrf.mxu0
  %v5637 = vadd.f32 %v5588, %v5636
  %5638 = vmatmul.bf16.gmra.mxu0 %v2053
  %v5639 = vpop.f32.mrf.mxu0
  %v5640 = vadd.f32 %v5591, %v5639
  %v5641 = vpop.f32.mrf.mxu0
  %v5642 = vadd.f32 %v5593, %v5641
  %5643 = vmatmul.bf16.gmra.mxu0 %v2055
  %v5644 = vpop.f32.mrf.mxu0
  %v5645 = vadd.f32 %v5596, %v5644
  %v5646 = vpop.f32.mrf.mxu0
  %v5647 = vadd.f32 %v5598, %v5646
  %5648 = vmatmul.bf16.gmra.mxu0 %v2057
  %v5649 = vpop.f32.mrf.mxu0
  %v5650 = vadd.f32 %v5601, %v5649
  %v5651 = vpop.f32.mrf.mxu0
  %v5652 = vadd.f32 %v5603, %v5651
  %5653 = vmatmul.bf16.gmra.mxu0 %v2059
  %v5654 = vpop.f32.mrf.mxu0
  %v5655 = vadd.f32 %v5606, %v5654
  %v5656 = vpop.f32.mrf.mxu0
  %v5657 = vadd.f32 %v5608, %v5656
  %5658 = vmatmul.bf16.gmra.mxu0 %v2083
  %v5659 = vpop.f32.mrf.mxu0
  %v5660 = vadd.f32 %v5611, %v5659
  %v5661 = vpop.f32.mrf.mxu0
  %v5662 = vadd.f32 %v5613, %v5661
  %5663 = vdwg.mxu0
  %5664 = vmatpush.bf16.msra.mxu0 %v3534
  %5665 = vmatpush.bf16.msra.mxu0 %v3530
  %5666 = vmatpush.bf16.msra.mxu0 %v3526
  %5667 = vmatpush.bf16.msra.mxu0 %v3522
  %5668 = vmatpush.bf16.msra.mxu0 %v3518
  %5669 = vmatpush.bf16.msra.mxu0 %v3514
  %5670 = vmatpush.bf16.msra.mxu0 %v3510
  %5671 = vmatpush.bf16.msra.mxu0 %v3506
  %5672 = vmatmul.bf16.gmra.mxu0 %v2048
  %v5673 = vpop.f32.mrf.mxu0
  %v5674 = vadd.f32 %v5625, %v5673
  %v5675 = vpop.f32.mrf.mxu0
  %v5676 = vadd.f32 %v5627, %v5675
  %5677 = vmatmul.bf16.gmra.mxu0 %v2050
  %v5678 = vpop.f32.mrf.mxu0
  %v5679 = vadd.f32 %v5630, %v5678
  %v5680 = vpop.f32.mrf.mxu0
  %v5681 = vadd.f32 %v5632, %v5680
  %5682 = vmatmul.bf16.gmra.mxu0 %v2052
  %v5683 = vpop.f32.mrf.mxu0
  %v5684 = vadd.f32 %v5635, %v5683
  %v5685 = vpop.f32.mrf.mxu0
  %v5686 = vadd.f32 %v5637, %v5685
  %5687 = vmatmul.bf16.gmra.mxu0 %v2054
  %v5688 = vpop.f32.mrf.mxu0
  %v5689 = vadd.f32 %v5640, %v5688
  %v5690 = vpop.f32.mrf.mxu0
  %v5691 = vadd.f32 %v5642, %v5690
  %5692 = vmatmul.bf16.gmra.mxu0 %v2056
  %v5693 = vpop.f32.mrf.mxu0
  %v5694 = vadd.f32 %v5645, %v5693
  %v5695 = vpop.f32.mrf.mxu0
  %v5696 = vadd.f32 %v5647, %v5695
  %5697 = vmatmul.bf16.gmra.mxu0 %v2058
  %v5698 = vpop.f32.mrf.mxu0
  %v5699 = vadd.f32 %v5650, %v5698
  %v5700 = vpop.f32.mrf.mxu0
  %v5701 = vadd.f32 %v5652, %v5700
  %5702 = vmatmul.bf16.gmra.mxu0 %v2060
  %v5703 = vpop.f32.mrf.mxu0
  %v5704 = vadd.f32 %v5655, %v5703
  %v5705 = vpop.f32.mrf.mxu0
  %v5706 = vadd.f32 %v5657, %v5705
  %5707 = vmatmul.bf16.gmra.mxu0 %v2084
  %v5708 = vpop.f32.mrf.mxu0
  %v5709 = vadd.f32 %v5660, %v5708
  %v5710 = vpop.f32.mrf.mxu0
  %v5711 = vadd.f32 %v5662, %v5710
  %5712 = vdwg.mxu0
  %5713 = vmatpush.bf16.msra.mxu0 %v3566
  %5714 = vmatpush.bf16.msra.mxu0 %v3562
  %5715 = vmatpush.bf16.msra.mxu0 %v3558
  %5716 = vmatpush.bf16.msra.mxu0 %v3554
  %5717 = vmatpush.bf16.msra.mxu0 %v3550
  %5718 = vmatpush.bf16.msra.mxu0 %v3546
  %5719 = vmatpush.bf16.msra.mxu0 %v3542
  %5720 = vmatpush.bf16.msra.mxu0 %v3538
  %5721 = vmatmul.bf16.gmra.mxu0 %v2049
  %v5722 = vpop.f32.mrf.mxu0
  %v5723 = vadd.f32 %v5674, %v5722
  %v5724 = vpop.f32.mrf.mxu0
  %v5725 = vadd.f32 %v5676, %v5724
  %5726 = vmatmul.bf16.gmra.mxu0 %v2051
  %v5727 = vpop.f32.mrf.mxu0
  %v5728 = vadd.f32 %v5679, %v5727
  %v5729 = vpop.f32.mrf.mxu0
  %v5730 = vadd.f32 %v5681, %v5729
  %5731 = vmatmul.bf16.gmra.mxu0 %v2053
  %v5732 = vpop.f32.mrf.mxu0
  %v5733 = vadd.f32 %v5684, %v5732
  %v5734 = vpop.f32.mrf.mxu0
  %v5735 = vadd.f32 %v5686, %v5734
  %5736 = vmatmul.bf16.gmra.mxu0 %v2055
  %v5737 = vpop.f32.mrf.mxu0
  %v5738 = vadd.f32 %v5689, %v5737
  %v5739 = vpop.f32.mrf.mxu0
  %v5740 = vadd.f32 %v5691, %v5739
  %5741 = vmatmul.bf16.gmra.mxu0 %v2057
  %v5742 = vpop.f32.mrf.mxu0
  %v5743 = vadd.f32 %v5694, %v5742
  %v5744 = vpop.f32.mrf.mxu0
  %v5745 = vadd.f32 %v5696, %v5744
  %5746 = vmatmul.bf16.gmra.mxu0 %v2059
  %v5747 = vpop.f32.mrf.mxu0
  %v5748 = vadd.f32 %v5699, %v5747
  %v5749 = vpop.f32.mrf.mxu0
  %v5750 = vadd.f32 %v5701, %v5749
  %5751 = vmatmul.bf16.gmra.mxu0 %v2083
  %v5752 = vpop.f32.mrf.mxu0
  %v5753 = vadd.f32 %v5704, %v5752
  %v5754 = vpop.f32.mrf.mxu0
  %v5755 = vadd.f32 %v5706, %v5754
  %5756 = vmatmul.bf16.gmra.mxu0 %v2093
  %v5757 = vpop.f32.mrf.mxu0
  %v5758 = vadd.f32 %v5709, %v5757
  %v5759 = vpop.f32.mrf.mxu0
  %v5760 = vadd.f32 %v5711, %v5759
  %5761 = vdwg.mxu0
  %5762 = vmatpush.bf16.msra.mxu0 %v3598
  %5763 = vmatpush.bf16.msra.mxu0 %v3594
  %5764 = vmatpush.bf16.msra.mxu0 %v3590
  %5765 = vmatpush.bf16.msra.mxu0 %v3586
  %5766 = vmatpush.bf16.msra.mxu0 %v3582
  %5767 = vmatpush.bf16.msra.mxu0 %v3578
  %5768 = vmatpush.bf16.msra.mxu0 %v3574
  %5769 = vmatpush.bf16.msra.mxu0 %v3570
  %5770 = vmatmul.bf16.gmra.mxu0 %v2050
  %v5771 = vpop.f32.mrf.mxu0
  %v5772 = vadd.f32 %v5723, %v5771
  %v5773 = vpop.f32.mrf.mxu0
  %v5774 = vadd.f32 %v5725, %v5773
  %5775 = vmatmul.bf16.gmra.mxu0 %v2052
  %v5776 = vpop.f32.mrf.mxu0
  %v5777 = vadd.f32 %v5728, %v5776
  %v5778 = vpop.f32.mrf.mxu0
  %v5779 = vadd.f32 %v5730, %v5778
  %5780 = vmatmul.bf16.gmra.mxu0 %v2054
  %v5781 = vpop.f32.mrf.mxu0
  %v5782 = vadd.f32 %v5733, %v5781
  %v5783 = vpop.f32.mrf.mxu0
  %v5784 = vadd.f32 %v5735, %v5783
  %5785 = vmatmul.bf16.gmra.mxu0 %v2056
  %v5786 = vpop.f32.mrf.mxu0
  %v5787 = vadd.f32 %v5738, %v5786
  %v5788 = vpop.f32.mrf.mxu0
  %v5789 = vadd.f32 %v5740, %v5788
  %5790 = vmatmul.bf16.gmra.mxu0 %v2058
  %v5791 = vpop.f32.mrf.mxu0
  %v5792 = vadd.f32 %v5743, %v5791
  %v5793 = vpop.f32.mrf.mxu0
  %v5794 = vadd.f32 %v5745, %v5793
  %5795 = vmatmul.bf16.gmra.mxu0 %v2060
  %v5796 = vpop.f32.mrf.mxu0
  %v5797 = vadd.f32 %v5748, %v5796
  %v5798 = vpop.f32.mrf.mxu0
  %v5799 = vadd.f32 %v5750, %v5798
  %5800 = vmatmul.bf16.gmra.mxu0 %v2084
  %v5801 = vpop.f32.mrf.mxu0
  %v5802 = vadd.f32 %v5753, %v5801
  %v5803 = vpop.f32.mrf.mxu0
  %v5804 = vadd.f32 %v5755, %v5803
  %5805 = vmatmul.bf16.gmra.mxu0 %v2094
  %v5806 = vpop.f32.mrf.mxu0
  %v5807 = vadd.f32 %v5758, %v5806
  %v5808 = vpop.f32.mrf.mxu0
  %v5809 = vadd.f32 %v5760, %v5808
  %5810 = vdwg.mxu0
  %5811 = vmatpush.bf16.msra.mxu0 %v3630
  %5812 = vmatpush.bf16.msra.mxu0 %v3626
  %5813 = vmatpush.bf16.msra.mxu0 %v3622
  %5814 = vmatpush.bf16.msra.mxu0 %v3618
  %5815 = vmatpush.bf16.msra.mxu0 %v3614
  %5816 = vmatpush.bf16.msra.mxu0 %v3610
  %5817 = vmatpush.bf16.msra.mxu0 %v3606
  %5818 = vmatpush.bf16.msra.mxu0 %v3602
  %5819 = vmatmul.bf16.gmra.mxu0 %v2051
  %v5820 = vpop.f32.mrf.mxu0
  %v5821 = vadd.f32 %v5772, %v5820
  %v5822 = vpop.f32.mrf.mxu0
  %v5823 = vadd.f32 %v5774, %v5822
  %5824 = vmatmul.bf16.gmra.mxu0 %v2053
  %v5825 = vpop.f32.mrf.mxu0
  %v5826 = vadd.f32 %v5777, %v5825
  %v5827 = vpop.f32.mrf.mxu0
  %v5828 = vadd.f32 %v5779, %v5827
  %5829 = vmatmul.bf16.gmra.mxu0 %v2055
  %v5830 = vpop.f32.mrf.mxu0
  %v5831 = vadd.f32 %v5782, %v5830
  %v5832 = vpop.f32.mrf.mxu0
  %v5833 = vadd.f32 %v5784, %v5832
  %5834 = vmatmul.bf16.gmra.mxu0 %v2057
  %v5835 = vpop.f32.mrf.mxu0
  %v5836 = vadd.f32 %v5787, %v5835
  %v5837 = vpop.f32.mrf.mxu0
  %v5838 = vadd.f32 %v5789, %v5837
  %5839 = vmatmul.bf16.gmra.mxu0 %v2059
  %v5840 = vpop.f32.mrf.mxu0
  %v5841 = vadd.f32 %v5792, %v5840
  %v5842 = vpop.f32.mrf.mxu0
  %v5843 = vadd.f32 %v5794, %v5842
  %5844 = vmatmul.bf16.gmra.mxu0 %v2083
  %v5845 = vpop.f32.mrf.mxu0
  %v5846 = vadd.f32 %v5797, %v5845
  %v5847 = vpop.f32.mrf.mxu0
  %v5848 = vadd.f32 %v5799, %v5847
  %5849 = vmatmul.bf16.gmra.mxu0 %v2093
  %v5850 = vpop.f32.mrf.mxu0
  %v5851 = vadd.f32 %v5802, %v5850
  %v5852 = vpop.f32.mrf.mxu0
  %v5853 = vadd.f32 %v5804, %v5852
  %5854 = vmatmul.bf16.gmra.mxu0 %v2103
  %v5855 = vpop.f32.mrf.mxu0
  %v5856 = vadd.f32 %v5807, %v5855
  %v5857 = vpop.f32.mrf.mxu0
  %v5858 = vadd.f32 %v5809, %v5857
  %5859 = vdwg.mxu0
  %5860 = vmatpush.bf16.msra.mxu0 %v3662
  %5861 = vmatpush.bf16.msra.mxu0 %v3658
  %5862 = vmatpush.bf16.msra.mxu0 %v3654
  %5863 = vmatpush.bf16.msra.mxu0 %v3650
  %5864 = vmatpush.bf16.msra.mxu0 %v3646
  %5865 = vmatpush.bf16.msra.mxu0 %v3642
  %5866 = vmatpush.bf16.msra.mxu0 %v3638
  %5867 = vmatpush.bf16.msra.mxu0 %v3634
  %5868 = vmatmul.bf16.gmra.mxu0 %v2052
  %v5869 = vpop.f32.mrf.mxu0
  %v5870 = vadd.f32 %v5821, %v5869
  %v5871 = vpop.f32.mrf.mxu0
  %v5872 = vadd.f32 %v5823, %v5871
  %5873 = vmatmul.bf16.gmra.mxu0 %v2054
  %v5874 = vpop.f32.mrf.mxu0
  %v5875 = vadd.f32 %v5826, %v5874
  %v5876 = vpop.f32.mrf.mxu0
  %v5877 = vadd.f32 %v5828, %v5876
  %5878 = vmatmul.bf16.gmra.mxu0 %v2056
  %v5879 = vpop.f32.mrf.mxu0
  %v5880 = vadd.f32 %v5831, %v5879
  %v5881 = vpop.f32.mrf.mxu0
  %v5882 = vadd.f32 %v5833, %v5881
  %5883 = vmatmul.bf16.gmra.mxu0 %v2058
  %v5884 = vpop.f32.mrf.mxu0
  %v5885 = vadd.f32 %v5836, %v5884
  %v5886 = vpop.f32.mrf.mxu0
  %v5887 = vadd.f32 %v5838, %v5886
  %5888 = vmatmul.bf16.gmra.mxu0 %v2060
  %v5889 = vpop.f32.mrf.mxu0
  %v5890 = vadd.f32 %v5841, %v5889
  %v5891 = vpop.f32.mrf.mxu0
  %v5892 = vadd.f32 %v5843, %v5891
  %5893 = vmatmul.bf16.gmra.mxu0 %v2084
  %v5894 = vpop.f32.mrf.mxu0
  %v5895 = vadd.f32 %v5846, %v5894
  %v5896 = vpop.f32.mrf.mxu0
  %v5897 = vadd.f32 %v5848, %v5896
  %5898 = vmatmul.bf16.gmra.mxu0 %v2094
  %v5899 = vpop.f32.mrf.mxu0
  %v5900 = vadd.f32 %v5851, %v5899
  %v5901 = vpop.f32.mrf.mxu0
  %v5902 = vadd.f32 %v5853, %v5901
  %5903 = vmatmul.bf16.gmra.mxu0 %v2104
  %v5904 = vpop.f32.mrf.mxu0
  %v5905 = vadd.f32 %v5856, %v5904
  %v5906 = vpop.f32.mrf.mxu0
  %v5907 = vadd.f32 %v5858, %v5906
  %5908 = vdwg.mxu0
  %5909 = vmatpush.bf16.msra.mxu0 %v3694
  %5910 = vmatpush.bf16.msra.mxu0 %v3690
  %5911 = vmatpush.bf16.msra.mxu0 %v3686
  %5912 = vmatpush.bf16.msra.mxu0 %v3682
  %5913 = vmatpush.bf16.msra.mxu0 %v3678
  %5914 = vmatpush.bf16.msra.mxu0 %v3674
  %5915 = vmatpush.bf16.msra.mxu0 %v3670
  %5916 = vmatpush.bf16.msra.mxu0 %v3666
  %5917 = vmatmul.bf16.gmra.mxu0 %v2053
  %v5918 = vpop.f32.mrf.mxu0
  %v5919 = vadd.f32 %v5870, %v5918
  %v5920 = vpop.f32.mrf.mxu0
  %v5921 = vadd.f32 %v5872, %v5920
  %5922 = vmatmul.bf16.gmra.mxu0 %v2055
  %v5923 = vpop.f32.mrf.mxu0
  %v5924 = vadd.f32 %v5875, %v5923
  %v5925 = vpop.f32.mrf.mxu0
  %v5926 = vadd.f32 %v5877, %v5925
  %5927 = vmatmul.bf16.gmra.mxu0 %v2057
  %v5928 = vpop.f32.mrf.mxu0
  %v5929 = vadd.f32 %v5880, %v5928
  %v5930 = vpop.f32.mrf.mxu0
  %v5931 = vadd.f32 %v5882, %v5930
  %5932 = vmatmul.bf16.gmra.mxu0 %v2059
  %v5933 = vpop.f32.mrf.mxu0
  %v5934 = vadd.f32 %v5885, %v5933
  %v5935 = vpop.f32.mrf.mxu0
  %v5936 = vadd.f32 %v5887, %v5935
  %5937 = vmatmul.bf16.gmra.mxu0 %v2083
  %v5938 = vpop.f32.mrf.mxu0
  %v5939 = vadd.f32 %v5890, %v5938
  %v5940 = vpop.f32.mrf.mxu0
  %v5941 = vadd.f32 %v5892, %v5940
  %5942 = vmatmul.bf16.gmra.mxu0 %v2093
  %v5943 = vpop.f32.mrf.mxu0
  %v5944 = vadd.f32 %v5895, %v5943
  %v5945 = vpop.f32.mrf.mxu0
  %v5946 = vadd.f32 %v5897, %v5945
  %5947 = vmatmul.bf16.gmra.mxu0 %v2103
  %v5948 = vpop.f32.mrf.mxu0
  %v5949 = vadd.f32 %v5900, %v5948
  %v5950 = vpop.f32.mrf.mxu0
  %v5951 = vadd.f32 %v5902, %v5950
  %5952 = vmatmul.bf16.gmra.mxu0 %v2113
  %v5953 = vpop.f32.mrf.mxu0
  %v5954 = vadd.f32 %v5905, %v5953
  %v5955 = vpop.f32.mrf.mxu0
  %v5956 = vadd.f32 %v5907, %v5955
  %5957 = vdwg.mxu0
  %5958 = vmatpush.bf16.msra.mxu0 %v3726
  %5959 = vmatpush.bf16.msra.mxu0 %v3722
  %5960 = vmatpush.bf16.msra.mxu0 %v3718
  %5961 = vmatpush.bf16.msra.mxu0 %v3714
  %5962 = vmatpush.bf16.msra.mxu0 %v3710
  %5963 = vmatpush.bf16.msra.mxu0 %v3706
  %5964 = vmatpush.bf16.msra.mxu0 %v3702
  %5965 = vmatpush.bf16.msra.mxu0 %v3698
  %5966 = vmatmul.bf16.gmra.mxu0 %v2054
  %v5967 = vpop.f32.mrf.mxu0
  %v5968 = vadd.f32 %v5919, %v5967
  %v5969 = vpop.f32.mrf.mxu0
  %v5970 = vadd.f32 %v5921, %v5969
  %5971 = vmatmul.bf16.gmra.mxu0 %v2056
  %v5972 = vpop.f32.mrf.mxu0
  %v5973 = vadd.f32 %v5924, %v5972
  %v5974 = vpop.f32.mrf.mxu0
  %v5975 = vadd.f32 %v5926, %v5974
  %5976 = vmatmul.bf16.gmra.mxu0 %v2058
  %v5977 = vpop.f32.mrf.mxu0
  %v5978 = vadd.f32 %v5929, %v5977
  %v5979 = vpop.f32.mrf.mxu0
  %v5980 = vadd.f32 %v5931, %v5979
  %5981 = vmatmul.bf16.gmra.mxu0 %v2060
  %v5982 = vpop.f32.mrf.mxu0
  %v5983 = vadd.f32 %v5934, %v5982
  %v5984 = vpop.f32.mrf.mxu0
  %v5985 = vadd.f32 %v5936, %v5984
  %5986 = vmatmul.bf16.gmra.mxu0 %v2084
  %v5987 = vpop.f32.mrf.mxu0
  %v5988 = vadd.f32 %v5939, %v5987
  %v5989 = vpop.f32.mrf.mxu0
  %v5990 = vadd.f32 %v5941, %v5989
  %5991 = vmatmul.bf16.gmra.mxu0 %v2094
  %v5992 = vpop.f32.mrf.mxu0
  %v5993 = vadd.f32 %v5944, %v5992
  %v5994 = vpop.f32.mrf.mxu0
  %v5995 = vadd.f32 %v5946, %v5994
  %5996 = vmatmul.bf16.gmra.mxu0 %v2104
  %v5997 = vpop.f32.mrf.mxu0
  %v5998 = vadd.f32 %v5949, %v5997
  %v5999 = vpop.f32.mrf.mxu0
  %v6000 = vadd.f32 %v5951, %v5999
  %6001 = vmatmul.bf16.gmra.mxu0 %v2114
  %v6002 = vpop.f32.mrf.mxu0
  %v6003 = vadd.f32 %v5954, %v6002
  %v6004 = vpop.f32.mrf.mxu0
  %v6005 = vadd.f32 %v5956, %v6004
  %6006 = vdwg.mxu0
  %v6007 = vmax.f32 %v4498, 0.0
  %v6008 = vmax.f32 %v4988, 0.0
  %v6009 = vmax.f32 %v5478, 0.0
  %v6010 = vmax.f32 %v5968, 0.0
  %v6011 = vmax.f32 %v4500, 0.0
  %v6012 = vmax.f32 %v4990, 0.0
  %v6013 = vmax.f32 %v5480, 0.0
  %v6014 = vmax.f32 %v5970, 0.0
  %v6015 = vmax.f32 %v4503, 0.0
  %v6016 = vmax.f32 %v4993, 0.0
  %v6017 = vmax.f32 %v5483, 0.0
  %v6018 = vmax.f32 %v5973, 0.0
  %v6019 = vmax.f32 %v4505, 0.0
  %v6020 = vmax.f32 %v4995, 0.0
  %v6021 = vmax.f32 %v5485, 0.0
  %v6022 = vmax.f32 %v5975, 0.0
  %v6023 = vmax.f32 %v4508, 0.0
  %v6024 = vmax.f32 %v4998, 0.0
  %v6025 = vmax.f32 %v5488, 0.0
  %v6026 = vmax.f32 %v5978, 0.0
  %v6027 = vmax.f32 %v4510, 0.0
  %v6028 = vmax.f32 %v5000, 0.0
  %v6029 = vmax.f32 %v5490, 0.0
  %v6030 = vmax.f32 %v5980, 0.0
  %v6031 = vmax.f32 %v4513, 0.0
  %v6032 = vmax.f32 %v5003, 0.0
  %v6033 = vmax.f32 %v5493, 0.0
  %v6034 = vmax.f32 %v5983, 0.0
  %v6035 = vmax.f32 %v4515, 0.0
  %v6036 = vmax.f32 %v5005, 0.0
  %v6037 = vmax.f32 %v5495, 0.0
  %v6038 = vmax.f32 %v5985, 0.0
  %v6039 = vmax.f32 %v4518, 0.0
  %v6040 = vmax.f32 %v5008, 0.0
  %v6041 = vmax.f32 %v5498, 0.0
  %v6042 = vmax.f32 %v5988, 0.0
  %v6043 = vmax.f32 %v4520, 0.0
  %v6044 = vmax.f32 %v5010, 0.0
  %v6045 = vmax.f32 %v5500, 0.0
  %v6046 = vmax.f32 %v5990, 0.0
  %v6047 = vmax.f32 %v4523, 0.0
  %v6048 = vmax.f32 %v5013, 0.0
  %v6049 = vmax.f32 %v5503, 0.0
  %v6050 = vmax.f32 %v5993, 0.0
  %v6051 = vmax.f32 %v4525, 0.0
  %v6052 = vmax.f32 %v5015, 0.0
  %v6053 = vmax.f32 %v5505, 0.0
  %v6054 = vmax.f32 %v5995, 0.0
  %v6055 = vmax.f32 %v4528, 0.0
  %v6056 = vmax.f32 %v5018, 0.0
  %v6057 = vmax.f32 %v5508, 0.0
  %v6058 = vmax.f32 %v5998, 0.0
  %v6059 = vmax.f32 %v4530, 0.0
  %v6060 = vmax.f32 %v5020, 0.0
  %v6061 = vmax.f32 %v5510, 0.0
  %v6062 = vmax.f32 %v6000, 0.0
  %v6063 = vmax.f32 %v4533, 0.0
  %v6064 = vmax.f32 %v5023, 0.0
  %v6065 = vmax.f32 %v5513, 0.0
  %v6066 = vmax.f32 %v6003, 0.0
  %v6067 = vmax.f32 %v4535, 0.0
  %v6068 = vmax.f32 %v5025, 0.0
  %v6069 = vmax.f32 %v5515, 0.0
  %v6070 = vmax.f32 %v6005, 0.0
  %v6071 = vmax.f32 %v6007, %v6015
  %v6072 = vmax.f32 %v6008, %v6016
  %v6073 = vmax.f32 %v6009, %v6017
  %v6074 = vmax.f32 %v6010, %v6018
  %v6075 = vmax.f32 %v6011, %v6019
  %v6076 = vmax.f32 %v6012, %v6020
  %v6077 = vmax.f32 %v6013, %v6021
  %v6078 = vmax.f32 %v6014, %v6022
  %v6079 = vmax.f32 %v6023, %v6031
  %v6080 = vmax.f32 %v6024, %v6032
  %v6081 = vmax.f32 %v6025, %v6033
  %v6082 = vmax.f32 %v6026, %v6034
  %v6083 = vmax.f32 %v6027, %v6035
  %v6084 = vmax.f32 %v6028, %v6036
  %v6085 = vmax.f32 %v6029, %v6037
  %v6086 = vmax.f32 %v6030, %v6038
  %v6087 = vmax.f32 %v6039, %v6047
  %v6088 = vmax.f32 %v6040, %v6048
  %v6089 = vmax.f32 %v6041, %v6049
  %v6090 = vmax.f32 %v6042, %v6050
  %v6091 = vmax.f32 %v6043, %v6051
  %v6092 = vmax.f32 %v6044, %v6052
  %v6093 = vmax.f32 %v6045, %v6053
  %v6094 = vmax.f32 %v6046, %v6054
  %v6095 = vmax.f32 %v6055, %v6063
  %v6096 = vmax.f32 %v6056, %v6064
  %v6097 = vmax.f32 %v6057, %v6065
  %v6098 = vmax.f32 %v6058, %v6066
  %v6099 = vmax.f32 %v6059, %v6067
  %v6100 = vmax.f32 %v6060, %v6068
  %v6101 = vmax.f32 %v6061, %v6069
  %v6102 = vmax.f32 %v6062, %v6070
  %v6103 = vmax.f32 %v6071, %v6073
  %v6104 = vmax.f32 %v6072, %v6074
  %v6105 = vmax.f32 %v6075, %v6077
  %v6106 = vmax.f32 %v6076, %v6078
  %v6107 = vmax.f32 %v6079, %v6081
  %v6108 = vmax.f32 %v6080, %v6082
  %v6109 = vmax.f32 %v6083, %v6085
  %v6110 = vmax.f32 %v6084, %v6086
  %v6111 = vmax.f32 %v6087, %v6089
  %v6112 = vmax.f32 %v6088, %v6090
  %v6113 = vmax.f32 %v6091, %v6093
  %v6114 = vmax.f32 %v6092, %v6094
  %v6115 = vmax.f32 %v6095, %v6097
  %v6116 = vmax.f32 %v6096, %v6098
  %v6117 = vmax.f32 %v6099, %v6101
  %v6118 = vmax.f32 %v6100, %v6102
  %v6119 = vpack.c.bf16 %v6104, %v6103
  %v6120 = vpack.c.bf16 %v6106, %v6105
  %v6121 = vpack.c.bf16 %v6108, %v6107
  %v6122 = vpack.c.bf16 %v6110, %v6109
  %v6123 = vpack.c.bf16 %v6112, %v6111
  %v6124 = vpack.c.bf16 %v6114, %v6113
  %v6125 = vpack.c.bf16 %v6116, %v6115
  %v6126 = vpack.c.bf16 %v6118, %v6117
  %v6129 = vunpack.c.l.b16 %v6119
  %v6130 = vunpack.c.h.b16 %v6119
  %v6131 = vunpack.c.l.b16 %v6120
  %v6132 = vunpack.c.h.b16 %v6120
  %v6133 = vpack.c.b16 %v6131, %v6129
  %v6134 = vpack.c.b16 %v6132, %v6130
  %v6139 = vunpack.c.l.b16 %v6121
  %v6140 = vunpack.c.h.b16 %v6121
  %v6141 = vunpack.c.l.b16 %v6122
  %v6142 = vunpack.c.h.b16 %v6122
  %v6143 = vpack.c.b16 %v6141, %v6139
  %v6144 = vpack.c.b16 %v6142, %v6140
  %v6149 = vunpack.c.l.b16 %v6123
  %v6150 = vunpack.c.h.b16 %v6123
  %v6151 = vunpack.c.l.b16 %v6124
  %v6152 = vunpack.c.h.b16 %v6124
  %v6153 = vpack.c.b16 %v6151, %v6149
  %v6154 = vpack.c.b16 %v6152, %v6150
  %v6159 = vunpack.c.l.b16 %v6125
  %v6160 = vunpack.c.h.b16 %v6125
  %v6161 = vunpack.c.l.b16 %v6126
  %v6162 = vunpack.c.h.b16 %v6126
  %v6163 = vpack.c.b16 %v6161, %v6159
  %v6164 = vpack.c.b16 %v6162, %v6160
  %v6167 = vld [vmem:[%s5] sm:$0xff]
  %v6168 = vld [vmem:[%s5 + $0x8] sm:$0xff]
  %v6169 = vld [vmem:[%s5 + $0x10] sm:$0xff]
  %v6170 = vld [vmem:[%s5 + $0x18] sm:$0xff]
  %v6171 = vld [vmem:[%s5 + $0x20] sm:$0xff]
  %v6172 = vld [vmem:[%s5 + $0x28] sm:$0xff]
  %v6173 = vld [vmem:[%s5 + $0x30] sm:$0xff]
  %v6174 = vld [vmem:[%s5 + $0x38] sm:$0xff]
  %v6175 = vld [vmem:[%s5 + $0x40] sm:$0xff]
  %v6176 = vld [vmem:[%s5 + $0x48] sm:$0xff]
  %v6177 = vld [vmem:[%s5 + $0x50] sm:$0xff]
  %v6178 = vld [vmem:[%s5 + $0x58] sm:$0xff]
  %v6179 = vld [vmem:[%s5 + $0x60] sm:$0xff]
  %v6180 = vld [vmem:[%s5 + $0x68] sm:$0xff]
  %v6181 = vld [vmem:[%s5 + $0x70] sm:$0xff]
  %v6182 = vld [vmem:[%s5 + $0x78] sm:$0xff]
  %v6183 = vld [vmem:[%s5 + $0x80] sm:$0xff]
  %v6184 = vld [vmem:[%s5 + $0x88] sm:$0xff]
  %v6185 = vld [vmem:[%s5 + $0x90] sm:$0xff]
  %v6186 = vld [vmem:[%s5 + $0x98] sm:$0xff]
  %v6187 = vld [vmem:[%s5 + $0xa0] sm:$0xff]
  %v6188 = vld [vmem:[%s5 + $0xa8] sm:$0xff]
  %v6189 = vld [vmem:[%s5 + $0xb0] sm:$0xff]
  %v6190 = vld [vmem:[%s5 + $0xb8] sm:$0xff]
  %v6191 = vld [vmem:[%s5 + $0xc0] sm:$0xff]
  %v6192 = vld [vmem:[%s5 + $0xc8] sm:$0xff]
  %v6193 = vld [vmem:[%s5 + $0xd0] sm:$0xff]
  %v6194 = vld [vmem:[%s5 + $0xd8] sm:$0xff]
  %v6195 = vld [vmem:[%s5 + $0xe0] sm:$0xff]
  %v6196 = vld [vmem:[%s5 + $0xe8] sm:$0xff]
  %v6197 = vld [vmem:[%s5 + $0xf0] sm:$0xff]
  %v6198 = vld [vmem:[%s5 + $0xf8] sm:$0xff]
  %v6199 = vld [vmem:[%s5 + $0x100] sm:$0xff]
  %v6200 = vld [vmem:[%s5 + $0x108] sm:$0xff]
  %v6201 = vld [vmem:[%s5 + $0x110] sm:$0xff]
  %v6202 = vld [vmem:[%s5 + $0x118] sm:$0xff]
  %v6203 = vld [vmem:[%s5 + $0x120] sm:$0xff]
  %v6204 = vld [vmem:[%s5 + $0x128] sm:$0xff]
  %v6205 = vld [vmem:[%s5 + $0x130] sm:$0xff]
  %v6206 = vld [vmem:[%s5 + $0x138] sm:$0xff]
  %v6207 = vld [vmem:[%s5 + $0x140] sm:$0xff]
  %v6208 = vld [vmem:[%s5 + $0x148] sm:$0xff]
  %v6209 = vld [vmem:[%s5 + $0x150] sm:$0xff]
  %v6210 = vld [vmem:[%s5 + $0x158] sm:$0xff]
  %v6211 = vld [vmem:[%s5 + $0x160] sm:$0xff]
  %v6212 = vld [vmem:[%s5 + $0x168] sm:$0xff]
  %v6213 = vld [vmem:[%s5 + $0x170] sm:$0xff]
  %v6214 = vld [vmem:[%s5 + $0x178] sm:$0xff]
  %v6215 = vld [vmem:[%s5 + $0x180] sm:$0xff]
  %v6216 = vld [vmem:[%s5 + $0x188] sm:$0xff]
  %v6217 = vld [vmem:[%s5 + $0x190] sm:$0xff]
  %v6218 = vld [vmem:[%s5 + $0x198] sm:$0xff]
  %v6219 = vld [vmem:[%s5 + $0x1a0] sm:$0xff]
  %v6220 = vld [vmem:[%s5 + $0x1a8] sm:$0xff]
  %v6221 = vld [vmem:[%s5 + $0x1b0] sm:$0xff]
  %v6222 = vld [vmem:[%s5 + $0x1b8] sm:$0xff]
  %v6223 = vld [vmem:[%s5 + $0x1c0] sm:$0xff]
  %v6224 = vld [vmem:[%s5 + $0x1c8] sm:$0xff]
  %v6225 = vld [vmem:[%s5 + $0x1d0] sm:$0xff]
  %v6226 = vld [vmem:[%s5 + $0x1d8] sm:$0xff]
  %v6227 = vld [vmem:[%s5 + $0x1e0] sm:$0xff]
  %v6228 = vld [vmem:[%s5 + $0x1e8] sm:$0xff]
  %v6229 = vld [vmem:[%s5 + $0x1f0] sm:$0xff]
  %v6230 = vld [vmem:[%s5 + $0x1f8] sm:$0xff]
  %v6231 = vld [vmem:[%s5 + $0x200] sm:$0xff]
  %v6232 = vld [vmem:[%s5 + $0x208] sm:$0xff]
  %v6233 = vld [vmem:[%s5 + $0x210] sm:$0xff]
  %v6234 = vld [vmem:[%s5 + $0x218] sm:$0xff]
  %v6235 = vld [vmem:[%s5 + $0x220] sm:$0xff]
  %v6236 = vld [vmem:[%s5 + $0x228] sm:$0xff]
  %v6237 = vld [vmem:[%s5 + $0x230] sm:$0xff]
  %v6238 = vld [vmem:[%s5 + $0x238] sm:$0xff]
  %v6239 = vld [vmem:[%s5 + $0x240] sm:$0xff]
  %v6240 = vld [vmem:[%s5 + $0x248] sm:$0xff]
  %v6241 = vld [vmem:[%s5 + $0x250] sm:$0xff]
  %v6242 = vld [vmem:[%s5 + $0x258] sm:$0xff]
  %v6243 = vld [vmem:[%s5 + $0x260] sm:$0xff]
  %v6244 = vld [vmem:[%s5 + $0x268] sm:$0xff]
  %v6245 = vld [vmem:[%s5 + $0x270] sm:$0xff]
  %v6246 = vld [vmem:[%s5 + $0x278] sm:$0xff]
  %v6247 = vld [vmem:[%s5 + $0x280] sm:$0xff]
  %v6248 = vld [vmem:[%s5 + $0x288] sm:$0xff]
  %v6249 = vld [vmem:[%s5 + $0x290] sm:$0xff]
  %v6250 = vld [vmem:[%s5 + $0x298] sm:$0xff]
  %v6251 = vld [vmem:[%s5 + $0x2a0] sm:$0xff]
  %v6252 = vld [vmem:[%s5 + $0x2a8] sm:$0xff]
  %v6253 = vld [vmem:[%s5 + $0x2b0] sm:$0xff]
  %v6254 = vld [vmem:[%s5 + $0x2b8] sm:$0xff]
  %v6255 = vld [vmem:[%s5 + $0x2c0] sm:$0xff]
  %v6256 = vld [vmem:[%s5 + $0x2c8] sm:$0xff]
  %v6257 = vld [vmem:[%s5 + $0x2d0] sm:$0xff]
  %v6258 = vld [vmem:[%s5 + $0x2d8] sm:$0xff]
  %v6259 = vld [vmem:[%s5 + $0x2e0] sm:$0xff]
  %v6260 = vld [vmem:[%s5 + $0x2e8] sm:$0xff]
  %v6261 = vld [vmem:[%s5 + $0x2f0] sm:$0xff]
  %v6262 = vld [vmem:[%s5 + $0x2f8] sm:$0xff]
  %v6263 = vld [vmem:[%s5 + $0x300] sm:$0xff]
  %v6264 = vld [vmem:[%s5 + $0x308] sm:$0xff]
  %v6265 = vld [vmem:[%s5 + $0x310] sm:$0xff]
  %v6266 = vld [vmem:[%s5 + $0x318] sm:$0xff]
  %v6267 = vld [vmem:[%s5 + $0x320] sm:$0xff]
  %v6268 = vld [vmem:[%s5 + $0x328] sm:$0xff]
  %v6269 = vld [vmem:[%s5 + $0x330] sm:$0xff]
  %v6270 = vld [vmem:[%s5 + $0x338] sm:$0xff]
  %v6271 = vld [vmem:[%s5 + $0x340] sm:$0xff]
  %v6272 = vld [vmem:[%s5 + $0x348] sm:$0xff]
  %v6273 = vld [vmem:[%s5 + $0x350] sm:$0xff]
  %v6274 = vld [vmem:[%s5 + $0x358] sm:$0xff]
  %v6275 = vld [vmem:[%s5 + $0x360] sm:$0xff]
  %v6276 = vld [vmem:[%s5 + $0x368] sm:$0xff]
  %v6277 = vld [vmem:[%s5 + $0x370] sm:$0xff]
  %v6278 = vld [vmem:[%s5 + $0x378] sm:$0xff]
  %v6279 = vld [vmem:[%s5 + $0x380] sm:$0xff]
  %v6280 = vld [vmem:[%s5 + $0x388] sm:$0xff]
  %v6281 = vld [vmem:[%s5 + $0x390] sm:$0xff]
  %v6282 = vld [vmem:[%s5 + $0x398] sm:$0xff]
  %v6283 = vld [vmem:[%s5 + $0x3a0] sm:$0xff]
  %v6284 = vld [vmem:[%s5 + $0x3a8] sm:$0xff]
  %v6285 = vld [vmem:[%s5 + $0x3b0] sm:$0xff]
  %v6286 = vld [vmem:[%s5 + $0x3b8] sm:$0xff]
  %v6287 = vld [vmem:[%s5 + $0x3c0] sm:$0xff]
  %v6288 = vld [vmem:[%s5 + $0x3c8] sm:$0xff]
  %v6289 = vld [vmem:[%s5 + $0x3d0] sm:$0xff]
  %v6290 = vld [vmem:[%s5 + $0x3d8] sm:$0xff]
  %v6291 = vld [vmem:[%s5 + $0x3e0] sm:$0xff]
  %v6292 = vld [vmem:[%s5 + $0x3e8] sm:$0xff]
  %v6293 = vld [vmem:[%s5 + $0x3f0] sm:$0xff]
  %v6294 = vld [vmem:[%s5 + $0x3f8] sm:$0xff]
  %v6295 = vld [vmem:[%s5 + $0x400] sm:$0xff]
  %v6296 = vld [vmem:[%s5 + $0x408] sm:$0xff]
  %v6297 = vld [vmem:[%s5 + $0x410] sm:$0xff]
  %v6298 = vld [vmem:[%s5 + $0x418] sm:$0xff]
  %v6299 = vld [vmem:[%s5 + $0x420] sm:$0xff]
  %v6300 = vld [vmem:[%s5 + $0x428] sm:$0xff]
  %v6301 = vld [vmem:[%s5 + $0x430] sm:$0xff]
  %v6302 = vld [vmem:[%s5 + $0x438] sm:$0xff]
  %v6303 = vld [vmem:[%s5 + $0x440] sm:$0xff]
  %v6304 = vld [vmem:[%s5 + $0x448] sm:$0xff]
  %v6305 = vld [vmem:[%s5 + $0x450] sm:$0xff]
  %v6306 = vld [vmem:[%s5 + $0x458] sm:$0xff]
  %v6307 = vld [vmem:[%s5 + $0x460] sm:$0xff]
  %v6308 = vld [vmem:[%s5 + $0x468] sm:$0xff]
  %v6309 = vld [vmem:[%s5 + $0x470] sm:$0xff]
  %v6310 = vld [vmem:[%s5 + $0x478] sm:$0xff]
  %v6311 = vld [vmem:[%s5 + $0x480] sm:$0xff]
  %v6312 = vld [vmem:[%s5 + $0x488] sm:$0xff]
  %v6313 = vld [vmem:[%s5 + $0x490] sm:$0xff]
  %v6314 = vld [vmem:[%s5 + $0x498] sm:$0xff]
  %v6315 = vld [vmem:[%s5 + $0x4a0] sm:$0xff]
  %v6316 = vld [vmem:[%s5 + $0x4a8] sm:$0xff]
  %v6317 = vld [vmem:[%s5 + $0x4b0] sm:$0xff]
  %v6318 = vld [vmem:[%s5 + $0x4b8] sm:$0xff]
  %v6319 = vld [vmem:[%s5 + $0x4c0] sm:$0xff]
  %v6320 = vld [vmem:[%s5 + $0x4c8] sm:$0xff]
  %v6321 = vld [vmem:[%s5 + $0x4d0] sm:$0xff]
  %v6322 = vld [vmem:[%s5 + $0x4d8] sm:$0xff]
  %v6323 = vld [vmem:[%s5 + $0x4e0] sm:$0xff]
  %v6324 = vld [vmem:[%s5 + $0x4e8] sm:$0xff]
  %v6325 = vld [vmem:[%s5 + $0x4f0] sm:$0xff]
  %v6326 = vld [vmem:[%s5 + $0x4f8] sm:$0xff]
  %v6327 = vld [vmem:[%s5 + $0x500] sm:$0xff]
  %v6328 = vld [vmem:[%s5 + $0x508] sm:$0xff]
  %v6329 = vld [vmem:[%s5 + $0x510] sm:$0xff]
  %v6330 = vld [vmem:[%s5 + $0x518] sm:$0xff]
  %v6331 = vld [vmem:[%s5 + $0x520] sm:$0xff]
  %v6332 = vld [vmem:[%s5 + $0x528] sm:$0xff]
  %v6333 = vld [vmem:[%s5 + $0x530] sm:$0xff]
  %v6334 = vld [vmem:[%s5 + $0x538] sm:$0xff]
  %v6335 = vld [vmem:[%s5 + $0x540] sm:$0xff]
  %v6336 = vld [vmem:[%s5 + $0x548] sm:$0xff]
  %v6337 = vld [vmem:[%s5 + $0x550] sm:$0xff]
  %v6338 = vld [vmem:[%s5 + $0x558] sm:$0xff]
  %v6339 = vld [vmem:[%s5 + $0x560] sm:$0xff]
  %v6340 = vld [vmem:[%s5 + $0x568] sm:$0xff]
  %v6341 = vld [vmem:[%s5 + $0x570] sm:$0xff]
  %v6342 = vld [vmem:[%s5 + $0x578] sm:$0xff]
  %v6343 = vld [vmem:[%s5 + $0x580] sm:$0xff]
  %v6344 = vld [vmem:[%s5 + $0x588] sm:$0xff]
  %v6345 = vld [vmem:[%s5 + $0x590] sm:$0xff]
  %v6346 = vld [vmem:[%s5 + $0x598] sm:$0xff]
  %v6347 = vld [vmem:[%s5 + $0x5a0] sm:$0xff]
  %v6348 = vld [vmem:[%s5 + $0x5a8] sm:$0xff]
  %v6349 = vld [vmem:[%s5 + $0x5b0] sm:$0xff]
  %v6350 = vld [vmem:[%s5 + $0x5b8] sm:$0xff]
  %v6351 = vld [vmem:[%s5 + $0x5c0] sm:$0xff]
  %v6352 = vld [vmem:[%s5 + $0x5c8] sm:$0xff]
  %v6353 = vld [vmem:[%s5 + $0x5d0] sm:$0xff]
  %v6354 = vld [vmem:[%s5 + $0x5d8] sm:$0xff]
  %v6355 = vld [vmem:[%s5 + $0x5e0] sm:$0xff]
  %v6356 = vld [vmem:[%s5 + $0x5e8] sm:$0xff]
  %v6357 = vld [vmem:[%s5 + $0x5f0] sm:$0xff]
  %v6358 = vld [vmem:[%s5 + $0x5f8] sm:$0xff]
  %v6359 = vld [vmem:[%s5 + $0x600] sm:$0xff]
  %v6360 = vld [vmem:[%s5 + $0x608] sm:$0xff]
  %v6361 = vld [vmem:[%s5 + $0x610] sm:$0xff]
  %v6362 = vld [vmem:[%s5 + $0x618] sm:$0xff]
  %v6363 = vld [vmem:[%s5 + $0x620] sm:$0xff]
  %v6364 = vld [vmem:[%s5 + $0x628] sm:$0xff]
  %v6365 = vld [vmem:[%s5 + $0x630] sm:$0xff]
  %v6366 = vld [vmem:[%s5 + $0x638] sm:$0xff]
  %v6367 = vld [vmem:[%s5 + $0x640] sm:$0xff]
  %v6368 = vld [vmem:[%s5 + $0x648] sm:$0xff]
  %v6369 = vld [vmem:[%s5 + $0x650] sm:$0xff]
  %v6370 = vld [vmem:[%s5 + $0x658] sm:$0xff]
  %v6371 = vld [vmem:[%s5 + $0x660] sm:$0xff]
  %v6372 = vld [vmem:[%s5 + $0x668] sm:$0xff]
  %v6373 = vld [vmem:[%s5 + $0x670] sm:$0xff]
  %v6374 = vld [vmem:[%s5 + $0x678] sm:$0xff]
  %v6375 = vld [vmem:[%s5 + $0x680] sm:$0xff]
  %v6376 = vld [vmem:[%s5 + $0x688] sm:$0xff]
  %v6377 = vld [vmem:[%s5 + $0x690] sm:$0xff]
  %v6378 = vld [vmem:[%s5 + $0x698] sm:$0xff]
  %v6379 = vld [vmem:[%s5 + $0x6a0] sm:$0xff]
  %v6380 = vld [vmem:[%s5 + $0x6a8] sm:$0xff]
  %v6381 = vld [vmem:[%s5 + $0x6b0] sm:$0xff]
  %v6382 = vld [vmem:[%s5 + $0x6b8] sm:$0xff]
  %v6383 = vld [vmem:[%s5 + $0x6c0] sm:$0xff]
  %v6384 = vld [vmem:[%s5 + $0x6c8] sm:$0xff]
  %v6385 = vld [vmem:[%s5 + $0x6d0] sm:$0xff]
  %v6386 = vld [vmem:[%s5 + $0x6d8] sm:$0xff]
  %v6387 = vld [vmem:[%s5 + $0x6e0] sm:$0xff]
  %v6388 = vld [vmem:[%s5 + $0x6e8] sm:$0xff]
  %v6389 = vld [vmem:[%s5 + $0x6f0] sm:$0xff]
  %v6390 = vld [vmem:[%s5 + $0x6f8] sm:$0xff]
  %v6391 = vld [vmem:[%s5 + $0x700] sm:$0xff]
  %v6392 = vld [vmem:[%s5 + $0x708] sm:$0xff]
  %v6393 = vld [vmem:[%s5 + $0x710] sm:$0xff]
  %v6394 = vld [vmem:[%s5 + $0x718] sm:$0xff]
  %v6395 = vld [vmem:[%s5 + $0x720] sm:$0xff]
  %v6396 = vld [vmem:[%s5 + $0x728] sm:$0xff]
  %v6397 = vld [vmem:[%s5 + $0x730] sm:$0xff]
  %v6398 = vld [vmem:[%s5 + $0x738] sm:$0xff]
  %v6399 = vld [vmem:[%s5 + $0x740] sm:$0xff]
  %v6400 = vld [vmem:[%s5 + $0x748] sm:$0xff]
  %v6401 = vld [vmem:[%s5 + $0x750] sm:$0xff]
  %v6402 = vld [vmem:[%s5 + $0x758] sm:$0xff]
  %v6403 = vld [vmem:[%s5 + $0x760] sm:$0xff]
  %v6404 = vld [vmem:[%s5 + $0x768] sm:$0xff]
  %v6405 = vld [vmem:[%s5 + $0x770] sm:$0xff]
  %v6406 = vld [vmem:[%s5 + $0x778] sm:$0xff]
  %v6407 = vld [vmem:[%s5 + $0x780] sm:$0xff]
  %v6408 = vld [vmem:[%s5 + $0x788] sm:$0xff]
  %v6409 = vld [vmem:[%s5 + $0x790] sm:$0xff]
  %v6410 = vld [vmem:[%s5 + $0x798] sm:$0xff]
  %v6411 = vld [vmem:[%s5 + $0x7a0] sm:$0xff]
  %v6412 = vld [vmem:[%s5 + $0x7a8] sm:$0xff]
  %v6413 = vld [vmem:[%s5 + $0x7b0] sm:$0xff]
  %v6414 = vld [vmem:[%s5 + $0x7b8] sm:$0xff]
  %v6415 = vld [vmem:[%s5 + $0x7c0] sm:$0xff]
  %v6416 = vld [vmem:[%s5 + $0x7c8] sm:$0xff]
  %v6417 = vld [vmem:[%s5 + $0x7d0] sm:$0xff]
  %v6418 = vld [vmem:[%s5 + $0x7d8] sm:$0xff]
  %v6419 = vld [vmem:[%s5 + $0x7e0] sm:$0xff]
  %v6420 = vld [vmem:[%s5 + $0x7e8] sm:$0xff]
  %v6421 = vld [vmem:[%s5 + $0x7f0] sm:$0xff]
  %v6422 = vld [vmem:[%s5 + $0x7f8] sm:$0xff]
  %v6423 = vld [vmem:[%s6] sm:$0xf]
  %v6425 = vperm.slane %v6423, 0
  %v6426 = vperm.slane %v6423, 1
  %v6427 = vperm.slane %v6423, 2
  %v6428 = vperm.slane %v6423, 3
  %v6689 = vunpack.c.l.b16 %v6167
  %v6690 = vunpack.c.h.b16 %v6167
  %v6691 = vunpack.c.l.b16 %v6168
  %v6692 = vunpack.c.h.b16 %v6168
  %v6693 = vunpack.c.l.b16 %v6169
  %v6694 = vunpack.c.h.b16 %v6169
  %v6695 = vunpack.c.l.b16 %v6170
  %v6696 = vunpack.c.h.b16 %v6170
  %v6697 = vunpack.c.l.b16 %v6171
  %v6698 = vunpack.c.h.b16 %v6171
  %v6699 = vunpack.c.l.b16 %v6172
  %v6700 = vunpack.c.h.b16 %v6172
  %v6701 = vunpack.c.l.b16 %v6173
  %v6702 = vunpack.c.h.b16 %v6173
  %v6703 = vunpack.c.l.b16 %v6174
  %v6704 = vunpack.c.h.b16 %v6174
  %v6705 = vunpack.c.l.b16 %v6175
  %v6706 = vunpack.c.h.b16 %v6175
  %v6707 = vunpack.c.l.b16 %v6176
  %v6708 = vunpack.c.h.b16 %v6176
  %v6709 = vunpack.c.l.b16 %v6177
  %v6710 = vunpack.c.h.b16 %v6177
  %v6711 = vunpack.c.l.b16 %v6178
  %v6712 = vunpack.c.h.b16 %v6178
  %v6713 = vunpack.c.l.b16 %v6179
  %v6714 = vunpack.c.h.b16 %v6179
  %v6715 = vunpack.c.l.b16 %v6180
  %v6716 = vunpack.c.h.b16 %v6180
  %v6717 = vunpack.c.l.b16 %v6181
  %v6718 = vunpack.c.h.b16 %v6181
  %v6719 = vunpack.c.l.b16 %v6182
  %v6720 = vunpack.c.h.b16 %v6182
  %v6721 = vunpack.c.l.b16 %v6183
  %v6722 = vunpack.c.h.b16 %v6183
  %v6723 = vunpack.c.l.b16 %v6184
  %v6724 = vunpack.c.h.b16 %v6184
  %v6725 = vunpack.c.l.b16 %v6185
  %v6726 = vunpack.c.h.b16 %v6185
  %v6727 = vunpack.c.l.b16 %v6186
  %v6728 = vunpack.c.h.b16 %v6186
  %v6729 = vunpack.c.l.b16 %v6187
  %v6730 = vunpack.c.h.b16 %v6187
  %v6731 = vunpack.c.l.b16 %v6188
  %v6732 = vunpack.c.h.b16 %v6188
  %v6733 = vunpack.c.l.b16 %v6189
  %v6734 = vunpack.c.h.b16 %v6189
  %v6735 = vunpack.c.l.b16 %v6190
  %v6736 = vunpack.c.h.b16 %v6190
  %v6737 = vunpack.c.l.b16 %v6191
  %v6738 = vunpack.c.h.b16 %v6191
  %v6739 = vunpack.c.l.b16 %v6192
  %v6740 = vunpack.c.h.b16 %v6192
  %v6741 = vunpack.c.l.b16 %v6193
  %v6742 = vunpack.c.h.b16 %v6193
  %v6743 = vunpack.c.l.b16 %v6194
  %v6744 = vunpack.c.h.b16 %v6194
  %v6745 = vunpack.c.l.b16 %v6195
  %v6746 = vunpack.c.h.b16 %v6195
  %v6747 = vunpack.c.l.b16 %v6196
  %v6748 = vunpack.c.h.b16 %v6196
  %v6749 = vunpack.c.l.b16 %v6197
  %v6750 = vunpack.c.h.b16 %v6197
  %v6751 = vunpack.c.l.b16 %v6198
  %v6752 = vunpack.c.h.b16 %v6198
  %v6753 = vunpack.c.l.b16 %v6199
  %v6754 = vunpack.c.h.b16 %v6199
  %v6755 = vunpack.c.l.b16 %v6200
  %v6756 = vunpack.c.h.b16 %v6200
  %v6757 = vunpack.c.l.b16 %v6201
  %v6758 = vunpack.c.h.b16 %v6201
  %v6759 = vunpack.c.l.b16 %v6202
  %v6760 = vunpack.c.h.b16 %v6202
  %v6761 = vunpack.c.l.b16 %v6203
  %v6762 = vunpack.c.h.b16 %v6203
  %v6763 = vunpack.c.l.b16 %v6204
  %v6764 = vunpack.c.h.b16 %v6204
  %v6765 = vunpack.c.l.b16 %v6205
  %v6766 = vunpack.c.h.b16 %v6205
  %v6767 = vunpack.c.l.b16 %v6206
  %v6768 = vunpack.c.h.b16 %v6206
  %v6769 = vunpack.c.l.b16 %v6207
  %v6770 = vunpack.c.h.b16 %v6207
  %v6771 = vunpack.c.l.b16 %v6208
  %v6772 = vunpack.c.h.b16 %v6208
  %v6773 = vunpack.c.l.b16 %v6209
  %v6774 = vunpack.c.h.b16 %v6209
  %v6775 = vunpack.c.l.b16 %v6210
  %v6776 = vunpack.c.h.b16 %v6210
  %v6777 = vunpack.c.l.b16 %v6211
  %v6778 = vunpack.c.h.b16 %v6211
  %v6779 = vunpack.c.l.b16 %v6212
  %v6780 = vunpack.c.h.b16 %v6212
  %v6781 = vunpack.c.l.b16 %v6213
  %v6782 = vunpack.c.h.b16 %v6213
  %v6783 = vunpack.c.l.b16 %v6214
  %v6784 = vunpack.c.h.b16 %v6214
  %v6785 = vunpack.c.l.b16 %v6215
  %v6786 = vunpack.c.h.b16 %v6215
  %v6787 = vunpack.c.l.b16 %v6216
  %v6788 = vunpack.c.h.b16 %v6216
  %v6789 = vunpack.c.l.b16 %v6217
  %v6790 = vunpack.c.h.b16 %v6217
  %v6791 = vunpack.c.l.b16 %v6218
  %v6792 = vunpack.c.h.b16 %v6218
  %v6793 = vunpack.c.l.b16 %v6219
  %v6794 = vunpack.c.h.b16 %v6219
  %v6795 = vunpack.c.l.b16 %v6220
  %v6796 = vunpack.c.h.b16 %v6220
  %v6797 = vunpack.c.l.b16 %v6221
  %v6798 = vunpack.c.h.b16 %v6221
  %v6799 = vunpack.c.l.b16 %v6222
  %v6800 = vunpack.c.h.b16 %v6222
  %v6801 = vunpack.c.l.b16 %v6223
  %v6802 = vunpack.c.h.b16 %v6223
  %v6803 = vunpack.c.l.b16 %v6224
  %v6804 = vunpack.c.h.b16 %v6224
  %v6805 = vunpack.c.l.b16 %v6225
  %v6806 = vunpack.c.h.b16 %v6225
  %v6807 = vunpack.c.l.b16 %v6226
  %v6808 = vunpack.c.h.b16 %v6226
  %v6809 = vunpack.c.l.b16 %v6227
  %v6810 = vunpack.c.h.b16 %v6227
  %v6811 = vunpack.c.l.b16 %v6228
  %v6812 = vunpack.c.h.b16 %v6228
  %v6813 = vunpack.c.l.b16 %v6229
  %v6814 = vunpack.c.h.b16 %v6229
  %v6815 = vunpack.c.l.b16 %v6230
  %v6816 = vunpack.c.h.b16 %v6230
  %v6817 = vunpack.c.l.b16 %v6231
  %v6818 = vunpack.c.h.b16 %v6231
  %v6819 = vunpack.c.l.b16 %v6232
  %v6820 = vunpack.c.h.b16 %v6232
  %v6821 = vunpack.c.l.b16 %v6233
  %v6822 = vunpack.c.h.b16 %v6233
  %v6823 = vunpack.c.l.b16 %v6234
  %v6824 = vunpack.c.h.b16 %v6234
  %v6825 = vunpack.c.l.b16 %v6235
  %v6826 = vunpack.c.h.b16 %v6235
  %v6827 = vunpack.c.l.b16 %v6236
  %v6828 = vunpack.c.h.b16 %v6236
  %v6829 = vunpack.c.l.b16 %v6237
  %v6830 = vunpack.c.h.b16 %v6237
  %v6831 = vunpack.c.l.b16 %v6238
  %v6832 = vunpack.c.h.b16 %v6238
  %v6833 = vunpack.c.l.b16 %v6239
  %v6834 = vunpack.c.h.b16 %v6239
  %v6835 = vunpack.c.l.b16 %v6240
  %v6836 = vunpack.c.h.b16 %v6240
  %v6837 = vunpack.c.l.b16 %v6241
  %v6838 = vunpack.c.h.b16 %v6241
  %v6839 = vunpack.c.l.b16 %v6242
  %v6840 = vunpack.c.h.b16 %v6242
  %v6841 = vunpack.c.l.b16 %v6243
  %v6842 = vunpack.c.h.b16 %v6243
  %v6843 = vunpack.c.l.b16 %v6244
  %v6844 = vunpack.c.h.b16 %v6244
  %v6845 = vunpack.c.l.b16 %v6245
  %v6846 = vunpack.c.h.b16 %v6245
  %v6847 = vunpack.c.l.b16 %v6246
  %v6848 = vunpack.c.h.b16 %v6246
  %v6849 = vunpack.c.l.b16 %v6247
  %v6850 = vunpack.c.h.b16 %v6247
  %v6851 = vunpack.c.l.b16 %v6248
  %v6852 = vunpack.c.h.b16 %v6248
  %v6853 = vunpack.c.l.b16 %v6249
  %v6854 = vunpack.c.h.b16 %v6249
  %v6855 = vunpack.c.l.b16 %v6250
  %v6856 = vunpack.c.h.b16 %v6250
  %v6857 = vunpack.c.l.b16 %v6251
  %v6858 = vunpack.c.h.b16 %v6251
  %v6859 = vunpack.c.l.b16 %v6252
  %v6860 = vunpack.c.h.b16 %v6252
  %v6861 = vunpack.c.l.b16 %v6253
  %v6862 = vunpack.c.h.b16 %v6253
  %v6863 = vunpack.c.l.b16 %v6254
  %v6864 = vunpack.c.h.b16 %v6254
  %v6865 = vunpack.c.l.b16 %v6255
  %v6866 = vunpack.c.h.b16 %v6255
  %v6867 = vunpack.c.l.b16 %v6256
  %v6868 = vunpack.c.h.b16 %v6256
  %v6869 = vunpack.c.l.b16 %v6257
  %v6870 = vunpack.c.h.b16 %v6257
  %v6871 = vunpack.c.l.b16 %v6258
  %v6872 = vunpack.c.h.b16 %v6258
  %v6873 = vunpack.c.l.b16 %v6259
  %v6874 = vunpack.c.h.b16 %v6259
  %v6875 = vunpack.c.l.b16 %v6260
  %v6876 = vunpack.c.h.b16 %v6260
  %v6877 = vunpack.c.l.b16 %v6261
  %v6878 = vunpack.c.h.b16 %v6261
  %v6879 = vunpack.c.l.b16 %v6262
  %v6880 = vunpack.c.h.b16 %v6262
  %v6881 = vunpack.c.l.b16 %v6263
  %v6882 = vunpack.c.h.b16 %v6263
  %v6883 = vunpack.c.l.b16 %v6264
  %v6884 = vunpack.c.h.b16 %v6264
  %v6885 = vunpack.c.l.b16 %v6265
  %v6886 = vunpack.c.h.b16 %v6265
  %v6887 = vunpack.c.l.b16 %v6266
  %v6888 = vunpack.c.h.b16 %v6266
  %v6889 = vunpack.c.l.b16 %v6267
  %v6890 = vunpack.c.h.b16 %v6267
  %v6891 = vunpack.c.l.b16 %v6268
  %v6892 = vunpack.c.h.b16 %v6268
  %v6893 = vunpack.c.l.b16 %v6269
  %v6894 = vunpack.c.h.b16 %v6269
  %v6895 = vunpack.c.l.b16 %v6270
  %v6896 = vunpack.c.h.b16 %v6270
  %v6897 = vunpack.c.l.b16 %v6271
  %v6898 = vunpack.c.h.b16 %v6271
  %v6899 = vunpack.c.l.b16 %v6272
  %v6900 = vunpack.c.h.b16 %v6272
  %v6901 = vunpack.c.l.b16 %v6273
  %v6902 = vunpack.c.h.b16 %v6273
  %v6903 = vunpack.c.l.b16 %v6274
  %v6904 = vunpack.c.h.b16 %v6274
  %v6905 = vunpack.c.l.b16 %v6275
  %v6906 = vunpack.c.h.b16 %v6275
  %v6907 = vunpack.c.l.b16 %v6276
  %v6908 = vunpack.c.h.b16 %v6276
  %v6909 = vunpack.c.l.b16 %v6277
  %v6910 = vunpack.c.h.b16 %v6277
  %v6911 = vunpack.c.l.b16 %v6278
  %v6912 = vunpack.c.h.b16 %v6278
  %v6913 = vunpack.c.l.b16 %v6279
  %v6914 = vunpack.c.h.b16 %v6279
  %v6915 = vunpack.c.l.b16 %v6280
  %v6916 = vunpack.c.h.b16 %v6280
  %v6917 = vunpack.c.l.b16 %v6281
  %v6918 = vunpack.c.h.b16 %v6281
  %v6919 = vunpack.c.l.b16 %v6282
  %v6920 = vunpack.c.h.b16 %v6282
  %v6921 = vunpack.c.l.b16 %v6283
  %v6922 = vunpack.c.h.b16 %v6283
  %v6923 = vunpack.c.l.b16 %v6284
  %v6924 = vunpack.c.h.b16 %v6284
  %v6925 = vunpack.c.l.b16 %v6285
  %v6926 = vunpack.c.h.b16 %v6285
  %v6927 = vunpack.c.l.b16 %v6286
  %v6928 = vunpack.c.h.b16 %v6286
  %v6929 = vunpack.c.l.b16 %v6287
  %v6930 = vunpack.c.h.b16 %v6287
  %v6931 = vunpack.c.l.b16 %v6288
  %v6932 = vunpack.c.h.b16 %v6288
  %v6933 = vunpack.c.l.b16 %v6289
  %v6934 = vunpack.c.h.b16 %v6289
  %v6935 = vunpack.c.l.b16 %v6290
  %v6936 = vunpack.c.h.b16 %v6290
  %v6937 = vunpack.c.l.b16 %v6291
  %v6938 = vunpack.c.h.b16 %v6291
  %v6939 = vunpack.c.l.b16 %v6292
  %v6940 = vunpack.c.h.b16 %v6292
  %v6941 = vunpack.c.l.b16 %v6293
  %v6942 = vunpack.c.h.b16 %v6293
  %v6943 = vunpack.c.l.b16 %v6294
  %v6944 = vunpack.c.h.b16 %v6294
  %v6945 = vunpack.c.l.b16 %v6295
  %v6946 = vunpack.c.h.b16 %v6295
  %v6947 = vunpack.c.l.b16 %v6296
  %v6948 = vunpack.c.h.b16 %v6296
  %v6949 = vunpack.c.l.b16 %v6297
  %v6950 = vunpack.c.h.b16 %v6297
  %v6951 = vunpack.c.l.b16 %v6298
  %v6952 = vunpack.c.h.b16 %v6298
  %v6953 = vunpack.c.l.b16 %v6299
  %v6954 = vunpack.c.h.b16 %v6299
  %v6955 = vunpack.c.l.b16 %v6300
  %v6956 = vunpack.c.h.b16 %v6300
  %v6957 = vunpack.c.l.b16 %v6301
  %v6958 = vunpack.c.h.b16 %v6301
  %v6959 = vunpack.c.l.b16 %v6302
  %v6960 = vunpack.c.h.b16 %v6302
  %v6961 = vunpack.c.l.b16 %v6303
  %v6962 = vunpack.c.h.b16 %v6303
  %v6963 = vunpack.c.l.b16 %v6304
  %v6964 = vunpack.c.h.b16 %v6304
  %v6965 = vunpack.c.l.b16 %v6305
  %v6966 = vunpack.c.h.b16 %v6305
  %v6967 = vunpack.c.l.b16 %v6306
  %v6968 = vunpack.c.h.b16 %v6306
  %v6969 = vunpack.c.l.b16 %v6307
  %v6970 = vunpack.c.h.b16 %v6307
  %v6971 = vunpack.c.l.b16 %v6308
  %v6972 = vunpack.c.h.b16 %v6308
  %v6973 = vunpack.c.l.b16 %v6309
  %v6974 = vunpack.c.h.b16 %v6309
  %v6975 = vunpack.c.l.b16 %v6310
  %v6976 = vunpack.c.h.b16 %v6310
  %v6977 = vunpack.c.l.b16 %v6311
  %v6978 = vunpack.c.h.b16 %v6311
  %v6979 = vunpack.c.l.b16 %v6312
  %v6980 = vunpack.c.h.b16 %v6312
  %v6981 = vunpack.c.l.b16 %v6313
  %v6982 = vunpack.c.h.b16 %v6313
  %v6983 = vunpack.c.l.b16 %v6314
  %v6984 = vunpack.c.h.b16 %v6314
  %v6985 = vunpack.c.l.b16 %v6315
  %v6986 = vunpack.c.h.b16 %v6315
  %v6987 = vunpack.c.l.b16 %v6316
  %v6988 = vunpack.c.h.b16 %v6316
  %v6989 = vunpack.c.l.b16 %v6317
  %v6990 = vunpack.c.h.b16 %v6317
  %v6991 = vunpack.c.l.b16 %v6318
  %v6992 = vunpack.c.h.b16 %v6318
  %v6993 = vunpack.c.l.b16 %v6319
  %v6994 = vunpack.c.h.b16 %v6319
  %v6995 = vunpack.c.l.b16 %v6320
  %v6996 = vunpack.c.h.b16 %v6320
  %v6997 = vunpack.c.l.b16 %v6321
  %v6998 = vunpack.c.h.b16 %v6321
  %v6999 = vunpack.c.l.b16 %v6322
  %v7000 = vunpack.c.h.b16 %v6322
  %v7001 = vunpack.c.l.b16 %v6323
  %v7002 = vunpack.c.h.b16 %v6323
  %v7003 = vunpack.c.l.b16 %v6324
  %v7004 = vunpack.c.h.b16 %v6324
  %v7005 = vunpack.c.l.b16 %v6325
  %v7006 = vunpack.c.h.b16 %v6325
  %v7007 = vunpack.c.l.b16 %v6326
  %v7008 = vunpack.c.h.b16 %v6326
  %v7009 = vunpack.c.l.b16 %v6327
  %v7010 = vunpack.c.h.b16 %v6327
  %v7011 = vunpack.c.l.b16 %v6328
  %v7012 = vunpack.c.h.b16 %v6328
  %v7013 = vunpack.c.l.b16 %v6329
  %v7014 = vunpack.c.h.b16 %v6329
  %v7015 = vunpack.c.l.b16 %v6330
  %v7016 = vunpack.c.h.b16 %v6330
  %v7017 = vunpack.c.l.b16 %v6331
  %v7018 = vunpack.c.h.b16 %v6331
  %v7019 = vunpack.c.l.b16 %v6332
  %v7020 = vunpack.c.h.b16 %v6332
  %v7021 = vunpack.c.l.b16 %v6333
  %v7022 = vunpack.c.h.b16 %v6333
  %v7023 = vunpack.c.l.b16 %v6334
  %v7024 = vunpack.c.h.b16 %v6334
  %v7025 = vunpack.c.l.b16 %v6335
  %v7026 = vunpack.c.h.b16 %v6335
  %v7027 = vunpack.c.l.b16 %v6336
  %v7028 = vunpack.c.h.b16 %v6336
  %v7029 = vunpack.c.l.b16 %v6337
  %v7030 = vunpack.c.h.b16 %v6337
  %v7031 = vunpack.c.l.b16 %v6338
  %v7032 = vunpack.c.h.b16 %v6338
  %v7033 = vunpack.c.l.b16 %v6339
  %v7034 = vunpack.c.h.b16 %v6339
  %v7035 = vunpack.c.l.b16 %v6340
  %v7036 = vunpack.c.h.b16 %v6340
  %v7037 = vunpack.c.l.b16 %v6341
  %v7038 = vunpack.c.h.b16 %v6341
  %v7039 = vunpack.c.l.b16 %v6342
  %v7040 = vunpack.c.h.b16 %v6342
  %v7041 = vunpack.c.l.b16 %v6343
  %v7042 = vunpack.c.h.b16 %v6343
  %v7043 = vunpack.c.l.b16 %v6344
  %v7044 = vunpack.c.h.b16 %v6344
  %v7045 = vunpack.c.l.b16 %v6345
  %v7046 = vunpack.c.h.b16 %v6345
  %v7047 = vunpack.c.l.b16 %v6346
  %v7048 = vunpack.c.h.b16 %v6346
  %v7049 = vunpack.c.l.b16 %v6347
  %v7050 = vunpack.c.h.b16 %v6347
  %v7051 = vunpack.c.l.b16 %v6348
  %v7052 = vunpack.c.h.b16 %v6348
  %v7053 = vunpack.c.l.b16 %v6349
  %v7054 = vunpack.c.h.b16 %v6349
  %v7055 = vunpack.c.l.b16 %v6350
  %v7056 = vunpack.c.h.b16 %v6350
  %v7057 = vunpack.c.l.b16 %v6351
  %v7058 = vunpack.c.h.b16 %v6351
  %v7059 = vunpack.c.l.b16 %v6352
  %v7060 = vunpack.c.h.b16 %v6352
  %v7061 = vunpack.c.l.b16 %v6353
  %v7062 = vunpack.c.h.b16 %v6353
  %v7063 = vunpack.c.l.b16 %v6354
  %v7064 = vunpack.c.h.b16 %v6354
  %v7065 = vunpack.c.l.b16 %v6355
  %v7066 = vunpack.c.h.b16 %v6355
  %v7067 = vunpack.c.l.b16 %v6356
  %v7068 = vunpack.c.h.b16 %v6356
  %v7069 = vunpack.c.l.b16 %v6357
  %v7070 = vunpack.c.h.b16 %v6357
  %v7071 = vunpack.c.l.b16 %v6358
  %v7072 = vunpack.c.h.b16 %v6358
  %v7073 = vunpack.c.l.b16 %v6359
  %v7074 = vunpack.c.h.b16 %v6359
  %v7075 = vunpack.c.l.b16 %v6360
  %v7076 = vunpack.c.h.b16 %v6360
  %v7077 = vunpack.c.l.b16 %v6361
  %v7078 = vunpack.c.h.b16 %v6361
  %v7079 = vunpack.c.l.b16 %v6362
  %v7080 = vunpack.c.h.b16 %v6362
  %v7081 = vunpack.c.l.b16 %v6363
  %v7082 = vunpack.c.h.b16 %v6363
  %v7083 = vunpack.c.l.b16 %v6364
  %v7084 = vunpack.c.h.b16 %v6364
  %v7085 = vunpack.c.l.b16 %v6365
  %v7086 = vunpack.c.h.b16 %v6365
  %v7087 = vunpack.c.l.b16 %v6366
  %v7088 = vunpack.c.h.b16 %v6366
  %v7089 = vunpack.c.l.b16 %v6367
  %v7090 = vunpack.c.h.b16 %v6367
  %v7091 = vunpack.c.l.b16 %v6368
  %v7092 = vunpack.c.h.b16 %v6368
  %v7093 = vunpack.c.l.b16 %v6369
  %v7094 = vunpack.c.h.b16 %v6369
  %v7095 = vunpack.c.l.b16 %v6370
  %v7096 = vunpack.c.h.b16 %v6370
  %v7097 = vunpack.c.l.b16 %v6371
  %v7098 = vunpack.c.h.b16 %v6371
  %v7099 = vunpack.c.l.b16 %v6372
  %v7100 = vunpack.c.h.b16 %v6372
  %v7101 = vunpack.c.l.b16 %v6373
  %v7102 = vunpack.c.h.b16 %v6373
  %v7103 = vunpack.c.l.b16 %v6374
  %v7104 = vunpack.c.h.b16 %v6374
  %v7105 = vunpack.c.l.b16 %v6375
  %v7106 = vunpack.c.h.b16 %v6375
  %v7107 = vunpack.c.l.b16 %v6376
  %v7108 = vunpack.c.h.b16 %v6376
  %v7109 = vunpack.c.l.b16 %v6377
  %v7110 = vunpack.c.h.b16 %v6377
  %v7111 = vunpack.c.l.b16 %v6378
  %v7112 = vunpack.c.h.b16 %v6378
  %v7113 = vunpack.c.l.b16 %v6379
  %v7114 = vunpack.c.h.b16 %v6379
  %v7115 = vunpack.c.l.b16 %v6380
  %v7116 = vunpack.c.h.b16 %v6380
  %v7117 = vunpack.c.l.b16 %v6381
  %v7118 = vunpack.c.h.b16 %v6381
  %v7119 = vunpack.c.l.b16 %v6382
  %v7120 = vunpack.c.h.b16 %v6382
  %v7121 = vunpack.c.l.b16 %v6383
  %v7122 = vunpack.c.h.b16 %v6383
  %v7123 = vunpack.c.l.b16 %v6384
  %v7124 = vunpack.c.h.b16 %v6384
  %v7125 = vunpack.c.l.b16 %v6385
  %v7126 = vunpack.c.h.b16 %v6385
  %v7127 = vunpack.c.l.b16 %v6386
  %v7128 = vunpack.c.h.b16 %v6386
  %v7129 = vunpack.c.l.b16 %v6387
  %v7130 = vunpack.c.h.b16 %v6387
  %v7131 = vunpack.c.l.b16 %v6388
  %v7132 = vunpack.c.h.b16 %v6388
  %v7133 = vunpack.c.l.b16 %v6389
  %v7134 = vunpack.c.h.b16 %v6389
  %v7135 = vunpack.c.l.b16 %v6390
  %v7136 = vunpack.c.h.b16 %v6390
  %v7137 = vunpack.c.l.b16 %v6391
  %v7138 = vunpack.c.h.b16 %v6391
  %v7139 = vunpack.c.l.b16 %v6392
  %v7140 = vunpack.c.h.b16 %v6392
  %v7141 = vunpack.c.l.b16 %v6393
  %v7142 = vunpack.c.h.b16 %v6393
  %v7143 = vunpack.c.l.b16 %v6394
  %v7144 = vunpack.c.h.b16 %v6394
  %v7145 = vunpack.c.l.b16 %v6395
  %v7146 = vunpack.c.h.b16 %v6395
  %v7147 = vunpack.c.l.b16 %v6396
  %v7148 = vunpack.c.h.b16 %v6396
  %v7149 = vunpack.c.l.b16 %v6397
  %v7150 = vunpack.c.h.b16 %v6397
  %v7151 = vunpack.c.l.b16 %v6398
  %v7152 = vunpack.c.h.b16 %v6398
  %v7153 = vunpack.c.l.b16 %v6399
  %v7154 = vunpack.c.h.b16 %v6399
  %v7155 = vunpack.c.l.b16 %v6400
  %v7156 = vunpack.c.h.b16 %v6400
  %v7157 = vunpack.c.l.b16 %v6401
  %v7158 = vunpack.c.h.b16 %v6401
  %v7159 = vunpack.c.l.b16 %v6402
  %v7160 = vunpack.c.h.b16 %v6402
  %v7161 = vunpack.c.l.b16 %v6403
  %v7162 = vunpack.c.h.b16 %v6403
  %v7163 = vunpack.c.l.b16 %v6404
  %v7164 = vunpack.c.h.b16 %v6404
  %v7165 = vunpack.c.l.b16 %v6405
  %v7166 = vunpack.c.h.b16 %v6405
  %v7167 = vunpack.c.l.b16 %v6406
  %v7168 = vunpack.c.h.b16 %v6406
  %v7169 = vunpack.c.l.b16 %v6407
  %v7170 = vunpack.c.h.b16 %v6407
  %v7171 = vunpack.c.l.b16 %v6408
  %v7172 = vunpack.c.h.b16 %v6408
  %v7173 = vunpack.c.l.b16 %v6409
  %v7174 = vunpack.c.h.b16 %v6409
  %v7175 = vunpack.c.l.b16 %v6410
  %v7176 = vunpack.c.h.b16 %v6410
  %v7177 = vunpack.c.l.b16 %v6411
  %v7178 = vunpack.c.h.b16 %v6411
  %v7179 = vunpack.c.l.b16 %v6412
  %v7180 = vunpack.c.h.b16 %v6412
  %v7181 = vunpack.c.l.b16 %v6413
  %v7182 = vunpack.c.h.b16 %v6413
  %v7183 = vunpack.c.l.b16 %v6414
  %v7184 = vunpack.c.h.b16 %v6414
  %v7185 = vunpack.c.l.b16 %v6415
  %v7186 = vunpack.c.h.b16 %v6415
  %v7187 = vunpack.c.l.b16 %v6416
  %v7188 = vunpack.c.h.b16 %v6416
  %v7189 = vunpack.c.l.b16 %v6417
  %v7190 = vunpack.c.h.b16 %v6417
  %v7191 = vunpack.c.l.b16 %v6418
  %v7192 = vunpack.c.h.b16 %v6418
  %v7193 = vunpack.c.l.b16 %v6419
  %v7194 = vunpack.c.h.b16 %v6419
  %v7195 = vunpack.c.l.b16 %v6420
  %v7196 = vunpack.c.h.b16 %v6420
  %v7197 = vunpack.c.l.b16 %v6421
  %v7198 = vunpack.c.h.b16 %v6421
  %v7199 = vunpack.c.l.b16 %v6422
  %v7200 = vunpack.c.h.b16 %v6422
  %v7201 = vpack.c.b16 %v6693, %v6689
  %v7202 = vpack.c.b16 %v6694, %v6690
  %v7203 = vpack.c.b16 %v6695, %v6691
  %v7204 = vpack.c.b16 %v6696, %v6692
  %v7205 = vpack.c.b16 %v6701, %v6697
  %v7206 = vpack.c.b16 %v6702, %v6698
  %v7207 = vpack.c.b16 %v6703, %v6699
  %v7208 = vpack.c.b16 %v6704, %v6700
  %v7209 = vpack.c.b16 %v6709, %v6705
  %v7210 = vpack.c.b16 %v6710, %v6706
  %v7211 = vpack.c.b16 %v6711, %v6707
  %v7212 = vpack.c.b16 %v6712, %v6708
  %v7213 = vpack.c.b16 %v6717, %v6713
  %v7214 = vpack.c.b16 %v6718, %v6714
  %v7215 = vpack.c.b16 %v6719, %v6715
  %v7216 = vpack.c.b16 %v6720, %v6716
  %v7217 = vpack.c.b16 %v6725, %v6721
  %v7218 = vpack.c.b16 %v6726, %v6722
  %v7219 = vpack.c.b16 %v6727, %v6723
  %v7220 = vpack.c.b16 %v6728, %v6724
  %v7221 = vpack.c.b16 %v6733, %v6729
  %v7222 = vpack.c.b16 %v6734, %v6730
  %v7223 = vpack.c.b16 %v6735, %v6731
  %v7224 = vpack.c.b16 %v6736, %v6732
  %v7225 = vpack.c.b16 %v6741, %v6737
  %v7226 = vpack.c.b16 %v6742, %v6738
  %v7227 = vpack.c.b16 %v6743, %v6739
  %v7228 = vpack.c.b16 %v6744, %v6740
  %v7229 = vpack.c.b16 %v6749, %v6745
  %v7230 = vpack.c.b16 %v6750, %v6746
  %v7231 = vpack.c.b16 %v6751, %v6747
  %v7232 = vpack.c.b16 %v6752, %v6748
  %v7233 = vpack.c.b16 %v6757, %v6753
  %v7234 = vpack.c.b16 %v6758, %v6754
  %v7235 = vpack.c.b16 %v6759, %v6755
  %v7236 = vpack.c.b16 %v6760, %v6756
  %v7237 = vpack.c.b16 %v6765, %v6761
  %v7238 = vpack.c.b16 %v6766, %v6762
  %v7239 = vpack.c.b16 %v6767, %v6763
  %v7240 = vpack.c.b16 %v6768, %v6764
  %v7241 = vpack.c.b16 %v6773, %v6769
  %v7242 = vpack.c.b16 %v6774, %v6770
  %v7243 = vpack.c.b16 %v6775, %v6771
  %v7244 = vpack.c.b16 %v6776, %v6772
  %v7245 = vpack.c.b16 %v6781, %v6777
  %v7246 = vpack.c.b16 %v6782, %v6778
  %v7247 = vpack.c.b16 %v6783, %v6779
  %v7248 = vpack.c.b16 %v6784, %v6780
  %v7249 = vpack.c.b16 %v6789, %v6785
  %v7250 = vpack.c.b16 %v6790, %v6786
  %v7251 = vpack.c.b16 %v6791, %v6787
  %v7252 = vpack.c.b16 %v6792, %v6788
  %v7253 = vpack.c.b16 %v6797, %v6793
  %v7254 = vpack.c.b16 %v6798, %v6794
  %v7255 = vpack.c.b16 %v6799, %v6795
  %v7256 = vpack.c.b16 %v6800, %v6796
  %v7257 = vpack.c.b16 %v6805, %v6801
  %v7258 = vpack.c.b16 %v6806, %v6802
  %v7259 = vpack.c.b16 %v6807, %v6803
  %v7260 = vpack.c.b16 %v6808, %v6804
  %v7261 = vpack.c.b16 %v6813, %v6809
  %v7262 = vpack.c.b16 %v6814, %v6810
  %v7263 = vpack.c.b16 %v6815, %v6811
  %v7264 = vpack.c.b16 %v6816, %v6812
  %v7265 = vpack.c.b16 %v6821, %v6817
  %v7266 = vpack.c.b16 %v6822, %v6818
  %v7267 = vpack.c.b16 %v6823, %v6819
  %v7268 = vpack.c.b16 %v6824, %v6820
  %v7269 = vpack.c.b16 %v6829, %v6825
  %v7270 = vpack.c.b16 %v6830, %v6826
  %v7271 = vpack.c.b16 %v6831, %v6827
  %v7272 = vpack.c.b16 %v6832, %v6828
  %v7273 = vpack.c.b16 %v6837, %v6833
  %v7274 = vpack.c.b16 %v6838, %v6834
  %v7275 = vpack.c.b16 %v6839, %v6835
  %v7276 = vpack.c.b16 %v6840, %v6836
  %v7277 = vpack.c.b16 %v6845, %v6841
  %v7278 = vpack.c.b16 %v6846, %v6842
  %v7279 = vpack.c.b16 %v6847, %v6843
  %v7280 = vpack.c.b16 %v6848, %v6844
  %v7281 = vpack.c.b16 %v6853, %v6849
  %v7282 = vpack.c.b16 %v6854, %v6850
  %v7283 = vpack.c.b16 %v6855, %v6851
  %v7284 = vpack.c.b16 %v6856, %v6852
  %v7285 = vpack.c.b16 %v6861, %v6857
  %v7286 = vpack.c.b16 %v6862, %v6858
  %v7287 = vpack.c.b16 %v6863, %v6859
  %v7288 = vpack.c.b16 %v6864, %v6860
  %v7289 = vpack.c.b16 %v6869, %v6865
  %v7290 = vpack.c.b16 %v6870, %v6866
  %v7291 = vpack.c.b16 %v6871, %v6867
  %v7292 = vpack.c.b16 %v6872, %v6868
  %v7293 = vpack.c.b16 %v6877, %v6873
  %v7294 = vpack.c.b16 %v6878, %v6874
  %v7295 = vpack.c.b16 %v6879, %v6875
  %v7296 = vpack.c.b16 %v6880, %v6876
  %v7297 = vpack.c.b16 %v6885, %v6881
  %v7298 = vpack.c.b16 %v6886, %v6882
  %v7299 = vpack.c.b16 %v6887, %v6883
  %v7300 = vpack.c.b16 %v6888, %v6884
  %v7301 = vpack.c.b16 %v6893, %v6889
  %v7302 = vpack.c.b16 %v6894, %v6890
  %v7303 = vpack.c.b16 %v6895, %v6891
  %v7304 = vpack.c.b16 %v6896, %v6892
  %v7305 = vpack.c.b16 %v6901, %v6897
  %v7306 = vpack.c.b16 %v6902, %v6898
  %v7307 = vpack.c.b16 %v6903, %v6899
  %v7308 = vpack.c.b16 %v6904, %v6900
  %v7309 = vpack.c.b16 %v6909, %v6905
  %v7310 = vpack.c.b16 %v6910, %v6906
  %v7311 = vpack.c.b16 %v6911, %v6907
  %v7312 = vpack.c.b16 %v6912, %v6908
  %v7313 = vpack.c.b16 %v6917, %v6913
  %v7314 = vpack.c.b16 %v6918, %v6914
  %v7315 = vpack.c.b16 %v6919, %v6915
  %v7316 = vpack.c.b16 %v6920, %v6916
  %v7317 = vpack.c.b16 %v6925, %v6921
  %v7318 = vpack.c.b16 %v6926, %v6922
  %v7319 = vpack.c.b16 %v6927, %v6923
  %v7320 = vpack.c.b16 %v6928, %v6924
  %v7321 = vpack.c.b16 %v6933, %v6929
  %v7322 = vpack.c.b16 %v6934, %v6930
  %v7323 = vpack.c.b16 %v6935, %v6931
  %v7324 = vpack.c.b16 %v6936, %v6932
  %v7325 = vpack.c.b16 %v6941, %v6937
  %v7326 = vpack.c.b16 %v6942, %v6938
  %v7327 = vpack.c.b16 %v6943, %v6939
  %v7328 = vpack.c.b16 %v6944, %v6940
  %v7329 = vpack.c.b16 %v6949, %v6945
  %v7330 = vpack.c.b16 %v6950, %v6946
  %v7331 = vpack.c.b16 %v6951, %v6947
  %v7332 = vpack.c.b16 %v6952, %v6948
  %v7333 = vpack.c.b16 %v6957, %v6953
  %v7334 = vpack.c.b16 %v6958, %v6954
  %v7335 = vpack.c.b16 %v6959, %v6955
  %v7336 = vpack.c.b16 %v6960, %v6956
  %v7337 = vpack.c.b16 %v6965, %v6961
  %v7338 = vpack.c.b16 %v6966, %v6962
  %v7339 = vpack.c.b16 %v6967, %v6963
  %v7340 = vpack.c.b16 %v6968, %v6964
  %v7341 = vpack.c.b16 %v6973, %v6969
  %v7342 = vpack.c.b16 %v6974, %v6970
  %v7343 = vpack.c.b16 %v6975, %v6971
  %v7344 = vpack.c.b16 %v6976, %v6972
  %v7345 = vpack.c.b16 %v6981, %v6977
  %v7346 = vpack.c.b16 %v6982, %v6978
  %v7347 = vpack.c.b16 %v6983, %v6979
  %v7348 = vpack.c.b16 %v6984, %v6980
  %v7349 = vpack.c.b16 %v6989, %v6985
  %v7350 = vpack.c.b16 %v6990, %v6986
  %v7351 = vpack.c.b16 %v6991, %v6987
  %v7352 = vpack.c.b16 %v6992, %v6988
  %v7353 = vpack.c.b16 %v6997, %v6993
  %v7354 = vpack.c.b16 %v6998, %v6994
  %v7355 = vpack.c.b16 %v6999, %v6995
  %v7356 = vpack.c.b16 %v7000, %v6996
  %v7357 = vpack.c.b16 %v7005, %v7001
  %v7358 = vpack.c.b16 %v7006, %v7002
  %v7359 = vpack.c.b16 %v7007, %v7003
  %v7360 = vpack.c.b16 %v7008, %v7004
  %v7361 = vpack.c.b16 %v7013, %v7009
  %v7362 = vpack.c.b16 %v7014, %v7010
  %v7363 = vpack.c.b16 %v7015, %v7011
  %v7364 = vpack.c.b16 %v7016, %v7012
  %v7365 = vpack.c.b16 %v7021, %v7017
  %v7366 = vpack.c.b16 %v7022, %v7018
  %v7367 = vpack.c.b16 %v7023, %v7019
  %v7368 = vpack.c.b16 %v7024, %v7020
  %v7369 = vpack.c.b16 %v7029, %v7025
  %v7370 = vpack.c.b16 %v7030, %v7026
  %v7371 = vpack.c.b16 %v7031, %v7027
  %v7372 = vpack.c.b16 %v7032, %v7028
  %v7373 = vpack.c.b16 %v7037, %v7033
  %v7374 = vpack.c.b16 %v7038, %v7034
  %v7375 = vpack.c.b16 %v7039, %v7035
  %v7376 = vpack.c.b16 %v7040, %v7036
  %v7377 = vpack.c.b16 %v7045, %v7041
  %v7378 = vpack.c.b16 %v7046, %v7042
  %v7379 = vpack.c.b16 %v7047, %v7043
  %v7380 = vpack.c.b16 %v7048, %v7044
  %v7381 = vpack.c.b16 %v7053, %v7049
  %v7382 = vpack.c.b16 %v7054, %v7050
  %v7383 = vpack.c.b16 %v7055, %v7051
  %v7384 = vpack.c.b16 %v7056, %v7052
  %v7385 = vpack.c.b16 %v7061, %v7057
  %v7386 = vpack.c.b16 %v7062, %v7058
  %v7387 = vpack.c.b16 %v7063, %v7059
  %v7388 = vpack.c.b16 %v7064, %v7060
  %v7389 = vpack.c.b16 %v7069, %v7065
  %v7390 = vpack.c.b16 %v7070, %v7066
  %v7391 = vpack.c.b16 %v7071, %v7067
  %v7392 = vpack.c.b16 %v7072, %v7068
  %v7393 = vpack.c.b16 %v7077, %v7073
  %v7394 = vpack.c.b16 %v7078, %v7074
  %v7395 = vpack.c.b16 %v7079, %v7075
  %v7396 = vpack.c.b16 %v7080, %v7076
  %v7397 = vpack.c.b16 %v7085, %v7081
  %v7398 = vpack.c.b16 %v7086, %v7082
  %v7399 = vpack.c.b16 %v7087, %v7083
  %v7400 = vpack.c.b16 %v7088, %v7084
  %v7401 = vpack.c.b16 %v7093, %v7089
  %v7402 = vpack.c.b16 %v7094, %v7090
  %v7403 = vpack.c.b16 %v7095, %v7091
  %v7404 = vpack.c.b16 %v7096, %v7092
  %v7405 = vpack.c.b16 %v7101, %v7097
  %v7406 = vpack.c.b16 %v7102, %v7098
  %v7407 = vpack.c.b16 %v7103, %v7099
  %v7408 = vpack.c.b16 %v7104, %v7100
  %v7409 = vpack.c.b16 %v7109, %v7105
  %v7410 = vpack.c.b16 %v7110, %v7106
  %v7411 = vpack.c.b16 %v7111, %v7107
  %v7412 = vpack.c.b16 %v7112, %v7108
  %v7413 = vpack.c.b16 %v7117, %v7113
  %v7414 = vpack.c.b16 %v7118, %v7114
  %v7415 = vpack.c.b16 %v7119, %v7115
  %v7416 = vpack.c.b16 %v7120, %v7116
  %v7417 = vpack.c.b16 %v7125, %v7121
  %v7418 = vpack.c.b16 %v7126, %v7122
  %v7419 = vpack.c.b16 %v7127, %v7123
  %v7420 = vpack.c.b16 %v7128, %v7124
  %v7421 = vpack.c.b16 %v7133, %v7129
  %v7422 = vpack.c.b16 %v7134, %v7130
  %v7423 = vpack.c.b16 %v7135, %v7131
  %v7424 = vpack.c.b16 %v7136, %v7132
  %v7425 = vpack.c.b16 %v7141, %v7137
  %v7426 = vpack.c.b16 %v7142, %v7138
  %v7427 = vpack.c.b16 %v7143, %v7139
  %v7428 = vpack.c.b16 %v7144, %v7140
  %v7429 = vpack.c.b16 %v7149, %v7145
  %v7430 = vpack.c.b16 %v7150, %v7146
  %v7431 = vpack.c.b16 %v7151, %v7147
  %v7432 = vpack.c.b16 %v7152, %v7148
  %v7433 = vpack.c.b16 %v7157, %v7153
  %v7434 = vpack.c.b16 %v7158, %v7154
  %v7435 = vpack.c.b16 %v7159, %v7155
  %v7436 = vpack.c.b16 %v7160, %v7156
  %v7437 = vpack.c.b16 %v7165, %v7161
  %v7438 = vpack.c.b16 %v7166, %v7162
  %v7439 = vpack.c.b16 %v7167, %v7163
  %v7440 = vpack.c.b16 %v7168, %v7164
  %v7441 = vpack.c.b16 %v7173, %v7169
  %v7442 = vpack.c.b16 %v7174, %v7170
  %v7443 = vpack.c.b16 %v7175, %v7171
  %v7444 = vpack.c.b16 %v7176, %v7172
  %v7445 = vpack.c.b16 %v7181, %v7177
  %v7446 = vpack.c.b16 %v7182, %v7178
  %v7447 = vpack.c.b16 %v7183, %v7179
  %v7448 = vpack.c.b16 %v7184, %v7180
  %v7449 = vpack.c.b16 %v7189, %v7185
  %v7450 = vpack.c.b16 %v7190, %v7186
  %v7451 = vpack.c.b16 %v7191, %v7187
  %v7452 = vpack.c.b16 %v7192, %v7188
  %v7453 = vpack.c.b16 %v7197, %v7193
  %v7454 = vpack.c.b16 %v7198, %v7194
  %v7455 = vpack.c.b16 %v7199, %v7195
  %v7456 = vpack.c.b16 %v7200, %v7196
  %7713 = vmatpush.bf16.msra.mxu0 %v7229
  %7714 = vmatpush.bf16.msra.mxu0 %v7225
  %7715 = vmatpush.bf16.msra.mxu0 %v7221
  %7716 = vmatpush.bf16.msra.mxu0 %v7217
  %7717 = vmatpush.bf16.msra.mxu0 %v7213
  %7718 = vmatpush.bf16.msra.mxu0 %v7209
  %7719 = vmatpush.bf16.msra.mxu0 %v7205
  %7720 = vmatpush.bf16.msra.mxu0 %v7201
  %7721 = vmatmul.bf16.gmra.mxu0 %v6133
  %v7722 = vpop.f32.mrf.mxu0
  %v7723 = vadd.f32 %v6425, %v7722
  %v7724 = vpop.f32.mrf.mxu0
  %v7725 = vadd.f32 %v6425, %v7724
  %7726 = vdwg.mxu0
  %7727 = vmatpush.bf16.msra.mxu0 %v7261
  %7728 = vmatpush.bf16.msra.mxu0 %v7257
  %7729 = vmatpush.bf16.msra.mxu0 %v7253
  %7730 = vmatpush.bf16.msra.mxu0 %v7249
  %7731 = vmatpush.bf16.msra.mxu0 %v7245
  %7732 = vmatpush.bf16.msra.mxu0 %v7241
  %7733 = vmatpush.bf16.msra.mxu0 %v7237
  %7734 = vmatpush.bf16.msra.mxu0 %v7233
  %7735 = vmatmul.bf16.gmra.mxu0 %v6134
  %v7736 = vpop.f32.mrf.mxu0
  %v7737 = vadd.f32 %v7723, %v7736
  %v7738 = vpop.f32.mrf.mxu0
  %v7739 = vadd.f32 %v7725, %v7738
  %7740 = vdwg.mxu0
  %7741 = vmatpush.bf16.msra.mxu0 %v7293
  %7742 = vmatpush.bf16.msra.mxu0 %v7289
  %7743 = vmatpush.bf16.msra.mxu0 %v7285
  %7744 = vmatpush.bf16.msra.mxu0 %v7281
  %7745 = vmatpush.bf16.msra.mxu0 %v7277
  %7746 = vmatpush.bf16.msra.mxu0 %v7273
  %7747 = vmatpush.bf16.msra.mxu0 %v7269
  %7748 = vmatpush.bf16.msra.mxu0 %v7265
  %7749 = vmatmul.bf16.gmra.mxu0 %v6143
  %v7750 = vpop.f32.mrf.mxu0
  %v7751 = vadd.f32 %v7737, %v7750
  %v7752 = vpop.f32.mrf.mxu0
  %v7753 = vadd.f32 %v7739, %v7752
  %7754 = vdwg.mxu0
  %7755 = vmatpush.bf16.msra.mxu0 %v7325
  %7756 = vmatpush.bf16.msra.mxu0 %v7321
  %7757 = vmatpush.bf16.msra.mxu0 %v7317
  %7758 = vmatpush.bf16.msra.mxu0 %v7313
  %7759 = vmatpush.bf16.msra.mxu0 %v7309
  %7760 = vmatpush.bf16.msra.mxu0 %v7305
  %7761 = vmatpush.bf16.msra.mxu0 %v7301
  %7762 = vmatpush.bf16.msra.mxu0 %v7297
  %7763 = vmatmul.bf16.gmra.mxu0 %v6144
  %v7764 = vpop.f32.mrf.mxu0
  %v7765 = vadd.f32 %v7751, %v7764
  %v7766 = vpop.f32.mrf.mxu0
  %v7767 = vadd.f32 %v7753, %v7766
  %7768 = vdwg.mxu0
  %7769 = vmatpush.bf16.msra.mxu0 %v7357
  %7770 = vmatpush.bf16.msra.mxu0 %v7353
  %7771 = vmatpush.bf16.msra.mxu0 %v7349
  %7772 = vmatpush.bf16.msra.mxu0 %v7345
  %7773 = vmatpush.bf16.msra.mxu0 %v7341
  %7774 = vmatpush.bf16.msra.mxu0 %v7337
  %7775 = vmatpush.bf16.msra.mxu0 %v7333
  %7776 = vmatpush.bf16.msra.mxu0 %v7329
  %7777 = vmatmul.bf16.gmra.mxu0 %v6153
  %v7778 = vpop.f32.mrf.mxu0
  %v7779 = vadd.f32 %v7765, %v7778
  %v7780 = vpop.f32.mrf.mxu0
  %v7781 = vadd.f32 %v7767, %v7780
  %7782 = vdwg.mxu0
  %7783 = vmatpush.bf16.msra.mxu0 %v7389
  %7784 = vmatpush.bf16.msra.mxu0 %v7385
  %7785 = vmatpush.bf16.msra.mxu0 %v7381
  %7786 = vmatpush.bf16.msra.mxu0 %v7377
  %7787 = vmatpush.bf16.msra.mxu0 %v7373
  %7788 = vmatpush.bf16.msra.mxu0 %v7369
  %7789 = vmatpush.bf16.msra.mxu0 %v7365
  %7790 = vmatpush.bf16.msra.mxu0 %v7361
  %7791 = vmatmul.bf16.gmra.mxu0 %v6154
  %v7792 = vpop.f32.mrf.mxu0
  %v7793 = vadd.f32 %v7779, %v7792
  %v7794 = vpop.f32.mrf.mxu0
  %v7795 = vadd.f32 %v7781, %v7794
  %7796 = vdwg.mxu0
  %7797 = vmatpush.bf16.msra.mxu0 %v7421
  %7798 = vmatpush.bf16.msra.mxu0 %v7417
  %7799 = vmatpush.bf16.msra.mxu0 %v7413
  %7800 = vmatpush.bf16.msra.mxu0 %v7409
  %7801 = vmatpush.bf16.msra.mxu0 %v7405
  %7802 = vmatpush.bf16.msra.mxu0 %v7401
  %7803 = vmatpush.bf16.msra.mxu0 %v7397
  %7804 = vmatpush.bf16.msra.mxu0 %v7393
  %7805 = vmatmul.bf16.gmra.mxu0 %v6163
  %v7806 = vpop.f32.mrf.mxu0
  %v7807 = vadd.f32 %v7793, %v7806
  %v7808 = vpop.f32.mrf.mxu0
  %v7809 = vadd.f32 %v7795, %v7808
  %7810 = vdwg.mxu0
  %7811 = vmatpush.bf16.msra.mxu0 %v7453
  %7812 = vmatpush.bf16.msra.mxu0 %v7449
  %7813 = vmatpush.bf16.msra.mxu0 %v7445
  %7814 = vmatpush.bf16.msra.mxu0 %v7441
  %7815 = vmatpush.bf16.msra.mxu0 %v7437
  %7816 = vmatpush.bf16.msra.mxu0 %v7433
  %7817 = vmatpush.bf16.msra.mxu0 %v7429
  %7818 = vmatpush.bf16.msra.mxu0 %v7425
  %7819 = vmatmul.bf16.gmra.mxu0 %v6164
  %v7820 = vpop.f32.mrf.mxu0
  %v7821 = vadd.f32 %v7807, %v7820
  %v7822 = vpop.f32.mrf.mxu0
  %v7823 = vadd.f32 %v7809, %v7822
  %7824 = vdwg.mxu0
  %7825 = vmatpush.bf16.msra.mxu0 %v7230
  %7826 = vmatpush.bf16.msra.mxu0 %v7226
  %7827 = vmatpush.bf16.msra.mxu0 %v7222
  %7828 = vmatpush.bf16.msra.mxu0 %v7218
  %7829 = vmatpush.bf16.msra.mxu0 %v7214
  %7830 = vmatpush.bf16.msra.mxu0 %v7210
  %7831 = vmatpush.bf16.msra.mxu0 %v7206
  %7832 = vmatpush.bf16.msra.mxu0 %v7202
  %7833 = vmatmul.bf16.gmra.mxu0 %v6133
  %v7834 = vpop.f32.mrf.mxu0
  %v7835 = vadd.f32 %v6426, %v7834
  %v7836 = vpop.f32.mrf.mxu0
  %v7837 = vadd.f32 %v6426, %v7836
  %7838 = vdwg.mxu0
  %7839 = vmatpush.bf16.msra.mxu0 %v7262
  %7840 = vmatpush.bf16.msra.mxu0 %v7258
  %7841 = vmatpush.bf16.msra.mxu0 %v7254
  %7842 = vmatpush.bf16.msra.mxu0 %v7250
  %7843 = vmatpush.bf16.msra.mxu0 %v7246
  %7844 = vmatpush.bf16.msra.mxu0 %v7242
  %7845 = vmatpush.bf16.msra.mxu0 %v7238
  %7846 = vmatpush.bf16.msra.mxu0 %v7234
  %7847 = vmatmul.bf16.gmra.mxu0 %v6134
  %v7848 = vpop.f32.mrf.mxu0
  %v7849 = vadd.f32 %v7835, %v7848
  %v7850 = vpop.f32.mrf.mxu0
  %v7851 = vadd.f32 %v7837, %v7850
  %7852 = vdwg.mxu0
  %7853 = vmatpush.bf16.msra.mxu0 %v7294
  %7854 = vmatpush.bf16.msra.mxu0 %v7290
  %7855 = vmatpush.bf16.msra.mxu0 %v7286
  %7856 = vmatpush.bf16.msra.mxu0 %v7282
  %7857 = vmatpush.bf16.msra.mxu0 %v7278
  %7858 = vmatpush.bf16.msra.mxu0 %v7274
  %7859 = vmatpush.bf16.msra.mxu0 %v7270
  %7860 = vmatpush.bf16.msra.mxu0 %v7266
  %7861 = vmatmul.bf16.gmra.mxu0 %v6143
  %v7862 = vpop.f32.mrf.mxu0
  %v7863 = vadd.f32 %v7849, %v7862
  %v7864 = vpop.f32.mrf.mxu0
  %v7865 = vadd.f32 %v7851, %v7864
  %7866 = vdwg.mxu0
  %7867 = vmatpush.bf16.msra.mxu0 %v7326
  %7868 = vmatpush.bf16.msra.mxu0 %v7322
  %7869 = vmatpush.bf16.msra.mxu0 %v7318
  %7870 = vmatpush.bf16.msra.mxu0 %v7314
  %7871 = vmatpush.bf16.msra.mxu0 %v7310
  %7872 = vmatpush.bf16.msra.mxu0 %v7306
  %7873 = vmatpush.bf16.msra.mxu0 %v7302
  %7874 = vmatpush.bf16.msra.mxu0 %v7298
  %7875 = vmatmul.bf16.gmra.mxu0 %v6144
  %v7876 = vpop.f32.mrf.mxu0
  %v7877 = vadd.f32 %v7863, %v7876
  %v7878 = vpop.f32.mrf.mxu0
  %v7879 = vadd.f32 %v7865, %v7878
  %7880 = vdwg.mxu0
  %7881 = vmatpush.bf16.msra.mxu0 %v7358
  %7882 = vmatpush.bf16.msra.mxu0 %v7354
  %7883 = vmatpush.bf16.msra.mxu0 %v7350
  %7884 = vmatpush.bf16.msra.mxu0 %v7346
  %7885 = vmatpush.bf16.msra.mxu0 %v7342
  %7886 = vmatpush.bf16.msra.mxu0 %v7338
  %7887 = vmatpush.bf16.msra.mxu0 %v7334
  %7888 = vmatpush.bf16.msra.mxu0 %v7330
  %7889 = vmatmul.bf16.gmra.mxu0 %v6153
  %v7890 = vpop.f32.mrf.mxu0
  %v7891 = vadd.f32 %v7877, %v7890
  %v7892 = vpop.f32.mrf.mxu0
  %v7893 = vadd.f32 %v7879, %v7892
  %7894 = vdwg.mxu0
  %7895 = vmatpush.bf16.msra.mxu0 %v7390
  %7896 = vmatpush.bf16.msra.mxu0 %v7386
  %7897 = vmatpush.bf16.msra.mxu0 %v7382
  %7898 = vmatpush.bf16.msra.mxu0 %v7378
  %7899 = vmatpush.bf16.msra.mxu0 %v7374
  %7900 = vmatpush.bf16.msra.mxu0 %v7370
  %7901 = vmatpush.bf16.msra.mxu0 %v7366
  %7902 = vmatpush.bf16.msra.mxu0 %v7362
  %7903 = vmatmul.bf16.gmra.mxu0 %v6154
  %v7904 = vpop.f32.mrf.mxu0
  %v7905 = vadd.f32 %v7891, %v7904
  %v7906 = vpop.f32.mrf.mxu0
  %v7907 = vadd.f32 %v7893, %v7906
  %7908 = vdwg.mxu0
  %7909 = vmatpush.bf16.msra.mxu0 %v7422
  %7910 = vmatpush.bf16.msra.mxu0 %v7418
  %7911 = vmatpush.bf16.msra.mxu0 %v7414
  %7912 = vmatpush.bf16.msra.mxu0 %v7410
  %7913 = vmatpush.bf16.msra.mxu0 %v7406
  %7914 = vmatpush.bf16.msra.mxu0 %v7402
  %7915 = vmatpush.bf16.msra.mxu0 %v7398
  %7916 = vmatpush.bf16.msra.mxu0 %v7394
  %7917 = vmatmul.bf16.gmra.mxu0 %v6163
  %v7918 = vpop.f32.mrf.mxu0
  %v7919 = vadd.f32 %v7905, %v7918
  %v7920 = vpop.f32.mrf.mxu0
  %v7921 = vadd.f32 %v7907, %v7920
  %7922 = vdwg.mxu0
  %7923 = vmatpush.bf16.msra.mxu0 %v7454
  %7924 = vmatpush.bf16.msra.mxu0 %v7450
  %7925 = vmatpush.bf16.msra.mxu0 %v7446
  %7926 = vmatpush.bf16.msra.mxu0 %v7442
  %7927 = vmatpush.bf16.msra.mxu0 %v7438
  %7928 = vmatpush.bf16.msra.mxu0 %v7434
  %7929 = vmatpush.bf16.msra.mxu0 %v7430
  %7930 = vmatpush.bf16.msra.mxu0 %v7426
  %7931 = vmatmul.bf16.gmra.mxu0 %v6164
  %v7932 = vpop.f32.mrf.mxu0
  %v7933 = vadd.f32 %v7919, %v7932
  %v7934 = vpop.f32.mrf.mxu0
  %v7935 = vadd.f32 %v7921, %v7934
  %7936 = vdwg.mxu0
  %7937 = vmatpush.bf16.msra.mxu0 %v7231
  %7938 = vmatpush.bf16.msra.mxu0 %v7227
  %7939 = vmatpush.bf16.msra.mxu0 %v7223
  %7940 = vmatpush.bf16.msra.mxu0 %v7219
  %7941 = vmatpush.bf16.msra.mxu0 %v7215
  %7942 = vmatpush.bf16.msra.mxu0 %v7211
  %7943 = vmatpush.bf16.msra.mxu0 %v7207
  %7944 = vmatpush.bf16.msra.mxu0 %v7203
  %7945 = vmatmul.bf16.gmra.mxu0 %v6133
  %v7946 = vpop.f32.mrf.mxu0
  %v7947 = vadd.f32 %v6427, %v7946
  %v7948 = vpop.f32.mrf.mxu0
  %v7949 = vadd.f32 %v6427, %v7948
  %7950 = vdwg.mxu0
  %7951 = vmatpush.bf16.msra.mxu0 %v7263
  %7952 = vmatpush.bf16.msra.mxu0 %v7259
  %7953 = vmatpush.bf16.msra.mxu0 %v7255
  %7954 = vmatpush.bf16.msra.mxu0 %v7251
  %7955 = vmatpush.bf16.msra.mxu0 %v7247
  %7956 = vmatpush.bf16.msra.mxu0 %v7243
  %7957 = vmatpush.bf16.msra.mxu0 %v7239
  %7958 = vmatpush.bf16.msra.mxu0 %v7235
  %7959 = vmatmul.bf16.gmra.mxu0 %v6134
  %v7960 = vpop.f32.mrf.mxu0
  %v7961 = vadd.f32 %v7947, %v7960
  %v7962 = vpop.f32.mrf.mxu0
  %v7963 = vadd.f32 %v7949, %v7962
  %7964 = vdwg.mxu0
  %7965 = vmatpush.bf16.msra.mxu0 %v7295
  %7966 = vmatpush.bf16.msra.mxu0 %v7291
  %7967 = vmatpush.bf16.msra.mxu0 %v7287
  %7968 = vmatpush.bf16.msra.mxu0 %v7283
  %7969 = vmatpush.bf16.msra.mxu0 %v7279
  %7970 = vmatpush.bf16.msra.mxu0 %v7275
  %7971 = vmatpush.bf16.msra.mxu0 %v7271
  %7972 = vmatpush.bf16.msra.mxu0 %v7267
  %7973 = vmatmul.bf16.gmra.mxu0 %v6143
  %v7974 = vpop.f32.mrf.mxu0
  %v7975 = vadd.f32 %v7961, %v7974
  %v7976 = vpop.f32.mrf.mxu0
  %v7977 = vadd.f32 %v7963, %v7976
  %7978 = vdwg.mxu0
  %7979 = vmatpush.bf16.msra.mxu0 %v7327
  %7980 = vmatpush.bf16.msra.mxu0 %v7323
  %7981 = vmatpush.bf16.msra.mxu0 %v7319
  %7982 = vmatpush.bf16.msra.mxu0 %v7315
  %7983 = vmatpush.bf16.msra.mxu0 %v7311
  %7984 = vmatpush.bf16.msra.mxu0 %v7307
  %7985 = vmatpush.bf16.msra.mxu0 %v7303
  %7986 = vmatpush.bf16.msra.mxu0 %v7299
  %7987 = vmatmul.bf16.gmra.mxu0 %v6144
  %v7988 = vpop.f32.mrf.mxu0
  %v7989 = vadd.f32 %v7975, %v7988
  %v7990 = vpop.f32.mrf.mxu0
  %v7991 = vadd.f32 %v7977, %v7990
  %7992 = vdwg.mxu0
  %7993 = vmatpush.bf16.msra.mxu0 %v7359
  %7994 = vmatpush.bf16.msra.mxu0 %v7355
  %7995 = vmatpush.bf16.msra.mxu0 %v7351
  %7996 = vmatpush.bf16.msra.mxu0 %v7347
  %7997 = vmatpush.bf16.msra.mxu0 %v7343
  %7998 = vmatpush.bf16.msra.mxu0 %v7339
  %7999 = vmatpush.bf16.msra.mxu0 %v7335
  %8000 = vmatpush.bf16.msra.mxu0 %v7331
  %8001 = vmatmul.bf16.gmra.mxu0 %v6153
  %v8002 = vpop.f32.mrf.mxu0
  %v8003 = vadd.f32 %v7989, %v8002
  %v8004 = vpop.f32.mrf.mxu0
  %v8005 = vadd.f32 %v7991, %v8004
  %8006 = vdwg.mxu0
  %8007 = vmatpush.bf16.msra.mxu0 %v7391
  %8008 = vmatpush.bf16.msra.mxu0 %v7387
  %8009 = vmatpush.bf16.msra.mxu0 %v7383
  %8010 = vmatpush.bf16.msra.mxu0 %v7379
  %8011 = vmatpush.bf16.msra.mxu0 %v7375
  %8012 = vmatpush.bf16.msra.mxu0 %v7371
  %8013 = vmatpush.bf16.msra.mxu0 %v7367
  %8014 = vmatpush.bf16.msra.mxu0 %v7363
  %8015 = vmatmul.bf16.gmra.mxu0 %v6154
  %v8016 = vpop.f32.mrf.mxu0
  %v8017 = vadd.f32 %v8003, %v8016
  %v8018 = vpop.f32.mrf.mxu0
  %v8019 = vadd.f32 %v8005, %v8018
  %8020 = vdwg.mxu0
  %8021 = vmatpush.bf16.msra.mxu0 %v7423
  %8022 = vmatpush.bf16.msra.mxu0 %v7419
  %8023 = vmatpush.bf16.msra.mxu0 %v7415
  %8024 = vmatpush.bf16.msra.mxu0 %v7411
  %8025 = vmatpush.bf16.msra.mxu0 %v7407
  %8026 = vmatpush.bf16.msra.mxu0 %v7403
  %8027 = vmatpush.bf16.msra.mxu0 %v7399
  %8028 = vmatpush.bf16.msra.mxu0 %v7395
  %8029 = vmatmul.bf16.gmra.mxu0 %v6163
  %v8030 = vpop.f32.mrf.mxu0
  %v8031 = vadd.f32 %v8017, %v8030
  %v8032 = vpop.f32.mrf.mxu0
  %v8033 = vadd.f32 %v8019, %v8032
  %8034 = vdwg.mxu0
  %8035 = vmatpush.bf16.msra.mxu0 %v7455
  %8036 = vmatpush.bf16.msra.mxu0 %v7451
  %8037 = vmatpush.bf16.msra.mxu0 %v7447
  %8038 = vmatpush.bf16.msra.mxu0 %v7443
  %8039 = vmatpush.bf16.msra.mxu0 %v7439
  %8040 = vmatpush.bf16.msra.mxu0 %v7435
  %8041 = vmatpush.bf16.msra.mxu0 %v7431
  %8042 = vmatpush.bf16.msra.mxu0 %v7427
  %8043 = vmatmul.bf16.gmra.mxu0 %v6164
  %v8044 = vpop.f32.mrf.mxu0
  %v8045 = vadd.f32 %v8031, %v8044
  %v8046 = vpop.f32.mrf.mxu0
  %v8047 = vadd.f32 %v8033, %v8046
  %8048 = vdwg.mxu0
  %8049 = vmatpush.bf16.msra.mxu0 %v7232
  %8050 = vmatpush.bf16.msra.mxu0 %v7228
  %8051 = vmatpush.bf16.msra.mxu0 %v7224
  %8052 = vmatpush.bf16.msra.mxu0 %v7220
  %8053 = vmatpush.bf16.msra.mxu0 %v7216
  %8054 = vmatpush.bf16.msra.mxu0 %v7212
  %8055 = vmatpush.bf16.msra.mxu0 %v7208
  %8056 = vmatpush.bf16.msra.mxu0 %v7204
  %8057 = vmatmul.bf16.gmra.mxu0 %v6133
  %v8058 = vpop.f32.mrf.mxu0
  %v8059 = vadd.f32 %v6428, %v8058
  %v8060 = vpop.f32.mrf.mxu0
  %v8061 = vadd.f32 %v6428, %v8060
  %8062 = vdwg.mxu0
  %8063 = vmatpush.bf16.msra.mxu0 %v7264
  %8064 = vmatpush.bf16.msra.mxu0 %v7260
  %8065 = vmatpush.bf16.msra.mxu0 %v7256
  %8066 = vmatpush.bf16.msra.mxu0 %v7252
  %8067 = vmatpush.bf16.msra.mxu0 %v7248
  %8068 = vmatpush.bf16.msra.mxu0 %v7244
  %8069 = vmatpush.bf16.msra.mxu0 %v7240
  %8070 = vmatpush.bf16.msra.mxu0 %v7236
  %8071 = vmatmul.bf16.gmra.mxu0 %v6134
  %v8072 = vpop.f32.mrf.mxu0
  %v8073 = vadd.f32 %v8059, %v8072
  %v8074 = vpop.f32.mrf.mxu0
  %v8075 = vadd.f32 %v8061, %v8074
  %8076 = vdwg.mxu0
  %8077 = vmatpush.bf16.msra.mxu0 %v7296
  %8078 = vmatpush.bf16.msra.mxu0 %v7292
  %8079 = vmatpush.bf16.msra.mxu0 %v7288
  %8080 = vmatpush.bf16.msra.mxu0 %v7284
  %8081 = vmatpush.bf16.msra.mxu0 %v7280
  %8082 = vmatpush.bf16.msra.mxu0 %v7276
  %8083 = vmatpush.bf16.msra.mxu0 %v7272
  %8084 = vmatpush.bf16.msra.mxu0 %v7268
  %8085 = vmatmul.bf16.gmra.mxu0 %v6143
  %v8086 = vpop.f32.mrf.mxu0
  %v8087 = vadd.f32 %v8073, %v8086
  %v8088 = vpop.f32.mrf.mxu0
  %v8089 = vadd.f32 %v8075, %v8088
  %8090 = vdwg.mxu0
  %8091 = vmatpush.bf16.msra.mxu0 %v7328
  %8092 = vmatpush.bf16.msra.mxu0 %v7324
  %8093 = vmatpush.bf16.msra.mxu0 %v7320
  %8094 = vmatpush.bf16.msra.mxu0 %v7316
  %8095 = vmatpush.bf16.msra.mxu0 %v7312
  %8096 = vmatpush.bf16.msra.mxu0 %v7308
  %8097 = vmatpush.bf16.msra.mxu0 %v7304
  %8098 = vmatpush.bf16.msra.mxu0 %v7300
  %8099 = vmatmul.bf16.gmra.mxu0 %v6144
  %v8100 = vpop.f32.mrf.mxu0
  %v8101 = vadd.f32 %v8087, %v8100
  %v8102 = vpop.f32.mrf.mxu0
  %v8103 = vadd.f32 %v8089, %v8102
  %8104 = vdwg.mxu0
  %8105 = vmatpush.bf16.msra.mxu0 %v7360
  %8106 = vmatpush.bf16.msra.mxu0 %v7356
  %8107 = vmatpush.bf16.msra.mxu0 %v7352
  %8108 = vmatpush.bf16.msra.mxu0 %v7348
  %8109 = vmatpush.bf16.msra.mxu0 %v7344
  %8110 = vmatpush.bf16.msra.mxu0 %v7340
  %8111 = vmatpush.bf16.msra.mxu0 %v7336
  %8112 = vmatpush.bf16.msra.mxu0 %v7332
  %8113 = vmatmul.bf16.gmra.mxu0 %v6153
  %v8114 = vpop.f32.mrf.mxu0
  %v8115 = vadd.f32 %v8101, %v8114
  %v8116 = vpop.f32.mrf.mxu0
  %v8117 = vadd.f32 %v8103, %v8116
  %8118 = vdwg.mxu0
  %8119 = vmatpush.bf16.msra.mxu0 %v7392
  %8120 = vmatpush.bf16.msra.mxu0 %v7388
  %8121 = vmatpush.bf16.msra.mxu0 %v7384
  %8122 = vmatpush.bf16.msra.mxu0 %v7380
  %8123 = vmatpush.bf16.msra.mxu0 %v7376
  %8124 = vmatpush.bf16.msra.mxu0 %v7372
  %8125 = vmatpush.bf16.msra.mxu0 %v7368
  %8126 = vmatpush.bf16.msra.mxu0 %v7364
  %8127 = vmatmul.bf16.gmra.mxu0 %v6154
  %v8128 = vpop.f32.mrf.mxu0
  %v8129 = vadd.f32 %v8115, %v8128
  %v8130 = vpop.f32.mrf.mxu0
  %v8131 = vadd.f32 %v8117, %v8130
  %8132 = vdwg.mxu0
  %8133 = vmatpush.bf16.msra.mxu0 %v7424
  %8134 = vmatpush.bf16.msra.mxu0 %v7420
  %8135 = vmatpush.bf16.msra.mxu0 %v7416
  %8136 = vmatpush.bf16.msra.mxu0 %v7412
  %8137 = vmatpush.bf16.msra.mxu0 %v7408
  %8138 = vmatpush.bf16.msra.mxu0 %v7404
  %8139 = vmatpush.bf16.msra.mxu0 %v7400
  %8140 = vmatpush.bf16.msra.mxu0 %v7396
  %8141 = vmatmul.bf16.gmra.mxu0 %v6163
  %v8142 = vpop.f32.mrf.mxu0
  %v8143 = vadd.f32 %v8129, %v8142
  %v8144 = vpop.f32.mrf.mxu0
  %v8145 = vadd.f32 %v8131, %v8144
  %8146 = vdwg.mxu0
  %8147 = vmatpush.bf16.msra.mxu0 %v7456
  %8148 = vmatpush.bf16.msra.mxu0 %v7452
  %8149 = vmatpush.bf16.msra.mxu0 %v7448
  %8150 = vmatpush.bf16.msra.mxu0 %v7444
  %8151 = vmatpush.bf16.msra.mxu0 %v7440
  %8152 = vmatpush.bf16.msra.mxu0 %v7436
  %8153 = vmatpush.bf16.msra.mxu0 %v7432
  %8154 = vmatpush.bf16.msra.mxu0 %v7428
  %8155 = vmatmul.bf16.gmra.mxu0 %v6164
  %v8156 = vpop.f32.mrf.mxu0
  %v8157 = vadd.f32 %v8143, %v8156
  %v8158 = vpop.f32.mrf.mxu0
  %v8159 = vadd.f32 %v8145, %v8158
  %8160 = vdwg.mxu0
  %v8161 = vmax.f32 %v7821, 0.0
  %v8162 = vmax.f32 %v7933, 0.0
  %v8163 = vmax.f32 %v8045, 0.0
  %v8164 = vmax.f32 %v8157, 0.0
  %v8165 = vmax.f32 %v7823, 0.0
  %v8166 = vmax.f32 %v7935, 0.0
  %v8167 = vmax.f32 %v8047, 0.0
  %v8168 = vmax.f32 %v8159, 0.0
  %v8169 = vpack.c.bf16 %v8165, %v8161
  %v8170 = vpack.c.bf16 %v8166, %v8162
  %v8171 = vpack.c.bf16 %v8167, %v8163
  %v8172 = vpack.c.bf16 %v8168, %v8164
  %v8173 = vld [vmem:[%s7] sm:$0xf]
  %v8174 = vld [vmem:[%s7 + $0x4] sm:$0xf]
  %v8175 = vld [vmem:[%s7 + $0x8] sm:$0xf]
  %v8176 = vld [vmem:[%s7 + $0xc] sm:$0xf]
  %v8177 = vld [vmem:[%s7 + $0x10] sm:$0xf]
  %v8178 = vld [vmem:[%s7 + $0x14] sm:$0xf]
  %v8179 = vld [vmem:[%s7 + $0x18] sm:$0xf]
  %v8180 = vld [vmem:[%s7 + $0x1c] sm:$0xf]
  %v8181 = vld [vmem:[%s7 + $0x20] sm:$0xf]
  %v8182 = vld [vmem:[%s7 + $0x24] sm:$0xf]
  %v8183 = vld [vmem:[%s7 + $0x28] sm:$0xf]
  %v8184 = vld [vmem:[%s7 + $0x2c] sm:$0xf]
  %v8185 = vld [vmem:[%s7 + $0x30] sm:$0xf]
  %v8186 = vld [vmem:[%s7 + $0x34] sm:$0xf]
  %v8187 = vld [vmem:[%s7 + $0x38] sm:$0xf]
  %v8188 = vld [vmem:[%s7 + $0x3c] sm:$0xf]
  %v8189 = vld [vmem:[%s7 + $0x40] sm:$0xf]
  %v8190 = vld [vmem:[%s7 + $0x44] sm:$0xf]
  %v8191 = vld [vmem:[%s7 + $0x48] sm:$0xf]
  %v8192 = vld [vmem:[%s7 + $0x4c] sm:$0xf]
  %v8193 = vld [vmem:[%s7 + $0x50] sm:$0xf]
  %v8194 = vld [vmem:[%s7 + $0x54] sm:$0xf]
  %v8195 = vld [vmem:[%s7 + $0x58] sm:$0xf]
  %v8196 = vld [vmem:[%s7 + $0x5c] sm:$0xf]
  %v8197 = vld [vmem:[%s7 + $0x60] sm:$0xf]
  %v8198 = vld [vmem:[%s7 + $0x64] sm:$0xf]
  %v8199 = vld [vmem:[%s7 + $0x68] sm:$0xf]
  %v8200 = vld [vmem:[%s7 + $0x6c] sm:$0xf]
  %v8201 = vld [vmem:[%s7 + $0x70] sm:$0xf]
  %v8202 = vld [vmem:[%s7 + $0x74] sm:$0xf]
  %v8203 = vld [vmem:[%s7 + $0x78] sm:$0xf]
  %v8204 = vld [vmem:[%s7 + $0x7c] sm:$0xf]
  %v8205 = vld [vmem:[%s7 + $0x80] sm:$0xf]
  %v8206 = vld [vmem:[%s7 + $0x84] sm:$0xf]
  %v8207 = vld [vmem:[%s7 + $0x88] sm:$0xf]
  %v8208 = vld [vmem:[%s7 + $0x8c] sm:$0xf]
  %v8209 = vld [vmem:[%s7 + $0x90] sm:$0xf]
  %v8210 = vld [vmem:[%s7 + $0x94] sm:$0xf]
  %v8211 = vld [vmem:[%s7 + $0x98] sm:$0xf]
  %v8212 = vld [vmem:[%s7 + $0x9c] sm:$0xf]
  %v8213 = vld [vmem:[%s7 + $0xa0] sm:$0xf]
  %v8214 = vld [vmem:[%s7 + $0xa4] sm:$0xf]
  %v8215 = vld [vmem:[%s7 + $0xa8] sm:$0xf]
  %v8216 = vld [vmem:[%s7 + $0xac] sm:$0xf]
  %v8217 = vld [vmem:[%s7 + $0xb0] sm:$0xf]
  %v8218 = vld [vmem:[%s7 + $0xb4] sm:$0xf]
  %v8219 = vld [vmem:[%s7 + $0xb8] sm:$0xf]
  %v8220 = vld [vmem:[%s7 + $0xbc] sm:$0xf]
  %v8221 = vld [vmem:[%s7 + $0xc0] sm:$0xf]
  %v8222 = vld [vmem:[%s7 + $0xc4] sm:$0xf]
  %v8223 = vld [vmem:[%s7 + $0xc8] sm:$0xf]
  %v8224 = vld [vmem:[%s7 + $0xcc] sm:$0xf]
  %v8225 = vld [vmem:[%s7 + $0xd0] sm:$0xf]
  %v8226 = vld [vmem:[%s7 + $0xd4] sm:$0xf]
  %v8227 = vld [vmem:[%s7 + $0xd8] sm:$0xf]
  %v8228 = vld [vmem:[%s7 + $0xdc] sm:$0xf]
  %v8229 = vld [vmem:[%s7 + $0xe0] sm:$0xf]
  %v8230 = vld [vmem:[%s7 + $0xe4] sm:$0xf]
  %v8231 = vld [vmem:[%s7 + $0xe8] sm:$0xf]
  %v8232 = vld [vmem:[%s7 + $0xec] sm:$0xf]
  %v8233 = vld [vmem:[%s7 + $0xf0] sm:$0xf]
  %v8234 = vld [vmem:[%s7 + $0xf4] sm:$0xf]
  %v8235 = vld [vmem:[%s7 + $0xf8] sm:$0xf]
  %v8236 = vld [vmem:[%s7 + $0xfc] sm:$0xf]
  %v8237 = vld [vmem:[%s8] sm:$0x1]
  %v8239 = vperm.slane %v8237, 0
  %v8305 = vunpack.c.l.b16 %v8173
  %v8306 = vunpack.c.l.b16 %v8174
  %v8307 = vunpack.c.l.b16 %v8175
  %v8308 = vunpack.c.l.b16 %v8176
  %v8309 = vunpack.c.l.b16 %v8177
  %v8310 = vunpack.c.l.b16 %v8178
  %v8311 = vunpack.c.l.b16 %v8179
  %v8312 = vunpack.c.l.b16 %v8180
  %v8313 = vunpack.c.l.b16 %v8181
  %v8314 = vunpack.c.l.b16 %v8182
  %v8315 = vunpack.c.l.b16 %v8183
  %v8316 = vunpack.c.l.b16 %v8184
  %v8317 = vunpack.c.l.b16 %v8185
  %v8318 = vunpack.c.l.b16 %v8186
  %v8319 = vunpack.c.l.b16 %v8187
  %v8320 = vunpack.c.l.b16 %v8188
  %v8321 = vunpack.c.l.b16 %v8189
  %v8322 = vunpack.c.l.b16 %v8190
  %v8323 = vunpack.c.l.b16 %v8191
  %v8324 = vunpack.c.l.b16 %v8192
  %v8325 = vunpack.c.l.b16 %v8193
  %v8326 = vunpack.c.l.b16 %v8194
  %v8327 = vunpack.c.l.b16 %v8195
  %v8328 = vunpack.c.l.b16 %v8196
  %v8329 = vunpack.c.l.b16 %v8197
  %v8330 = vunpack.c.l.b16 %v8198
  %v8331 = vunpack.c.l.b16 %v8199
  %v8332 = vunpack.c.l.b16 %v8200
  %v8333 = vunpack.c.l.b16 %v8201
  %v8334 = vunpack.c.l.b16 %v8202
  %v8335 = vunpack.c.l.b16 %v8203
  %v8336 = vunpack.c.l.b16 %v8204
  %v8337 = vunpack.c.l.b16 %v8205
  %v8338 = vunpack.c.l.b16 %v8206
  %v8339 = vunpack.c.l.b16 %v8207
  %v8340 = vunpack.c.l.b16 %v8208
  %v8341 = vunpack.c.l.b16 %v8209
  %v8342 = vunpack.c.l.b16 %v8210
  %v8343 = vunpack.c.l.b16 %v8211
  %v8344 = vunpack.c.l.b16 %v8212
  %v8345 = vunpack.c.l.b16 %v8213
  %v8346 = vunpack.c.l.b16 %v8214
  %v8347 = vunpack.c.l.b16 %v8215
  %v8348 = vunpack.c.l.b16 %v8216
  %v8349 = vunpack.c.l.b16 %v8217
  %v8350 = vunpack.c.l.b16 %v8218
  %v8351 = vunpack.c.l.b16 %v8219
  %v8352 = vunpack.c.l.b16 %v8220
  %v8353 = vunpack.c.l.b16 %v8221
  %v8354 = vunpack.c.l.b16 %v8222
  %v8355 = vunpack.c.l.b16 %v8223
  %v8356 = vunpack.c.l.b16 %v8224
  %v8357 = vunpack.c.l.b16 %v8225
  %v8358 = vunpack.c.l.b16 %v8226
  %v8359 = vunpack.c.l.b16 %v8227
  %v8360 = vunpack.c.l.b16 %v8228
  %v8361 = vunpack.c.l.b16 %v8229
  %v8362 = vunpack.c.l.b16 %v8230
  %v8363 = vunpack.c.l.b16 %v8231
  %v8364 = vunpack.c.l.b16 %v8232
  %v8365 = vunpack.c.l.b16 %v8233
  %v8366 = vunpack.c.l.b16 %v8234
  %v8367 = vunpack.c.l.b16 %v8235
  %v8368 = vunpack.c.l.b16 %v8236
  %v8369 = vpack.c.b16 %v8306, %v8305
  %v8370 = vpack.c.b16 %v8308, %v8307
  %v8371 = vpack.c.b16 %v8310, %v8309
  %v8372 = vpack.c.b16 %v8312, %v8311
  %v8373 = vpack.c.b16 %v8314, %v8313
  %v8374 = vpack.c.b16 %v8316, %v8315
  %v8375 = vpack.c.b16 %v8318, %v8317
  %v8376 = vpack.c.b16 %v8320, %v8319
  %v8377 = vpack.c.b16 %v8322, %v8321
  %v8378 = vpack.c.b16 %v8324, %v8323
  %v8379 = vpack.c.b16 %v8326, %v8325
  %v8380 = vpack.c.b16 %v8328, %v8327
  %v8381 = vpack.c.b16 %v8330, %v8329
  %v8382 = vpack.c.b16 %v8332, %v8331
  %v8383 = vpack.c.b16 %v8334, %v8333
  %v8384 = vpack.c.b16 %v8336, %v8335
  %v8385 = vpack.c.b16 %v8338, %v8337
  %v8386 = vpack.c.b16 %v8340, %v8339
  %v8387 = vpack.c.b16 %v8342, %v8341
  %v8388 = vpack.c.b16 %v8344, %v8343
  %v8389 = vpack.c.b16 %v8346, %v8345
  %v8390 = vpack.c.b16 %v8348, %v8347
  %v8391 = vpack.c.b16 %v8350, %v8349
  %v8392 = vpack.c.b16 %v8352, %v8351
  %v8393 = vpack.c.b16 %v8354, %v8353
  %v8394 = vpack.c.b16 %v8356, %v8355
  %v8395 = vpack.c.b16 %v8358, %v8357
  %v8396 = vpack.c.b16 %v8360, %v8359
  %v8397 = vpack.c.b16 %v8362, %v8361
  %v8398 = vpack.c.b16 %v8364, %v8363
  %v8399 = vpack.c.b16 %v8366, %v8365
  %v8400 = vpack.c.b16 %v8368, %v8367
  %8433 = vmatpush.bf16.msra.mxu0 %v8376
  %8434 = vmatpush.bf16.msra.mxu0 %v8375
  %8435 = vmatpush.bf16.msra.mxu0 %v8374
  %8436 = vmatpush.bf16.msra.mxu0 %v8373
  %8437 = vmatpush.bf16.msra.mxu0 %v8372
  %8438 = vmatpush.bf16.msra.mxu0 %v8371
  %8439 = vmatpush.bf16.msra.mxu0 %v8370
  %8440 = vmatpush.bf16.msra.mxu0 %v8369
  %8441 = vmatmul.bf16.gmra.mxu0 %v8169
  %v8442 = vpop.f32.mrf.mxu0
  %v8443 = vadd.f32 %v8239, %v8442
  %v8444 = vpop.f32.mrf.mxu0
  %v8445 = vadd.f32 %v8239, %v8444
  %8446 = vdwg.mxu0
  %8447 = vmatpush.bf16.msra.mxu0 %v8384
  %8448 = vmatpush.bf16.msra.mxu0 %v8383
  %8449 = vmatpush.bf16.msra.mxu0 %v8382
  %8450 = vmatpush.bf16.msra.mxu0 %v8381
  %8451 = vmatpush.bf16.msra.mxu0 %v8380
  %8452 = vmatpush.bf16.msra.mxu0 %v8379
  %8453 = vmatpush.bf16.msra.mxu0 %v8378
  %8454 = vmatpush.bf16.msra.mxu0 %v8377
  %8455 = vmatmul.bf16.gmra.mxu0 %v8170
  %v8456 = vpop.f32.mrf.mxu0
  %v8457 = vadd.f32 %v8443, %v8456
  %v8458 = vpop.f32.mrf.mxu0
  %v8459 = vadd.f32 %v8445, %v8458
  %8460 = vdwg.mxu0
  %8461 = vmatpush.bf16.msra.mxu0 %v8392
  %8462 = vmatpush.bf16.msra.mxu0 %v8391
  %8463 = vmatpush.bf16.msra.mxu0 %v8390
  %8464 = vmatpush.bf16.msra.mxu0 %v8389
  %8465 = vmatpush.bf16.msra.mxu0 %v8388
  %8466 = vmatpush.bf16.msra.mxu0 %v8387
  %8467 = vmatpush.bf16.msra.mxu0 %v8386
  %8468 = vmatpush.bf16.msra.mxu0 %v8385
  %8469 = vmatmul.bf16.gmra.mxu0 %v8171
  %v8470 = vpop.f32.mrf.mxu0
  %v8471 = vadd.f32 %v8457, %v8470
  %v8472 = vpop.f32.mrf.mxu0
  %v8473 = vadd.f32 %v8459, %v8472
  %8474 = vdwg.mxu0
  %8475 = vmatpush.bf16.msra.mxu0 %v8400
  %8476 = vmatpush.bf16.msra.mxu0 %v8399
  %8477 = vmatpush.bf16.msra.mxu0 %v8398
  %8478 = vmatpush.bf16.msra.mxu0 %v8397
  %8479 = vmatpush.bf16.msra.mxu0 %v8396
  %8480 = vmatpush.bf16.msra.mxu0 %v8395
  %8481 = vmatpush.bf16.msra.mxu0 %v8394
  %8482 = vmatpush.bf16.msra.mxu0 %v8393
  %8483 = vmatmul.bf16.gmra.mxu0 %v8172
  %v8484 = vpop.f32.mrf.mxu0
  %v8485 = vadd.f32 %v8471, %v8484
  %v8486 = vpop.f32.mrf.mxu0
  %v8487 = vadd.f32 %v8473, %v8486
  %8488 = vdwg.mxu0
  %8489 = vmax.xlane.f32.xlu0 %v8485
  %v8490 = vpop.xlane.xlu0 %8489
  %8491 = vmax.xlane.f32.xlu0 %v8487
  %v8492 = vpop.xlane.xlu0 %8491
  %v8493 = vsub.f32 %v8485, %v8490
  %v8494 = vsub.f32 %v8487, %v8492
  %v8495 = vmul.f32 %v8493, 1.442695
  %v8496 = vpow.pop %v8495
  %v8497 = vmul.f32 %v8494, 1.442695
  %v8498 = vpow.pop %v8497
  %8499 = vadd.xlane.f32.xlu0 %v8496
  %v8500 = vpop.xlane.xlu0 %8499
  %8501 = vadd.xlane.f32.xlu0 %v8498
  %v8502 = vpop.xlane.xlu0 %8501
  %v8503 = vrcp.pop %v8500
  %v8504 = vrcp.pop %v8502
  %v8505 = vmul.f32 %v8496, %v8503
  %v8506 = vmul.f32 %v8498, %v8504
  %8507 = vst [vmem:[%s9] sm:$0xff] %v8505
  %8508 = vst [vmem:[%s9 + $0x8] sm:$0xff] %v8506
  // Predicated region
  $region38: #{net_forward.1} parent=0 // pred_check
    _
  $region39: #{net_forward.1} parent=0 // pred_check_branch
    %8510 = sbr.rel (0) target = $region41
  $region40: #{net_forward.1} parent=0 // pred_region
    _
  $region41: #{net_forward.1} parent=0 // pred_fallthru
    _
  // Predicated region
  $region42: #{net_forward.1} parent=0 // pred_check
    _
  $region43: #{net_forward.1} parent=0 // pred_check_branch
    %8512 = sbr.rel (0) target = $region45
  $region44: #{net_forward.1} parent=0 // pred_region
    _
  $region45: #{net_forward.1} parent=0 // pred_fallthru
    _

</llo_original>
